<compile_context>
chip_gen: v5e
topology: v5e:2x2
jax: 0.10.0
libtpu: 0.0.40
codegen_flags: <defaults>
</compile_context>

<pallas_src>
import functools
import numpy as np
import jax
import jax.numpy as jnp
from jax.experimental import pallas as pl
from jax.experimental.pallas import tpu as pltpu

EPS = 1e-5


# ---------------------------------------------------------------------------
# The single fused kernel
# ---------------------------------------------------------------------------
def _encdec_kernel(s1_ref, s2_ref, s3_ref, m2t_ref,
                   w1_ref, w2_ref, w3_ref, w4_ref,
                   g1_ref, b1_ref, g2_ref, b2_ref, g3_ref, b3_ref, g4_ref, b4_ref,
                   x_ref, out_ref,
                   a1_ref, a2_ref, a3_ref):
    n_batch = x_ref.shape[0]

    def conv_bn_relu(in_ref, out_sref, s_ref, w_ref, g_ref, b_ref):
        n_taps, c_in, c_out = w_ref.shape
        p_out = out_sref.shape[1]

        # --- 3x3 / stride-2 / pad-1 conv: per tap, gather matmul + channel-mix matmul ---
        for n in range(n_batch):
            a = in_ref[n]                                              # [P_in, C_in]
            acc = jnp.zeros((p_out, c_out), jnp.float32)
            for t in range(n_taps):
                g_t = jnp.dot(s_ref[t], a,
                              preferred_element_type=jnp.float32)      # [P_out, C_in]
                if c_in == 1:
                    # outer product -> cheap VPU broadcast-multiply, no K=1 matmul
                    acc = acc + g_t * w_ref[t]
                else:
                    acc = acc + jnp.dot(g_t, w_ref[t],
                                        preferred_element_type=jnp.float32)
            out_sref[n] = acc

        # --- BatchNorm (training-mode stats over N*H*W, biased var) + ReLU, in place ---
        denom = float(n_batch * p_out)
        total = jnp.zeros((1, c_out), jnp.float32)
        for n in range(n_batch):
            total = total + jnp.sum(out_sref[n], axis=0, keepdims=True)
        mean = total * (1.0 / denom)
        ssq = jnp.zeros((1, c_out), jnp.float32)
        for n in range(n_batch):
            d = out_sref[n] - mean
            ssq = ssq + jnp.sum(d * d, axis=0, keepdims=True)
        inv_std = jax.lax.rsqrt(ssq * (1.0 / denom) + EPS)
        scale = g_ref[...] * inv_std                                   # [1, C_out]
        shift = b_ref[...] - mean * scale
        for n in range(n_batch):
            out_sref[n] = jnp.maximum(out_sref[n] * scale + shift, 0.0)

    # encoder: conv1 -> bn1 -> relu, conv2 -> bn2 -> relu, conv3 -> bn3 -> relu
    conv_bn_relu(x_ref, a1_ref, s1_ref, w1_ref, g1_ref, b1_ref)
    conv_bn_relu(a1_ref, a2_ref, s2_ref, w2_ref, g2_ref, b2_ref)
    conv_bn_relu(a2_ref, a3_ref, s3_ref, w3_ref, g3_ref, b3_ref)

    # --- decoder head: 1x1 conv (64->1) BEFORE the bilinear x8 upsample (commutes),
    #     then the batch-shared upsample operator -> lane-dense [1, Ho*Wo] row per batch ---
    for n in range(n_batch):
        # y_row[0, p] = sum_k w4[0, k] * a3[n][p, k]   (contract last dims, q @ k.T style)
        y_row = jax.lax.dot_general(
            w4_ref[...], a3_ref[n],
            dimension_numbers=(((1,), (1,)), ((), ())),
            preferred_element_type=jnp.float32)                        # [1, h3*w3]
        out_ref[n] = jnp.dot(y_row, m2t_ref[...],
                             preferred_element_type=jnp.float32)       # [1, Ho*Wo]

    # --- BatchNorm4 (single channel, stats over N*Ho*Wo) + ReLU, lane-dense ---
    q = out_ref.shape[2]
    denom4 = float(n_batch * q)
    tot4 = jnp.zeros((1, 1), jnp.float32)
    for n in range(n_batch):
        tot4 = tot4 + jnp.sum(out_ref[n], axis=1, keepdims=True)
    mean4 = tot4 * (1.0 / denom4)
    ssq4 = jnp.zeros((1, 1), jnp.float32)
    for n in range(n_batch):
        d = out_ref[n] - mean4
        ssq4 = ssq4 + jnp.sum(d * d, axis=1, keepdims=True)
    inv4 = jax.lax.rsqrt(ssq4 * (1.0 / denom4) + EPS)
    scale4 = g4_ref[...] * inv4
    shift4 = b4_ref[...] - mean4 * scale4
    for n in range(n_batch):
        out_ref[n] = jnp.maximum(out_ref[n] * scale4 + shift4, 0.0)


# ---------------------------------------------------------------------------
# Compile-time constant operators (numpy -> folded into the executable under jit)
# ---------------------------------------------------------------------------
def _tap_select_matrices(h, w):
    """S[t, p_out, p_in] 0/1 gather matrices for a 3x3 / stride-2 / pad-1 conv on (h, w)."""
    ho, wo = h // 2, w // 2
    s = np.zeros((9, ho * wo, h * w), np.float32)
    for ki in range(3):
        for kj in range(3):
            t = ki * 3 + kj
            for i in range(ho):
                r = 2 * i + ki - 1
                if r < 0 or r >= h:
                    continue                      # zero padding row
                for j in range(wo):
                    c = 2 * j + kj - 1
                    if c < 0 or c >= w:
                        continue                  # zero padding col
                    s[t, i * wo + j, r * w + c] = 1.0
    return s


def _bilinear_matrix(in_size, scale):
    """1-D interpolation matrix of nn.Upsample(mode='bilinear', align_corners=False)."""
    out_size = in_size * scale
    j = np.arange(out_size, dtype=np.float64)
    src = np.maximum((j + 0.5) / scale - 0.5, 0.0)
    x0 = np.minimum(np.floor(src).astype(np.int64), in_size - 1)
    x1 = np.minimum(x0 + 1, in_size - 1)
    w1 = src - x0
    w0 = 1.0 - w1
    m = np.zeros((out_size, in_size), np.float32)
    m[np.arange(out_size), x0] += w0.astype(np.float32)
    m[np.arange(out_size), x1] += w1.astype(np.float32)
    return m


# ---------------------------------------------------------------------------
# Parameters (kernel-layout weights; PyTorch default BN affine init)
# ---------------------------------------------------------------------------
def _torch_conv_w_to_taps(w):
    # PyTorch [Cout, Cin, kh, kw] -> [kh*kw, Cin, Cout] (tap-major, matches S_t ordering)
    co, ci, kh, kw = w.shape
    return jnp.transpose(w, (2, 3, 1, 0)).reshape(kh * kw, ci, co)


def init_params(key):
    ks = jax.random.split(key, 4)

    def nrm(k, shape, s=0.1):
        return s * jax.random.normal(k, shape, dtype=jnp.float32)

    p = {}
    p["w1"] = _torch_conv_w_to_taps(nrm(ks[0], (16, 1, 3, 3)))     # [9, 1, 16]
    p["w2"] = _torch_conv_w_to_taps(nrm(ks[1], (32, 16, 3, 3)))    # [9, 16, 32]
    p["w3"] = _torch_conv_w_to_taps(nrm(ks[2], (64, 32, 3, 3)))    # [9, 32, 64]
    p["w4"] = nrm(ks[3], (1, 64, 1, 1)).reshape(1, 64)             # [Cout=1, Cin=64]
    # NOTE: conv biases are intentionally omitted -- each conv feeds a training-mode
    # BatchNorm whose batch-mean subtraction cancels any per-channel constant exactly,
    # so the forward output is identical with or without them.
    # BatchNorm affine params (PyTorch default init: weight=1, bias=0), stored as [1, C].
    for i, c in zip((1, 2, 3, 4), (16, 32, 64, 1)):
        p[f"g{i}"] = jnp.ones((1, c), jnp.float32)
        p[f"be{i}"] = jnp.zeros((1, c), jnp.float32)
    return p


# ---------------------------------------------------------------------------
# Forward wrapper: one pallas_call, two free reshapes outside the kernel
# ---------------------------------------------------------------------------
@functools.partial(jax.jit, static_argnames=("scale",))
def encdec_forward(x_nchw, params, scale=8):
    n, c_in, h0, w0 = x_nchw.shape
    assert c_in == 1
    h1, w1 = h0 // 2, w0 // 2
    h2, w2 = h1 // 2, w1 // 2
    h3, w3 = h2 // 2, w2 // 2
    ho, wo = h3 * scale, w3 * scale

    # constant operators (host numpy at trace time -> baked into the jitted executable)
    s1 = jnp.asarray(_tap_select_matrices(h0, w0))                 # [9, 64, 256]
    s2 = jnp.asarray(_tap_select_matrices(h1, w1))                 # [9, 16,  64]
    s3 = jnp.asarray(_tap_select_matrices(h2, w2))                 # [9,  4,  16]
    # batch-shared bilinear x8 operator, built from the separable 1-D factors
    m2t = jnp.asarray(
        np.kron(_bilinear_matrix(h3, scale), _bilinear_matrix(w3, scale)).T)  # [4, 256]

    x_flat = x_nchw.astype(jnp.float32).reshape(n, h0 * w0, 1)     # NCHW(C=1) -> [N, H*W, 1]

    # advisory cost estimate (compile-time Python arithmetic)
    macs = 0
    for (hh, ww, ci, co) in ((h0, w0, 1, 16), (h1, w1, 16, 32), (h2, w2, 32, 64)):
        po, pi = (hh // 2) * (ww // 2), hh * ww
        macs += n * 9 * (po * pi * ci + po * ci * co)
    macs += n * (h3 * w3 * 64 + h3 * w3 * ho * wo)
    in_bytes = 4 * (int(s1.size) + int(s2.size) + int(s3.size) + int(m2t.size)
                    + sum(int(np.prod(params[k].shape)) for k in params)
                    + n * h0 * w0)
    cost = pl.CostEstimate(flops=2 * macs, transcendentals=16 + 32 + 64 + 1,
                           bytes_accessed=in_bytes + 4 * n * ho * wo)

    vmem = pl.BlockSpec(memory_space=pltpu.MemorySpace.VMEM)
    out = pl.pallas_call(
        _encdec_kernel,
        out_shape=jax.ShapeDtypeStruct((n, 1, ho * wo), jnp.float32),
        in_specs=[vmem] * 17,
        out_specs=vmem,
        scratch_shapes=[
            pltpu.VMEM((n, h1 * w1, 16), jnp.float32),   # act1
            pltpu.VMEM((n, h2 * w2, 32), jnp.float32),   # act2
            pltpu.VMEM((n, h3 * w3, 64), jnp.float32),   # act3
        ],
        compiler_params=pltpu.CompilerParams(vmem_limit_bytes=32 * 1024 * 1024),
        cost_estimate=cost,
    )(s1, s2, s3, m2t,
      params["w1"], params["w2"], params["w3"], params["w4"],
      params["g1"], params["be1"], params["g2"], params["be2"],
      params["g3"], params["be3"], params["g4"], params["be4"],
      x_flat)

    return out.reshape(n, 1, ho, wo)                               # back to NCHW


if __name__ == "__main__":
    key = jax.random.PRNGKey(0)
    k_in, k_par = jax.random.split(key)
    # NCHW input like the PyTorch module: batch=2, channels=1, 16x16 spatial
    x = jax.random.normal(k_in, (2, 1, 16, 16), dtype=jnp.float32)
    params = init_params(k_par)

    out = encdec_forward(x, params)
    out = jax.block_until_ready(out)
    assert out.shape == (2, 1, 16, 16), out.shape
    assert bool(jnp.all(jnp.isfinite(out)))
    assert bool(jnp.all(out >= 0.0))   # ReLU output
    print("KERNEL_OK")
</pallas_src>

<mosaic_0001>
module attributes {stable_mosaic.version = 11 : i64} {
  func.func @_encdec_kernel(%arg0: memref<9x64x256xf32, #tpu.memory_space<vmem>>, %arg1: memref<9x16x64xf32, #tpu.memory_space<vmem>>, %arg2: memref<9x4x16xf32, #tpu.memory_space<vmem>>, %arg3: memref<4x256xf32, #tpu.memory_space<vmem>>, %arg4: memref<9x1x16xf32, #tpu.memory_space<vmem>>, %arg5: memref<9x16x32xf32, #tpu.memory_space<vmem>>, %arg6: memref<9x32x64xf32, #tpu.memory_space<vmem>>, %arg7: memref<1x64xf32, #tpu.memory_space<vmem>>, %arg8: memref<1x16xf32, #tpu.memory_space<vmem>>, %arg9: memref<1x16xf32, #tpu.memory_space<vmem>>, %arg10: memref<1x32xf32, #tpu.memory_space<vmem>>, %arg11: memref<1x32xf32, #tpu.memory_space<vmem>>, %arg12: memref<1x64xf32, #tpu.memory_space<vmem>>, %arg13: memref<1x64xf32, #tpu.memory_space<vmem>>, %arg14: memref<1x1xf32, #tpu.memory_space<vmem>>, %arg15: memref<1x1xf32, #tpu.memory_space<vmem>>, %arg16: memref<2x256x1xf32, #tpu.memory_space<vmem>>, %arg17: memref<2x1x256xf32, #tpu.memory_space<vmem>>, %arg18: memref<2x64x16xf32, #tpu.memory_space<vmem>>, %arg19: memref<2x16x32xf32, #tpu.memory_space<vmem>>, %arg20: memref<2x4x64xf32, #tpu.memory_space<vmem>>) attributes {dimension_semantics = [], scalar_prefetch = 0 : i64, scratch_operands = 3 : i64, tpu.core_type = #tpu.core_type<tc>} {
    %c0 = arith.constant 0 : index
    %c0_0 = arith.constant 0 : index
    %c0_1 = arith.constant 0 : index
    %0 = vector.load %arg16[%c0, %c0_0, %c0_1] : memref<2x256x1xf32, #tpu.memory_space<vmem>>, vector<1x256x1xf32>
    %1 = vector.shape_cast %0 : vector<1x256x1xf32> to vector<256x1xf32>
    %cst = arith.constant 0.000000e+00 : f32
    %2 = vector.broadcast %cst : f32 to vector<64x16xf32>
    %c0_2 = arith.constant 0 : index
    %c0_3 = arith.constant 0 : index
    %c0_4 = arith.constant 0 : index
    %3 = vector.load %arg0[%c0_2, %c0_3, %c0_4] : memref<9x64x256xf32, #tpu.memory_space<vmem>>, vector<1x64x256xf32>
    %4 = vector.shape_cast %3 : vector<1x64x256xf32> to vector<64x256xf32>
    %cst_5 = arith.constant dense<0.000000e+00> : vector<64x1xf32>
    %5 = tpu.matmul %4, %1, %cst_5 {dimension_numbers = #tpu.dot_dimension_numbers<[1], [0], [0], [1], [0, 0, 1, 1], [], []>} : vector<64x256xf32>, vector<256x1xf32>, vector<64x1xf32> -> vector<64x1xf32>
    %c0_6 = arith.constant 0 : index
    %c0_7 = arith.constant 0 : index
    %c0_8 = arith.constant 0 : index
    %6 = vector.load %arg4[%c0_6, %c0_7, %c0_8] : memref<9x1x16xf32, #tpu.memory_space<vmem>>, vector<1x1x16xf32>
    %7 = vector.shape_cast %6 : vector<1x1x16xf32> to vector<1x16xf32>
    %8 = vector.broadcast %5 : vector<64x1xf32> to vector<64x16xf32>
    %9 = vector.broadcast %7 : vector<1x16xf32> to vector<64x16xf32>
    %10 = arith.mulf %8, %9 : vector<64x16xf32>
    %11 = arith.addf %2, %10 : vector<64x16xf32>
    %c1 = arith.constant 1 : index
    %c0_9 = arith.constant 0 : index
    %c0_10 = arith.constant 0 : index
    %12 = vector.load %arg0[%c1, %c0_9, %c0_10] : memref<9x64x256xf32, #tpu.memory_space<vmem>>, vector<1x64x256xf32>
    %13 = vector.shape_cast %12 : vector<1x64x256xf32> to vector<64x256xf32>
    %cst_11 = arith.constant dense<0.000000e+00> : vector<64x1xf32>
    %14 = tpu.matmul %13, %1, %cst_11 {dimension_numbers = #tpu.dot_dimension_numbers<[1], [0], [0], [1], [0, 0, 1, 1], [], []>} : vector<64x256xf32>, vector<256x1xf32>, vector<64x1xf32> -> vector<64x1xf32>
    %c1_12 = arith.constant 1 : index
    %c0_13 = arith.constant 0 : index
    %c0_14 = arith.constant 0 : index
    %15 = vector.load %arg4[%c1_12, %c0_13, %c0_14] : memref<9x1x16xf32, #tpu.memory_space<vmem>>, vector<1x1x16xf32>
    %16 = vector.shape_cast %15 : vector<1x1x16xf32> to vector<1x16xf32>
    %17 = vector.broadcast %14 : vector<64x1xf32> to vector<64x16xf32>
    %18 = vector.broadcast %16 : vector<1x16xf32> to vector<64x16xf32>
    %19 = arith.mulf %17, %18 : vector<64x16xf32>
    %20 = arith.addf %11, %19 : vector<64x16xf32>
    %c2 = arith.constant 2 : index
    %c0_15 = arith.constant 0 : index
    %c0_16 = arith.constant 0 : index
    %21 = vector.load %arg0[%c2, %c0_15, %c0_16] : memref<9x64x256xf32, #tpu.memory_space<vmem>>, vector<1x64x256xf32>
    %22 = vector.shape_cast %21 : vector<1x64x256xf32> to vector<64x256xf32>
    %cst_17 = arith.constant dense<0.000000e+00> : vector<64x1xf32>
    %23 = tpu.matmul %22, %1, %cst_17 {dimension_numbers = #tpu.dot_dimension_numbers<[1], [0], [0], [1], [0, 0, 1, 1], [], []>} : vector<64x256xf32>, vector<256x1xf32>, vector<64x1xf32> -> vector<64x1xf32>
    %c2_18 = arith.constant 2 : index
    %c0_19 = arith.constant 0 : index
    %c0_20 = arith.constant 0 : index
    %24 = vector.load %arg4[%c2_18, %c0_19, %c0_20] : memref<9x1x16xf32, #tpu.memory_space<vmem>>, vector<1x1x16xf32>
    %25 = vector.shape_cast %24 : vector<1x1x16xf32> to vector<1x16xf32>
    %26 = vector.broadcast %23 : vector<64x1xf32> to vector<64x16xf32>
    %27 = vector.broadcast %25 : vector<1x16xf32> to vector<64x16xf32>
    %28 = arith.mulf %26, %27 : vector<64x16xf32>
    %29 = arith.addf %20, %28 : vector<64x16xf32>
    %c3 = arith.constant 3 : index
    %c0_21 = arith.constant 0 : index
    %c0_22 = arith.constant 0 : index
    %30 = vector.load %arg0[%c3, %c0_21, %c0_22] : memref<9x64x256xf32, #tpu.memory_space<vmem>>, vector<1x64x256xf32>
    %31 = vector.shape_cast %30 : vector<1x64x256xf32> to vector<64x256xf32>
    %cst_23 = arith.constant dense<0.000000e+00> : vector<64x1xf32>
    %32 = tpu.matmul %31, %1, %cst_23 {dimension_numbers = #tpu.dot_dimension_numbers<[1], [0], [0], [1], [0, 0, 1, 1], [], []>} : vector<64x256xf32>, vector<256x1xf32>, vector<64x1xf32> -> vector<64x1xf32>
    %c3_24 = arith.constant 3 : index
    %c0_25 = arith.constant 0 : index
    %c0_26 = arith.constant 0 : index
    %33 = vector.load %arg4[%c3_24, %c0_25, %c0_26] : memref<9x1x16xf32, #tpu.memory_space<vmem>>, vector<1x1x16xf32>
    %34 = vector.shape_cast %33 : vector<1x1x16xf32> to vector<1x16xf32>
    %35 = vector.broadcast %32 : vector<64x1xf32> to vector<64x16xf32>
    %36 = vector.broadcast %34 : vector<1x16xf32> to vector<64x16xf32>
    %37 = arith.mulf %35, %36 : vector<64x16xf32>
    %38 = arith.addf %29, %37 : vector<64x16xf32>
    %c4 = arith.constant 4 : index
    %c0_27 = arith.constant 0 : index
    %c0_28 = arith.constant 0 : index
    %39 = vector.load %arg0[%c4, %c0_27, %c0_28] : memref<9x64x256xf32, #tpu.memory_space<vmem>>, vector<1x64x256xf32>
    %40 = vector.shape_cast %39 : vector<1x64x256xf32> to vector<64x256xf32>
    %cst_29 = arith.constant dense<0.000000e+00> : vector<64x1xf32>
    %41 = tpu.matmul %40, %1, %cst_29 {dimension_numbers = #tpu.dot_dimension_numbers<[1], [0], [0], [1], [0, 0, 1, 1], [], []>} : vector<64x256xf32>, vector<256x1xf32>, vector<64x1xf32> -> vector<64x1xf32>
    %c4_30 = arith.constant 4 : index
    %c0_31 = arith.constant 0 : index
    %c0_32 = arith.constant 0 : index
    %42 = vector.load %arg4[%c4_30, %c0_31, %c0_32] : memref<9x1x16xf32, #tpu.memory_space<vmem>>, vector<1x1x16xf32>
    %43 = vector.shape_cast %42 : vector<1x1x16xf32> to vector<1x16xf32>
    %44 = vector.broadcast %41 : vector<64x1xf32> to vector<64x16xf32>
    %45 = vector.broadcast %43 : vector<1x16xf32> to vector<64x16xf32>
    %46 = arith.mulf %44, %45 : vector<64x16xf32>
    %47 = arith.addf %38, %46 : vector<64x16xf32>
    %c5 = arith.constant 5 : index
    %c0_33 = arith.constant 0 : index
    %c0_34 = arith.constant 0 : index
    %48 = vector.load %arg0[%c5, %c0_33, %c0_34] : memref<9x64x256xf32, #tpu.memory_space<vmem>>, vector<1x64x256xf32>
    %49 = vector.shape_cast %48 : vector<1x64x256xf32> to vector<64x256xf32>
    %cst_35 = arith.constant dense<0.000000e+00> : vector<64x1xf32>
    %50 = tpu.matmul %49, %1, %cst_35 {dimension_numbers = #tpu.dot_dimension_numbers<[1], [0], [0], [1], [0, 0, 1, 1], [], []>} : vector<64x256xf32>, vector<256x1xf32>, vector<64x1xf32> -> vector<64x1xf32>
    %c5_36 = arith.constant 5 : index
    %c0_37 = arith.constant 0 : index
    %c0_38 = arith.constant 0 : index
    %51 = vector.load %arg4[%c5_36, %c0_37, %c0_38] : memref<9x1x16xf32, #tpu.memory_space<vmem>>, vector<1x1x16xf32>
    %52 = vector.shape_cast %51 : vector<1x1x16xf32> to vector<1x16xf32>
    %53 = vector.broadcast %50 : vector<64x1xf32> to vector<64x16xf32>
    %54 = vector.broadcast %52 : vector<1x16xf32> to vector<64x16xf32>
    %55 = arith.mulf %53, %54 : vector<64x16xf32>
    %56 = arith.addf %47, %55 : vector<64x16xf32>
    %c6 = arith.constant 6 : index
    %c0_39 = arith.constant 0 : index
    %c0_40 = arith.constant 0 : index
    %57 = vector.load %arg0[%c6, %c0_39, %c0_40] : memref<9x64x256xf32, #tpu.memory_space<vmem>>, vector<1x64x256xf32>
    %58 = vector.shape_cast %57 : vector<1x64x256xf32> to vector<64x256xf32>
    %cst_41 = arith.constant dense<0.000000e+00> : vector<64x1xf32>
    %59 = tpu.matmul %58, %1, %cst_41 {dimension_numbers = #tpu.dot_dimension_numbers<[1], [0], [0], [1], [0, 0, 1, 1], [], []>} : vector<64x256xf32>, vector<256x1xf32>, vector<64x1xf32> -> vector<64x1xf32>
    %c6_42 = arith.constant 6 : index
    %c0_43 = arith.constant 0 : index
    %c0_44 = arith.constant 0 : index
    %60 = vector.load %arg4[%c6_42, %c0_43, %c0_44] : memref<9x1x16xf32, #tpu.memory_space<vmem>>, vector<1x1x16xf32>
    %61 = vector.shape_cast %60 : vector<1x1x16xf32> to vector<1x16xf32>
    %62 = vector.broadcast %59 : vector<64x1xf32> to vector<64x16xf32>
    %63 = vector.broadcast %61 : vector<1x16xf32> to vector<64x16xf32>
    %64 = arith.mulf %62, %63 : vector<64x16xf32>
    %65 = arith.addf %56, %64 : vector<64x16xf32>
    %c7 = arith.constant 7 : index
    %c0_45 = arith.constant 0 : index
    %c0_46 = arith.constant 0 : index
    %66 = vector.load %arg0[%c7, %c0_45, %c0_46] : memref<9x64x256xf32, #tpu.memory_space<vmem>>, vector<1x64x256xf32>
    %67 = vector.shape_cast %66 : vector<1x64x256xf32> to vector<64x256xf32>
    %cst_47 = arith.constant dense<0.000000e+00> : vector<64x1xf32>
    %68 = tpu.matmul %67, %1, %cst_47 {dimension_numbers = #tpu.dot_dimension_numbers<[1], [0], [0], [1], [0, 0, 1, 1], [], []>} : vector<64x256xf32>, vector<256x1xf32>, vector<64x1xf32> -> vector<64x1xf32>
    %c7_48 = arith.constant 7 : index
    %c0_49 = arith.constant 0 : index
    %c0_50 = arith.constant 0 : index
    %69 = vector.load %arg4[%c7_48, %c0_49, %c0_50] : memref<9x1x16xf32, #tpu.memory_space<vmem>>, vector<1x1x16xf32>
    %70 = vector.shape_cast %69 : vector<1x1x16xf32> to vector<1x16xf32>
    %71 = vector.broadcast %68 : vector<64x1xf32> to vector<64x16xf32>
    %72 = vector.broadcast %70 : vector<1x16xf32> to vector<64x16xf32>
    %73 = arith.mulf %71, %72 : vector<64x16xf32>
    %74 = arith.addf %65, %73 : vector<64x16xf32>
    %c8 = arith.constant 8 : index
    %c0_51 = arith.constant 0 : index
    %c0_52 = arith.constant 0 : index
    %75 = vector.load %arg0[%c8, %c0_51, %c0_52] : memref<9x64x256xf32, #tpu.memory_space<vmem>>, vector<1x64x256xf32>
    %76 = vector.shape_cast %75 : vector<1x64x256xf32> to vector<64x256xf32>
    %cst_53 = arith.constant dense<0.000000e+00> : vector<64x1xf32>
    %77 = tpu.matmul %76, %1, %cst_53 {dimension_numbers = #tpu.dot_dimension_numbers<[1], [0], [0], [1], [0, 0, 1, 1], [], []>} : vector<64x256xf32>, vector<256x1xf32>, vector<64x1xf32> -> vector<64x1xf32>
    %c8_54 = arith.constant 8 : index
    %c0_55 = arith.constant 0 : index
    %c0_56 = arith.constant 0 : index
    %78 = vector.load %arg4[%c8_54, %c0_55, %c0_56] : memref<9x1x16xf32, #tpu.memory_space<vmem>>, vector<1x1x16xf32>
    %79 = vector.shape_cast %78 : vector<1x1x16xf32> to vector<1x16xf32>
    %80 = vector.broadcast %77 : vector<64x1xf32> to vector<64x16xf32>
    %81 = vector.broadcast %79 : vector<1x16xf32> to vector<64x16xf32>
    %82 = arith.mulf %80, %81 : vector<64x16xf32>
    %83 = arith.addf %74, %82 : vector<64x16xf32>
    %c0_57 = arith.constant 0 : index
    %c0_58 = arith.constant 0 : index
    %c0_59 = arith.constant 0 : index
    %84 = vector.load %arg18[%c0_57, %c0_58, %c0_59] : memref<2x64x16xf32, #tpu.memory_space<vmem>>, vector<1x64x16xf32>
    %85 = vector.shape_cast %84 : vector<1x64x16xf32> to vector<64x16xf32>
    %86 = vector.shape_cast %83 : vector<64x16xf32> to vector<1x64x16xf32>
    tpu.vector_store %arg18[%c0_57, %c0_58, %c0_59], %86 {strides = array<i32>} : memref<2x64x16xf32, #tpu.memory_space<vmem>>, vector<1x64x16xf32>,
    %c1_60 = arith.constant 1 : index
    %c0_61 = arith.constant 0 : index
    %c0_62 = arith.constant 0 : index
    %87 = vector.load %arg16[%c1_60, %c0_61, %c0_62] : memref<2x256x1xf32, #tpu.memory_space<vmem>>, vector<1x256x1xf32>
    %88 = vector.shape_cast %87 : vector<1x256x1xf32> to vector<256x1xf32>
    %cst_63 = arith.constant 0.000000e+00 : f32
    %89 = vector.broadcast %cst_63 : f32 to vector<64x16xf32>
    %c0_64 = arith.constant 0 : index
    %c0_65 = arith.constant 0 : index
    %c0_66 = arith.constant 0 : index
    %90 = vector.load %arg0[%c0_64, %c0_65, %c0_66] : memref<9x64x256xf32, #tpu.memory_space<vmem>>, vector<1x64x256xf32>
    %91 = vector.shape_cast %90 : vector<1x64x256xf32> to vector<64x256xf32>
    %cst_67 = arith.constant dense<0.000000e+00> : vector<64x1xf32>
    %92 = tpu.matmul %91, %88, %cst_67 {dimension_numbers = #tpu.dot_dimension_numbers<[1], [0], [0], [1], [0, 0, 1, 1], [], []>} : vector<64x256xf32>, vector<256x1xf32>, vector<64x1xf32> -> vector<64x1xf32>
    %c0_68 = arith.constant 0 : index
    %c0_69 = arith.constant 0 : index
    %c0_70 = arith.constant 0 : index
    %93 = vector.load %arg4[%c0_68, %c0_69, %c0_70] : memref<9x1x16xf32, #tpu.memory_space<vmem>>, vector<1x1x16xf32>
    %94 = vector.shape_cast %93 : vector<1x1x16xf32> to vector<1x16xf32>
    %95 = vector.broadcast %92 : vector<64x1xf32> to vector<64x16xf32>
    %96 = vector.broadcast %94 : vector<1x16xf32> to vector<64x16xf32>
    %97 = arith.mulf %95, %96 : vector<64x16xf32>
    %98 = arith.addf %89, %97 : vector<64x16xf32>
    %c1_71 = arith.constant 1 : index
    %c0_72 = arith.constant 0 : index
    %c0_73 = arith.constant 0 : index
    %99 = vector.load %arg0[%c1_71, %c0_72, %c0_73] : memref<9x64x256xf32, #tpu.memory_space<vmem>>, vector<1x64x256xf32>
    %100 = vector.shape_cast %99 : vector<1x64x256xf32> to vector<64x256xf32>
    %cst_74 = arith.constant dense<0.000000e+00> : vector<64x1xf32>
    %101 = tpu.matmul %100, %88, %cst_74 {dimension_numbers = #tpu.dot_dimension_numbers<[1], [0], [0], [1], [0, 0, 1, 1], [], []>} : vector<64x256xf32>, vector<256x1xf32>, vector<64x1xf32> -> vector<64x1xf32>
    %c1_75 = arith.constant 1 : index
    %c0_76 = arith.constant 0 : index
    %c0_77 = arith.constant 0 : index
    %102 = vector.load %arg4[%c1_75, %c0_76, %c0_77] : memref<9x1x16xf32, #tpu.memory_space<vmem>>, vector<1x1x16xf32>
    %103 = vector.shape_cast %102 : vector<1x1x16xf32> to vector<1x16xf32>
    %104 = vector.broadcast %101 : vector<64x1xf32> to vector<64x16xf32>
    %105 = vector.broadcast %103 : vector<1x16xf32> to vector<64x16xf32>
    %106 = arith.mulf %104, %105 : vector<64x16xf32>
    %107 = arith.addf %98, %106 : vector<64x16xf32>
    %c2_78 = arith.constant 2 : index
    %c0_79 = arith.constant 0 : index
    %c0_80 = arith.constant 0 : index
    %108 = vector.load %arg0[%c2_78, %c0_79, %c0_80] : memref<9x64x256xf32, #tpu.memory_space<vmem>>, vector<1x64x256xf32>
    %109 = vector.shape_cast %108 : vector<1x64x256xf32> to vector<64x256xf32>
    %cst_81 = arith.constant dense<0.000000e+00> : vector<64x1xf32>
    %110 = tpu.matmul %109, %88, %cst_81 {dimension_numbers = #tpu.dot_dimension_numbers<[1], [0], [0], [1], [0, 0, 1, 1], [], []>} : vector<64x256xf32>, vector<256x1xf32>, vector<64x1xf32> -> vector<64x1xf32>
    %c2_82 = arith.constant 2 : index
    %c0_83 = arith.constant 0 : index
    %c0_84 = arith.constant 0 : index
    %111 = vector.load %arg4[%c2_82, %c0_83, %c0_84] : memref<9x1x16xf32, #tpu.memory_space<vmem>>, vector<1x1x16xf32>
    %112 = vector.shape_cast %111 : vector<1x1x16xf32> to vector<1x16xf32>
    %113 = vector.broadcast %110 : vector<64x1xf32> to vector<64x16xf32>
    %114 = vector.broadcast %112 : vector<1x16xf32> to vector<64x16xf32>
    %115 = arith.mulf %113, %114 : vector<64x16xf32>
    %116 = arith.addf %107, %115 : vector<64x16xf32>
    %c3_85 = arith.constant 3 : index
    %c0_86 = arith.constant 0 : index
    %c0_87 = arith.constant 0 : index
    %117 = vector.load %arg0[%c3_85, %c0_86, %c0_87] : memref<9x64x256xf32, #tpu.memory_space<vmem>>, vector<1x64x256xf32>
    %118 = vector.shape_cast %117 : vector<1x64x256xf32> to vector<64x256xf32>
    %cst_88 = arith.constant dense<0.000000e+00> : vector<64x1xf32>
    %119 = tpu.matmul %118, %88, %cst_88 {dimension_numbers = #tpu.dot_dimension_numbers<[1], [0], [0], [1], [0, 0, 1, 1], [], []>} : vector<64x256xf32>, vector<256x1xf32>, vector<64x1xf32> -> vector<64x1xf32>
    %c3_89 = arith.constant 3 : index
    %c0_90 = arith.constant 0 : index
    %c0_91 = arith.constant 0 : index
    %120 = vector.load %arg4[%c3_89, %c0_90, %c0_91] : memref<9x1x16xf32, #tpu.memory_space<vmem>>, vector<1x1x16xf32>
    %121 = vector.shape_cast %120 : vector<1x1x16xf32> to vector<1x16xf32>
    %122 = vector.broadcast %119 : vector<64x1xf32> to vector<64x16xf32>
    %123 = vector.broadcast %121 : vector<1x16xf32> to vector<64x16xf32>
    %124 = arith.mulf %122, %123 : vector<64x16xf32>
    %125 = arith.addf %116, %124 : vector<64x16xf32>
    %c4_92 = arith.constant 4 : index
    %c0_93 = arith.constant 0 : index
    %c0_94 = arith.constant 0 : index
    %126 = vector.load %arg0[%c4_92, %c0_93, %c0_94] : memref<9x64x256xf32, #tpu.memory_space<vmem>>, vector<1x64x256xf32>
    %127 = vector.shape_cast %126 : vector<1x64x256xf32> to vector<64x256xf32>
    %cst_95 = arith.constant dense<0.000000e+00> : vector<64x1xf32>
    %128 = tpu.matmul %127, %88, %cst_95 {dimension_numbers = #tpu.dot_dimension_numbers<[1], [0], [0], [1], [0, 0, 1, 1], [], []>} : vector<64x256xf32>, vector<256x1xf32>, vector<64x1xf32> -> vector<64x1xf32>
    %c4_96 = arith.constant 4 : index
    %c0_97 = arith.constant 0 : index
    %c0_98 = arith.constant 0 : index
    %129 = vector.load %arg4[%c4_96, %c0_97, %c0_98] : memref<9x1x16xf32, #tpu.memory_space<vmem>>, vector<1x1x16xf32>
    %130 = vector.shape_cast %129 : vector<1x1x16xf32> to vector<1x16xf32>
    %131 = vector.broadcast %128 : vector<64x1xf32> to vector<64x16xf32>
    %132 = vector.broadcast %130 : vector<1x16xf32> to vector<64x16xf32>
    %133 = arith.mulf %131, %132 : vector<64x16xf32>
    %134 = arith.addf %125, %133 : vector<64x16xf32>
    %c5_99 = arith.constant 5 : index
    %c0_100 = arith.constant 0 : index
    %c0_101 = arith.constant 0 : index
    %135 = vector.load %arg0[%c5_99, %c0_100, %c0_101] : memref<9x64x256xf32, #tpu.memory_space<vmem>>, vector<1x64x256xf32>
    %136 = vector.shape_cast %135 : vector<1x64x256xf32> to vector<64x256xf32>
    %cst_102 = arith.constant dense<0.000000e+00> : vector<64x1xf32>
    %137 = tpu.matmul %136, %88, %cst_102 {dimension_numbers = #tpu.dot_dimension_numbers<[1], [0], [0], [1], [0, 0, 1, 1], [], []>} : vector<64x256xf32>, vector<256x1xf32>, vector<64x1xf32> -> vector<64x1xf32>
    %c5_103 = arith.constant 5 : index
    %c0_104 = arith.constant 0 : index
    %c0_105 = arith.constant 0 : index
    %138 = vector.load %arg4[%c5_103, %c0_104, %c0_105] : memref<9x1x16xf32, #tpu.memory_space<vmem>>, vector<1x1x16xf32>
    %139 = vector.shape_cast %138 : vector<1x1x16xf32> to vector<1x16xf32>
    %140 = vector.broadcast %137 : vector<64x1xf32> to vector<64x16xf32>
    %141 = vector.broadcast %139 : vector<1x16xf32> to vector<64x16xf32>
    %142 = arith.mulf %140, %141 : vector<64x16xf32>
    %143 = arith.addf %134, %142 : vector<64x16xf32>
    %c6_106 = arith.constant 6 : index
    %c0_107 = arith.constant 0 : index
    %c0_108 = arith.constant 0 : index
    %144 = vector.load %arg0[%c6_106, %c0_107, %c0_108] : memref<9x64x256xf32, #tpu.memory_space<vmem>>, vector<1x64x256xf32>
    %145 = vector.shape_cast %144 : vector<1x64x256xf32> to vector<64x256xf32>
    %cst_109 = arith.constant dense<0.000000e+00> : vector<64x1xf32>
    %146 = tpu.matmul %145, %88, %cst_109 {dimension_numbers = #tpu.dot_dimension_numbers<[1], [0], [0], [1], [0, 0, 1, 1], [], []>} : vector<64x256xf32>, vector<256x1xf32>, vector<64x1xf32> -> vector<64x1xf32>
    %c6_110 = arith.constant 6 : index
    %c0_111 = arith.constant 0 : index
    %c0_112 = arith.constant 0 : index
    %147 = vector.load %arg4[%c6_110, %c0_111, %c0_112] : memref<9x1x16xf32, #tpu.memory_space<vmem>>, vector<1x1x16xf32>
    %148 = vector.shape_cast %147 : vector<1x1x16xf32> to vector<1x16xf32>
    %149 = vector.broadcast %146 : vector<64x1xf32> to vector<64x16xf32>
    %150 = vector.broadcast %148 : vector<1x16xf32> to vector<64x16xf32>
    %151 = arith.mulf %149, %150 : vector<64x16xf32>
    %152 = arith.addf %143, %151 : vector<64x16xf32>
    %c7_113 = arith.constant 7 : index
    %c0_114 = arith.constant 0 : index
    %c0_115 = arith.constant 0 : index
    %153 = vector.load %arg0[%c7_113, %c0_114, %c0_115] : memref<9x64x256xf32, #tpu.memory_space<vmem>>, vector<1x64x256xf32>
    %154 = vector.shape_cast %153 : vector<1x64x256xf32> to vector<64x256xf32>
    %cst_116 = arith.constant dense<0.000000e+00> : vector<64x1xf32>
    %155 = tpu.matmul %154, %88, %cst_116 {dimension_numbers = #tpu.dot_dimension_numbers<[1], [0], [0], [1], [0, 0, 1, 1], [], []>} : vector<64x256xf32>, vector<256x1xf32>, vector<64x1xf32> -> vector<64x1xf32>
    %c7_117 = arith.constant 7 : index
    %c0_118 = arith.constant 0 : index
    %c0_119 = arith.constant 0 : index
    %156 = vector.load %arg4[%c7_117, %c0_118, %c0_119] : memref<9x1x16xf32, #tpu.memory_space<vmem>>, vector<1x1x16xf32>
    %157 = vector.shape_cast %156 : vector<1x1x16xf32> to vector<1x16xf32>
    %158 = vector.broadcast %155 : vector<64x1xf32> to vector<64x16xf32>
    %159 = vector.broadcast %157 : vector<1x16xf32> to vector<64x16xf32>
    %160 = arith.mulf %158, %159 : vector<64x16xf32>
    %161 = arith.addf %152, %160 : vector<64x16xf32>
    %c8_120 = arith.constant 8 : index
    %c0_121 = arith.constant 0 : index
    %c0_122 = arith.constant 0 : index
    %162 = vector.load %arg0[%c8_120, %c0_121, %c0_122] : memref<9x64x256xf32, #tpu.memory_space<vmem>>, vector<1x64x256xf32>
    %163 = vector.shape_cast %162 : vector<1x64x256xf32> to vector<64x256xf32>
    %cst_123 = arith.constant dense<0.000000e+00> : vector<64x1xf32>
    %164 = tpu.matmul %163, %88, %cst_123 {dimension_numbers = #tpu.dot_dimension_numbers<[1], [0], [0], [1], [0, 0, 1, 1], [], []>} : vector<64x256xf32>, vector<256x1xf32>, vector<64x1xf32> -> vector<64x1xf32>
    %c8_124 = arith.constant 8 : index
    %c0_125 = arith.constant 0 : index
    %c0_126 = arith.constant 0 : index
    %165 = vector.load %arg4[%c8_124, %c0_125, %c0_126] : memref<9x1x16xf32, #tpu.memory_space<vmem>>, vector<1x1x16xf32>
    %166 = vector.shape_cast %165 : vector<1x1x16xf32> to vector<1x16xf32>
    %167 = vector.broadcast %164 : vector<64x1xf32> to vector<64x16xf32>
    %168 = vector.broadcast %166 : vector<1x16xf32> to vector<64x16xf32>
    %169 = arith.mulf %167, %168 : vector<64x16xf32>
    %170 = arith.addf %161, %169 : vector<64x16xf32>
    %c1_127 = arith.constant 1 : index
    %c0_128 = arith.constant 0 : index
    %c0_129 = arith.constant 0 : index
    %171 = vector.load %arg18[%c1_127, %c0_128, %c0_129] : memref<2x64x16xf32, #tpu.memory_space<vmem>>, vector<1x64x16xf32>
    %172 = vector.shape_cast %171 : vector<1x64x16xf32> to vector<64x16xf32>
    %173 = vector.shape_cast %170 : vector<64x16xf32> to vector<1x64x16xf32>
    tpu.vector_store %arg18[%c1_127, %c0_128, %c0_129], %173 {strides = array<i32>} : memref<2x64x16xf32, #tpu.memory_space<vmem>>, vector<1x64x16xf32>,
    %cst_130 = arith.constant 0.000000e+00 : f32
    %174 = vector.broadcast %cst_130 : f32 to vector<1x16xf32>
    %c0_131 = arith.constant 0 : index
    %c0_132 = arith.constant 0 : index
    %c0_133 = arith.constant 0 : index
    %175 = vector.load %arg18[%c0_131, %c0_132, %c0_133] : memref<2x64x16xf32, #tpu.memory_space<vmem>>, vector<1x64x16xf32>
    %176 = vector.shape_cast %175 : vector<1x64x16xf32> to vector<64x16xf32>
    %cst_134 = arith.constant dense<0.000000e+00> : vector<16xf32>
    %177 = vector.multi_reduction <add>, %176, %cst_134 [0] : vector<64x16xf32> to vector<16xf32>
    %178 = vector.shape_cast %177 : vector<16xf32> to vector<1x16xf32>
    %179 = arith.addf %174, %178 : vector<1x16xf32>
    %c1_135 = arith.constant 1 : index
    %c0_136 = arith.constant 0 : index
    %c0_137 = arith.constant 0 : index
    %180 = vector.load %arg18[%c1_135, %c0_136, %c0_137] : memref<2x64x16xf32, #tpu.memory_space<vmem>>, vector<1x64x16xf32>
    %181 = vector.shape_cast %180 : vector<1x64x16xf32> to vector<64x16xf32>
    %cst_138 = arith.constant dense<0.000000e+00> : vector<16xf32>
    %182 = vector.multi_reduction <add>, %181, %cst_138 [0] : vector<64x16xf32> to vector<16xf32>
    %183 = vector.shape_cast %182 : vector<16xf32> to vector<1x16xf32>
    %184 = arith.addf %179, %183 : vector<1x16xf32>
    %cst_139 = arith.constant 7.812500e-03 : f32
    %185 = vector.broadcast %cst_139 : f32 to vector<1x16xf32>
    %186 = arith.mulf %184, %185 : vector<1x16xf32>
    %cst_140 = arith.constant 0.000000e+00 : f32
    %187 = vector.broadcast %cst_140 : f32 to vector<1x16xf32>
    %c0_141 = arith.constant 0 : index
    %c0_142 = arith.constant 0 : index
    %c0_143 = arith.constant 0 : index
    %188 = vector.load %arg18[%c0_141, %c0_142, %c0_143] : memref<2x64x16xf32, #tpu.memory_space<vmem>>, vector<1x64x16xf32>
    %189 = vector.shape_cast %188 : vector<1x64x16xf32> to vector<64x16xf32>
    %190 = vector.broadcast %186 : vector<1x16xf32> to vector<64x16xf32>
    %191 = arith.subf %189, %190 : vector<64x16xf32>
    %192 = arith.mulf %191, %191 : vector<64x16xf32>
    %cst_144 = arith.constant dense<0.000000e+00> : vector<16xf32>
    %193 = vector.multi_reduction <add>, %192, %cst_144 [0] : vector<64x16xf32> to vector<16xf32>
    %194 = vector.shape_cast %193 : vector<16xf32> to vector<1x16xf32>
    %195 = arith.addf %187, %194 : vector<1x16xf32>
    %c1_145 = arith.constant 1 : index
    %c0_146 = arith.constant 0 : index
    %c0_147 = arith.constant 0 : index
    %196 = vector.load %arg18[%c1_145, %c0_146, %c0_147] : memref<2x64x16xf32, #tpu.memory_space<vmem>>, vector<1x64x16xf32>
    %197 = vector.shape_cast %196 : vector<1x64x16xf32> to vector<64x16xf32>
    %198 = vector.broadcast %186 : vector<1x16xf32> to vector<64x16xf32>
    %199 = arith.subf %197, %198 : vector<64x16xf32>
    %200 = arith.mulf %199, %199 : vector<64x16xf32>
    %cst_148 = arith.constant dense<0.000000e+00> : vector<16xf32>
    %201 = vector.multi_reduction <add>, %200, %cst_148 [0] : vector<64x16xf32> to vector<16xf32>
    %202 = vector.shape_cast %201 : vector<16xf32> to vector<1x16xf32>
    %203 = arith.addf %195, %202 : vector<1x16xf32>
    %cst_149 = arith.constant 7.812500e-03 : f32
    %204 = vector.broadcast %cst_149 : f32 to vector<1x16xf32>
    %205 = arith.mulf %203, %204 : vector<1x16xf32>
    %cst_150 = arith.constant 9.99999974E-6 : f32
    %206 = vector.broadcast %cst_150 : f32 to vector<1x16xf32>
    %207 = arith.addf %205, %206 : vector<1x16xf32>
    %208 = math.rsqrt %207 : vector<1x16xf32>
    %c0_151 = arith.constant 0 : index
    %c0_152 = arith.constant 0 : index
    %209 = vector.load %arg8[%c0_151, %c0_152] : memref<1x16xf32, #tpu.memory_space<vmem>>, vector<1x16xf32>
    %210 = arith.mulf %209, %208 : vector<1x16xf32>
    %c0_153 = arith.constant 0 : index
    %c0_154 = arith.constant 0 : index
    %211 = vector.load %arg9[%c0_153, %c0_154] : memref<1x16xf32, #tpu.memory_space<vmem>>, vector<1x16xf32>
    %212 = arith.mulf %186, %210 : vector<1x16xf32>
    %213 = arith.subf %211, %212 : vector<1x16xf32>
    %c0_155 = arith.constant 0 : index
    %c0_156 = arith.constant 0 : index
    %c0_157 = arith.constant 0 : index
    %214 = vector.load %arg18[%c0_155, %c0_156, %c0_157] : memref<2x64x16xf32, #tpu.memory_space<vmem>>, vector<1x64x16xf32>
    %215 = vector.shape_cast %214 : vector<1x64x16xf32> to vector<64x16xf32>
    %216 = vector.broadcast %210 : vector<1x16xf32> to vector<64x16xf32>
    %217 = arith.mulf %215, %216 : vector<64x16xf32>
    %218 = vector.broadcast %213 : vector<1x16xf32> to vector<64x16xf32>
    %219 = arith.addf %217, %218 : vector<64x16xf32>
    %cst_158 = arith.constant 0.000000e+00 : f32
    %220 = vector.broadcast %cst_158 : f32 to vector<64x16xf32>
    %221 = arith.maximumf %219, %220 : vector<64x16xf32>
    %c0_159 = arith.constant 0 : index
    %c0_160 = arith.constant 0 : index
    %c0_161 = arith.constant 0 : index
    %222 = vector.load %arg18[%c0_159, %c0_160, %c0_161] : memref<2x64x16xf32, #tpu.memory_space<vmem>>, vector<1x64x16xf32>
    %223 = vector.shape_cast %222 : vector<1x64x16xf32> to vector<64x16xf32>
    %224 = vector.shape_cast %221 : vector<64x16xf32> to vector<1x64x16xf32>
    tpu.vector_store %arg18[%c0_159, %c0_160, %c0_161], %224 {strides = array<i32>} : memref<2x64x16xf32, #tpu.memory_space<vmem>>, vector<1x64x16xf32>,
    %c1_162 = arith.constant 1 : index
    %c0_163 = arith.constant 0 : index
    %c0_164 = arith.constant 0 : index
    %225 = vector.load %arg18[%c1_162, %c0_163, %c0_164] : memref<2x64x16xf32, #tpu.memory_space<vmem>>, vector<1x64x16xf32>
    %226 = vector.shape_cast %225 : vector<1x64x16xf32> to vector<64x16xf32>
    %227 = vector.broadcast %210 : vector<1x16xf32> to vector<64x16xf32>
    %228 = arith.mulf %226, %227 : vector<64x16xf32>
    %229 = vector.broadcast %213 : vector<1x16xf32> to vector<64x16xf32>
    %230 = arith.addf %228, %229 : vector<64x16xf32>
    %cst_165 = arith.constant 0.000000e+00 : f32
    %231 = vector.broadcast %cst_165 : f32 to vector<64x16xf32>
    %232 = arith.maximumf %230, %231 : vector<64x16xf32>
    %c1_166 = arith.constant 1 : index
    %c0_167 = arith.constant 0 : index
    %c0_168 = arith.constant 0 : index
    %233 = vector.load %arg18[%c1_166, %c0_167, %c0_168] : memref<2x64x16xf32, #tpu.memory_space<vmem>>, vector<1x64x16xf32>
    %234 = vector.shape_cast %233 : vector<1x64x16xf32> to vector<64x16xf32>
    %235 = vector.shape_cast %232 : vector<64x16xf32> to vector<1x64x16xf32>
    tpu.vector_store %arg18[%c1_166, %c0_167, %c0_168], %235 {strides = array<i32>} : memref<2x64x16xf32, #tpu.memory_space<vmem>>, vector<1x64x16xf32>,
    %c0_169 = arith.constant 0 : index
    %c0_170 = arith.constant 0 : index
    %c0_171 = arith.constant 0 : index
    %236 = vector.load %arg18[%c0_169, %c0_170, %c0_171] : memref<2x64x16xf32, #tpu.memory_space<vmem>>, vector<1x64x16xf32>
    %237 = vector.shape_cast %236 : vector<1x64x16xf32> to vector<64x16xf32>
    %cst_172 = arith.constant 0.000000e+00 : f32
    %238 = vector.broadcast %cst_172 : f32 to vector<16x32xf32>
    %c0_173 = arith.constant 0 : index
    %c0_174 = arith.constant 0 : index
    %c0_175 = arith.constant 0 : index
    %239 = vector.load %arg1[%c0_173, %c0_174, %c0_175] : memref<9x16x64xf32, #tpu.memory_space<vmem>>, vector<1x16x64xf32>
    %240 = vector.shape_cast %239 : vector<1x16x64xf32> to vector<16x64xf32>
    %cst_176 = arith.constant dense<0.000000e+00> : vector<16x16xf32>
    %241 = tpu.matmul %240, %237, %cst_176 {dimension_numbers = #tpu.dot_dimension_numbers<[1], [0], [0], [1], [0, 0, 1, 1], [], []>} : vector<16x64xf32>, vector<64x16xf32>, vector<16x16xf32> -> vector<16x16xf32>
    %c0_177 = arith.constant 0 : index
    %c0_178 = arith.constant 0 : index
    %c0_179 = arith.constant 0 : index
    %242 = vector.load %arg5[%c0_177, %c0_178, %c0_179] : memref<9x16x32xf32, #tpu.memory_space<vmem>>, vector<1x16x32xf32>
    %243 = vector.shape_cast %242 : vector<1x16x32xf32> to vector<16x32xf32>
    %cst_180 = arith.constant dense<0.000000e+00> : vector<16x32xf32>
    %244 = tpu.matmul %241, %243, %cst_180 {dimension_numbers = #tpu.dot_dimension_numbers<[1], [0], [0], [1], [0, 0, 1, 1], [], []>} : vector<16x16xf32>, vector<16x32xf32>, vector<16x32xf32> -> vector<16x32xf32>
    %245 = arith.addf %238, %244 : vector<16x32xf32>
    %c1_181 = arith.constant 1 : index
    %c0_182 = arith.constant 0 : index
    %c0_183 = arith.constant 0 : index
    %246 = vector.load %arg1[%c1_181, %c0_182, %c0_183] : memref<9x16x64xf32, #tpu.memory_space<vmem>>, vector<1x16x64xf32>
    %247 = vector.shape_cast %246 : vector<1x16x64xf32> to vector<16x64xf32>
    %cst_184 = arith.constant dense<0.000000e+00> : vector<16x16xf32>
    %248 = tpu.matmul %247, %237, %cst_184 {dimension_numbers = #tpu.dot_dimension_numbers<[1], [0], [0], [1], [0, 0, 1, 1], [], []>} : vector<16x64xf32>, vector<64x16xf32>, vector<16x16xf32> -> vector<16x16xf32>
    %c1_185 = arith.constant 1 : index
    %c0_186 = arith.constant 0 : index
    %c0_187 = arith.constant 0 : index
    %249 = vector.load %arg5[%c1_185, %c0_186, %c0_187] : memref<9x16x32xf32, #tpu.memory_space<vmem>>, vector<1x16x32xf32>
    %250 = vector.shape_cast %249 : vector<1x16x32xf32> to vector<16x32xf32>
    %cst_188 = arith.constant dense<0.000000e+00> : vector<16x32xf32>
    %251 = tpu.matmul %248, %250, %cst_188 {dimension_numbers = #tpu.dot_dimension_numbers<[1], [0], [0], [1], [0, 0, 1, 1], [], []>} : vector<16x16xf32>, vector<16x32xf32>, vector<16x32xf32> -> vector<16x32xf32>
    %252 = arith.addf %245, %251 : vector<16x32xf32>
    %c2_189 = arith.constant 2 : index
    %c0_190 = arith.constant 0 : index
    %c0_191 = arith.constant 0 : index
    %253 = vector.load %arg1[%c2_189, %c0_190, %c0_191] : memref<9x16x64xf32, #tpu.memory_space<vmem>>, vector<1x16x64xf32>
    %254 = vector.shape_cast %253 : vector<1x16x64xf32> to vector<16x64xf32>
    %cst_192 = arith.constant dense<0.000000e+00> : vector<16x16xf32>
    %255 = tpu.matmul %254, %237, %cst_192 {dimension_numbers = #tpu.dot_dimension_numbers<[1], [0], [0], [1], [0, 0, 1, 1], [], []>} : vector<16x64xf32>, vector<64x16xf32>, vector<16x16xf32> -> vector<16x16xf32>
    %c2_193 = arith.constant 2 : index
    %c0_194 = arith.constant 0 : index
    %c0_195 = arith.constant 0 : index
    %256 = vector.load %arg5[%c2_193, %c0_194, %c0_195] : memref<9x16x32xf32, #tpu.memory_space<vmem>>, vector<1x16x32xf32>
    %257 = vector.shape_cast %256 : vector<1x16x32xf32> to vector<16x32xf32>
    %cst_196 = arith.constant dense<0.000000e+00> : vector<16x32xf32>
    %258 = tpu.matmul %255, %257, %cst_196 {dimension_numbers = #tpu.dot_dimension_numbers<[1], [0], [0], [1], [0, 0, 1, 1], [], []>} : vector<16x16xf32>, vector<16x32xf32>, vector<16x32xf32> -> vector<16x32xf32>
    %259 = arith.addf %252, %258 : vector<16x32xf32>
    %c3_197 = arith.constant 3 : index
    %c0_198 = arith.constant 0 : index
    %c0_199 = arith.constant 0 : index
    %260 = vector.load %arg1[%c3_197, %c0_198, %c0_199] : memref<9x16x64xf32, #tpu.memory_space<vmem>>, vector<1x16x64xf32>
    %261 = vector.shape_cast %260 : vector<1x16x64xf32> to vector<16x64xf32>
    %cst_200 = arith.constant dense<0.000000e+00> : vector<16x16xf32>
    %262 = tpu.matmul %261, %237, %cst_200 {dimension_numbers = #tpu.dot_dimension_numbers<[1], [0], [0], [1], [0, 0, 1, 1], [], []>} : vector<16x64xf32>, vector<64x16xf32>, vector<16x16xf32> -> vector<16x16xf32>
    %c3_201 = arith.constant 3 : index
    %c0_202 = arith.constant 0 : index
    %c0_203 = arith.constant 0 : index
    %263 = vector.load %arg5[%c3_201, %c0_202, %c0_203] : memref<9x16x32xf32, #tpu.memory_space<vmem>>, vector<1x16x32xf32>
    %264 = vector.shape_cast %263 : vector<1x16x32xf32> to vector<16x32xf32>
    %cst_204 = arith.constant dense<0.000000e+00> : vector<16x32xf32>
    %265 = tpu.matmul %262, %264, %cst_204 {dimension_numbers = #tpu.dot_dimension_numbers<[1], [0], [0], [1], [0, 0, 1, 1], [], []>} : vector<16x16xf32>, vector<16x32xf32>, vector<16x32xf32> -> vector<16x32xf32>
    %266 = arith.addf %259, %265 : vector<16x32xf32>
    %c4_205 = arith.constant 4 : index
    %c0_206 = arith.constant 0 : index
    %c0_207 = arith.constant 0 : index
    %267 = vector.load %arg1[%c4_205, %c0_206, %c0_207] : memref<9x16x64xf32, #tpu.memory_space<vmem>>, vector<1x16x64xf32>
    %268 = vector.shape_cast %267 : vector<1x16x64xf32> to vector<16x64xf32>
    %cst_208 = arith.constant dense<0.000000e+00> : vector<16x16xf32>
    %269 = tpu.matmul %268, %237, %cst_208 {dimension_numbers = #tpu.dot_dimension_numbers<[1], [0], [0], [1], [0, 0, 1, 1], [], []>} : vector<16x64xf32>, vector<64x16xf32>, vector<16x16xf32> -> vector<16x16xf32>
    %c4_209 = arith.constant 4 : index
    %c0_210 = arith.constant 0 : index
    %c0_211 = arith.constant 0 : index
    %270 = vector.load %arg5[%c4_209, %c0_210, %c0_211] : memref<9x16x32xf32, #tpu.memory_space<vmem>>, vector<1x16x32xf32>
    %271 = vector.shape_cast %270 : vector<1x16x32xf32> to vector<16x32xf32>
    %cst_212 = arith.constant dense<0.000000e+00> : vector<16x32xf32>
    %272 = tpu.matmul %269, %271, %cst_212 {dimension_numbers = #tpu.dot_dimension_numbers<[1], [0], [0], [1], [0, 0, 1, 1], [], []>} : vector<16x16xf32>, vector<16x32xf32>, vector<16x32xf32> -> vector<16x32xf32>
    %273 = arith.addf %266, %272 : vector<16x32xf32>
    %c5_213 = arith.constant 5 : index
    %c0_214 = arith.constant 0 : index
    %c0_215 = arith.constant 0 : index
    %274 = vector.load %arg1[%c5_213, %c0_214, %c0_215] : memref<9x16x64xf32, #tpu.memory_space<vmem>>, vector<1x16x64xf32>
    %275 = vector.shape_cast %274 : vector<1x16x64xf32> to vector<16x64xf32>
    %cst_216 = arith.constant dense<0.000000e+00> : vector<16x16xf32>
    %276 = tpu.matmul %275, %237, %cst_216 {dimension_numbers = #tpu.dot_dimension_numbers<[1], [0], [0], [1], [0, 0, 1, 1], [], []>} : vector<16x64xf32>, vector<64x16xf32>, vector<16x16xf32> -> vector<16x16xf32>
    %c5_217 = arith.constant 5 : index
    %c0_218 = arith.constant 0 : index
    %c0_219 = arith.constant 0 : index
    %277 = vector.load %arg5[%c5_217, %c0_218, %c0_219] : memref<9x16x32xf32, #tpu.memory_space<vmem>>, vector<1x16x32xf32>
    %278 = vector.shape_cast %277 : vector<1x16x32xf32> to vector<16x32xf32>
    %cst_220 = arith.constant dense<0.000000e+00> : vector<16x32xf32>
    %279 = tpu.matmul %276, %278, %cst_220 {dimension_numbers = #tpu.dot_dimension_numbers<[1], [0], [0], [1], [0, 0, 1, 1], [], []>} : vector<16x16xf32>, vector<16x32xf32>, vector<16x32xf32> -> vector<16x32xf32>
    %280 = arith.addf %273, %279 : vector<16x32xf32>
    %c6_221 = arith.constant 6 : index
    %c0_222 = arith.constant 0 : index
    %c0_223 = arith.constant 0 : index
    %281 = vector.load %arg1[%c6_221, %c0_222, %c0_223] : memref<9x16x64xf32, #tpu.memory_space<vmem>>, vector<1x16x64xf32>
    %282 = vector.shape_cast %281 : vector<1x16x64xf32> to vector<16x64xf32>
    %cst_224 = arith.constant dense<0.000000e+00> : vector<16x16xf32>
    %283 = tpu.matmul %282, %237, %cst_224 {dimension_numbers = #tpu.dot_dimension_numbers<[1], [0], [0], [1], [0, 0, 1, 1], [], []>} : vector<16x64xf32>, vector<64x16xf32>, vector<16x16xf32> -> vector<16x16xf32>
    %c6_225 = arith.constant 6 : index
    %c0_226 = arith.constant 0 : index
    %c0_227 = arith.constant 0 : index
    %284 = vector.load %arg5[%c6_225, %c0_226, %c0_227] : memref<9x16x32xf32, #tpu.memory_space<vmem>>, vector<1x16x32xf32>
    %285 = vector.shape_cast %284 : vector<1x16x32xf32> to vector<16x32xf32>
    %cst_228 = arith.constant dense<0.000000e+00> : vector<16x32xf32>
    %286 = tpu.matmul %283, %285, %cst_228 {dimension_numbers = #tpu.dot_dimension_numbers<[1], [0], [0], [1], [0, 0, 1, 1], [], []>} : vector<16x16xf32>, vector<16x32xf32>, vector<16x32xf32> -> vector<16x32xf32>
    %287 = arith.addf %280, %286 : vector<16x32xf32>
    %c7_229 = arith.constant 7 : index
    %c0_230 = arith.constant 0 : index
    %c0_231 = arith.constant 0 : index
    %288 = vector.load %arg1[%c7_229, %c0_230, %c0_231] : memref<9x16x64xf32, #tpu.memory_space<vmem>>, vector<1x16x64xf32>
    %289 = vector.shape_cast %288 : vector<1x16x64xf32> to vector<16x64xf32>
    %cst_232 = arith.constant dense<0.000000e+00> : vector<16x16xf32>
    %290 = tpu.matmul %289, %237, %cst_232 {dimension_numbers = #tpu.dot_dimension_numbers<[1], [0], [0], [1], [0, 0, 1, 1], [], []>} : vector<16x64xf32>, vector<64x16xf32>, vector<16x16xf32> -> vector<16x16xf32>
    %c7_233 = arith.constant 7 : index
    %c0_234 = arith.constant 0 : index
    %c0_235 = arith.constant 0 : index
    %291 = vector.load %arg5[%c7_233, %c0_234, %c0_235] : memref<9x16x32xf32, #tpu.memory_space<vmem>>, vector<1x16x32xf32>
    %292 = vector.shape_cast %291 : vector<1x16x32xf32> to vector<16x32xf32>
    %cst_236 = arith.constant dense<0.000000e+00> : vector<16x32xf32>
    %293 = tpu.matmul %290, %292, %cst_236 {dimension_numbers = #tpu.dot_dimension_numbers<[1], [0], [0], [1], [0, 0, 1, 1], [], []>} : vector<16x16xf32>, vector<16x32xf32>, vector<16x32xf32> -> vector<16x32xf32>
    %294 = arith.addf %287, %293 : vector<16x32xf32>
    %c8_237 = arith.constant 8 : index
    %c0_238 = arith.constant 0 : index
    %c0_239 = arith.constant 0 : index
    %295 = vector.load %arg1[%c8_237, %c0_238, %c0_239] : memref<9x16x64xf32, #tpu.memory_space<vmem>>, vector<1x16x64xf32>
    %296 = vector.shape_cast %295 : vector<1x16x64xf32> to vector<16x64xf32>
    %cst_240 = arith.constant dense<0.000000e+00> : vector<16x16xf32>
    %297 = tpu.matmul %296, %237, %cst_240 {dimension_numbers = #tpu.dot_dimension_numbers<[1], [0], [0], [1], [0, 0, 1, 1], [], []>} : vector<16x64xf32>, vector<64x16xf32>, vector<16x16xf32> -> vector<16x16xf32>
    %c8_241 = arith.constant 8 : index
    %c0_242 = arith.constant 0 : index
    %c0_243 = arith.constant 0 : index
    %298 = vector.load %arg5[%c8_241, %c0_242, %c0_243] : memref<9x16x32xf32, #tpu.memory_space<vmem>>, vector<1x16x32xf32>
    %299 = vector.shape_cast %298 : vector<1x16x32xf32> to vector<16x32xf32>
    %cst_244 = arith.constant dense<0.000000e+00> : vector<16x32xf32>
    %300 = tpu.matmul %297, %299, %cst_244 {dimension_numbers = #tpu.dot_dimension_numbers<[1], [0], [0], [1], [0, 0, 1, 1], [], []>} : vector<16x16xf32>, vector<16x32xf32>, vector<16x32xf32> -> vector<16x32xf32>
    %301 = arith.addf %294, %300 : vector<16x32xf32>
    %c0_245 = arith.constant 0 : index
    %c0_246 = arith.constant 0 : index
    %c0_247 = arith.constant 0 : index
    %302 = vector.load %arg19[%c0_245, %c0_246, %c0_247] : memref<2x16x32xf32, #tpu.memory_space<vmem>>, vector<1x16x32xf32>
    %303 = vector.shape_cast %302 : vector<1x16x32xf32> to vector<16x32xf32>
    %304 = vector.shape_cast %301 : vector<16x32xf32> to vector<1x16x32xf32>
    tpu.vector_store %arg19[%c0_245, %c0_246, %c0_247], %304 {strides = array<i32>} : memref<2x16x32xf32, #tpu.memory_space<vmem>>, vector<1x16x32xf32>,
    %c1_248 = arith.constant 1 : index
    %c0_249 = arith.constant 0 : index
    %c0_250 = arith.constant 0 : index
    %305 = vector.load %arg18[%c1_248, %c0_249, %c0_250] : memref<2x64x16xf32, #tpu.memory_space<vmem>>, vector<1x64x16xf32>
    %306 = vector.shape_cast %305 : vector<1x64x16xf32> to vector<64x16xf32>
    %cst_251 = arith.constant 0.000000e+00 : f32
    %307 = vector.broadcast %cst_251 : f32 to vector<16x32xf32>
    %c0_252 = arith.constant 0 : index
    %c0_253 = arith.constant 0 : index
    %c0_254 = arith.constant 0 : index
    %308 = vector.load %arg1[%c0_252, %c0_253, %c0_254] : memref<9x16x64xf32, #tpu.memory_space<vmem>>, vector<1x16x64xf32>
    %309 = vector.shape_cast %308 : vector<1x16x64xf32> to vector<16x64xf32>
    %cst_255 = arith.constant dense<0.000000e+00> : vector<16x16xf32>
    %310 = tpu.matmul %309, %306, %cst_255 {dimension_numbers = #tpu.dot_dimension_numbers<[1], [0], [0], [1], [0, 0, 1, 1], [], []>} : vector<16x64xf32>, vector<64x16xf32>, vector<16x16xf32> -> vector<16x16xf32>
    %c0_256 = arith.constant 0 : index
    %c0_257 = arith.constant 0 : index
    %c0_258 = arith.constant 0 : index
    %311 = vector.load %arg5[%c0_256, %c0_257, %c0_258] : memref<9x16x32xf32, #tpu.memory_space<vmem>>, vector<1x16x32xf32>
    %312 = vector.shape_cast %311 : vector<1x16x32xf32> to vector<16x32xf32>
    %cst_259 = arith.constant dense<0.000000e+00> : vector<16x32xf32>
    %313 = tpu.matmul %310, %312, %cst_259 {dimension_numbers = #tpu.dot_dimension_numbers<[1], [0], [0], [1], [0, 0, 1, 1], [], []>} : vector<16x16xf32>, vector<16x32xf32>, vector<16x32xf32> -> vector<16x32xf32>
    %314 = arith.addf %307, %313 : vector<16x32xf32>
    %c1_260 = arith.constant 1 : index
    %c0_261 = arith.constant 0 : index
    %c0_262 = arith.constant 0 : index
    %315 = vector.load %arg1[%c1_260, %c0_261, %c0_262] : memref<9x16x64xf32, #tpu.memory_space<vmem>>, vector<1x16x64xf32>
    %316 = vector.shape_cast %315 : vector<1x16x64xf32> to vector<16x64xf32>
    %cst_263 = arith.constant dense<0.000000e+00> : vector<16x16xf32>
    %317 = tpu.matmul %316, %306, %cst_263 {dimension_numbers = #tpu.dot_dimension_numbers<[1], [0], [0], [1], [0, 0, 1, 1], [], []>} : vector<16x64xf32>, vector<64x16xf32>, vector<16x16xf32> -> vector<16x16xf32>
    %c1_264 = arith.constant 1 : index
    %c0_265 = arith.constant 0 : index
    %c0_266 = arith.constant 0 : index
    %318 = vector.load %arg5[%c1_264, %c0_265, %c0_266] : memref<9x16x32xf32, #tpu.memory_space<vmem>>, vector<1x16x32xf32>
    %319 = vector.shape_cast %318 : vector<1x16x32xf32> to vector<16x32xf32>
    %cst_267 = arith.constant dense<0.000000e+00> : vector<16x32xf32>
    %320 = tpu.matmul %317, %319, %cst_267 {dimension_numbers = #tpu.dot_dimension_numbers<[1], [0], [0], [1], [0, 0, 1, 1], [], []>} : vector<16x16xf32>, vector<16x32xf32>, vector<16x32xf32> -> vector<16x32xf32>
    %321 = arith.addf %314, %320 : vector<16x32xf32>
    %c2_268 = arith.constant 2 : index
    %c0_269 = arith.constant 0 : index
    %c0_270 = arith.constant 0 : index
    %322 = vector.load %arg1[%c2_268, %c0_269, %c0_270] : memref<9x16x64xf32, #tpu.memory_space<vmem>>, vector<1x16x64xf32>
    %323 = vector.shape_cast %322 : vector<1x16x64xf32> to vector<16x64xf32>
    %cst_271 = arith.constant dense<0.000000e+00> : vector<16x16xf32>
    %324 = tpu.matmul %323, %306, %cst_271 {dimension_numbers = #tpu.dot_dimension_numbers<[1], [0], [0], [1], [0, 0, 1, 1], [], []>} : vector<16x64xf32>, vector<64x16xf32>, vector<16x16xf32> -> vector<16x16xf32>
    %c2_272 = arith.constant 2 : index
    %c0_273 = arith.constant 0 : index
    %c0_274 = arith.constant 0 : index
    %325 = vector.load %arg5[%c2_272, %c0_273, %c0_274] : memref<9x16x32xf32, #tpu.memory_space<vmem>>, vector<1x16x32xf32>
    %326 = vector.shape_cast %325 : vector<1x16x32xf32> to vector<16x32xf32>
    %cst_275 = arith.constant dense<0.000000e+00> : vector<16x32xf32>
    %327 = tpu.matmul %324, %326, %cst_275 {dimension_numbers = #tpu.dot_dimension_numbers<[1], [0], [0], [1], [0, 0, 1, 1], [], []>} : vector<16x16xf32>, vector<16x32xf32>, vector<16x32xf32> -> vector<16x32xf32>
    %328 = arith.addf %321, %327 : vector<16x32xf32>
    %c3_276 = arith.constant 3 : index
    %c0_277 = arith.constant 0 : index
    %c0_278 = arith.constant 0 : index
    %329 = vector.load %arg1[%c3_276, %c0_277, %c0_278] : memref<9x16x64xf32, #tpu.memory_space<vmem>>, vector<1x16x64xf32>
    %330 = vector.shape_cast %329 : vector<1x16x64xf32> to vector<16x64xf32>
    %cst_279 = arith.constant dense<0.000000e+00> : vector<16x16xf32>
    %331 = tpu.matmul %330, %306, %cst_279 {dimension_numbers = #tpu.dot_dimension_numbers<[1], [0], [0], [1], [0, 0, 1, 1], [], []>} : vector<16x64xf32>, vector<64x16xf32>, vector<16x16xf32> -> vector<16x16xf32>
    %c3_280 = arith.constant 3 : index
    %c0_281 = arith.constant 0 : index
    %c0_282 = arith.constant 0 : index
    %332 = vector.load %arg5[%c3_280, %c0_281, %c0_282] : memref<9x16x32xf32, #tpu.memory_space<vmem>>, vector<1x16x32xf32>
    %333 = vector.shape_cast %332 : vector<1x16x32xf32> to vector<16x32xf32>
    %cst_283 = arith.constant dense<0.000000e+00> : vector<16x32xf32>
    %334 = tpu.matmul %331, %333, %cst_283 {dimension_numbers = #tpu.dot_dimension_numbers<[1], [0], [0], [1], [0, 0, 1, 1], [], []>} : vector<16x16xf32>, vector<16x32xf32>, vector<16x32xf32> -> vector<16x32xf32>
    %335 = arith.addf %328, %334 : vector<16x32xf32>
    %c4_284 = arith.constant 4 : index
    %c0_285 = arith.constant 0 : index
    %c0_286 = arith.constant 0 : index
    %336 = vector.load %arg1[%c4_284, %c0_285, %c0_286] : memref<9x16x64xf32, #tpu.memory_space<vmem>>, vector<1x16x64xf32>
    %337 = vector.shape_cast %336 : vector<1x16x64xf32> to vector<16x64xf32>
    %cst_287 = arith.constant dense<0.000000e+00> : vector<16x16xf32>
    %338 = tpu.matmul %337, %306, %cst_287 {dimension_numbers = #tpu.dot_dimension_numbers<[1], [0], [0], [1], [0, 0, 1, 1], [], []>} : vector<16x64xf32>, vector<64x16xf32>, vector<16x16xf32> -> vector<16x16xf32>
    %c4_288 = arith.constant 4 : index
    %c0_289 = arith.constant 0 : index
    %c0_290 = arith.constant 0 : index
    %339 = vector.load %arg5[%c4_288, %c0_289, %c0_290] : memref<9x16x32xf32, #tpu.memory_space<vmem>>, vector<1x16x32xf32>
    %340 = vector.shape_cast %339 : vector<1x16x32xf32> to vector<16x32xf32>
    %cst_291 = arith.constant dense<0.000000e+00> : vector<16x32xf32>
    %341 = tpu.matmul %338, %340, %cst_291 {dimension_numbers = #tpu.dot_dimension_numbers<[1], [0], [0], [1], [0, 0, 1, 1], [], []>} : vector<16x16xf32>, vector<16x32xf32>, vector<16x32xf32> -> vector<16x32xf32>
    %342 = arith.addf %335, %341 : vector<16x32xf32>
    %c5_292 = arith.constant 5 : index
    %c0_293 = arith.constant 0 : index
    %c0_294 = arith.constant 0 : index
    %343 = vector.load %arg1[%c5_292, %c0_293, %c0_294] : memref<9x16x64xf32, #tpu.memory_space<vmem>>, vector<1x16x64xf32>
    %344 = vector.shape_cast %343 : vector<1x16x64xf32> to vector<16x64xf32>
    %cst_295 = arith.constant dense<0.000000e+00> : vector<16x16xf32>
    %345 = tpu.matmul %344, %306, %cst_295 {dimension_numbers = #tpu.dot_dimension_numbers<[1], [0], [0], [1], [0, 0, 1, 1], [], []>} : vector<16x64xf32>, vector<64x16xf32>, vector<16x16xf32> -> vector<16x16xf32>
    %c5_296 = arith.constant 5 : index
    %c0_297 = arith.constant 0 : index
    %c0_298 = arith.constant 0 : index
    %346 = vector.load %arg5[%c5_296, %c0_297, %c0_298] : memref<9x16x32xf32, #tpu.memory_space<vmem>>, vector<1x16x32xf32>
    %347 = vector.shape_cast %346 : vector<1x16x32xf32> to vector<16x32xf32>
    %cst_299 = arith.constant dense<0.000000e+00> : vector<16x32xf32>
    %348 = tpu.matmul %345, %347, %cst_299 {dimension_numbers = #tpu.dot_dimension_numbers<[1], [0], [0], [1], [0, 0, 1, 1], [], []>} : vector<16x16xf32>, vector<16x32xf32>, vector<16x32xf32> -> vector<16x32xf32>
    %349 = arith.addf %342, %348 : vector<16x32xf32>
    %c6_300 = arith.constant 6 : index
    %c0_301 = arith.constant 0 : index
    %c0_302 = arith.constant 0 : index
    %350 = vector.load %arg1[%c6_300, %c0_301, %c0_302] : memref<9x16x64xf32, #tpu.memory_space<vmem>>, vector<1x16x64xf32>
    %351 = vector.shape_cast %350 : vector<1x16x64xf32> to vector<16x64xf32>
    %cst_303 = arith.constant dense<0.000000e+00> : vector<16x16xf32>
    %352 = tpu.matmul %351, %306, %cst_303 {dimension_numbers = #tpu.dot_dimension_numbers<[1], [0], [0], [1], [0, 0, 1, 1], [], []>} : vector<16x64xf32>, vector<64x16xf32>, vector<16x16xf32> -> vector<16x16xf32>
    %c6_304 = arith.constant 6 : index
    %c0_305 = arith.constant 0 : index
    %c0_306 = arith.constant 0 : index
    %353 = vector.load %arg5[%c6_304, %c0_305, %c0_306] : memref<9x16x32xf32, #tpu.memory_space<vmem>>, vector<1x16x32xf32>
    %354 = vector.shape_cast %353 : vector<1x16x32xf32> to vector<16x32xf32>
    %cst_307 = arith.constant dense<0.000000e+00> : vector<16x32xf32>
    %355 = tpu.matmul %352, %354, %cst_307 {dimension_numbers = #tpu.dot_dimension_numbers<[1], [0], [0], [1], [0, 0, 1, 1], [], []>} : vector<16x16xf32>, vector<16x32xf32>, vector<16x32xf32> -> vector<16x32xf32>
    %356 = arith.addf %349, %355 : vector<16x32xf32>
    %c7_308 = arith.constant 7 : index
    %c0_309 = arith.constant 0 : index
    %c0_310 = arith.constant 0 : index
    %357 = vector.load %arg1[%c7_308, %c0_309, %c0_310] : memref<9x16x64xf32, #tpu.memory_space<vmem>>, vector<1x16x64xf32>
    %358 = vector.shape_cast %357 : vector<1x16x64xf32> to vector<16x64xf32>
    %cst_311 = arith.constant dense<0.000000e+00> : vector<16x16xf32>
    %359 = tpu.matmul %358, %306, %cst_311 {dimension_numbers = #tpu.dot_dimension_numbers<[1], [0], [0], [1], [0, 0, 1, 1], [], []>} : vector<16x64xf32>, vector<64x16xf32>, vector<16x16xf32> -> vector<16x16xf32>
    %c7_312 = arith.constant 7 : index
    %c0_313 = arith.constant 0 : index
    %c0_314 = arith.constant 0 : index
    %360 = vector.load %arg5[%c7_312, %c0_313, %c0_314] : memref<9x16x32xf32, #tpu.memory_space<vmem>>, vector<1x16x32xf32>
    %361 = vector.shape_cast %360 : vector<1x16x32xf32> to vector<16x32xf32>
    %cst_315 = arith.constant dense<0.000000e+00> : vector<16x32xf32>
    %362 = tpu.matmul %359, %361, %cst_315 {dimension_numbers = #tpu.dot_dimension_numbers<[1], [0], [0], [1], [0, 0, 1, 1], [], []>} : vector<16x16xf32>, vector<16x32xf32>, vector<16x32xf32> -> vector<16x32xf32>
    %363 = arith.addf %356, %362 : vector<16x32xf32>
    %c8_316 = arith.constant 8 : index
    %c0_317 = arith.constant 0 : index
    %c0_318 = arith.constant 0 : index
    %364 = vector.load %arg1[%c8_316, %c0_317, %c0_318] : memref<9x16x64xf32, #tpu.memory_space<vmem>>, vector<1x16x64xf32>
    %365 = vector.shape_cast %364 : vector<1x16x64xf32> to vector<16x64xf32>
    %cst_319 = arith.constant dense<0.000000e+00> : vector<16x16xf32>
    %366 = tpu.matmul %365, %306, %cst_319 {dimension_numbers = #tpu.dot_dimension_numbers<[1], [0], [0], [1], [0, 0, 1, 1], [], []>} : vector<16x64xf32>, vector<64x16xf32>, vector<16x16xf32> -> vector<16x16xf32>
    %c8_320 = arith.constant 8 : index
    %c0_321 = arith.constant 0 : index
    %c0_322 = arith.constant 0 : index
    %367 = vector.load %arg5[%c8_320, %c0_321, %c0_322] : memref<9x16x32xf32, #tpu.memory_space<vmem>>, vector<1x16x32xf32>
    %368 = vector.shape_cast %367 : vector<1x16x32xf32> to vector<16x32xf32>
    %cst_323 = arith.constant dense<0.000000e+00> : vector<16x32xf32>
    %369 = tpu.matmul %366, %368, %cst_323 {dimension_numbers = #tpu.dot_dimension_numbers<[1], [0], [0], [1], [0, 0, 1, 1], [], []>} : vector<16x16xf32>, vector<16x32xf32>, vector<16x32xf32> -> vector<16x32xf32>
    %370 = arith.addf %363, %369 : vector<16x32xf32>
    %c1_324 = arith.constant 1 : index
    %c0_325 = arith.constant 0 : index
    %c0_326 = arith.constant 0 : index
    %371 = vector.load %arg19[%c1_324, %c0_325, %c0_326] : memref<2x16x32xf32, #tpu.memory_space<vmem>>, vector<1x16x32xf32>
    %372 = vector.shape_cast %371 : vector<1x16x32xf32> to vector<16x32xf32>
    %373 = vector.shape_cast %370 : vector<16x32xf32> to vector<1x16x32xf32>
    tpu.vector_store %arg19[%c1_324, %c0_325, %c0_326], %373 {strides = array<i32>} : memref<2x16x32xf32, #tpu.memory_space<vmem>>, vector<1x16x32xf32>,
    %cst_327 = arith.constant 0.000000e+00 : f32
    %374 = vector.broadcast %cst_327 : f32 to vector<1x32xf32>
    %c0_328 = arith.constant 0 : index
    %c0_329 = arith.constant 0 : index
    %c0_330 = arith.constant 0 : index
    %375 = vector.load %arg19[%c0_328, %c0_329, %c0_330] : memref<2x16x32xf32, #tpu.memory_space<vmem>>, vector<1x16x32xf32>
    %376 = vector.shape_cast %375 : vector<1x16x32xf32> to vector<16x32xf32>
    %cst_331 = arith.constant dense<0.000000e+00> : vector<32xf32>
    %377 = vector.multi_reduction <add>, %376, %cst_331 [0] : vector<16x32xf32> to vector<32xf32>
    %378 = vector.shape_cast %377 : vector<32xf32> to vector<1x32xf32>
    %379 = arith.addf %374, %378 : vector<1x32xf32>
    %c1_332 = arith.constant 1 : index
    %c0_333 = arith.constant 0 : index
    %c0_334 = arith.constant 0 : index
    %380 = vector.load %arg19[%c1_332, %c0_333, %c0_334] : memref<2x16x32xf32, #tpu.memory_space<vmem>>, vector<1x16x32xf32>
    %381 = vector.shape_cast %380 : vector<1x16x32xf32> to vector<16x32xf32>
    %cst_335 = arith.constant dense<0.000000e+00> : vector<32xf32>
    %382 = vector.multi_reduction <add>, %381, %cst_335 [0] : vector<16x32xf32> to vector<32xf32>
    %383 = vector.shape_cast %382 : vector<32xf32> to vector<1x32xf32>
    %384 = arith.addf %379, %383 : vector<1x32xf32>
    %cst_336 = arith.constant 3.125000e-02 : f32
    %385 = vector.broadcast %cst_336 : f32 to vector<1x32xf32>
    %386 = arith.mulf %384, %385 : vector<1x32xf32>
    %cst_337 = arith.constant 0.000000e+00 : f32
    %387 = vector.broadcast %cst_337 : f32 to vector<1x32xf32>
    %c0_338 = arith.constant 0 : index
    %c0_339 = arith.constant 0 : index
    %c0_340 = arith.constant 0 : index
    %388 = vector.load %arg19[%c0_338, %c0_339, %c0_340] : memref<2x16x32xf32, #tpu.memory_space<vmem>>, vector<1x16x32xf32>
    %389 = vector.shape_cast %388 : vector<1x16x32xf32> to vector<16x32xf32>
    %390 = vector.broadcast %386 : vector<1x32xf32> to vector<16x32xf32>
    %391 = arith.subf %389, %390 : vector<16x32xf32>
    %392 = arith.mulf %391, %391 : vector<16x32xf32>
    %cst_341 = arith.constant dense<0.000000e+00> : vector<32xf32>
    %393 = vector.multi_reduction <add>, %392, %cst_341 [0] : vector<16x32xf32> to vector<32xf32>
    %394 = vector.shape_cast %393 : vector<32xf32> to vector<1x32xf32>
    %395 = arith.addf %387, %394 : vector<1x32xf32>
    %c1_342 = arith.constant 1 : index
    %c0_343 = arith.constant 0 : index
    %c0_344 = arith.constant 0 : index
    %396 = vector.load %arg19[%c1_342, %c0_343, %c0_344] : memref<2x16x32xf32, #tpu.memory_space<vmem>>, vector<1x16x32xf32>
    %397 = vector.shape_cast %396 : vector<1x16x32xf32> to vector<16x32xf32>
    %398 = vector.broadcast %386 : vector<1x32xf32> to vector<16x32xf32>
    %399 = arith.subf %397, %398 : vector<16x32xf32>
    %400 = arith.mulf %399, %399 : vector<16x32xf32>
    %cst_345 = arith.constant dense<0.000000e+00> : vector<32xf32>
    %401 = vector.multi_reduction <add>, %400, %cst_345 [0] : vector<16x32xf32> to vector<32xf32>
    %402 = vector.shape_cast %401 : vector<32xf32> to vector<1x32xf32>
    %403 = arith.addf %395, %402 : vector<1x32xf32>
    %cst_346 = arith.constant 3.125000e-02 : f32
    %404 = vector.broadcast %cst_346 : f32 to vector<1x32xf32>
    %405 = arith.mulf %403, %404 : vector<1x32xf32>
    %cst_347 = arith.constant 9.99999974E-6 : f32
    %406 = vector.broadcast %cst_347 : f32 to vector<1x32xf32>
    %407 = arith.addf %405, %406 : vector<1x32xf32>
    %408 = math.rsqrt %407 : vector<1x32xf32>
    %c0_348 = arith.constant 0 : index
    %c0_349 = arith.constant 0 : index
    %409 = vector.load %arg10[%c0_348, %c0_349] : memref<1x32xf32, #tpu.memory_space<vmem>>, vector<1x32xf32>
    %410 = arith.mulf %409, %408 : vector<1x32xf32>
    %c0_350 = arith.constant 0 : index
    %c0_351 = arith.constant 0 : index
    %411 = vector.load %arg11[%c0_350, %c0_351] : memref<1x32xf32, #tpu.memory_space<vmem>>, vector<1x32xf32>
    %412 = arith.mulf %386, %410 : vector<1x32xf32>
    %413 = arith.subf %411, %412 : vector<1x32xf32>
    %c0_352 = arith.constant 0 : index
    %c0_353 = arith.constant 0 : index
    %c0_354 = arith.constant 0 : index
    %414 = vector.load %arg19[%c0_352, %c0_353, %c0_354] : memref<2x16x32xf32, #tpu.memory_space<vmem>>, vector<1x16x32xf32>
    %415 = vector.shape_cast %414 : vector<1x16x32xf32> to vector<16x32xf32>
    %416 = vector.broadcast %410 : vector<1x32xf32> to vector<16x32xf32>
    %417 = arith.mulf %415, %416 : vector<16x32xf32>
    %418 = vector.broadcast %413 : vector<1x32xf32> to vector<16x32xf32>
    %419 = arith.addf %417, %418 : vector<16x32xf32>
    %cst_355 = arith.constant 0.000000e+00 : f32
    %420 = vector.broadcast %cst_355 : f32 to vector<16x32xf32>
    %421 = arith.maximumf %419, %420 : vector<16x32xf32>
    %c0_356 = arith.constant 0 : index
    %c0_357 = arith.constant 0 : index
    %c0_358 = arith.constant 0 : index
    %422 = vector.load %arg19[%c0_356, %c0_357, %c0_358] : memref<2x16x32xf32, #tpu.memory_space<vmem>>, vector<1x16x32xf32>
    %423 = vector.shape_cast %422 : vector<1x16x32xf32> to vector<16x32xf32>
    %424 = vector.shape_cast %421 : vector<16x32xf32> to vector<1x16x32xf32>
    tpu.vector_store %arg19[%c0_356, %c0_357, %c0_358], %424 {strides = array<i32>} : memref<2x16x32xf32, #tpu.memory_space<vmem>>, vector<1x16x32xf32>,
    %c1_359 = arith.constant 1 : index
    %c0_360 = arith.constant 0 : index
    %c0_361 = arith.constant 0 : index
    %425 = vector.load %arg19[%c1_359, %c0_360, %c0_361] : memref<2x16x32xf32, #tpu.memory_space<vmem>>, vector<1x16x32xf32>
    %426 = vector.shape_cast %425 : vector<1x16x32xf32> to vector<16x32xf32>
    %427 = vector.broadcast %410 : vector<1x32xf32> to vector<16x32xf32>
    %428 = arith.mulf %426, %427 : vector<16x32xf32>
    %429 = vector.broadcast %413 : vector<1x32xf32> to vector<16x32xf32>
    %430 = arith.addf %428, %429 : vector<16x32xf32>
    %cst_362 = arith.constant 0.000000e+00 : f32
    %431 = vector.broadcast %cst_362 : f32 to vector<16x32xf32>
    %432 = arith.maximumf %430, %431 : vector<16x32xf32>
    %c1_363 = arith.constant 1 : index
    %c0_364 = arith.constant 0 : index
    %c0_365 = arith.constant 0 : index
    %433 = vector.load %arg19[%c1_363, %c0_364, %c0_365] : memref<2x16x32xf32, #tpu.memory_space<vmem>>, vector<1x16x32xf32>
    %434 = vector.shape_cast %433 : vector<1x16x32xf32> to vector<16x32xf32>
    %435 = vector.shape_cast %432 : vector<16x32xf32> to vector<1x16x32xf32>
    tpu.vector_store %arg19[%c1_363, %c0_364, %c0_365], %435 {strides = array<i32>} : memref<2x16x32xf32, #tpu.memory_space<vmem>>, vector<1x16x32xf32>,
    %c0_366 = arith.constant 0 : index
    %c0_367 = arith.constant 0 : index
    %c0_368 = arith.constant 0 : index
    %436 = vector.load %arg19[%c0_366, %c0_367, %c0_368] : memref<2x16x32xf32, #tpu.memory_space<vmem>>, vector<1x16x32xf32>
    %437 = vector.shape_cast %436 : vector<1x16x32xf32> to vector<16x32xf32>
    %cst_369 = arith.constant 0.000000e+00 : f32
    %438 = vector.broadcast %cst_369 : f32 to vector<4x64xf32>
    %c0_370 = arith.constant 0 : index
    %c0_371 = arith.constant 0 : index
    %c0_372 = arith.constant 0 : index
    %439 = vector.load %arg2[%c0_370, %c0_371, %c0_372] : memref<9x4x16xf32, #tpu.memory_space<vmem>>, vector<1x4x16xf32>
    %440 = vector.shape_cast %439 : vector<1x4x16xf32> to vector<4x16xf32>
    %cst_373 = arith.constant dense<0.000000e+00> : vector<4x32xf32>
    %441 = tpu.matmul %440, %437, %cst_373 {dimension_numbers = #tpu.dot_dimension_numbers<[1], [0], [0], [1], [0, 0, 1, 1], [], []>} : vector<4x16xf32>, vector<16x32xf32>, vector<4x32xf32> -> vector<4x32xf32>
    %c0_374 = arith.constant 0 : index
    %c0_375 = arith.constant 0 : index
    %c0_376 = arith.constant 0 : index
    %442 = vector.load %arg6[%c0_374, %c0_375, %c0_376] : memref<9x32x64xf32, #tpu.memory_space<vmem>>, vector<1x32x64xf32>
    %443 = vector.shape_cast %442 : vector<1x32x64xf32> to vector<32x64xf32>
    %cst_377 = arith.constant dense<0.000000e+00> : vector<4x64xf32>
    %444 = tpu.matmul %441, %443, %cst_377 {dimension_numbers = #tpu.dot_dimension_numbers<[1], [0], [0], [1], [0, 0, 1, 1], [], []>} : vector<4x32xf32>, vector<32x64xf32>, vector<4x64xf32> -> vector<4x64xf32>
    %445 = arith.addf %438, %444 : vector<4x64xf32>
    %c1_378 = arith.constant 1 : index
    %c0_379 = arith.constant 0 : index
    %c0_380 = arith.constant 0 : index
    %446 = vector.load %arg2[%c1_378, %c0_379, %c0_380] : memref<9x4x16xf32, #tpu.memory_space<vmem>>, vector<1x4x16xf32>
    %447 = vector.shape_cast %446 : vector<1x4x16xf32> to vector<4x16xf32>
    %cst_381 = arith.constant dense<0.000000e+00> : vector<4x32xf32>
    %448 = tpu.matmul %447, %437, %cst_381 {dimension_numbers = #tpu.dot_dimension_numbers<[1], [0], [0], [1], [0, 0, 1, 1], [], []>} : vector<4x16xf32>, vector<16x32xf32>, vector<4x32xf32> -> vector<4x32xf32>
    %c1_382 = arith.constant 1 : index
    %c0_383 = arith.constant 0 : index
    %c0_384 = arith.constant 0 : index
    %449 = vector.load %arg6[%c1_382, %c0_383, %c0_384] : memref<9x32x64xf32, #tpu.memory_space<vmem>>, vector<1x32x64xf32>
    %450 = vector.shape_cast %449 : vector<1x32x64xf32> to vector<32x64xf32>
    %cst_385 = arith.constant dense<0.000000e+00> : vector<4x64xf32>
    %451 = tpu.matmul %448, %450, %cst_385 {dimension_numbers = #tpu.dot_dimension_numbers<[1], [0], [0], [1], [0, 0, 1, 1], [], []>} : vector<4x32xf32>, vector<32x64xf32>, vector<4x64xf32> -> vector<4x64xf32>
    %452 = arith.addf %445, %451 : vector<4x64xf32>
    %c2_386 = arith.constant 2 : index
    %c0_387 = arith.constant 0 : index
    %c0_388 = arith.constant 0 : index
    %453 = vector.load %arg2[%c2_386, %c0_387, %c0_388] : memref<9x4x16xf32, #tpu.memory_space<vmem>>, vector<1x4x16xf32>
    %454 = vector.shape_cast %453 : vector<1x4x16xf32> to vector<4x16xf32>
    %cst_389 = arith.constant dense<0.000000e+00> : vector<4x32xf32>
    %455 = tpu.matmul %454, %437, %cst_389 {dimension_numbers = #tpu.dot_dimension_numbers<[1], [0], [0], [1], [0, 0, 1, 1], [], []>} : vector<4x16xf32>, vector<16x32xf32>, vector<4x32xf32> -> vector<4x32xf32>
    %c2_390 = arith.constant 2 : index
    %c0_391 = arith.constant 0 : index
    %c0_392 = arith.constant 0 : index
    %456 = vector.load %arg6[%c2_390, %c0_391, %c0_392] : memref<9x32x64xf32, #tpu.memory_space<vmem>>, vector<1x32x64xf32>
    %457 = vector.shape_cast %456 : vector<1x32x64xf32> to vector<32x64xf32>
    %cst_393 = arith.constant dense<0.000000e+00> : vector<4x64xf32>
    %458 = tpu.matmul %455, %457, %cst_393 {dimension_numbers = #tpu.dot_dimension_numbers<[1], [0], [0], [1], [0, 0, 1, 1], [], []>} : vector<4x32xf32>, vector<32x64xf32>, vector<4x64xf32> -> vector<4x64xf32>
    %459 = arith.addf %452, %458 : vector<4x64xf32>
    %c3_394 = arith.constant 3 : index
    %c0_395 = arith.constant 0 : index
    %c0_396 = arith.constant 0 : index
    %460 = vector.load %arg2[%c3_394, %c0_395, %c0_396] : memref<9x4x16xf32, #tpu.memory_space<vmem>>, vector<1x4x16xf32>
    %461 = vector.shape_cast %460 : vector<1x4x16xf32> to vector<4x16xf32>
    %cst_397 = arith.constant dense<0.000000e+00> : vector<4x32xf32>
    %462 = tpu.matmul %461, %437, %cst_397 {dimension_numbers = #tpu.dot_dimension_numbers<[1], [0], [0], [1], [0, 0, 1, 1], [], []>} : vector<4x16xf32>, vector<16x32xf32>, vector<4x32xf32> -> vector<4x32xf32>
    %c3_398 = arith.constant 3 : index
    %c0_399 = arith.constant 0 : index
    %c0_400 = arith.constant 0 : index
    %463 = vector.load %arg6[%c3_398, %c0_399, %c0_400] : memref<9x32x64xf32, #tpu.memory_space<vmem>>, vector<1x32x64xf32>
    %464 = vector.shape_cast %463 : vector<1x32x64xf32> to vector<32x64xf32>
    %cst_401 = arith.constant dense<0.000000e+00> : vector<4x64xf32>
    %465 = tpu.matmul %462, %464, %cst_401 {dimension_numbers = #tpu.dot_dimension_numbers<[1], [0], [0], [1], [0, 0, 1, 1], [], []>} : vector<4x32xf32>, vector<32x64xf32>, vector<4x64xf32> -> vector<4x64xf32>
    %466 = arith.addf %459, %465 : vector<4x64xf32>
    %c4_402 = arith.constant 4 : index
    %c0_403 = arith.constant 0 : index
    %c0_404 = arith.constant 0 : index
    %467 = vector.load %arg2[%c4_402, %c0_403, %c0_404] : memref<9x4x16xf32, #tpu.memory_space<vmem>>, vector<1x4x16xf32>
    %468 = vector.shape_cast %467 : vector<1x4x16xf32> to vector<4x16xf32>
    %cst_405 = arith.constant dense<0.000000e+00> : vector<4x32xf32>
    %469 = tpu.matmul %468, %437, %cst_405 {dimension_numbers = #tpu.dot_dimension_numbers<[1], [0], [0], [1], [0, 0, 1, 1], [], []>} : vector<4x16xf32>, vector<16x32xf32>, vector<4x32xf32> -> vector<4x32xf32>
    %c4_406 = arith.constant 4 : index
    %c0_407 = arith.constant 0 : index
    %c0_408 = arith.constant 0 : index
    %470 = vector.load %arg6[%c4_406, %c0_407, %c0_408] : memref<9x32x64xf32, #tpu.memory_space<vmem>>, vector<1x32x64xf32>
    %471 = vector.shape_cast %470 : vector<1x32x64xf32> to vector<32x64xf32>
    %cst_409 = arith.constant dense<0.000000e+00> : vector<4x64xf32>
    %472 = tpu.matmul %469, %471, %cst_409 {dimension_numbers = #tpu.dot_dimension_numbers<[1], [0], [0], [1], [0, 0, 1, 1], [], []>} : vector<4x32xf32>, vector<32x64xf32>, vector<4x64xf32> -> vector<4x64xf32>
    %473 = arith.addf %466, %472 : vector<4x64xf32>
    %c5_410 = arith.constant 5 : index
    %c0_411 = arith.constant 0 : index
    %c0_412 = arith.constant 0 : index
    %474 = vector.load %arg2[%c5_410, %c0_411, %c0_412] : memref<9x4x16xf32, #tpu.memory_space<vmem>>, vector<1x4x16xf32>
    %475 = vector.shape_cast %474 : vector<1x4x16xf32> to vector<4x16xf32>
    %cst_413 = arith.constant dense<0.000000e+00> : vector<4x32xf32>
    %476 = tpu.matmul %475, %437, %cst_413 {dimension_numbers = #tpu.dot_dimension_numbers<[1], [0], [0], [1], [0, 0, 1, 1], [], []>} : vector<4x16xf32>, vector<16x32xf32>, vector<4x32xf32> -> vector<4x32xf32>
    %c5_414 = arith.constant 5 : index
    %c0_415 = arith.constant 0 : index
    %c0_416 = arith.constant 0 : index
    %477 = vector.load %arg6[%c5_414, %c0_415, %c0_416] : memref<9x32x64xf32, #tpu.memory_space<vmem>>, vector<1x32x64xf32>
    %478 = vector.shape_cast %477 : vector<1x32x64xf32> to vector<32x64xf32>
    %cst_417 = arith.constant dense<0.000000e+00> : vector<4x64xf32>
    %479 = tpu.matmul %476, %478, %cst_417 {dimension_numbers = #tpu.dot_dimension_numbers<[1], [0], [0], [1], [0, 0, 1, 1], [], []>} : vector<4x32xf32>, vector<32x64xf32>, vector<4x64xf32> -> vector<4x64xf32>
    %480 = arith.addf %473, %479 : vector<4x64xf32>
    %c6_418 = arith.constant 6 : index
    %c0_419 = arith.constant 0 : index
    %c0_420 = arith.constant 0 : index
    %481 = vector.load %arg2[%c6_418, %c0_419, %c0_420] : memref<9x4x16xf32, #tpu.memory_space<vmem>>, vector<1x4x16xf32>
    %482 = vector.shape_cast %481 : vector<1x4x16xf32> to vector<4x16xf32>
    %cst_421 = arith.constant dense<0.000000e+00> : vector<4x32xf32>
    %483 = tpu.matmul %482, %437, %cst_421 {dimension_numbers = #tpu.dot_dimension_numbers<[1], [0], [0], [1], [0, 0, 1, 1], [], []>} : vector<4x16xf32>, vector<16x32xf32>, vector<4x32xf32> -> vector<4x32xf32>
    %c6_422 = arith.constant 6 : index
    %c0_423 = arith.constant 0 : index
    %c0_424 = arith.constant 0 : index
    %484 = vector.load %arg6[%c6_422, %c0_423, %c0_424] : memref<9x32x64xf32, #tpu.memory_space<vmem>>, vector<1x32x64xf32>
    %485 = vector.shape_cast %484 : vector<1x32x64xf32> to vector<32x64xf32>
    %cst_425 = arith.constant dense<0.000000e+00> : vector<4x64xf32>
    %486 = tpu.matmul %483, %485, %cst_425 {dimension_numbers = #tpu.dot_dimension_numbers<[1], [0], [0], [1], [0, 0, 1, 1], [], []>} : vector<4x32xf32>, vector<32x64xf32>, vector<4x64xf32> -> vector<4x64xf32>
    %487 = arith.addf %480, %486 : vector<4x64xf32>
    %c7_426 = arith.constant 7 : index
    %c0_427 = arith.constant 0 : index
    %c0_428 = arith.constant 0 : index
    %488 = vector.load %arg2[%c7_426, %c0_427, %c0_428] : memref<9x4x16xf32, #tpu.memory_space<vmem>>, vector<1x4x16xf32>
    %489 = vector.shape_cast %488 : vector<1x4x16xf32> to vector<4x16xf32>
    %cst_429 = arith.constant dense<0.000000e+00> : vector<4x32xf32>
    %490 = tpu.matmul %489, %437, %cst_429 {dimension_numbers = #tpu.dot_dimension_numbers<[1], [0], [0], [1], [0, 0, 1, 1], [], []>} : vector<4x16xf32>, vector<16x32xf32>, vector<4x32xf32> -> vector<4x32xf32>
    %c7_430 = arith.constant 7 : index
    %c0_431 = arith.constant 0 : index
    %c0_432 = arith.constant 0 : index
    %491 = vector.load %arg6[%c7_430, %c0_431, %c0_432] : memref<9x32x64xf32, #tpu.memory_space<vmem>>, vector<1x32x64xf32>
    %492 = vector.shape_cast %491 : vector<1x32x64xf32> to vector<32x64xf32>
    %cst_433 = arith.constant dense<0.000000e+00> : vector<4x64xf32>
    %493 = tpu.matmul %490, %492, %cst_433 {dimension_numbers = #tpu.dot_dimension_numbers<[1], [0], [0], [1], [0, 0, 1, 1], [], []>} : vector<4x32xf32>, vector<32x64xf32>, vector<4x64xf32> -> vector<4x64xf32>
    %494 = arith.addf %487, %493 : vector<4x64xf32>
    %c8_434 = arith.constant 8 : index
    %c0_435 = arith.constant 0 : index
    %c0_436 = arith.constant 0 : index
    %495 = vector.load %arg2[%c8_434, %c0_435, %c0_436] : memref<9x4x16xf32, #tpu.memory_space<vmem>>, vector<1x4x16xf32>
    %496 = vector.shape_cast %495 : vector<1x4x16xf32> to vector<4x16xf32>
    %cst_437 = arith.constant dense<0.000000e+00> : vector<4x32xf32>
    %497 = tpu.matmul %496, %437, %cst_437 {dimension_numbers = #tpu.dot_dimension_numbers<[1], [0], [0], [1], [0, 0, 1, 1], [], []>} : vector<4x16xf32>, vector<16x32xf32>, vector<4x32xf32> -> vector<4x32xf32>
    %c8_438 = arith.constant 8 : index
    %c0_439 = arith.constant 0 : index
    %c0_440 = arith.constant 0 : index
    %498 = vector.load %arg6[%c8_438, %c0_439, %c0_440] : memref<9x32x64xf32, #tpu.memory_space<vmem>>, vector<1x32x64xf32>
    %499 = vector.shape_cast %498 : vector<1x32x64xf32> to vector<32x64xf32>
    %cst_441 = arith.constant dense<0.000000e+00> : vector<4x64xf32>
    %500 = tpu.matmul %497, %499, %cst_441 {dimension_numbers = #tpu.dot_dimension_numbers<[1], [0], [0], [1], [0, 0, 1, 1], [], []>} : vector<4x32xf32>, vector<32x64xf32>, vector<4x64xf32> -> vector<4x64xf32>
    %501 = arith.addf %494, %500 : vector<4x64xf32>
    %c0_442 = arith.constant 0 : index
    %c0_443 = arith.constant 0 : index
    %c0_444 = arith.constant 0 : index
    %502 = vector.load %arg20[%c0_442, %c0_443, %c0_444] : memref<2x4x64xf32, #tpu.memory_space<vmem>>, vector<1x4x64xf32>
    %503 = vector.shape_cast %502 : vector<1x4x64xf32> to vector<4x64xf32>
    %504 = vector.shape_cast %501 : vector<4x64xf32> to vector<1x4x64xf32>
    tpu.vector_store %arg20[%c0_442, %c0_443, %c0_444], %504 {strides = array<i32>} : memref<2x4x64xf32, #tpu.memory_space<vmem>>, vector<1x4x64xf32>,
    %c1_445 = arith.constant 1 : index
    %c0_446 = arith.constant 0 : index
    %c0_447 = arith.constant 0 : index
    %505 = vector.load %arg19[%c1_445, %c0_446, %c0_447] : memref<2x16x32xf32, #tpu.memory_space<vmem>>, vector<1x16x32xf32>
    %506 = vector.shape_cast %505 : vector<1x16x32xf32> to vector<16x32xf32>
    %cst_448 = arith.constant 0.000000e+00 : f32
    %507 = vector.broadcast %cst_448 : f32 to vector<4x64xf32>
    %c0_449 = arith.constant 0 : index
    %c0_450 = arith.constant 0 : index
    %c0_451 = arith.constant 0 : index
    %508 = vector.load %arg2[%c0_449, %c0_450, %c0_451] : memref<9x4x16xf32, #tpu.memory_space<vmem>>, vector<1x4x16xf32>
    %509 = vector.shape_cast %508 : vector<1x4x16xf32> to vector<4x16xf32>
    %cst_452 = arith.constant dense<0.000000e+00> : vector<4x32xf32>
    %510 = tpu.matmul %509, %506, %cst_452 {dimension_numbers = #tpu.dot_dimension_numbers<[1], [0], [0], [1], [0, 0, 1, 1], [], []>} : vector<4x16xf32>, vector<16x32xf32>, vector<4x32xf32> -> vector<4x32xf32>
    %c0_453 = arith.constant 0 : index
    %c0_454 = arith.constant 0 : index
    %c0_455 = arith.constant 0 : index
    %511 = vector.load %arg6[%c0_453, %c0_454, %c0_455] : memref<9x32x64xf32, #tpu.memory_space<vmem>>, vector<1x32x64xf32>
    %512 = vector.shape_cast %511 : vector<1x32x64xf32> to vector<32x64xf32>
    %cst_456 = arith.constant dense<0.000000e+00> : vector<4x64xf32>
    %513 = tpu.matmul %510, %512, %cst_456 {dimension_numbers = #tpu.dot_dimension_numbers<[1], [0], [0], [1], [0, 0, 1, 1], [], []>} : vector<4x32xf32>, vector<32x64xf32>, vector<4x64xf32> -> vector<4x64xf32>
    %514 = arith.addf %507, %513 : vector<4x64xf32>
    %c1_457 = arith.constant 1 : index
    %c0_458 = arith.constant 0 : index
    %c0_459 = arith.constant 0 : index
    %515 = vector.load %arg2[%c1_457, %c0_458, %c0_459] : memref<9x4x16xf32, #tpu.memory_space<vmem>>, vector<1x4x16xf32>
    %516 = vector.shape_cast %515 : vector<1x4x16xf32> to vector<4x16xf32>
    %cst_460 = arith.constant dense<0.000000e+00> : vector<4x32xf32>
    %517 = tpu.matmul %516, %506, %cst_460 {dimension_numbers = #tpu.dot_dimension_numbers<[1], [0], [0], [1], [0, 0, 1, 1], [], []>} : vector<4x16xf32>, vector<16x32xf32>, vector<4x32xf32> -> vector<4x32xf32>
    %c1_461 = arith.constant 1 : index
    %c0_462 = arith.constant 0 : index
    %c0_463 = arith.constant 0 : index
    %518 = vector.load %arg6[%c1_461, %c0_462, %c0_463] : memref<9x32x64xf32, #tpu.memory_space<vmem>>, vector<1x32x64xf32>
    %519 = vector.shape_cast %518 : vector<1x32x64xf32> to vector<32x64xf32>
    %cst_464 = arith.constant dense<0.000000e+00> : vector<4x64xf32>
    %520 = tpu.matmul %517, %519, %cst_464 {dimension_numbers = #tpu.dot_dimension_numbers<[1], [0], [0], [1], [0, 0, 1, 1], [], []>} : vector<4x32xf32>, vector<32x64xf32>, vector<4x64xf32> -> vector<4x64xf32>
    %521 = arith.addf %514, %520 : vector<4x64xf32>
    %c2_465 = arith.constant 2 : index
    %c0_466 = arith.constant 0 : index
    %c0_467 = arith.constant 0 : index
    %522 = vector.load %arg2[%c2_465, %c0_466, %c0_467] : memref<9x4x16xf32, #tpu.memory_space<vmem>>, vector<1x4x16xf32>
    %523 = vector.shape_cast %522 : vector<1x4x16xf32> to vector<4x16xf32>
    %cst_468 = arith.constant dense<0.000000e+00> : vector<4x32xf32>
    %524 = tpu.matmul %523, %506, %cst_468 {dimension_numbers = #tpu.dot_dimension_numbers<[1], [0], [0], [1], [0, 0, 1, 1], [], []>} : vector<4x16xf32>, vector<16x32xf32>, vector<4x32xf32> -> vector<4x32xf32>
    %c2_469 = arith.constant 2 : index
    %c0_470 = arith.constant 0 : index
    %c0_471 = arith.constant 0 : index
    %525 = vector.load %arg6[%c2_469, %c0_470, %c0_471] : memref<9x32x64xf32, #tpu.memory_space<vmem>>, vector<1x32x64xf32>
    %526 = vector.shape_cast %525 : vector<1x32x64xf32> to vector<32x64xf32>
    %cst_472 = arith.constant dense<0.000000e+00> : vector<4x64xf32>
    %527 = tpu.matmul %524, %526, %cst_472 {dimension_numbers = #tpu.dot_dimension_numbers<[1], [0], [0], [1], [0, 0, 1, 1], [], []>} : vector<4x32xf32>, vector<32x64xf32>, vector<4x64xf32> -> vector<4x64xf32>
    %528 = arith.addf %521, %527 : vector<4x64xf32>
    %c3_473 = arith.constant 3 : index
    %c0_474 = arith.constant 0 : index
    %c0_475 = arith.constant 0 : index
    %529 = vector.load %arg2[%c3_473, %c0_474, %c0_475] : memref<9x4x16xf32, #tpu.memory_space<vmem>>, vector<1x4x16xf32>
    %530 = vector.shape_cast %529 : vector<1x4x16xf32> to vector<4x16xf32>
    %cst_476 = arith.constant dense<0.000000e+00> : vector<4x32xf32>
    %531 = tpu.matmul %530, %506, %cst_476 {dimension_numbers = #tpu.dot_dimension_numbers<[1], [0], [0], [1], [0, 0, 1, 1], [], []>} : vector<4x16xf32>, vector<16x32xf32>, vector<4x32xf32> -> vector<4x32xf32>
    %c3_477 = arith.constant 3 : index
    %c0_478 = arith.constant 0 : index
    %c0_479 = arith.constant 0 : index
    %532 = vector.load %arg6[%c3_477, %c0_478, %c0_479] : memref<9x32x64xf32, #tpu.memory_space<vmem>>, vector<1x32x64xf32>
    %533 = vector.shape_cast %532 : vector<1x32x64xf32> to vector<32x64xf32>
    %cst_480 = arith.constant dense<0.000000e+00> : vector<4x64xf32>
    %534 = tpu.matmul %531, %533, %cst_480 {dimension_numbers = #tpu.dot_dimension_numbers<[1], [0], [0], [1], [0, 0, 1, 1], [], []>} : vector<4x32xf32>, vector<32x64xf32>, vector<4x64xf32> -> vector<4x64xf32>
    %535 = arith.addf %528, %534 : vector<4x64xf32>
    %c4_481 = arith.constant 4 : index
    %c0_482 = arith.constant 0 : index
    %c0_483 = arith.constant 0 : index
    %536 = vector.load %arg2[%c4_481, %c0_482, %c0_483] : memref<9x4x16xf32, #tpu.memory_space<vmem>>, vector<1x4x16xf32>
    %537 = vector.shape_cast %536 : vector<1x4x16xf32> to vector<4x16xf32>
    %cst_484 = arith.constant dense<0.000000e+00> : vector<4x32xf32>
    %538 = tpu.matmul %537, %506, %cst_484 {dimension_numbers = #tpu.dot_dimension_numbers<[1], [0], [0], [1], [0, 0, 1, 1], [], []>} : vector<4x16xf32>, vector<16x32xf32>, vector<4x32xf32> -> vector<4x32xf32>
    %c4_485 = arith.constant 4 : index
    %c0_486 = arith.constant 0 : index
    %c0_487 = arith.constant 0 : index
    %539 = vector.load %arg6[%c4_485, %c0_486, %c0_487] : memref<9x32x64xf32, #tpu.memory_space<vmem>>, vector<1x32x64xf32>
    %540 = vector.shape_cast %539 : vector<1x32x64xf32> to vector<32x64xf32>
    %cst_488 = arith.constant dense<0.000000e+00> : vector<4x64xf32>
    %541 = tpu.matmul %538, %540, %cst_488 {dimension_numbers = #tpu.dot_dimension_numbers<[1], [0], [0], [1], [0, 0, 1, 1], [], []>} : vector<4x32xf32>, vector<32x64xf32>, vector<4x64xf32> -> vector<4x64xf32>
    %542 = arith.addf %535, %541 : vector<4x64xf32>
    %c5_489 = arith.constant 5 : index
    %c0_490 = arith.constant 0 : index
    %c0_491 = arith.constant 0 : index
    %543 = vector.load %arg2[%c5_489, %c0_490, %c0_491] : memref<9x4x16xf32, #tpu.memory_space<vmem>>, vector<1x4x16xf32>
    %544 = vector.shape_cast %543 : vector<1x4x16xf32> to vector<4x16xf32>
    %cst_492 = arith.constant dense<0.000000e+00> : vector<4x32xf32>
    %545 = tpu.matmul %544, %506, %cst_492 {dimension_numbers = #tpu.dot_dimension_numbers<[1], [0], [0], [1], [0, 0, 1, 1], [], []>} : vector<4x16xf32>, vector<16x32xf32>, vector<4x32xf32> -> vector<4x32xf32>
    %c5_493 = arith.constant 5 : index
    %c0_494 = arith.constant 0 : index
    %c0_495 = arith.constant 0 : index
    %546 = vector.load %arg6[%c5_493, %c0_494, %c0_495] : memref<9x32x64xf32, #tpu.memory_space<vmem>>, vector<1x32x64xf32>
    %547 = vector.shape_cast %546 : vector<1x32x64xf32> to vector<32x64xf32>
    %cst_496 = arith.constant dense<0.000000e+00> : vector<4x64xf32>
    %548 = tpu.matmul %545, %547, %cst_496 {dimension_numbers = #tpu.dot_dimension_numbers<[1], [0], [0], [1], [0, 0, 1, 1], [], []>} : vector<4x32xf32>, vector<32x64xf32>, vector<4x64xf32> -> vector<4x64xf32>
    %549 = arith.addf %542, %548 : vector<4x64xf32>
    %c6_497 = arith.constant 6 : index
    %c0_498 = arith.constant 0 : index
    %c0_499 = arith.constant 0 : index
    %550 = vector.load %arg2[%c6_497, %c0_498, %c0_499] : memref<9x4x16xf32, #tpu.memory_space<vmem>>, vector<1x4x16xf32>
    %551 = vector.shape_cast %550 : vector<1x4x16xf32> to vector<4x16xf32>
    %cst_500 = arith.constant dense<0.000000e+00> : vector<4x32xf32>
    %552 = tpu.matmul %551, %506, %cst_500 {dimension_numbers = #tpu.dot_dimension_numbers<[1], [0], [0], [1], [0, 0, 1, 1], [], []>} : vector<4x16xf32>, vector<16x32xf32>, vector<4x32xf32> -> vector<4x32xf32>
    %c6_501 = arith.constant 6 : index
    %c0_502 = arith.constant 0 : index
    %c0_503 = arith.constant 0 : index
    %553 = vector.load %arg6[%c6_501, %c0_502, %c0_503] : memref<9x32x64xf32, #tpu.memory_space<vmem>>, vector<1x32x64xf32>
    %554 = vector.shape_cast %553 : vector<1x32x64xf32> to vector<32x64xf32>
    %cst_504 = arith.constant dense<0.000000e+00> : vector<4x64xf32>
    %555 = tpu.matmul %552, %554, %cst_504 {dimension_numbers = #tpu.dot_dimension_numbers<[1], [0], [0], [1], [0, 0, 1, 1], [], []>} : vector<4x32xf32>, vector<32x64xf32>, vector<4x64xf32> -> vector<4x64xf32>
    %556 = arith.addf %549, %555 : vector<4x64xf32>
    %c7_505 = arith.constant 7 : index
    %c0_506 = arith.constant 0 : index
    %c0_507 = arith.constant 0 : index
    %557 = vector.load %arg2[%c7_505, %c0_506, %c0_507] : memref<9x4x16xf32, #tpu.memory_space<vmem>>, vector<1x4x16xf32>
    %558 = vector.shape_cast %557 : vector<1x4x16xf32> to vector<4x16xf32>
    %cst_508 = arith.constant dense<0.000000e+00> : vector<4x32xf32>
    %559 = tpu.matmul %558, %506, %cst_508 {dimension_numbers = #tpu.dot_dimension_numbers<[1], [0], [0], [1], [0, 0, 1, 1], [], []>} : vector<4x16xf32>, vector<16x32xf32>, vector<4x32xf32> -> vector<4x32xf32>
    %c7_509 = arith.constant 7 : index
    %c0_510 = arith.constant 0 : index
    %c0_511 = arith.constant 0 : index
    %560 = vector.load %arg6[%c7_509, %c0_510, %c0_511] : memref<9x32x64xf32, #tpu.memory_space<vmem>>, vector<1x32x64xf32>
    %561 = vector.shape_cast %560 : vector<1x32x64xf32> to vector<32x64xf32>
    %cst_512 = arith.constant dense<0.000000e+00> : vector<4x64xf32>
    %562 = tpu.matmul %559, %561, %cst_512 {dimension_numbers = #tpu.dot_dimension_numbers<[1], [0], [0], [1], [0, 0, 1, 1], [], []>} : vector<4x32xf32>, vector<32x64xf32>, vector<4x64xf32> -> vector<4x64xf32>
    %563 = arith.addf %556, %562 : vector<4x64xf32>
    %c8_513 = arith.constant 8 : index
    %c0_514 = arith.constant 0 : index
    %c0_515 = arith.constant 0 : index
    %564 = vector.load %arg2[%c8_513, %c0_514, %c0_515] : memref<9x4x16xf32, #tpu.memory_space<vmem>>, vector<1x4x16xf32>
    %565 = vector.shape_cast %564 : vector<1x4x16xf32> to vector<4x16xf32>
    %cst_516 = arith.constant dense<0.000000e+00> : vector<4x32xf32>
    %566 = tpu.matmul %565, %506, %cst_516 {dimension_numbers = #tpu.dot_dimension_numbers<[1], [0], [0], [1], [0, 0, 1, 1], [], []>} : vector<4x16xf32>, vector<16x32xf32>, vector<4x32xf32> -> vector<4x32xf32>
    %c8_517 = arith.constant 8 : index
    %c0_518 = arith.constant 0 : index
    %c0_519 = arith.constant 0 : index
    %567 = vector.load %arg6[%c8_517, %c0_518, %c0_519] : memref<9x32x64xf32, #tpu.memory_space<vmem>>, vector<1x32x64xf32>
    %568 = vector.shape_cast %567 : vector<1x32x64xf32> to vector<32x64xf32>
    %cst_520 = arith.constant dense<0.000000e+00> : vector<4x64xf32>
    %569 = tpu.matmul %566, %568, %cst_520 {dimension_numbers = #tpu.dot_dimension_numbers<[1], [0], [0], [1], [0, 0, 1, 1], [], []>} : vector<4x32xf32>, vector<32x64xf32>, vector<4x64xf32> -> vector<4x64xf32>
    %570 = arith.addf %563, %569 : vector<4x64xf32>
    %c1_521 = arith.constant 1 : index
    %c0_522 = arith.constant 0 : index
    %c0_523 = arith.constant 0 : index
    %571 = vector.load %arg20[%c1_521, %c0_522, %c0_523] : memref<2x4x64xf32, #tpu.memory_space<vmem>>, vector<1x4x64xf32>
    %572 = vector.shape_cast %571 : vector<1x4x64xf32> to vector<4x64xf32>
    %573 = vector.shape_cast %570 : vector<4x64xf32> to vector<1x4x64xf32>
    tpu.vector_store %arg20[%c1_521, %c0_522, %c0_523], %573 {strides = array<i32>} : memref<2x4x64xf32, #tpu.memory_space<vmem>>, vector<1x4x64xf32>,
    %cst_524 = arith.constant 0.000000e+00 : f32
    %574 = vector.broadcast %cst_524 : f32 to vector<1x64xf32>
    %c0_525 = arith.constant 0 : index
    %c0_526 = arith.constant 0 : index
    %c0_527 = arith.constant 0 : index
    %575 = vector.load %arg20[%c0_525, %c0_526, %c0_527] : memref<2x4x64xf32, #tpu.memory_space<vmem>>, vector<1x4x64xf32>
    %576 = vector.shape_cast %575 : vector<1x4x64xf32> to vector<4x64xf32>
    %cst_528 = arith.constant dense<0.000000e+00> : vector<64xf32>
    %577 = vector.multi_reduction <add>, %576, %cst_528 [0] : vector<4x64xf32> to vector<64xf32>
    %578 = vector.shape_cast %577 : vector<64xf32> to vector<1x64xf32>
    %579 = arith.addf %574, %578 : vector<1x64xf32>
    %c1_529 = arith.constant 1 : index
    %c0_530 = arith.constant 0 : index
    %c0_531 = arith.constant 0 : index
    %580 = vector.load %arg20[%c1_529, %c0_530, %c0_531] : memref<2x4x64xf32, #tpu.memory_space<vmem>>, vector<1x4x64xf32>
    %581 = vector.shape_cast %580 : vector<1x4x64xf32> to vector<4x64xf32>
    %cst_532 = arith.constant dense<0.000000e+00> : vector<64xf32>
    %582 = vector.multi_reduction <add>, %581, %cst_532 [0] : vector<4x64xf32> to vector<64xf32>
    %583 = vector.shape_cast %582 : vector<64xf32> to vector<1x64xf32>
    %584 = arith.addf %579, %583 : vector<1x64xf32>
    %cst_533 = arith.constant 1.250000e-01 : f32
    %585 = vector.broadcast %cst_533 : f32 to vector<1x64xf32>
    %586 = arith.mulf %584, %585 : vector<1x64xf32>
    %cst_534 = arith.constant 0.000000e+00 : f32
    %587 = vector.broadcast %cst_534 : f32 to vector<1x64xf32>
    %c0_535 = arith.constant 0 : index
    %c0_536 = arith.constant 0 : index
    %c0_537 = arith.constant 0 : index
    %588 = vector.load %arg20[%c0_535, %c0_536, %c0_537] : memref<2x4x64xf32, #tpu.memory_space<vmem>>, vector<1x4x64xf32>
    %589 = vector.shape_cast %588 : vector<1x4x64xf32> to vector<4x64xf32>
    %590 = vector.broadcast %586 : vector<1x64xf32> to vector<4x64xf32>
    %591 = arith.subf %589, %590 : vector<4x64xf32>
    %592 = arith.mulf %591, %591 : vector<4x64xf32>
    %cst_538 = arith.constant dense<0.000000e+00> : vector<64xf32>
    %593 = vector.multi_reduction <add>, %592, %cst_538 [0] : vector<4x64xf32> to vector<64xf32>
    %594 = vector.shape_cast %593 : vector<64xf32> to vector<1x64xf32>
    %595 = arith.addf %587, %594 : vector<1x64xf32>
    %c1_539 = arith.constant 1 : index
    %c0_540 = arith.constant 0 : index
    %c0_541 = arith.constant 0 : index
    %596 = vector.load %arg20[%c1_539, %c0_540, %c0_541] : memref<2x4x64xf32, #tpu.memory_space<vmem>>, vector<1x4x64xf32>
    %597 = vector.shape_cast %596 : vector<1x4x64xf32> to vector<4x64xf32>
    %598 = vector.broadcast %586 : vector<1x64xf32> to vector<4x64xf32>
    %599 = arith.subf %597, %598 : vector<4x64xf32>
    %600 = arith.mulf %599, %599 : vector<4x64xf32>
    %cst_542 = arith.constant dense<0.000000e+00> : vector<64xf32>
    %601 = vector.multi_reduction <add>, %600, %cst_542 [0] : vector<4x64xf32> to vector<64xf32>
    %602 = vector.shape_cast %601 : vector<64xf32> to vector<1x64xf32>
    %603 = arith.addf %595, %602 : vector<1x64xf32>
    %cst_543 = arith.constant 1.250000e-01 : f32
    %604 = vector.broadcast %cst_543 : f32 to vector<1x64xf32>
    %605 = arith.mulf %603, %604 : vector<1x64xf32>
    %cst_544 = arith.constant 9.99999974E-6 : f32
    %606 = vector.broadcast %cst_544 : f32 to vector<1x64xf32>
    %607 = arith.addf %605, %606 : vector<1x64xf32>
    %608 = math.rsqrt %607 : vector<1x64xf32>
    %c0_545 = arith.constant 0 : index
    %c0_546 = arith.constant 0 : index
    %609 = vector.load %arg12[%c0_545, %c0_546] : memref<1x64xf32, #tpu.memory_space<vmem>>, vector<1x64xf32>
    %610 = arith.mulf %609, %608 : vector<1x64xf32>
    %c0_547 = arith.constant 0 : index
    %c0_548 = arith.constant 0 : index
    %611 = vector.load %arg13[%c0_547, %c0_548] : memref<1x64xf32, #tpu.memory_space<vmem>>, vector<1x64xf32>
    %612 = arith.mulf %586, %610 : vector<1x64xf32>
    %613 = arith.subf %611, %612 : vector<1x64xf32>
    %c0_549 = arith.constant 0 : index
    %c0_550 = arith.constant 0 : index
    %c0_551 = arith.constant 0 : index
    %614 = vector.load %arg20[%c0_549, %c0_550, %c0_551] : memref<2x4x64xf32, #tpu.memory_space<vmem>>, vector<1x4x64xf32>
    %615 = vector.shape_cast %614 : vector<1x4x64xf32> to vector<4x64xf32>
    %616 = vector.broadcast %610 : vector<1x64xf32> to vector<4x64xf32>
    %617 = arith.mulf %615, %616 : vector<4x64xf32>
    %618 = vector.broadcast %613 : vector<1x64xf32> to vector<4x64xf32>
    %619 = arith.addf %617, %618 : vector<4x64xf32>
    %cst_552 = arith.constant 0.000000e+00 : f32
    %620 = vector.broadcast %cst_552 : f32 to vector<4x64xf32>
    %621 = arith.maximumf %619, %620 : vector<4x64xf32>
    %c0_553 = arith.constant 0 : index
    %c0_554 = arith.constant 0 : index
    %c0_555 = arith.constant 0 : index
    %622 = vector.load %arg20[%c0_553, %c0_554, %c0_555] : memref<2x4x64xf32, #tpu.memory_space<vmem>>, vector<1x4x64xf32>
    %623 = vector.shape_cast %622 : vector<1x4x64xf32> to vector<4x64xf32>
    %624 = vector.shape_cast %621 : vector<4x64xf32> to vector<1x4x64xf32>
    tpu.vector_store %arg20[%c0_553, %c0_554, %c0_555], %624 {strides = array<i32>} : memref<2x4x64xf32, #tpu.memory_space<vmem>>, vector<1x4x64xf32>,
    %c1_556 = arith.constant 1 : index
    %c0_557 = arith.constant 0 : index
    %c0_558 = arith.constant 0 : index
    %625 = vector.load %arg20[%c1_556, %c0_557, %c0_558] : memref<2x4x64xf32, #tpu.memory_space<vmem>>, vector<1x4x64xf32>
    %626 = vector.shape_cast %625 : vector<1x4x64xf32> to vector<4x64xf32>
    %627 = vector.broadcast %610 : vector<1x64xf32> to vector<4x64xf32>
    %628 = arith.mulf %626, %627 : vector<4x64xf32>
    %629 = vector.broadcast %613 : vector<1x64xf32> to vector<4x64xf32>
    %630 = arith.addf %628, %629 : vector<4x64xf32>
    %cst_559 = arith.constant 0.000000e+00 : f32
    %631 = vector.broadcast %cst_559 : f32 to vector<4x64xf32>
    %632 = arith.maximumf %630, %631 : vector<4x64xf32>
    %c1_560 = arith.constant 1 : index
    %c0_561 = arith.constant 0 : index
    %c0_562 = arith.constant 0 : index
    %633 = vector.load %arg20[%c1_560, %c0_561, %c0_562] : memref<2x4x64xf32, #tpu.memory_space<vmem>>, vector<1x4x64xf32>
    %634 = vector.shape_cast %633 : vector<1x4x64xf32> to vector<4x64xf32>
    %635 = vector.shape_cast %632 : vector<4x64xf32> to vector<1x4x64xf32>
    tpu.vector_store %arg20[%c1_560, %c0_561, %c0_562], %635 {strides = array<i32>} : memref<2x4x64xf32, #tpu.memory_space<vmem>>, vector<1x4x64xf32>,
    %c0_563 = arith.constant 0 : index
    %c0_564 = arith.constant 0 : index
    %636 = vector.load %arg7[%c0_563, %c0_564] : memref<1x64xf32, #tpu.memory_space<vmem>>, vector<1x64xf32>
    %c0_565 = arith.constant 0 : index
    %c0_566 = arith.constant 0 : index
    %c0_567 = arith.constant 0 : index
    %637 = vector.load %arg20[%c0_565, %c0_566, %c0_567] : memref<2x4x64xf32, #tpu.memory_space<vmem>>, vector<1x4x64xf32>
    %638 = vector.shape_cast %637 : vector<1x4x64xf32> to vector<4x64xf32>
    %cst_568 = arith.constant dense<0.000000e+00> : vector<1x4xf32>
    %639 = tpu.matmul %636, %638, %cst_568 {dimension_numbers = #tpu.dot_dimension_numbers<[1], [1], [0], [0], [0, 0, 1, 0], [], []>} : vector<1x64xf32>, vector<4x64xf32>, vector<1x4xf32> -> vector<1x4xf32>
    %c0_569 = arith.constant 0 : index
    %c0_570 = arith.constant 0 : index
    %640 = vector.load %arg3[%c0_569, %c0_570] : memref<4x256xf32, #tpu.memory_space<vmem>>, vector<4x256xf32>
    %cst_571 = arith.constant dense<0.000000e+00> : vector<1x256xf32>
    %641 = tpu.matmul %639, %640, %cst_571 {dimension_numbers = #tpu.dot_dimension_numbers<[1], [0], [0], [1], [0, 0, 1, 1], [], []>} : vector<1x4xf32>, vector<4x256xf32>, vector<1x256xf32> -> vector<1x256xf32>
    %c0_572 = arith.constant 0 : index
    %c0_573 = arith.constant 0 : index
    %c0_574 = arith.constant 0 : index
    %642 = vector.load %arg17[%c0_572, %c0_573, %c0_574] : memref<2x1x256xf32, #tpu.memory_space<vmem>>, vector<1x1x256xf32>
    %643 = vector.shape_cast %642 : vector<1x1x256xf32> to vector<1x256xf32>
    %644 = vector.shape_cast %641 : vector<1x256xf32> to vector<1x1x256xf32>
    tpu.vector_store %arg17[%c0_572, %c0_573, %c0_574], %644 {strides = array<i32>} : memref<2x1x256xf32, #tpu.memory_space<vmem>>, vector<1x1x256xf32>,
    %c0_575 = arith.constant 0 : index
    %c0_576 = arith.constant 0 : index
    %645 = vector.load %arg7[%c0_575, %c0_576] : memref<1x64xf32, #tpu.memory_space<vmem>>, vector<1x64xf32>
    %c1_577 = arith.constant 1 : index
    %c0_578 = arith.constant 0 : index
    %c0_579 = arith.constant 0 : index
    %646 = vector.load %arg20[%c1_577, %c0_578, %c0_579] : memref<2x4x64xf32, #tpu.memory_space<vmem>>, vector<1x4x64xf32>
    %647 = vector.shape_cast %646 : vector<1x4x64xf32> to vector<4x64xf32>
    %cst_580 = arith.constant dense<0.000000e+00> : vector<1x4xf32>
    %648 = tpu.matmul %645, %647, %cst_580 {dimension_numbers = #tpu.dot_dimension_numbers<[1], [1], [0], [0], [0, 0, 1, 0], [], []>} : vector<1x64xf32>, vector<4x64xf32>, vector<1x4xf32> -> vector<1x4xf32>
    %c0_581 = arith.constant 0 : index
    %c0_582 = arith.constant 0 : index
    %649 = vector.load %arg3[%c0_581, %c0_582] : memref<4x256xf32, #tpu.memory_space<vmem>>, vector<4x256xf32>
    %cst_583 = arith.constant dense<0.000000e+00> : vector<1x256xf32>
    %650 = tpu.matmul %648, %649, %cst_583 {dimension_numbers = #tpu.dot_dimension_numbers<[1], [0], [0], [1], [0, 0, 1, 1], [], []>} : vector<1x4xf32>, vector<4x256xf32>, vector<1x256xf32> -> vector<1x256xf32>
    %c1_584 = arith.constant 1 : index
    %c0_585 = arith.constant 0 : index
    %c0_586 = arith.constant 0 : index
    %651 = vector.load %arg17[%c1_584, %c0_585, %c0_586] : memref<2x1x256xf32, #tpu.memory_space<vmem>>, vector<1x1x256xf32>
    %652 = vector.shape_cast %651 : vector<1x1x256xf32> to vector<1x256xf32>
    %653 = vector.shape_cast %650 : vector<1x256xf32> to vector<1x1x256xf32>
    tpu.vector_store %arg17[%c1_584, %c0_585, %c0_586], %653 {strides = array<i32>} : memref<2x1x256xf32, #tpu.memory_space<vmem>>, vector<1x1x256xf32>,
    %cst_587 = arith.constant 0.000000e+00 : f32
    %654 = vector.broadcast %cst_587 : f32 to vector<1x1xf32>
    %c0_588 = arith.constant 0 : index
    %c0_589 = arith.constant 0 : index
    %c0_590 = arith.constant 0 : index
    %655 = vector.load %arg17[%c0_588, %c0_589, %c0_590] : memref<2x1x256xf32, #tpu.memory_space<vmem>>, vector<1x1x256xf32>
    %656 = vector.shape_cast %655 : vector<1x1x256xf32> to vector<1x256xf32>
    %cst_591 = arith.constant dense<0.000000e+00> : vector<1xf32>
    %657 = vector.multi_reduction <add>, %656, %cst_591 [1] : vector<1x256xf32> to vector<1xf32>
    %658 = vector.shape_cast %657 : vector<1xf32> to vector<1x1xf32>
    %659 = arith.addf %654, %658 : vector<1x1xf32>
    %c1_592 = arith.constant 1 : index
    %c0_593 = arith.constant 0 : index
    %c0_594 = arith.constant 0 : index
    %660 = vector.load %arg17[%c1_592, %c0_593, %c0_594] : memref<2x1x256xf32, #tpu.memory_space<vmem>>, vector<1x1x256xf32>
    %661 = vector.shape_cast %660 : vector<1x1x256xf32> to vector<1x256xf32>
    %cst_595 = arith.constant dense<0.000000e+00> : vector<1xf32>
    %662 = vector.multi_reduction <add>, %661, %cst_595 [1] : vector<1x256xf32> to vector<1xf32>
    %663 = vector.shape_cast %662 : vector<1xf32> to vector<1x1xf32>
    %664 = arith.addf %659, %663 : vector<1x1xf32>
    %cst_596 = arith.constant 0.001953125 : f32
    %665 = vector.broadcast %cst_596 : f32 to vector<1x1xf32>
    %666 = arith.mulf %664, %665 : vector<1x1xf32>
    %cst_597 = arith.constant 0.000000e+00 : f32
    %667 = vector.broadcast %cst_597 : f32 to vector<1x1xf32>
    %c0_598 = arith.constant 0 : index
    %c0_599 = arith.constant 0 : index
    %c0_600 = arith.constant 0 : index
    %668 = vector.load %arg17[%c0_598, %c0_599, %c0_600] : memref<2x1x256xf32, #tpu.memory_space<vmem>>, vector<1x1x256xf32>
    %669 = vector.shape_cast %668 : vector<1x1x256xf32> to vector<1x256xf32>
    %670 = vector.broadcast %666 : vector<1x1xf32> to vector<1x256xf32>
    %671 = arith.subf %669, %670 : vector<1x256xf32>
    %672 = arith.mulf %671, %671 : vector<1x256xf32>
    %cst_601 = arith.constant dense<0.000000e+00> : vector<1xf32>
    %673 = vector.multi_reduction <add>, %672, %cst_601 [1] : vector<1x256xf32> to vector<1xf32>
    %674 = vector.shape_cast %673 : vector<1xf32> to vector<1x1xf32>
    %675 = arith.addf %667, %674 : vector<1x1xf32>
    %c1_602 = arith.constant 1 : index
    %c0_603 = arith.constant 0 : index
    %c0_604 = arith.constant 0 : index
    %676 = vector.load %arg17[%c1_602, %c0_603, %c0_604] : memref<2x1x256xf32, #tpu.memory_space<vmem>>, vector<1x1x256xf32>
    %677 = vector.shape_cast %676 : vector<1x1x256xf32> to vector<1x256xf32>
    %678 = vector.broadcast %666 : vector<1x1xf32> to vector<1x256xf32>
    %679 = arith.subf %677, %678 : vector<1x256xf32>
    %680 = arith.mulf %679, %679 : vector<1x256xf32>
    %cst_605 = arith.constant dense<0.000000e+00> : vector<1xf32>
    %681 = vector.multi_reduction <add>, %680, %cst_605 [1] : vector<1x256xf32> to vector<1xf32>
    %682 = vector.shape_cast %681 : vector<1xf32> to vector<1x1xf32>
    %683 = arith.addf %675, %682 : vector<1x1xf32>
    %cst_606 = arith.constant 0.001953125 : f32
    %684 = vector.broadcast %cst_606 : f32 to vector<1x1xf32>
    %685 = arith.mulf %683, %684 : vector<1x1xf32>
    %cst_607 = arith.constant 9.99999974E-6 : f32
    %686 = vector.broadcast %cst_607 : f32 to vector<1x1xf32>
    %687 = arith.addf %685, %686 : vector<1x1xf32>
    %688 = math.rsqrt %687 : vector<1x1xf32>
    %c0_608 = arith.constant 0 : index
    %c0_609 = arith.constant 0 : index
    %689 = vector.load %arg14[%c0_608, %c0_609] : memref<1x1xf32, #tpu.memory_space<vmem>>, vector<1x1xf32>
    %690 = arith.mulf %689, %688 : vector<1x1xf32>
    %c0_610 = arith.constant 0 : index
    %c0_611 = arith.constant 0 : index
    %691 = vector.load %arg15[%c0_610, %c0_611] : memref<1x1xf32, #tpu.memory_space<vmem>>, vector<1x1xf32>
    %692 = arith.mulf %666, %690 : vector<1x1xf32>
    %693 = arith.subf %691, %692 : vector<1x1xf32>
    %c0_612 = arith.constant 0 : index
    %c0_613 = arith.constant 0 : index
    %c0_614 = arith.constant 0 : index
    %694 = vector.load %arg17[%c0_612, %c0_613, %c0_614] : memref<2x1x256xf32, #tpu.memory_space<vmem>>, vector<1x1x256xf32>
    %695 = vector.shape_cast %694 : vector<1x1x256xf32> to vector<1x256xf32>
    %696 = vector.broadcast %690 : vector<1x1xf32> to vector<1x256xf32>
    %697 = arith.mulf %695, %696 : vector<1x256xf32>
    %698 = vector.broadcast %693 : vector<1x1xf32> to vector<1x256xf32>
    %699 = arith.addf %697, %698 : vector<1x256xf32>
    %cst_615 = arith.constant 0.000000e+00 : f32
    %700 = vector.broadcast %cst_615 : f32 to vector<1x256xf32>
    %701 = arith.maximumf %699, %700 : vector<1x256xf32>
    %c0_616 = arith.constant 0 : index
    %c0_617 = arith.constant 0 : index
    %c0_618 = arith.constant 0 : index
    %702 = vector.load %arg17[%c0_616, %c0_617, %c0_618] : memref<2x1x256xf32, #tpu.memory_space<vmem>>, vector<1x1x256xf32>
    %703 = vector.shape_cast %702 : vector<1x1x256xf32> to vector<1x256xf32>
    %704 = vector.shape_cast %701 : vector<1x256xf32> to vector<1x1x256xf32>
    tpu.vector_store %arg17[%c0_616, %c0_617, %c0_618], %704 {strides = array<i32>} : memref<2x1x256xf32, #tpu.memory_space<vmem>>, vector<1x1x256xf32>,
    %c1_619 = arith.constant 1 : index
    %c0_620 = arith.constant 0 : index
    %c0_621 = arith.constant 0 : index
    %705 = vector.load %arg17[%c1_619, %c0_620, %c0_621] : memref<2x1x256xf32, #tpu.memory_space<vmem>>, vector<1x1x256xf32>
    %706 = vector.shape_cast %705 : vector<1x1x256xf32> to vector<1x256xf32>
    %707 = vector.broadcast %690 : vector<1x1xf32> to vector<1x256xf32>
    %708 = arith.mulf %706, %707 : vector<1x256xf32>
    %709 = vector.broadcast %693 : vector<1x1xf32> to vector<1x256xf32>
    %710 = arith.addf %708, %709 : vector<1x256xf32>
    %cst_622 = arith.constant 0.000000e+00 : f32
    %711 = vector.broadcast %cst_622 : f32 to vector<1x256xf32>
    %712 = arith.maximumf %710, %711 : vector<1x256xf32>
    %c1_623 = arith.constant 1 : index
    %c0_624 = arith.constant 0 : index
    %c0_625 = arith.constant 0 : index
    %713 = vector.load %arg17[%c1_623, %c0_624, %c0_625] : memref<2x1x256xf32, #tpu.memory_space<vmem>>, vector<1x1x256xf32>
    %714 = vector.shape_cast %713 : vector<1x1x256xf32> to vector<1x256xf32>
    %715 = vector.shape_cast %712 : vector<1x256xf32> to vector<1x1x256xf32>
    tpu.vector_store %arg17[%c1_623, %c0_624, %c0_625], %715 {strides = array<i32>} : memref<2x1x256xf32, #tpu.memory_space<vmem>>, vector<1x1x256xf32>,
    return
  }
}

</mosaic_0001>

<llo_original>
// kernel: encdec_forward.1
$region0: #{encdec_forward.1}
  #allocation0 [shape = 'u32[]', space=smem, size = 0x4, offset = 0x4, fixed_abs, tag = 'smem constant byte address 0x4 - core index']
  #allocation1 [shape = 'u32[72,128]{1,0:T(1,128)}', space=vmem, size = 0x9000, scoped, tag = 'internal scratch']
  #allocation2 [shape = 'f32[2,64,16]{2,1,0:T(8,128)}', space=vmem, size = 0x10000, scoped, tag = 'scratch operand']
  #allocation3 [shape = 'f32[2,16,32]{2,1,0:T(8,128)}', space=vmem, size = 0x4000, scoped, tag = 'scratch operand']
  #allocation4 [shape = 'f32[2,4,64]{2,1,0:T(4,128)}', space=vmem, size = 0x1000, scoped, tag = 'scratch operand']
  #allocation5 [shape = 'f32[1,1]{1,0:T(1,128)S(1)}', space=vmem, size = 0x200, scoped, tag = 'scoped memory for encdec_forward.1']
  #allocation6 [shape = 'f32[1,1]{1,0:T(1,128)S(1)}', space=vmem, size = 0x200, scoped, tag = 'scoped memory for encdec_forward.1']
  %s0 = inlined_call_operand.hbm [shape: f32[9,64,256], index: 0, kind: input, shape index: {}]
  %s1 = inlined_call_operand.hbm [shape: f32[9,16,64], index: 1, kind: input, shape index: {}]
  %s2 = inlined_call_operand.vmem [shape: f32[9,4,16], index: 2, kind: input, shape index: {}]
  %s3 = inlined_call_operand.vmem [shape: f32[4,256], index: 3, kind: input, shape index: {}]
  %s4 = inlined_call_operand.vmem [shape: f32[9,1,16], index: 4, kind: input, shape index: {}]
  %s5 = inlined_call_operand.vmem [shape: f32[9,16,32], index: 5, kind: input, shape index: {}]
  %s6 = inlined_call_operand.vmem [shape: f32[9,32,64], index: 6, kind: input, shape index: {}]
  %s7 = inlined_call_operand.vmem [shape: f32[1,64], index: 7, kind: input, shape index: {}]
  %s8 = inlined_call_operand.vmem [shape: f32[1,16], index: 8, kind: input, shape index: {}]
  %s9 = inlined_call_operand.vmem [shape: f32[1,16], index: 9, kind: input, shape index: {}]
  %s10 = inlined_call_operand.vmem [shape: f32[1,32], index: 10, kind: input, shape index: {}]
  %s11 = inlined_call_operand.vmem [shape: f32[1,32], index: 11, kind: input, shape index: {}]
  %s12 = inlined_call_operand.vmem [shape: f32[1,64], index: 12, kind: input, shape index: {}]
  %s13 = inlined_call_operand.vmem [shape: f32[1,64], index: 13, kind: input, shape index: {}]
  %s14 = inlined_call_operand.<no memory space> [shape: f32[1,1], index: 14, kind: input, shape index: {}]
  %s15 = inlined_call_operand.<no memory space> [shape: f32[1,1], index: 15, kind: input, shape index: {}]
  %s16 = inlined_call_operand.vmem [shape: f32[2,256,1], index: 16, kind: input, shape index: {}]
  %s17 = inlined_call_operand.vmem [shape: f32[2,1,256], index: 17, kind: output, shape index: {}]
  %s18 = sld [smem:[#allocation0]]
  $region86: #{encdec_forward.1} parent=0
    _
  %s20 = ssub.s32 1, %s18
  %s21 = scalar_select 0, %s20, %s18
  %v22 = vstv %s14
  %23 = vst [vmem:[#allocation5] sm:$0x1] %v22
  %v24 = vstv %s15
  %25 = vst [vmem:[#allocation6] sm:$0x1] %v24
  $region1: #{encdec_forward.1} parent=0
    #allocation7 [shape = 'u8[589824]{0}', space=vmem, size = 0x90000, scoped, tag = 'input window, operand 0, single buffered']
    #allocation8 [shape = 's32[1]{0}', space=sflag, size = 0x4, scoped, tag = 'scoped memory for encdec_forward.1']
    #allocation9 [shape = 'u8[73728]{0}', space=vmem, size = 0x12000, scoped, tag = 'input window, operand 1, single buffered']
    #allocation10 [shape = 's32[1]{0}', space=sflag, size = 0x4, scoped, tag = 'scoped memory for encdec_forward.1']
    %26 = vsyncpa [#allocation8], 0
    %27 = vsyncpa [#allocation10], 0
    // Predicated region
    $region2: #{encdec_forward.1} parent=1 // pred_check
      _
    $region3: #{encdec_forward.1} parent=1 // pred_check_branch
      %29 = sbr.rel (0) target = $region5
    $region4: #{encdec_forward.1} parent=1 // pred_region
      %31 = vsyncadd [#allocation8], 0
      %s32 = sshll.u32 %s0, 4
      %s33 = int_to_ptr.hbm [resolvable:$true] %s32
      %s34 = sshll.u32 [#allocation7], 4
      %s35 = int_to_ptr.vmem [resolvable:$true] %s34
      %40 = dma.hbm_to_vmem [thread:$0]  %s33, 18432, %s35, [#allocation8], 256, 256, 16
    $region5: #{encdec_forward.1} parent=1 // pred_fallthru
      _
    // Predicated region
    $region6: #{encdec_forward.1} parent=1 // pred_check
      _
    $region7: #{encdec_forward.1} parent=1 // pred_check_branch
      %42 = sbr.rel (0) target = $region9
    $region8: #{encdec_forward.1} parent=1 // pred_region
      %44 = vsyncadd [#allocation10], 0
      %s45 = sshll.u32 %s1, 4
      %s46 = int_to_ptr.hbm [resolvable:$true] %s45
      %s47 = sshll.u32 [#allocation9], 4
      %s48 = int_to_ptr.vmem [resolvable:$true] %s47
      %53 = dma.hbm_to_vmem [thread:$0]  %s46, 2304, %s48, [#allocation10], 128, 128, 8
    $region9: #{encdec_forward.1} parent=1 // pred_fallthru
      _
    // Predicated region
    $region10: #{encdec_forward.1} parent=1 // pred_check
      _
    $region11: #{encdec_forward.1} parent=1 // pred_check_branch
      %55 = sbr.rel (0) target = $region13
    $region12: #{encdec_forward.1} parent=1 // pred_region
      _
    $region13: #{encdec_forward.1} parent=1 // pred_fallthru
      _
    // Predicated region
    $region14: #{encdec_forward.1} parent=1 // pred_check
      _
    $region15: #{encdec_forward.1} parent=1 // pred_check_branch
      %57 = sbr.rel (0) target = $region17
    $region16: #{encdec_forward.1} parent=1 // pred_region
      _
    $region17: #{encdec_forward.1} parent=1 // pred_fallthru
      _
    // Predicated region
    $region18: #{encdec_forward.1} parent=1 // pred_check
      _
    $region19: #{encdec_forward.1} parent=1 // pred_check_branch
      %59 = sbr.rel (0) target = $region21
    $region20: #{encdec_forward.1} parent=1 // pred_region
      _
    $region21: #{encdec_forward.1} parent=1 // pred_fallthru
      _
    // Predicated region
    $region22: #{encdec_forward.1} parent=1 // pred_check
      _
    $region23: #{encdec_forward.1} parent=1 // pred_check_branch
      %61 = sbr.rel (0) target = $region25
    $region24: #{encdec_forward.1} parent=1 // pred_region
      _
    $region25: #{encdec_forward.1} parent=1 // pred_fallthru
      _
    // Predicated region
    $region26: #{encdec_forward.1} parent=1 // pred_check
      _
    $region27: #{encdec_forward.1} parent=1 // pred_check_branch
      %63 = sbr.rel (0) target = $region29
    $region28: #{encdec_forward.1} parent=1 // pred_region
      _
    $region29: #{encdec_forward.1} parent=1 // pred_fallthru
      _
    // Predicated region
    $region30: #{encdec_forward.1} parent=1 // pred_check
      _
    $region31: #{encdec_forward.1} parent=1 // pred_check_branch
      %65 = sbr.rel (0) target = $region33
    $region32: #{encdec_forward.1} parent=1 // pred_region
      _
    $region33: #{encdec_forward.1} parent=1 // pred_fallthru
      _
    // Predicated region
    $region34: #{encdec_forward.1} parent=1 // pred_check
      _
    $region35: #{encdec_forward.1} parent=1 // pred_check_branch
      %67 = sbr.rel (0) target = $region37
    $region36: #{encdec_forward.1} parent=1 // pred_region
      _
    $region37: #{encdec_forward.1} parent=1 // pred_fallthru
      _
    // Predicated region
    $region38: #{encdec_forward.1} parent=1 // pred_check
      _
    $region39: #{encdec_forward.1} parent=1 // pred_check_branch
      %69 = sbr.rel (0) target = $region41
    $region40: #{encdec_forward.1} parent=1 // pred_region
      _
    $region41: #{encdec_forward.1} parent=1 // pred_fallthru
      _
    // Predicated region
    $region42: #{encdec_forward.1} parent=1 // pred_check
      _
    $region43: #{encdec_forward.1} parent=1 // pred_check_branch
      %71 = sbr.rel (0) target = $region45
    $region44: #{encdec_forward.1} parent=1 // pred_region
      _
    $region45: #{encdec_forward.1} parent=1 // pred_fallthru
      _
    // Predicated region
    $region46: #{encdec_forward.1} parent=1 // pred_check
      _
    $region47: #{encdec_forward.1} parent=1 // pred_check_branch
      %73 = sbr.rel (0) target = $region49
    $region48: #{encdec_forward.1} parent=1 // pred_region
      _
    $region49: #{encdec_forward.1} parent=1 // pred_fallthru
      _
    // Predicated region
    $region50: #{encdec_forward.1} parent=1 // pred_check
      _
    $region51: #{encdec_forward.1} parent=1 // pred_check_branch
      %75 = sbr.rel (0) target = $region53
    $region52: #{encdec_forward.1} parent=1 // pred_region
      _
    $region53: #{encdec_forward.1} parent=1 // pred_fallthru
      _
    // Predicated region
    $region54: #{encdec_forward.1} parent=1 // pred_check
      _
    $region55: #{encdec_forward.1} parent=1 // pred_check_branch
      %77 = sbr.rel (0) target = $region57
    $region56: #{encdec_forward.1} parent=1 // pred_region
      _
    $region57: #{encdec_forward.1} parent=1 // pred_fallthru
      _
    // Predicated region
    $region58: #{encdec_forward.1} parent=1 // pred_check
      _
    $region59: #{encdec_forward.1} parent=1 // pred_check_branch
      %79 = sbr.rel (0) target = $region61
    $region60: #{encdec_forward.1} parent=1 // pred_region
      _
    $region61: #{encdec_forward.1} parent=1 // pred_fallthru
      _
    // Predicated region
    $region62: #{encdec_forward.1} parent=1 // pred_check
      _
    $region63: #{encdec_forward.1} parent=1 // pred_check_branch
      %81 = sbr.rel (0) target = $region65
    $region64: #{encdec_forward.1} parent=1 // pred_region
      _
    $region65: #{encdec_forward.1} parent=1 // pred_fallthru
      _
    // Predicated region
    $region66: #{encdec_forward.1} parent=1 // pred_check
      _
    $region67: #{encdec_forward.1} parent=1 // pred_check_branch
      %83 = sbr.rel (0) target = $region69
    $region68: #{encdec_forward.1} parent=1 // pred_region
      _
    $region69: #{encdec_forward.1} parent=1 // pred_fallthru
      _
    // Predicated region
    $region70: #{encdec_forward.1} parent=1 // pred_check
      _
    $region71: #{encdec_forward.1} parent=1 // pred_check_branch
      %85 = sbr.rel (0) target = $region73
    $region72: #{encdec_forward.1} parent=1 // pred_region
      %87 = dma.done [#allocation8], 18432
    $region73: #{encdec_forward.1} parent=1 // pred_fallthru
      _
    // Predicated region
    $region74: #{encdec_forward.1} parent=1 // pred_check
      _
    $region75: #{encdec_forward.1} parent=1 // pred_check_branch
      %89 = sbr.rel (0) target = $region77
    $region76: #{encdec_forward.1} parent=1 // pred_region
      %91 = dma.done [#allocation10], 2304
    $region77: #{encdec_forward.1} parent=1 // pred_fallthru
      _
    %v92 = vld [vmem:[%s16] sm:$0xff]
    %v93 = vld [vmem:[%s16 + $0x8] sm:$0xff]
    %v94 = vld [vmem:[%s16 + $0x10] sm:$0xff]
    %v95 = vld [vmem:[%s16 + $0x18] sm:$0xff]
    %v96 = vld [vmem:[%s16 + $0x20] sm:$0xff]
    %v97 = vld [vmem:[%s16 + $0x28] sm:$0xff]
    %v98 = vld [vmem:[%s16 + $0x30] sm:$0xff]
    %v99 = vld [vmem:[%s16 + $0x38] sm:$0xff]
    %v100 = vld [vmem:[%s16 + $0x40] sm:$0xff]
    %v101 = vld [vmem:[%s16 + $0x48] sm:$0xff]
    %v102 = vld [vmem:[%s16 + $0x50] sm:$0xff]
    %v103 = vld [vmem:[%s16 + $0x58] sm:$0xff]
    %v104 = vld [vmem:[%s16 + $0x60] sm:$0xff]
    %v105 = vld [vmem:[%s16 + $0x68] sm:$0xff]
    %v106 = vld [vmem:[%s16 + $0x70] sm:$0xff]
    %v107 = vld [vmem:[%s16 + $0x78] sm:$0xff]
    %v108 = vld [vmem:[%s16 + $0x80] sm:$0xff]
    %v109 = vld [vmem:[%s16 + $0x88] sm:$0xff]
    %v110 = vld [vmem:[%s16 + $0x90] sm:$0xff]
    %v111 = vld [vmem:[%s16 + $0x98] sm:$0xff]
    %v112 = vld [vmem:[%s16 + $0xa0] sm:$0xff]
    %v113 = vld [vmem:[%s16 + $0xa8] sm:$0xff]
    %v114 = vld [vmem:[%s16 + $0xb0] sm:$0xff]
    %v115 = vld [vmem:[%s16 + $0xb8] sm:$0xff]
    %v116 = vld [vmem:[%s16 + $0xc0] sm:$0xff]
    %v117 = vld [vmem:[%s16 + $0xc8] sm:$0xff]
    %v118 = vld [vmem:[%s16 + $0xd0] sm:$0xff]
    %v119 = vld [vmem:[%s16 + $0xd8] sm:$0xff]
    %v120 = vld [vmem:[%s16 + $0xe0] sm:$0xff]
    %v121 = vld [vmem:[%s16 + $0xe8] sm:$0xff]
    %v122 = vld [vmem:[%s16 + $0xf0] sm:$0xff]
    %v123 = vld [vmem:[%s16 + $0xf8] sm:$0xff]
    %v124 = vld [vmem:[#allocation7] sm:$0xff]
    %v125 = vld [vmem:[#allocation7 + $0x8] sm:$0xff]
    %v126 = vld [vmem:[#allocation7 + $0x10] sm:$0xff]
    %v127 = vld [vmem:[#allocation7 + $0x18] sm:$0xff]
    %v128 = vld [vmem:[#allocation7 + $0x20] sm:$0xff]
    %v129 = vld [vmem:[#allocation7 + $0x28] sm:$0xff]
    %v130 = vld [vmem:[#allocation7 + $0x30] sm:$0xff]
    %v131 = vld [vmem:[#allocation7 + $0x38] sm:$0xff]
    %v132 = vld [vmem:[#allocation7 + $0x40] sm:$0xff]
    %v133 = vld [vmem:[#allocation7 + $0x48] sm:$0xff]
    %v134 = vld [vmem:[#allocation7 + $0x50] sm:$0xff]
    %v135 = vld [vmem:[#allocation7 + $0x58] sm:$0xff]
    %v136 = vld [vmem:[#allocation7 + $0x60] sm:$0xff]
    %v137 = vld [vmem:[#allocation7 + $0x68] sm:$0xff]
    %v138 = vld [vmem:[#allocation7 + $0x70] sm:$0xff]
    %v139 = vld [vmem:[#allocation7 + $0x78] sm:$0xff]
    %140 = vmatpush.msra.mxu0 %v107
    %141 = vmatpush.msra.mxu0 %v106
    %142 = vmatpush.msra.mxu0 %v105
    %143 = vmatpush.msra.mxu0 %v104
    %144 = vmatpush.msra.mxu0 %v103
    %145 = vmatpush.msra.mxu0 %v102
    %146 = vmatpush.msra.mxu0 %v101
    %147 = vmatpush.msra.mxu0 %v100
    %148 = vmatpush.msra.mxu0 %v99
    %149 = vmatpush.msra.mxu0 %v98
    %150 = vmatpush.msra.mxu0 %v97
    %151 = vmatpush.msra.mxu0 %v96
    %152 = vmatpush.msra.mxu0 %v95
    %153 = vmatpush.msra.mxu0 %v94
    %154 = vmatpush.msra.mxu0 %v93
    %155 = vmatpush.msra.mxu0 %v92
    %156 = vmatmul.f32.gmra.mxu0 %v124
    %v157 = vpop.f32.mrf.mxu0
    %v158 = vadd.f32 0.0, %v157
    %159 = vmatmul.f32.gmra.mxu0 %v126
    %v160 = vpop.f32.mrf.mxu0
    %v161 = vadd.f32 0.0, %v160
    %162 = vmatmul.f32.gmra.mxu0 %v128
    %v163 = vpop.f32.mrf.mxu0
    %v164 = vadd.f32 0.0, %v163
    %165 = vmatmul.f32.gmra.mxu0 %v130
    %v166 = vpop.f32.mrf.mxu0
    %v167 = vadd.f32 0.0, %v166
    %168 = vmatmul.f32.gmra.mxu0 %v132
    %v169 = vpop.f32.mrf.mxu0
    %v170 = vadd.f32 0.0, %v169
    %171 = vmatmul.f32.gmra.mxu0 %v134
    %v172 = vpop.f32.mrf.mxu0
    %v173 = vadd.f32 0.0, %v172
    %174 = vmatmul.f32.gmra.mxu0 %v136
    %v175 = vpop.f32.mrf.mxu0
    %v176 = vadd.f32 0.0, %v175
    %177 = vmatmul.f32.gmra.mxu0 %v138
    %v178 = vpop.f32.mrf.mxu0
    %v179 = vadd.f32 0.0, %v178
    %180 = vdwg.mxu0
    %181 = vmatpush.msra.mxu0 %v123
    %182 = vmatpush.msra.mxu0 %v122
    %183 = vmatpush.msra.mxu0 %v121
    %184 = vmatpush.msra.mxu0 %v120
    %185 = vmatpush.msra.mxu0 %v119
    %186 = vmatpush.msra.mxu0 %v118
    %187 = vmatpush.msra.mxu0 %v117
    %188 = vmatpush.msra.mxu0 %v116
    %189 = vmatpush.msra.mxu0 %v115
    %190 = vmatpush.msra.mxu0 %v114
    %191 = vmatpush.msra.mxu0 %v113
    %192 = vmatpush.msra.mxu0 %v112
    %193 = vmatpush.msra.mxu0 %v111
    %194 = vmatpush.msra.mxu0 %v110
    %195 = vmatpush.msra.mxu0 %v109
    %196 = vmatpush.msra.mxu0 %v108
    %197 = vmatmul.f32.gmra.mxu0 %v125
    %v198 = vpop.f32.mrf.mxu0
    %v199 = vadd.f32 %v158, %v198
    %200 = vmatmul.f32.gmra.mxu0 %v127
    %v201 = vpop.f32.mrf.mxu0
    %v202 = vadd.f32 %v161, %v201
    %203 = vmatmul.f32.gmra.mxu0 %v129
    %v204 = vpop.f32.mrf.mxu0
    %v205 = vadd.f32 %v164, %v204
    %206 = vmatmul.f32.gmra.mxu0 %v131
    %v207 = vpop.f32.mrf.mxu0
    %v208 = vadd.f32 %v167, %v207
    %209 = vmatmul.f32.gmra.mxu0 %v133
    %v210 = vpop.f32.mrf.mxu0
    %v211 = vadd.f32 %v170, %v210
    %212 = vmatmul.f32.gmra.mxu0 %v135
    %v213 = vpop.f32.mrf.mxu0
    %v214 = vadd.f32 %v173, %v213
    %215 = vmatmul.f32.gmra.mxu0 %v137
    %v216 = vpop.f32.mrf.mxu0
    %v217 = vadd.f32 %v176, %v216
    %218 = vmatmul.f32.gmra.mxu0 %v139
    %v219 = vpop.f32.mrf.mxu0
    %v220 = vadd.f32 %v179, %v219
    %221 = vdwg.mxu0
    %v222 = vld [vmem:[%s4] sm:$0x1]
    %224 = vset.pattern.permute.xlu0 0
    %225 = vperm.xlu0 %224, %v199
    %v226 = vpop.permute.xlu0 %225
    %229 = vset.pattern.permute.xlu0 0
    %230 = vperm.xlu0 %229, %v202
    %v231 = vpop.permute.xlu0 %230
    %234 = vset.pattern.permute.xlu0 0
    %235 = vperm.xlu0 %234, %v205
    %v236 = vpop.permute.xlu0 %235
    %239 = vset.pattern.permute.xlu0 0
    %240 = vperm.xlu0 %239, %v208
    %v241 = vpop.permute.xlu0 %240
    %244 = vset.pattern.permute.xlu0 0
    %245 = vperm.xlu0 %244, %v211
    %v246 = vpop.permute.xlu0 %245
    %249 = vset.pattern.permute.xlu0 0
    %250 = vperm.xlu0 %249, %v214
    %v251 = vpop.permute.xlu0 %250
    %254 = vset.pattern.permute.xlu0 0
    %255 = vperm.xlu0 %254, %v217
    %v256 = vpop.permute.xlu0 %255
    %259 = vset.pattern.permute.xlu0 0
    %260 = vperm.xlu0 %259, %v220
    %v261 = vpop.permute.xlu0 %260
    %v264 = vperm.slane %v222, 0
    %v266 = vmul.f32 %v226, %v264
    %v267 = vmul.f32 %v231, %v264
    %v268 = vmul.f32 %v236, %v264
    %v269 = vmul.f32 %v241, %v264
    %v270 = vmul.f32 %v246, %v264
    %v271 = vmul.f32 %v251, %v264
    %v272 = vmul.f32 %v256, %v264
    %v273 = vmul.f32 %v261, %v264
    %v274 = vadd.f32 %v266, 0.0
    %v275 = vadd.f32 %v267, 0.0
    %v276 = vadd.f32 %v268, 0.0
    %v277 = vadd.f32 %v269, 0.0
    %v278 = vadd.f32 %v270, 0.0
    %v279 = vadd.f32 %v271, 0.0
    %v280 = vadd.f32 %v272, 0.0
    %v281 = vadd.f32 %v273, 0.0
    %s282 = scalar_lea.vmem [#allocation7], 128
    %v283 = vld [vmem:[%s282] sm:$0xff]
    %v284 = vld [vmem:[%s282 + $0x8] sm:$0xff]
    %v285 = vld [vmem:[%s282 + $0x10] sm:$0xff]
    %v286 = vld [vmem:[%s282 + $0x18] sm:$0xff]
    %v287 = vld [vmem:[%s282 + $0x20] sm:$0xff]
    %v288 = vld [vmem:[%s282 + $0x28] sm:$0xff]
    %v289 = vld [vmem:[%s282 + $0x30] sm:$0xff]
    %v290 = vld [vmem:[%s282 + $0x38] sm:$0xff]
    %v291 = vld [vmem:[%s282 + $0x40] sm:$0xff]
    %v292 = vld [vmem:[%s282 + $0x48] sm:$0xff]
    %v293 = vld [vmem:[%s282 + $0x50] sm:$0xff]
    %v294 = vld [vmem:[%s282 + $0x58] sm:$0xff]
    %v295 = vld [vmem:[%s282 + $0x60] sm:$0xff]
    %v296 = vld [vmem:[%s282 + $0x68] sm:$0xff]
    %v297 = vld [vmem:[%s282 + $0x70] sm:$0xff]
    %v298 = vld [vmem:[%s282 + $0x78] sm:$0xff]
    %299 = vmatpush.msra.mxu0 %v107
    %300 = vmatpush.msra.mxu0 %v106
    %301 = vmatpush.msra.mxu0 %v105
    %302 = vmatpush.msra.mxu0 %v104
    %303 = vmatpush.msra.mxu0 %v103
    %304 = vmatpush.msra.mxu0 %v102
    %305 = vmatpush.msra.mxu0 %v101
    %306 = vmatpush.msra.mxu0 %v100
    %307 = vmatpush.msra.mxu0 %v99
    %308 = vmatpush.msra.mxu0 %v98
    %309 = vmatpush.msra.mxu0 %v97
    %310 = vmatpush.msra.mxu0 %v96
    %311 = vmatpush.msra.mxu0 %v95
    %312 = vmatpush.msra.mxu0 %v94
    %313 = vmatpush.msra.mxu0 %v93
    %314 = vmatpush.msra.mxu0 %v92
    %315 = vmatmul.f32.gmra.mxu0 %v283
    %v316 = vpop.f32.mrf.mxu0
    %v317 = vadd.f32 0.0, %v316
    %318 = vmatmul.f32.gmra.mxu0 %v285
    %v319 = vpop.f32.mrf.mxu0
    %v320 = vadd.f32 0.0, %v319
    %321 = vmatmul.f32.gmra.mxu0 %v287
    %v322 = vpop.f32.mrf.mxu0
    %v323 = vadd.f32 0.0, %v322
    %324 = vmatmul.f32.gmra.mxu0 %v289
    %v325 = vpop.f32.mrf.mxu0
    %v326 = vadd.f32 0.0, %v325
    %327 = vmatmul.f32.gmra.mxu0 %v291
    %v328 = vpop.f32.mrf.mxu0
    %v329 = vadd.f32 0.0, %v328
    %330 = vmatmul.f32.gmra.mxu0 %v293
    %v331 = vpop.f32.mrf.mxu0
    %v332 = vadd.f32 0.0, %v331
    %333 = vmatmul.f32.gmra.mxu0 %v295
    %v334 = vpop.f32.mrf.mxu0
    %v335 = vadd.f32 0.0, %v334
    %336 = vmatmul.f32.gmra.mxu0 %v297
    %v337 = vpop.f32.mrf.mxu0
    %v338 = vadd.f32 0.0, %v337
    %339 = vdwg.mxu0
    %340 = vmatpush.msra.mxu0 %v123
    %341 = vmatpush.msra.mxu0 %v122
    %342 = vmatpush.msra.mxu0 %v121
    %343 = vmatpush.msra.mxu0 %v120
    %344 = vmatpush.msra.mxu0 %v119
    %345 = vmatpush.msra.mxu0 %v118
    %346 = vmatpush.msra.mxu0 %v117
    %347 = vmatpush.msra.mxu0 %v116
    %348 = vmatpush.msra.mxu0 %v115
    %349 = vmatpush.msra.mxu0 %v114
    %350 = vmatpush.msra.mxu0 %v113
    %351 = vmatpush.msra.mxu0 %v112
    %352 = vmatpush.msra.mxu0 %v111
    %353 = vmatpush.msra.mxu0 %v110
    %354 = vmatpush.msra.mxu0 %v109
    %355 = vmatpush.msra.mxu0 %v108
    %356 = vmatmul.f32.gmra.mxu0 %v284
    %v357 = vpop.f32.mrf.mxu0
    %v358 = vadd.f32 %v317, %v357
    %359 = vmatmul.f32.gmra.mxu0 %v286
    %v360 = vpop.f32.mrf.mxu0
    %v361 = vadd.f32 %v320, %v360
    %362 = vmatmul.f32.gmra.mxu0 %v288
    %v363 = vpop.f32.mrf.mxu0
    %v364 = vadd.f32 %v323, %v363
    %365 = vmatmul.f32.gmra.mxu0 %v290
    %v366 = vpop.f32.mrf.mxu0
    %v367 = vadd.f32 %v326, %v366
    %368 = vmatmul.f32.gmra.mxu0 %v292
    %v369 = vpop.f32.mrf.mxu0
    %v370 = vadd.f32 %v329, %v369
    %371 = vmatmul.f32.gmra.mxu0 %v294
    %v372 = vpop.f32.mrf.mxu0
    %v373 = vadd.f32 %v332, %v372
    %374 = vmatmul.f32.gmra.mxu0 %v296
    %v375 = vpop.f32.mrf.mxu0
    %v376 = vadd.f32 %v335, %v375
    %377 = vmatmul.f32.gmra.mxu0 %v298
    %v378 = vpop.f32.mrf.mxu0
    %v379 = vadd.f32 %v338, %v378
    %380 = vdwg.mxu0
    %s381 = scalar_lea.vmem %s4, 1
    %v382 = vld [vmem:[%s381] sm:$0x1]
    %384 = vset.pattern.permute.xlu0 0
    %385 = vperm.xlu0 %384, %v358
    %v386 = vpop.permute.xlu0 %385
    %389 = vset.pattern.permute.xlu0 0
    %390 = vperm.xlu0 %389, %v361
    %v391 = vpop.permute.xlu0 %390
    %394 = vset.pattern.permute.xlu0 0
    %395 = vperm.xlu0 %394, %v364
    %v396 = vpop.permute.xlu0 %395
    %399 = vset.pattern.permute.xlu0 0
    %400 = vperm.xlu0 %399, %v367
    %v401 = vpop.permute.xlu0 %400
    %404 = vset.pattern.permute.xlu0 0
    %405 = vperm.xlu0 %404, %v370
    %v406 = vpop.permute.xlu0 %405
    %409 = vset.pattern.permute.xlu0 0
    %410 = vperm.xlu0 %409, %v373
    %v411 = vpop.permute.xlu0 %410
    %414 = vset.pattern.permute.xlu0 0
    %415 = vperm.xlu0 %414, %v376
    %v416 = vpop.permute.xlu0 %415
    %419 = vset.pattern.permute.xlu0 0
    %420 = vperm.xlu0 %419, %v379
    %v421 = vpop.permute.xlu0 %420
    %v424 = vperm.slane %v382, 0
    %v426 = vmul.f32 %v386, %v424
    %v427 = vmul.f32 %v391, %v424
    %v428 = vmul.f32 %v396, %v424
    %v429 = vmul.f32 %v401, %v424
    %v430 = vmul.f32 %v406, %v424
    %v431 = vmul.f32 %v411, %v424
    %v432 = vmul.f32 %v416, %v424
    %v433 = vmul.f32 %v421, %v424
    %v434 = vadd.f32 %v274, %v426
    %v435 = vadd.f32 %v275, %v427
    %v436 = vadd.f32 %v276, %v428
    %v437 = vadd.f32 %v277, %v429
    %v438 = vadd.f32 %v278, %v430
    %v439 = vadd.f32 %v279, %v431
    %v440 = vadd.f32 %v280, %v432
    %v441 = vadd.f32 %v281, %v433
    %s442 = scalar_lea.vmem [#allocation7], 256
    %v443 = vld [vmem:[%s442] sm:$0xff]
    %v444 = vld [vmem:[%s442 + $0x8] sm:$0xff]
    %v445 = vld [vmem:[%s442 + $0x10] sm:$0xff]
    %v446 = vld [vmem:[%s442 + $0x18] sm:$0xff]
    %v447 = vld [vmem:[%s442 + $0x20] sm:$0xff]
    %v448 = vld [vmem:[%s442 + $0x28] sm:$0xff]
    %v449 = vld [vmem:[%s442 + $0x30] sm:$0xff]
    %v450 = vld [vmem:[%s442 + $0x38] sm:$0xff]
    %v451 = vld [vmem:[%s442 + $0x40] sm:$0xff]
    %v452 = vld [vmem:[%s442 + $0x48] sm:$0xff]
    %v453 = vld [vmem:[%s442 + $0x50] sm:$0xff]
    %v454 = vld [vmem:[%s442 + $0x58] sm:$0xff]
    %v455 = vld [vmem:[%s442 + $0x60] sm:$0xff]
    %v456 = vld [vmem:[%s442 + $0x68] sm:$0xff]
    %v457 = vld [vmem:[%s442 + $0x70] sm:$0xff]
    %v458 = vld [vmem:[%s442 + $0x78] sm:$0xff]
    %459 = vmatpush.msra.mxu0 %v107
    %460 = vmatpush.msra.mxu0 %v106
    %461 = vmatpush.msra.mxu0 %v105
    %462 = vmatpush.msra.mxu0 %v104
    %463 = vmatpush.msra.mxu0 %v103
    %464 = vmatpush.msra.mxu0 %v102
    %465 = vmatpush.msra.mxu0 %v101
    %466 = vmatpush.msra.mxu0 %v100
    %467 = vmatpush.msra.mxu0 %v99
    %468 = vmatpush.msra.mxu0 %v98
    %469 = vmatpush.msra.mxu0 %v97
    %470 = vmatpush.msra.mxu0 %v96
    %471 = vmatpush.msra.mxu0 %v95
    %472 = vmatpush.msra.mxu0 %v94
    %473 = vmatpush.msra.mxu0 %v93
    %474 = vmatpush.msra.mxu0 %v92
    %475 = vmatmul.f32.gmra.mxu0 %v443
    %v476 = vpop.f32.mrf.mxu0
    %v477 = vadd.f32 0.0, %v476
    %478 = vmatmul.f32.gmra.mxu0 %v445
    %v479 = vpop.f32.mrf.mxu0
    %v480 = vadd.f32 0.0, %v479
    %481 = vmatmul.f32.gmra.mxu0 %v447
    %v482 = vpop.f32.mrf.mxu0
    %v483 = vadd.f32 0.0, %v482
    %484 = vmatmul.f32.gmra.mxu0 %v449
    %v485 = vpop.f32.mrf.mxu0
    %v486 = vadd.f32 0.0, %v485
    %487 = vmatmul.f32.gmra.mxu0 %v451
    %v488 = vpop.f32.mrf.mxu0
    %v489 = vadd.f32 0.0, %v488
    %490 = vmatmul.f32.gmra.mxu0 %v453
    %v491 = vpop.f32.mrf.mxu0
    %v492 = vadd.f32 0.0, %v491
    %493 = vmatmul.f32.gmra.mxu0 %v455
    %v494 = vpop.f32.mrf.mxu0
    %v495 = vadd.f32 0.0, %v494
    %496 = vmatmul.f32.gmra.mxu0 %v457
    %v497 = vpop.f32.mrf.mxu0
    %v498 = vadd.f32 0.0, %v497
    %499 = vdwg.mxu0
    %500 = vmatpush.msra.mxu0 %v123
    %501 = vmatpush.msra.mxu0 %v122
    %502 = vmatpush.msra.mxu0 %v121
    %503 = vmatpush.msra.mxu0 %v120
    %504 = vmatpush.msra.mxu0 %v119
    %505 = vmatpush.msra.mxu0 %v118
    %506 = vmatpush.msra.mxu0 %v117
    %507 = vmatpush.msra.mxu0 %v116
    %508 = vmatpush.msra.mxu0 %v115
    %509 = vmatpush.msra.mxu0 %v114
    %510 = vmatpush.msra.mxu0 %v113
    %511 = vmatpush.msra.mxu0 %v112
    %512 = vmatpush.msra.mxu0 %v111
    %513 = vmatpush.msra.mxu0 %v110
    %514 = vmatpush.msra.mxu0 %v109
    %515 = vmatpush.msra.mxu0 %v108
    %516 = vmatmul.f32.gmra.mxu0 %v444
    %v517 = vpop.f32.mrf.mxu0
    %v518 = vadd.f32 %v477, %v517
    %519 = vmatmul.f32.gmra.mxu0 %v446
    %v520 = vpop.f32.mrf.mxu0
    %v521 = vadd.f32 %v480, %v520
    %522 = vmatmul.f32.gmra.mxu0 %v448
    %v523 = vpop.f32.mrf.mxu0
    %v524 = vadd.f32 %v483, %v523
    %525 = vmatmul.f32.gmra.mxu0 %v450
    %v526 = vpop.f32.mrf.mxu0
    %v527 = vadd.f32 %v486, %v526
    %528 = vmatmul.f32.gmra.mxu0 %v452
    %v529 = vpop.f32.mrf.mxu0
    %v530 = vadd.f32 %v489, %v529
    %531 = vmatmul.f32.gmra.mxu0 %v454
    %v532 = vpop.f32.mrf.mxu0
    %v533 = vadd.f32 %v492, %v532
    %534 = vmatmul.f32.gmra.mxu0 %v456
    %v535 = vpop.f32.mrf.mxu0
    %v536 = vadd.f32 %v495, %v535
    %537 = vmatmul.f32.gmra.mxu0 %v458
    %v538 = vpop.f32.mrf.mxu0
    %v539 = vadd.f32 %v498, %v538
    %540 = vdwg.mxu0
    %s541 = scalar_lea.vmem %s4, 2
    %v542 = vld [vmem:[%s541] sm:$0x1]
    %544 = vset.pattern.permute.xlu0 0
    %545 = vperm.xlu0 %544, %v518
    %v546 = vpop.permute.xlu0 %545
    %549 = vset.pattern.permute.xlu0 0
    %550 = vperm.xlu0 %549, %v521
    %v551 = vpop.permute.xlu0 %550
    %554 = vset.pattern.permute.xlu0 0
    %555 = vperm.xlu0 %554, %v524
    %v556 = vpop.permute.xlu0 %555
    %559 = vset.pattern.permute.xlu0 0
    %560 = vperm.xlu0 %559, %v527
    %v561 = vpop.permute.xlu0 %560
    %564 = vset.pattern.permute.xlu0 0
    %565 = vperm.xlu0 %564, %v530
    %v566 = vpop.permute.xlu0 %565
    %569 = vset.pattern.permute.xlu0 0
    %570 = vperm.xlu0 %569, %v533
    %v571 = vpop.permute.xlu0 %570
    %574 = vset.pattern.permute.xlu0 0
    %575 = vperm.xlu0 %574, %v536
    %v576 = vpop.permute.xlu0 %575
    %579 = vset.pattern.permute.xlu0 0
    %580 = vperm.xlu0 %579, %v539
    %v581 = vpop.permute.xlu0 %580
    %v584 = vperm.slane %v542, 0
    %v586 = vmul.f32 %v546, %v584
    %v587 = vmul.f32 %v551, %v584
    %v588 = vmul.f32 %v556, %v584
    %v589 = vmul.f32 %v561, %v584
    %v590 = vmul.f32 %v566, %v584
    %v591 = vmul.f32 %v571, %v584
    %v592 = vmul.f32 %v576, %v584
    %v593 = vmul.f32 %v581, %v584
    %v594 = vadd.f32 %v434, %v586
    %v595 = vadd.f32 %v435, %v587
    %v596 = vadd.f32 %v436, %v588
    %v597 = vadd.f32 %v437, %v589
    %v598 = vadd.f32 %v438, %v590
    %v599 = vadd.f32 %v439, %v591
    %v600 = vadd.f32 %v440, %v592
    %v601 = vadd.f32 %v441, %v593
    %s602 = scalar_lea.vmem [#allocation7], 384
    %v603 = vld [vmem:[%s602] sm:$0xff]
    %v604 = vld [vmem:[%s602 + $0x8] sm:$0xff]
    %v605 = vld [vmem:[%s602 + $0x10] sm:$0xff]
    %v606 = vld [vmem:[%s602 + $0x18] sm:$0xff]
    %v607 = vld [vmem:[%s602 + $0x20] sm:$0xff]
    %v608 = vld [vmem:[%s602 + $0x28] sm:$0xff]
    %v609 = vld [vmem:[%s602 + $0x30] sm:$0xff]
    %v610 = vld [vmem:[%s602 + $0x38] sm:$0xff]
    %v611 = vld [vmem:[%s602 + $0x40] sm:$0xff]
    %v612 = vld [vmem:[%s602 + $0x48] sm:$0xff]
    %v613 = vld [vmem:[%s602 + $0x50] sm:$0xff]
    %v614 = vld [vmem:[%s602 + $0x58] sm:$0xff]
    %v615 = vld [vmem:[%s602 + $0x60] sm:$0xff]
    %v616 = vld [vmem:[%s602 + $0x68] sm:$0xff]
    %v617 = vld [vmem:[%s602 + $0x70] sm:$0xff]
    %v618 = vld [vmem:[%s602 + $0x78] sm:$0xff]
    %619 = vmatpush.msra.mxu0 %v107
    %620 = vmatpush.msra.mxu0 %v106
    %621 = vmatpush.msra.mxu0 %v105
    %622 = vmatpush.msra.mxu0 %v104
    %623 = vmatpush.msra.mxu0 %v103
    %624 = vmatpush.msra.mxu0 %v102
    %625 = vmatpush.msra.mxu0 %v101
    %626 = vmatpush.msra.mxu0 %v100
    %627 = vmatpush.msra.mxu0 %v99
    %628 = vmatpush.msra.mxu0 %v98
    %629 = vmatpush.msra.mxu0 %v97
    %630 = vmatpush.msra.mxu0 %v96
    %631 = vmatpush.msra.mxu0 %v95
    %632 = vmatpush.msra.mxu0 %v94
    %633 = vmatpush.msra.mxu0 %v93
    %634 = vmatpush.msra.mxu0 %v92
    %635 = vmatmul.f32.gmra.mxu0 %v603
    %v636 = vpop.f32.mrf.mxu0
    %v637 = vadd.f32 0.0, %v636
    %638 = vmatmul.f32.gmra.mxu0 %v605
    %v639 = vpop.f32.mrf.mxu0
    %v640 = vadd.f32 0.0, %v639
    %641 = vmatmul.f32.gmra.mxu0 %v607
    %v642 = vpop.f32.mrf.mxu0
    %v643 = vadd.f32 0.0, %v642
    %644 = vmatmul.f32.gmra.mxu0 %v609
    %v645 = vpop.f32.mrf.mxu0
    %v646 = vadd.f32 0.0, %v645
    %647 = vmatmul.f32.gmra.mxu0 %v611
    %v648 = vpop.f32.mrf.mxu0
    %v649 = vadd.f32 0.0, %v648
    %650 = vmatmul.f32.gmra.mxu0 %v613
    %v651 = vpop.f32.mrf.mxu0
    %v652 = vadd.f32 0.0, %v651
    %653 = vmatmul.f32.gmra.mxu0 %v615
    %v654 = vpop.f32.mrf.mxu0
    %v655 = vadd.f32 0.0, %v654
    %656 = vmatmul.f32.gmra.mxu0 %v617
    %v657 = vpop.f32.mrf.mxu0
    %v658 = vadd.f32 0.0, %v657
    %659 = vdwg.mxu0
    %660 = vmatpush.msra.mxu0 %v123
    %661 = vmatpush.msra.mxu0 %v122
    %662 = vmatpush.msra.mxu0 %v121
    %663 = vmatpush.msra.mxu0 %v120
    %664 = vmatpush.msra.mxu0 %v119
    %665 = vmatpush.msra.mxu0 %v118
    %666 = vmatpush.msra.mxu0 %v117
    %667 = vmatpush.msra.mxu0 %v116
    %668 = vmatpush.msra.mxu0 %v115
    %669 = vmatpush.msra.mxu0 %v114
    %670 = vmatpush.msra.mxu0 %v113
    %671 = vmatpush.msra.mxu0 %v112
    %672 = vmatpush.msra.mxu0 %v111
    %673 = vmatpush.msra.mxu0 %v110
    %674 = vmatpush.msra.mxu0 %v109
    %675 = vmatpush.msra.mxu0 %v108
    %676 = vmatmul.f32.gmra.mxu0 %v604
    %v677 = vpop.f32.mrf.mxu0
    %v678 = vadd.f32 %v637, %v677
    %679 = vmatmul.f32.gmra.mxu0 %v606
    %v680 = vpop.f32.mrf.mxu0
    %v681 = vadd.f32 %v640, %v680
    %682 = vmatmul.f32.gmra.mxu0 %v608
    %v683 = vpop.f32.mrf.mxu0
    %v684 = vadd.f32 %v643, %v683
    %685 = vmatmul.f32.gmra.mxu0 %v610
    %v686 = vpop.f32.mrf.mxu0
    %v687 = vadd.f32 %v646, %v686
    %688 = vmatmul.f32.gmra.mxu0 %v612
    %v689 = vpop.f32.mrf.mxu0
    %v690 = vadd.f32 %v649, %v689
    %691 = vmatmul.f32.gmra.mxu0 %v614
    %v692 = vpop.f32.mrf.mxu0
    %v693 = vadd.f32 %v652, %v692
    %694 = vmatmul.f32.gmra.mxu0 %v616
    %v695 = vpop.f32.mrf.mxu0
    %v696 = vadd.f32 %v655, %v695
    %697 = vmatmul.f32.gmra.mxu0 %v618
    %v698 = vpop.f32.mrf.mxu0
    %v699 = vadd.f32 %v658, %v698
    %700 = vdwg.mxu0
    %s701 = scalar_lea.vmem %s4, 3
    %v702 = vld [vmem:[%s701] sm:$0x1]
    %704 = vset.pattern.permute.xlu0 0
    %705 = vperm.xlu0 %704, %v678
    %v706 = vpop.permute.xlu0 %705
    %709 = vset.pattern.permute.xlu0 0
    %710 = vperm.xlu0 %709, %v681
    %v711 = vpop.permute.xlu0 %710
    %714 = vset.pattern.permute.xlu0 0
    %715 = vperm.xlu0 %714, %v684
    %v716 = vpop.permute.xlu0 %715
    %719 = vset.pattern.permute.xlu0 0
    %720 = vperm.xlu0 %719, %v687
    %v721 = vpop.permute.xlu0 %720
    %724 = vset.pattern.permute.xlu0 0
    %725 = vperm.xlu0 %724, %v690
    %v726 = vpop.permute.xlu0 %725
    %729 = vset.pattern.permute.xlu0 0
    %730 = vperm.xlu0 %729, %v693
    %v731 = vpop.permute.xlu0 %730
    %734 = vset.pattern.permute.xlu0 0
    %735 = vperm.xlu0 %734, %v696
    %v736 = vpop.permute.xlu0 %735
    %739 = vset.pattern.permute.xlu0 0
    %740 = vperm.xlu0 %739, %v699
    %v741 = vpop.permute.xlu0 %740
    %v744 = vperm.slane %v702, 0
    %v746 = vmul.f32 %v706, %v744
    %v747 = vmul.f32 %v711, %v744
    %v748 = vmul.f32 %v716, %v744
    %v749 = vmul.f32 %v721, %v744
    %v750 = vmul.f32 %v726, %v744
    %v751 = vmul.f32 %v731, %v744
    %v752 = vmul.f32 %v736, %v744
    %v753 = vmul.f32 %v741, %v744
    %v754 = vadd.f32 %v594, %v746
    %v755 = vadd.f32 %v595, %v747
    %v756 = vadd.f32 %v596, %v748
    %v757 = vadd.f32 %v597, %v749
    %v758 = vadd.f32 %v598, %v750
    %v759 = vadd.f32 %v599, %v751
    %v760 = vadd.f32 %v600, %v752
    %v761 = vadd.f32 %v601, %v753
    %s762 = scalar_lea.vmem [#allocation7], 512
    %v763 = vld [vmem:[%s762] sm:$0xff]
    %v764 = vld [vmem:[%s762 + $0x8] sm:$0xff]
    %v765 = vld [vmem:[%s762 + $0x10] sm:$0xff]
    %v766 = vld [vmem:[%s762 + $0x18] sm:$0xff]
    %v767 = vld [vmem:[%s762 + $0x20] sm:$0xff]
    %v768 = vld [vmem:[%s762 + $0x28] sm:$0xff]
    %v769 = vld [vmem:[%s762 + $0x30] sm:$0xff]
    %v770 = vld [vmem:[%s762 + $0x38] sm:$0xff]
    %v771 = vld [vmem:[%s762 + $0x40] sm:$0xff]
    %v772 = vld [vmem:[%s762 + $0x48] sm:$0xff]
    %v773 = vld [vmem:[%s762 + $0x50] sm:$0xff]
    %v774 = vld [vmem:[%s762 + $0x58] sm:$0xff]
    %v775 = vld [vmem:[%s762 + $0x60] sm:$0xff]
    %v776 = vld [vmem:[%s762 + $0x68] sm:$0xff]
    %v777 = vld [vmem:[%s762 + $0x70] sm:$0xff]
    %v778 = vld [vmem:[%s762 + $0x78] sm:$0xff]
    %779 = vmatpush.msra.mxu0 %v107
    %780 = vmatpush.msra.mxu0 %v106
    %781 = vmatpush.msra.mxu0 %v105
    %782 = vmatpush.msra.mxu0 %v104
    %783 = vmatpush.msra.mxu0 %v103
    %784 = vmatpush.msra.mxu0 %v102
    %785 = vmatpush.msra.mxu0 %v101
    %786 = vmatpush.msra.mxu0 %v100
    %787 = vmatpush.msra.mxu0 %v99
    %788 = vmatpush.msra.mxu0 %v98
    %789 = vmatpush.msra.mxu0 %v97
    %790 = vmatpush.msra.mxu0 %v96
    %791 = vmatpush.msra.mxu0 %v95
    %792 = vmatpush.msra.mxu0 %v94
    %793 = vmatpush.msra.mxu0 %v93
    %794 = vmatpush.msra.mxu0 %v92
    %795 = vmatmul.f32.gmra.mxu0 %v763
    %v796 = vpop.f32.mrf.mxu0
    %v797 = vadd.f32 0.0, %v796
    %798 = vmatmul.f32.gmra.mxu0 %v765
    %v799 = vpop.f32.mrf.mxu0
    %v800 = vadd.f32 0.0, %v799
    %801 = vmatmul.f32.gmra.mxu0 %v767
    %v802 = vpop.f32.mrf.mxu0
    %v803 = vadd.f32 0.0, %v802
    %804 = vmatmul.f32.gmra.mxu0 %v769
    %v805 = vpop.f32.mrf.mxu0
    %v806 = vadd.f32 0.0, %v805
    %807 = vmatmul.f32.gmra.mxu0 %v771
    %v808 = vpop.f32.mrf.mxu0
    %v809 = vadd.f32 0.0, %v808
    %810 = vmatmul.f32.gmra.mxu0 %v773
    %v811 = vpop.f32.mrf.mxu0
    %v812 = vadd.f32 0.0, %v811
    %813 = vmatmul.f32.gmra.mxu0 %v775
    %v814 = vpop.f32.mrf.mxu0
    %v815 = vadd.f32 0.0, %v814
    %816 = vmatmul.f32.gmra.mxu0 %v777
    %v817 = vpop.f32.mrf.mxu0
    %v818 = vadd.f32 0.0, %v817
    %819 = vdwg.mxu0
    %820 = vmatpush.msra.mxu0 %v123
    %821 = vmatpush.msra.mxu0 %v122
    %822 = vmatpush.msra.mxu0 %v121
    %823 = vmatpush.msra.mxu0 %v120
    %824 = vmatpush.msra.mxu0 %v119
    %825 = vmatpush.msra.mxu0 %v118
    %826 = vmatpush.msra.mxu0 %v117
    %827 = vmatpush.msra.mxu0 %v116
    %828 = vmatpush.msra.mxu0 %v115
    %829 = vmatpush.msra.mxu0 %v114
    %830 = vmatpush.msra.mxu0 %v113
    %831 = vmatpush.msra.mxu0 %v112
    %832 = vmatpush.msra.mxu0 %v111
    %833 = vmatpush.msra.mxu0 %v110
    %834 = vmatpush.msra.mxu0 %v109
    %835 = vmatpush.msra.mxu0 %v108
    %836 = vmatmul.f32.gmra.mxu0 %v764
    %v837 = vpop.f32.mrf.mxu0
    %v838 = vadd.f32 %v797, %v837
    %839 = vmatmul.f32.gmra.mxu0 %v766
    %v840 = vpop.f32.mrf.mxu0
    %v841 = vadd.f32 %v800, %v840
    %842 = vmatmul.f32.gmra.mxu0 %v768
    %v843 = vpop.f32.mrf.mxu0
    %v844 = vadd.f32 %v803, %v843
    %845 = vmatmul.f32.gmra.mxu0 %v770
    %v846 = vpop.f32.mrf.mxu0
    %v847 = vadd.f32 %v806, %v846
    %848 = vmatmul.f32.gmra.mxu0 %v772
    %v849 = vpop.f32.mrf.mxu0
    %v850 = vadd.f32 %v809, %v849
    %851 = vmatmul.f32.gmra.mxu0 %v774
    %v852 = vpop.f32.mrf.mxu0
    %v853 = vadd.f32 %v812, %v852
    %854 = vmatmul.f32.gmra.mxu0 %v776
    %v855 = vpop.f32.mrf.mxu0
    %v856 = vadd.f32 %v815, %v855
    %857 = vmatmul.f32.gmra.mxu0 %v778
    %v858 = vpop.f32.mrf.mxu0
    %v859 = vadd.f32 %v818, %v858
    %860 = vdwg.mxu0
    %s861 = scalar_lea.vmem %s4, 4
    %v862 = vld [vmem:[%s861] sm:$0x1]
    %864 = vset.pattern.permute.xlu0 0
    %865 = vperm.xlu0 %864, %v838
    %v866 = vpop.permute.xlu0 %865
    %869 = vset.pattern.permute.xlu0 0
    %870 = vperm.xlu0 %869, %v841
    %v871 = vpop.permute.xlu0 %870
    %874 = vset.pattern.permute.xlu0 0
    %875 = vperm.xlu0 %874, %v844
    %v876 = vpop.permute.xlu0 %875
    %879 = vset.pattern.permute.xlu0 0
    %880 = vperm.xlu0 %879, %v847
    %v881 = vpop.permute.xlu0 %880
    %884 = vset.pattern.permute.xlu0 0
    %885 = vperm.xlu0 %884, %v850
    %v886 = vpop.permute.xlu0 %885
    %889 = vset.pattern.permute.xlu0 0
    %890 = vperm.xlu0 %889, %v853
    %v891 = vpop.permute.xlu0 %890
    %894 = vset.pattern.permute.xlu0 0
    %895 = vperm.xlu0 %894, %v856
    %v896 = vpop.permute.xlu0 %895
    %899 = vset.pattern.permute.xlu0 0
    %900 = vperm.xlu0 %899, %v859
    %v901 = vpop.permute.xlu0 %900
    %v904 = vperm.slane %v862, 0
    %v906 = vmul.f32 %v866, %v904
    %v907 = vmul.f32 %v871, %v904
    %v908 = vmul.f32 %v876, %v904
    %v909 = vmul.f32 %v881, %v904
    %v910 = vmul.f32 %v886, %v904
    %v911 = vmul.f32 %v891, %v904
    %v912 = vmul.f32 %v896, %v904
    %v913 = vmul.f32 %v901, %v904
    %v914 = vadd.f32 %v754, %v906
    %v915 = vadd.f32 %v755, %v907
    %v916 = vadd.f32 %v756, %v908
    %v917 = vadd.f32 %v757, %v909
    %v918 = vadd.f32 %v758, %v910
    %v919 = vadd.f32 %v759, %v911
    %v920 = vadd.f32 %v760, %v912
    %v921 = vadd.f32 %v761, %v913
    %s922 = scalar_lea.vmem [#allocation7], 640
    %v923 = vld [vmem:[%s922] sm:$0xff]
    %v924 = vld [vmem:[%s922 + $0x8] sm:$0xff]
    %v925 = vld [vmem:[%s922 + $0x10] sm:$0xff]
    %v926 = vld [vmem:[%s922 + $0x18] sm:$0xff]
    %v927 = vld [vmem:[%s922 + $0x20] sm:$0xff]
    %v928 = vld [vmem:[%s922 + $0x28] sm:$0xff]
    %v929 = vld [vmem:[%s922 + $0x30] sm:$0xff]
    %v930 = vld [vmem:[%s922 + $0x38] sm:$0xff]
    %v931 = vld [vmem:[%s922 + $0x40] sm:$0xff]
    %v932 = vld [vmem:[%s922 + $0x48] sm:$0xff]
    %v933 = vld [vmem:[%s922 + $0x50] sm:$0xff]
    %v934 = vld [vmem:[%s922 + $0x58] sm:$0xff]
    %v935 = vld [vmem:[%s922 + $0x60] sm:$0xff]
    %v936 = vld [vmem:[%s922 + $0x68] sm:$0xff]
    %v937 = vld [vmem:[%s922 + $0x70] sm:$0xff]
    %v938 = vld [vmem:[%s922 + $0x78] sm:$0xff]
    %939 = vmatpush.msra.mxu0 %v107
    %940 = vmatpush.msra.mxu0 %v106
    %941 = vmatpush.msra.mxu0 %v105
    %942 = vmatpush.msra.mxu0 %v104
    %943 = vmatpush.msra.mxu0 %v103
    %944 = vmatpush.msra.mxu0 %v102
    %945 = vmatpush.msra.mxu0 %v101
    %946 = vmatpush.msra.mxu0 %v100
    %947 = vmatpush.msra.mxu0 %v99
    %948 = vmatpush.msra.mxu0 %v98
    %949 = vmatpush.msra.mxu0 %v97
    %950 = vmatpush.msra.mxu0 %v96
    %951 = vmatpush.msra.mxu0 %v95
    %952 = vmatpush.msra.mxu0 %v94
    %953 = vmatpush.msra.mxu0 %v93
    %954 = vmatpush.msra.mxu0 %v92
    %955 = vmatmul.f32.gmra.mxu0 %v923
    %v956 = vpop.f32.mrf.mxu0
    %v957 = vadd.f32 0.0, %v956
    %958 = vmatmul.f32.gmra.mxu0 %v925
    %v959 = vpop.f32.mrf.mxu0
    %v960 = vadd.f32 0.0, %v959
    %961 = vmatmul.f32.gmra.mxu0 %v927
    %v962 = vpop.f32.mrf.mxu0
    %v963 = vadd.f32 0.0, %v962
    %964 = vmatmul.f32.gmra.mxu0 %v929
    %v965 = vpop.f32.mrf.mxu0
    %v966 = vadd.f32 0.0, %v965
    %967 = vmatmul.f32.gmra.mxu0 %v931
    %v968 = vpop.f32.mrf.mxu0
    %v969 = vadd.f32 0.0, %v968
    %970 = vmatmul.f32.gmra.mxu0 %v933
    %v971 = vpop.f32.mrf.mxu0
    %v972 = vadd.f32 0.0, %v971
    %973 = vmatmul.f32.gmra.mxu0 %v935
    %v974 = vpop.f32.mrf.mxu0
    %v975 = vadd.f32 0.0, %v974
    %976 = vmatmul.f32.gmra.mxu0 %v937
    %v977 = vpop.f32.mrf.mxu0
    %v978 = vadd.f32 0.0, %v977
    %979 = vdwg.mxu0
    %980 = vmatpush.msra.mxu0 %v123
    %981 = vmatpush.msra.mxu0 %v122
    %982 = vmatpush.msra.mxu0 %v121
    %983 = vmatpush.msra.mxu0 %v120
    %984 = vmatpush.msra.mxu0 %v119
    %985 = vmatpush.msra.mxu0 %v118
    %986 = vmatpush.msra.mxu0 %v117
    %987 = vmatpush.msra.mxu0 %v116
    %988 = vmatpush.msra.mxu0 %v115
    %989 = vmatpush.msra.mxu0 %v114
    %990 = vmatpush.msra.mxu0 %v113
    %991 = vmatpush.msra.mxu0 %v112
    %992 = vmatpush.msra.mxu0 %v111
    %993 = vmatpush.msra.mxu0 %v110
    %994 = vmatpush.msra.mxu0 %v109
    %995 = vmatpush.msra.mxu0 %v108
    %996 = vmatmul.f32.gmra.mxu0 %v924
    %v997 = vpop.f32.mrf.mxu0
    %v998 = vadd.f32 %v957, %v997
    %999 = vmatmul.f32.gmra.mxu0 %v926
    %v1000 = vpop.f32.mrf.mxu0
    %v1001 = vadd.f32 %v960, %v1000
    %1002 = vmatmul.f32.gmra.mxu0 %v928
    %v1003 = vpop.f32.mrf.mxu0
    %v1004 = vadd.f32 %v963, %v1003
    %1005 = vmatmul.f32.gmra.mxu0 %v930
    %v1006 = vpop.f32.mrf.mxu0
    %v1007 = vadd.f32 %v966, %v1006
    %1008 = vmatmul.f32.gmra.mxu0 %v932
    %v1009 = vpop.f32.mrf.mxu0
    %v1010 = vadd.f32 %v969, %v1009
    %1011 = vmatmul.f32.gmra.mxu0 %v934
    %v1012 = vpop.f32.mrf.mxu0
    %v1013 = vadd.f32 %v972, %v1012
    %1014 = vmatmul.f32.gmra.mxu0 %v936
    %v1015 = vpop.f32.mrf.mxu0
    %v1016 = vadd.f32 %v975, %v1015
    %1017 = vmatmul.f32.gmra.mxu0 %v938
    %v1018 = vpop.f32.mrf.mxu0
    %v1019 = vadd.f32 %v978, %v1018
    %1020 = vdwg.mxu0
    %s1021 = scalar_lea.vmem %s4, 5
    %v1022 = vld [vmem:[%s1021] sm:$0x1]
    %1024 = vset.pattern.permute.xlu0 0
    %1025 = vperm.xlu0 %1024, %v998
    %v1026 = vpop.permute.xlu0 %1025
    %1029 = vset.pattern.permute.xlu0 0
    %1030 = vperm.xlu0 %1029, %v1001
    %v1031 = vpop.permute.xlu0 %1030
    %1034 = vset.pattern.permute.xlu0 0
    %1035 = vperm.xlu0 %1034, %v1004
    %v1036 = vpop.permute.xlu0 %1035
    %1039 = vset.pattern.permute.xlu0 0
    %1040 = vperm.xlu0 %1039, %v1007
    %v1041 = vpop.permute.xlu0 %1040
    %1044 = vset.pattern.permute.xlu0 0
    %1045 = vperm.xlu0 %1044, %v1010
    %v1046 = vpop.permute.xlu0 %1045
    %1049 = vset.pattern.permute.xlu0 0
    %1050 = vperm.xlu0 %1049, %v1013
    %v1051 = vpop.permute.xlu0 %1050
    %1054 = vset.pattern.permute.xlu0 0
    %1055 = vperm.xlu0 %1054, %v1016
    %v1056 = vpop.permute.xlu0 %1055
    %1059 = vset.pattern.permute.xlu0 0
    %1060 = vperm.xlu0 %1059, %v1019
    %v1061 = vpop.permute.xlu0 %1060
    %v1064 = vperm.slane %v1022, 0
    %v1066 = vmul.f32 %v1026, %v1064
    %v1067 = vmul.f32 %v1031, %v1064
    %v1068 = vmul.f32 %v1036, %v1064
    %v1069 = vmul.f32 %v1041, %v1064
    %v1070 = vmul.f32 %v1046, %v1064
    %v1071 = vmul.f32 %v1051, %v1064
    %v1072 = vmul.f32 %v1056, %v1064
    %v1073 = vmul.f32 %v1061, %v1064
    %v1074 = vadd.f32 %v914, %v1066
    %v1075 = vadd.f32 %v915, %v1067
    %v1076 = vadd.f32 %v916, %v1068
    %v1077 = vadd.f32 %v917, %v1069
    %v1078 = vadd.f32 %v918, %v1070
    %v1079 = vadd.f32 %v919, %v1071
    %v1080 = vadd.f32 %v920, %v1072
    %v1081 = vadd.f32 %v921, %v1073
    %s1082 = scalar_lea.vmem [#allocation7], 768
    %v1083 = vld [vmem:[%s1082] sm:$0xff]
    %v1084 = vld [vmem:[%s1082 + $0x8] sm:$0xff]
    %v1085 = vld [vmem:[%s1082 + $0x10] sm:$0xff]
    %v1086 = vld [vmem:[%s1082 + $0x18] sm:$0xff]
    %v1087 = vld [vmem:[%s1082 + $0x20] sm:$0xff]
    %v1088 = vld [vmem:[%s1082 + $0x28] sm:$0xff]
    %v1089 = vld [vmem:[%s1082 + $0x30] sm:$0xff]
    %v1090 = vld [vmem:[%s1082 + $0x38] sm:$0xff]
    %v1091 = vld [vmem:[%s1082 + $0x40] sm:$0xff]
    %v1092 = vld [vmem:[%s1082 + $0x48] sm:$0xff]
    %v1093 = vld [vmem:[%s1082 + $0x50] sm:$0xff]
    %v1094 = vld [vmem:[%s1082 + $0x58] sm:$0xff]
    %v1095 = vld [vmem:[%s1082 + $0x60] sm:$0xff]
    %v1096 = vld [vmem:[%s1082 + $0x68] sm:$0xff]
    %v1097 = vld [vmem:[%s1082 + $0x70] sm:$0xff]
    %v1098 = vld [vmem:[%s1082 + $0x78] sm:$0xff]
    %1099 = vmatpush.msra.mxu0 %v107
    %1100 = vmatpush.msra.mxu0 %v106
    %1101 = vmatpush.msra.mxu0 %v105
    %1102 = vmatpush.msra.mxu0 %v104
    %1103 = vmatpush.msra.mxu0 %v103
    %1104 = vmatpush.msra.mxu0 %v102
    %1105 = vmatpush.msra.mxu0 %v101
    %1106 = vmatpush.msra.mxu0 %v100
    %1107 = vmatpush.msra.mxu0 %v99
    %1108 = vmatpush.msra.mxu0 %v98
    %1109 = vmatpush.msra.mxu0 %v97
    %1110 = vmatpush.msra.mxu0 %v96
    %1111 = vmatpush.msra.mxu0 %v95
    %1112 = vmatpush.msra.mxu0 %v94
    %1113 = vmatpush.msra.mxu0 %v93
    %1114 = vmatpush.msra.mxu0 %v92
    %1115 = vmatmul.f32.gmra.mxu0 %v1083
    %v1116 = vpop.f32.mrf.mxu0
    %v1117 = vadd.f32 0.0, %v1116
    %1118 = vmatmul.f32.gmra.mxu0 %v1085
    %v1119 = vpop.f32.mrf.mxu0
    %v1120 = vadd.f32 0.0, %v1119
    %1121 = vmatmul.f32.gmra.mxu0 %v1087
    %v1122 = vpop.f32.mrf.mxu0
    %v1123 = vadd.f32 0.0, %v1122
    %1124 = vmatmul.f32.gmra.mxu0 %v1089
    %v1125 = vpop.f32.mrf.mxu0
    %v1126 = vadd.f32 0.0, %v1125
    %1127 = vmatmul.f32.gmra.mxu0 %v1091
    %v1128 = vpop.f32.mrf.mxu0
    %v1129 = vadd.f32 0.0, %v1128
    %1130 = vmatmul.f32.gmra.mxu0 %v1093
    %v1131 = vpop.f32.mrf.mxu0
    %v1132 = vadd.f32 0.0, %v1131
    %1133 = vmatmul.f32.gmra.mxu0 %v1095
    %v1134 = vpop.f32.mrf.mxu0
    %v1135 = vadd.f32 0.0, %v1134
    %1136 = vmatmul.f32.gmra.mxu0 %v1097
    %v1137 = vpop.f32.mrf.mxu0
    %v1138 = vadd.f32 0.0, %v1137
    %1139 = vdwg.mxu0
    %1140 = vmatpush.msra.mxu0 %v123
    %1141 = vmatpush.msra.mxu0 %v122
    %1142 = vmatpush.msra.mxu0 %v121
    %1143 = vmatpush.msra.mxu0 %v120
    %1144 = vmatpush.msra.mxu0 %v119
    %1145 = vmatpush.msra.mxu0 %v118
    %1146 = vmatpush.msra.mxu0 %v117
    %1147 = vmatpush.msra.mxu0 %v116
    %1148 = vmatpush.msra.mxu0 %v115
    %1149 = vmatpush.msra.mxu0 %v114
    %1150 = vmatpush.msra.mxu0 %v113
    %1151 = vmatpush.msra.mxu0 %v112
    %1152 = vmatpush.msra.mxu0 %v111
    %1153 = vmatpush.msra.mxu0 %v110
    %1154 = vmatpush.msra.mxu0 %v109
    %1155 = vmatpush.msra.mxu0 %v108
    %1156 = vmatmul.f32.gmra.mxu0 %v1084
    %v1157 = vpop.f32.mrf.mxu0
    %v1158 = vadd.f32 %v1117, %v1157
    %1159 = vmatmul.f32.gmra.mxu0 %v1086
    %v1160 = vpop.f32.mrf.mxu0
    %v1161 = vadd.f32 %v1120, %v1160
    %1162 = vmatmul.f32.gmra.mxu0 %v1088
    %v1163 = vpop.f32.mrf.mxu0
    %v1164 = vadd.f32 %v1123, %v1163
    %1165 = vmatmul.f32.gmra.mxu0 %v1090
    %v1166 = vpop.f32.mrf.mxu0
    %v1167 = vadd.f32 %v1126, %v1166
    %1168 = vmatmul.f32.gmra.mxu0 %v1092
    %v1169 = vpop.f32.mrf.mxu0
    %v1170 = vadd.f32 %v1129, %v1169
    %1171 = vmatmul.f32.gmra.mxu0 %v1094
    %v1172 = vpop.f32.mrf.mxu0
    %v1173 = vadd.f32 %v1132, %v1172
    %1174 = vmatmul.f32.gmra.mxu0 %v1096
    %v1175 = vpop.f32.mrf.mxu0
    %v1176 = vadd.f32 %v1135, %v1175
    %1177 = vmatmul.f32.gmra.mxu0 %v1098
    %v1178 = vpop.f32.mrf.mxu0
    %v1179 = vadd.f32 %v1138, %v1178
    %1180 = vdwg.mxu0
    %s1181 = scalar_lea.vmem %s4, 6
    %v1182 = vld [vmem:[%s1181] sm:$0x1]
    %1184 = vset.pattern.permute.xlu0 0
    %1185 = vperm.xlu0 %1184, %v1158
    %v1186 = vpop.permute.xlu0 %1185
    %1189 = vset.pattern.permute.xlu0 0
    %1190 = vperm.xlu0 %1189, %v1161
    %v1191 = vpop.permute.xlu0 %1190
    %1194 = vset.pattern.permute.xlu0 0
    %1195 = vperm.xlu0 %1194, %v1164
    %v1196 = vpop.permute.xlu0 %1195
    %1199 = vset.pattern.permute.xlu0 0
    %1200 = vperm.xlu0 %1199, %v1167
    %v1201 = vpop.permute.xlu0 %1200
    %1204 = vset.pattern.permute.xlu0 0
    %1205 = vperm.xlu0 %1204, %v1170
    %v1206 = vpop.permute.xlu0 %1205
    %1209 = vset.pattern.permute.xlu0 0
    %1210 = vperm.xlu0 %1209, %v1173
    %v1211 = vpop.permute.xlu0 %1210
    %1214 = vset.pattern.permute.xlu0 0
    %1215 = vperm.xlu0 %1214, %v1176
    %v1216 = vpop.permute.xlu0 %1215
    %1219 = vset.pattern.permute.xlu0 0
    %1220 = vperm.xlu0 %1219, %v1179
    %v1221 = vpop.permute.xlu0 %1220
    %v1224 = vperm.slane %v1182, 0
    %v1226 = vmul.f32 %v1186, %v1224
    %v1227 = vmul.f32 %v1191, %v1224
    %v1228 = vmul.f32 %v1196, %v1224
    %v1229 = vmul.f32 %v1201, %v1224
    %v1230 = vmul.f32 %v1206, %v1224
    %v1231 = vmul.f32 %v1211, %v1224
    %v1232 = vmul.f32 %v1216, %v1224
    %v1233 = vmul.f32 %v1221, %v1224
    %v1234 = vadd.f32 %v1074, %v1226
    %v1235 = vadd.f32 %v1075, %v1227
    %v1236 = vadd.f32 %v1076, %v1228
    %v1237 = vadd.f32 %v1077, %v1229
    %v1238 = vadd.f32 %v1078, %v1230
    %v1239 = vadd.f32 %v1079, %v1231
    %v1240 = vadd.f32 %v1080, %v1232
    %v1241 = vadd.f32 %v1081, %v1233
    %s1242 = scalar_lea.vmem [#allocation7], 896
    %v1243 = vld [vmem:[%s1242] sm:$0xff]
    %v1244 = vld [vmem:[%s1242 + $0x8] sm:$0xff]
    %v1245 = vld [vmem:[%s1242 + $0x10] sm:$0xff]
    %v1246 = vld [vmem:[%s1242 + $0x18] sm:$0xff]
    %v1247 = vld [vmem:[%s1242 + $0x20] sm:$0xff]
    %v1248 = vld [vmem:[%s1242 + $0x28] sm:$0xff]
    %v1249 = vld [vmem:[%s1242 + $0x30] sm:$0xff]
    %v1250 = vld [vmem:[%s1242 + $0x38] sm:$0xff]
    %v1251 = vld [vmem:[%s1242 + $0x40] sm:$0xff]
    %v1252 = vld [vmem:[%s1242 + $0x48] sm:$0xff]
    %v1253 = vld [vmem:[%s1242 + $0x50] sm:$0xff]
    %v1254 = vld [vmem:[%s1242 + $0x58] sm:$0xff]
    %v1255 = vld [vmem:[%s1242 + $0x60] sm:$0xff]
    %v1256 = vld [vmem:[%s1242 + $0x68] sm:$0xff]
    %v1257 = vld [vmem:[%s1242 + $0x70] sm:$0xff]
    %v1258 = vld [vmem:[%s1242 + $0x78] sm:$0xff]
    %1259 = vmatpush.msra.mxu0 %v107
    %1260 = vmatpush.msra.mxu0 %v106
    %1261 = vmatpush.msra.mxu0 %v105
    %1262 = vmatpush.msra.mxu0 %v104
    %1263 = vmatpush.msra.mxu0 %v103
    %1264 = vmatpush.msra.mxu0 %v102
    %1265 = vmatpush.msra.mxu0 %v101
    %1266 = vmatpush.msra.mxu0 %v100
    %1267 = vmatpush.msra.mxu0 %v99
    %1268 = vmatpush.msra.mxu0 %v98
    %1269 = vmatpush.msra.mxu0 %v97
    %1270 = vmatpush.msra.mxu0 %v96
    %1271 = vmatpush.msra.mxu0 %v95
    %1272 = vmatpush.msra.mxu0 %v94
    %1273 = vmatpush.msra.mxu0 %v93
    %1274 = vmatpush.msra.mxu0 %v92
    %1275 = vmatmul.f32.gmra.mxu0 %v1243
    %v1276 = vpop.f32.mrf.mxu0
    %v1277 = vadd.f32 0.0, %v1276
    %1278 = vmatmul.f32.gmra.mxu0 %v1245
    %v1279 = vpop.f32.mrf.mxu0
    %v1280 = vadd.f32 0.0, %v1279
    %1281 = vmatmul.f32.gmra.mxu0 %v1247
    %v1282 = vpop.f32.mrf.mxu0
    %v1283 = vadd.f32 0.0, %v1282
    %1284 = vmatmul.f32.gmra.mxu0 %v1249
    %v1285 = vpop.f32.mrf.mxu0
    %v1286 = vadd.f32 0.0, %v1285
    %1287 = vmatmul.f32.gmra.mxu0 %v1251
    %v1288 = vpop.f32.mrf.mxu0
    %v1289 = vadd.f32 0.0, %v1288
    %1290 = vmatmul.f32.gmra.mxu0 %v1253
    %v1291 = vpop.f32.mrf.mxu0
    %v1292 = vadd.f32 0.0, %v1291
    %1293 = vmatmul.f32.gmra.mxu0 %v1255
    %v1294 = vpop.f32.mrf.mxu0
    %v1295 = vadd.f32 0.0, %v1294
    %1296 = vmatmul.f32.gmra.mxu0 %v1257
    %v1297 = vpop.f32.mrf.mxu0
    %v1298 = vadd.f32 0.0, %v1297
    %1299 = vdwg.mxu0
    %1300 = vmatpush.msra.mxu0 %v123
    %1301 = vmatpush.msra.mxu0 %v122
    %1302 = vmatpush.msra.mxu0 %v121
    %1303 = vmatpush.msra.mxu0 %v120
    %1304 = vmatpush.msra.mxu0 %v119
    %1305 = vmatpush.msra.mxu0 %v118
    %1306 = vmatpush.msra.mxu0 %v117
    %1307 = vmatpush.msra.mxu0 %v116
    %1308 = vmatpush.msra.mxu0 %v115
    %1309 = vmatpush.msra.mxu0 %v114
    %1310 = vmatpush.msra.mxu0 %v113
    %1311 = vmatpush.msra.mxu0 %v112
    %1312 = vmatpush.msra.mxu0 %v111
    %1313 = vmatpush.msra.mxu0 %v110
    %1314 = vmatpush.msra.mxu0 %v109
    %1315 = vmatpush.msra.mxu0 %v108
    %1316 = vmatmul.f32.gmra.mxu0 %v1244
    %v1317 = vpop.f32.mrf.mxu0
    %v1318 = vadd.f32 %v1277, %v1317
    %1319 = vmatmul.f32.gmra.mxu0 %v1246
    %v1320 = vpop.f32.mrf.mxu0
    %v1321 = vadd.f32 %v1280, %v1320
    %1322 = vmatmul.f32.gmra.mxu0 %v1248
    %v1323 = vpop.f32.mrf.mxu0
    %v1324 = vadd.f32 %v1283, %v1323
    %1325 = vmatmul.f32.gmra.mxu0 %v1250
    %v1326 = vpop.f32.mrf.mxu0
    %v1327 = vadd.f32 %v1286, %v1326
    %1328 = vmatmul.f32.gmra.mxu0 %v1252
    %v1329 = vpop.f32.mrf.mxu0
    %v1330 = vadd.f32 %v1289, %v1329
    %1331 = vmatmul.f32.gmra.mxu0 %v1254
    %v1332 = vpop.f32.mrf.mxu0
    %v1333 = vadd.f32 %v1292, %v1332
    %1334 = vmatmul.f32.gmra.mxu0 %v1256
    %v1335 = vpop.f32.mrf.mxu0
    %v1336 = vadd.f32 %v1295, %v1335
    %1337 = vmatmul.f32.gmra.mxu0 %v1258
    %v1338 = vpop.f32.mrf.mxu0
    %v1339 = vadd.f32 %v1298, %v1338
    %1340 = vdwg.mxu0
    %s1341 = scalar_lea.vmem %s4, 7
    %v1342 = vld [vmem:[%s1341] sm:$0x1]
    %1344 = vset.pattern.permute.xlu0 0
    %1345 = vperm.xlu0 %1344, %v1318
    %v1346 = vpop.permute.xlu0 %1345
    %1349 = vset.pattern.permute.xlu0 0
    %1350 = vperm.xlu0 %1349, %v1321
    %v1351 = vpop.permute.xlu0 %1350
    %1354 = vset.pattern.permute.xlu0 0
    %1355 = vperm.xlu0 %1354, %v1324
    %v1356 = vpop.permute.xlu0 %1355
    %1359 = vset.pattern.permute.xlu0 0
    %1360 = vperm.xlu0 %1359, %v1327
    %v1361 = vpop.permute.xlu0 %1360
    %1364 = vset.pattern.permute.xlu0 0
    %1365 = vperm.xlu0 %1364, %v1330
    %v1366 = vpop.permute.xlu0 %1365
    %1369 = vset.pattern.permute.xlu0 0
    %1370 = vperm.xlu0 %1369, %v1333
    %v1371 = vpop.permute.xlu0 %1370
    %1374 = vset.pattern.permute.xlu0 0
    %1375 = vperm.xlu0 %1374, %v1336
    %v1376 = vpop.permute.xlu0 %1375
    %1379 = vset.pattern.permute.xlu0 0
    %1380 = vperm.xlu0 %1379, %v1339
    %v1381 = vpop.permute.xlu0 %1380
    %v1384 = vperm.slane %v1342, 0
    %v1386 = vmul.f32 %v1346, %v1384
    %v1387 = vmul.f32 %v1351, %v1384
    %v1388 = vmul.f32 %v1356, %v1384
    %v1389 = vmul.f32 %v1361, %v1384
    %v1390 = vmul.f32 %v1366, %v1384
    %v1391 = vmul.f32 %v1371, %v1384
    %v1392 = vmul.f32 %v1376, %v1384
    %v1393 = vmul.f32 %v1381, %v1384
    %v1394 = vadd.f32 %v1234, %v1386
    %v1395 = vadd.f32 %v1235, %v1387
    %v1396 = vadd.f32 %v1236, %v1388
    %v1397 = vadd.f32 %v1237, %v1389
    %v1398 = vadd.f32 %v1238, %v1390
    %v1399 = vadd.f32 %v1239, %v1391
    %v1400 = vadd.f32 %v1240, %v1392
    %v1401 = vadd.f32 %v1241, %v1393
    %s1402 = scalar_lea.vmem [#allocation7], 1024
    %v1403 = vld [vmem:[%s1402] sm:$0xff]
    %v1404 = vld [vmem:[%s1402 + $0x8] sm:$0xff]
    %v1405 = vld [vmem:[%s1402 + $0x10] sm:$0xff]
    %v1406 = vld [vmem:[%s1402 + $0x18] sm:$0xff]
    %v1407 = vld [vmem:[%s1402 + $0x20] sm:$0xff]
    %v1408 = vld [vmem:[%s1402 + $0x28] sm:$0xff]
    %v1409 = vld [vmem:[%s1402 + $0x30] sm:$0xff]
    %v1410 = vld [vmem:[%s1402 + $0x38] sm:$0xff]
    %v1411 = vld [vmem:[%s1402 + $0x40] sm:$0xff]
    %v1412 = vld [vmem:[%s1402 + $0x48] sm:$0xff]
    %v1413 = vld [vmem:[%s1402 + $0x50] sm:$0xff]
    %v1414 = vld [vmem:[%s1402 + $0x58] sm:$0xff]
    %v1415 = vld [vmem:[%s1402 + $0x60] sm:$0xff]
    %v1416 = vld [vmem:[%s1402 + $0x68] sm:$0xff]
    %v1417 = vld [vmem:[%s1402 + $0x70] sm:$0xff]
    %v1418 = vld [vmem:[%s1402 + $0x78] sm:$0xff]
    %1419 = vmatpush.msra.mxu0 %v107
    %1420 = vmatpush.msra.mxu0 %v106
    %1421 = vmatpush.msra.mxu0 %v105
    %1422 = vmatpush.msra.mxu0 %v104
    %1423 = vmatpush.msra.mxu0 %v103
    %1424 = vmatpush.msra.mxu0 %v102
    %1425 = vmatpush.msra.mxu0 %v101
    %1426 = vmatpush.msra.mxu0 %v100
    %1427 = vmatpush.msra.mxu0 %v99
    %1428 = vmatpush.msra.mxu0 %v98
    %1429 = vmatpush.msra.mxu0 %v97
    %1430 = vmatpush.msra.mxu0 %v96
    %1431 = vmatpush.msra.mxu0 %v95
    %1432 = vmatpush.msra.mxu0 %v94
    %1433 = vmatpush.msra.mxu0 %v93
    %1434 = vmatpush.msra.mxu0 %v92
    %1435 = vmatmul.f32.gmra.mxu0 %v1403
    %v1436 = vpop.f32.mrf.mxu0
    %v1437 = vadd.f32 0.0, %v1436
    %1438 = vmatmul.f32.gmra.mxu0 %v1405
    %v1439 = vpop.f32.mrf.mxu0
    %v1440 = vadd.f32 0.0, %v1439
    %1441 = vmatmul.f32.gmra.mxu0 %v1407
    %v1442 = vpop.f32.mrf.mxu0
    %v1443 = vadd.f32 0.0, %v1442
    %1444 = vmatmul.f32.gmra.mxu0 %v1409
    %v1445 = vpop.f32.mrf.mxu0
    %v1446 = vadd.f32 0.0, %v1445
    %1447 = vmatmul.f32.gmra.mxu0 %v1411
    %v1448 = vpop.f32.mrf.mxu0
    %v1449 = vadd.f32 0.0, %v1448
    %1450 = vmatmul.f32.gmra.mxu0 %v1413
    %v1451 = vpop.f32.mrf.mxu0
    %v1452 = vadd.f32 0.0, %v1451
    %1453 = vmatmul.f32.gmra.mxu0 %v1415
    %v1454 = vpop.f32.mrf.mxu0
    %v1455 = vadd.f32 0.0, %v1454
    %1456 = vmatmul.f32.gmra.mxu0 %v1417
    %v1457 = vpop.f32.mrf.mxu0
    %v1458 = vadd.f32 0.0, %v1457
    %1459 = vdwg.mxu0
    %1460 = vmatpush.msra.mxu0 %v123
    %1461 = vmatpush.msra.mxu0 %v122
    %1462 = vmatpush.msra.mxu0 %v121
    %1463 = vmatpush.msra.mxu0 %v120
    %1464 = vmatpush.msra.mxu0 %v119
    %1465 = vmatpush.msra.mxu0 %v118
    %1466 = vmatpush.msra.mxu0 %v117
    %1467 = vmatpush.msra.mxu0 %v116
    %1468 = vmatpush.msra.mxu0 %v115
    %1469 = vmatpush.msra.mxu0 %v114
    %1470 = vmatpush.msra.mxu0 %v113
    %1471 = vmatpush.msra.mxu0 %v112
    %1472 = vmatpush.msra.mxu0 %v111
    %1473 = vmatpush.msra.mxu0 %v110
    %1474 = vmatpush.msra.mxu0 %v109
    %1475 = vmatpush.msra.mxu0 %v108
    %1476 = vmatmul.f32.gmra.mxu0 %v1404
    %v1477 = vpop.f32.mrf.mxu0
    %v1478 = vadd.f32 %v1437, %v1477
    %1479 = vmatmul.f32.gmra.mxu0 %v1406
    %v1480 = vpop.f32.mrf.mxu0
    %v1481 = vadd.f32 %v1440, %v1480
    %1482 = vmatmul.f32.gmra.mxu0 %v1408
    %v1483 = vpop.f32.mrf.mxu0
    %v1484 = vadd.f32 %v1443, %v1483
    %1485 = vmatmul.f32.gmra.mxu0 %v1410
    %v1486 = vpop.f32.mrf.mxu0
    %v1487 = vadd.f32 %v1446, %v1486
    %1488 = vmatmul.f32.gmra.mxu0 %v1412
    %v1489 = vpop.f32.mrf.mxu0
    %v1490 = vadd.f32 %v1449, %v1489
    %1491 = vmatmul.f32.gmra.mxu0 %v1414
    %v1492 = vpop.f32.mrf.mxu0
    %v1493 = vadd.f32 %v1452, %v1492
    %1494 = vmatmul.f32.gmra.mxu0 %v1416
    %v1495 = vpop.f32.mrf.mxu0
    %v1496 = vadd.f32 %v1455, %v1495
    %1497 = vmatmul.f32.gmra.mxu0 %v1418
    %v1498 = vpop.f32.mrf.mxu0
    %v1499 = vadd.f32 %v1458, %v1498
    %1500 = vdwg.mxu0
    %s1501 = scalar_lea.vmem %s4, 8
    %v1502 = vld [vmem:[%s1501] sm:$0x1]
    %1504 = vset.pattern.permute.xlu0 0
    %1505 = vperm.xlu0 %1504, %v1478
    %v1506 = vpop.permute.xlu0 %1505
    %1509 = vset.pattern.permute.xlu0 0
    %1510 = vperm.xlu0 %1509, %v1481
    %v1511 = vpop.permute.xlu0 %1510
    %1514 = vset.pattern.permute.xlu0 0
    %1515 = vperm.xlu0 %1514, %v1484
    %v1516 = vpop.permute.xlu0 %1515
    %1519 = vset.pattern.permute.xlu0 0
    %1520 = vperm.xlu0 %1519, %v1487
    %v1521 = vpop.permute.xlu0 %1520
    %1524 = vset.pattern.permute.xlu0 0
    %1525 = vperm.xlu0 %1524, %v1490
    %v1526 = vpop.permute.xlu0 %1525
    %1529 = vset.pattern.permute.xlu0 0
    %1530 = vperm.xlu0 %1529, %v1493
    %v1531 = vpop.permute.xlu0 %1530
    %1534 = vset.pattern.permute.xlu0 0
    %1535 = vperm.xlu0 %1534, %v1496
    %v1536 = vpop.permute.xlu0 %1535
    %1539 = vset.pattern.permute.xlu0 0
    %1540 = vperm.xlu0 %1539, %v1499
    %v1541 = vpop.permute.xlu0 %1540
    %v1544 = vperm.slane %v1502, 0
    %v1546 = vmul.f32 %v1506, %v1544
    %v1547 = vmul.f32 %v1511, %v1544
    %v1548 = vmul.f32 %v1516, %v1544
    %v1549 = vmul.f32 %v1521, %v1544
    %v1550 = vmul.f32 %v1526, %v1544
    %v1551 = vmul.f32 %v1531, %v1544
    %v1552 = vmul.f32 %v1536, %v1544
    %v1553 = vmul.f32 %v1541, %v1544
    %v1554 = vadd.f32 %v1394, %v1546
    %v1555 = vadd.f32 %v1395, %v1547
    %v1556 = vadd.f32 %v1396, %v1548
    %v1557 = vadd.f32 %v1397, %v1549
    %v1558 = vadd.f32 %v1398, %v1550
    %v1559 = vadd.f32 %v1399, %v1551
    %v1560 = vadd.f32 %v1400, %v1552
    %v1561 = vadd.f32 %v1401, %v1553
    %vm1562 = vcmask 130048
    %1563 = vst.msk [vmem:[#allocation2] sm:$0xff] %vm1562, %v1554
    %1564 = vst.msk [vmem:[#allocation2 + $0x8] sm:$0xff] %vm1562, %v1555
    %1565 = vst.msk [vmem:[#allocation2 + $0x10] sm:$0xff] %vm1562, %v1556
    %1566 = vst.msk [vmem:[#allocation2 + $0x18] sm:$0xff] %vm1562, %v1557
    %1567 = vst.msk [vmem:[#allocation2 + $0x20] sm:$0xff] %vm1562, %v1558
    %1568 = vst.msk [vmem:[#allocation2 + $0x28] sm:$0xff] %vm1562, %v1559
    %1569 = vst.msk [vmem:[#allocation2 + $0x30] sm:$0xff] %vm1562, %v1560
    %1570 = vst.msk [vmem:[#allocation2 + $0x38] sm:$0xff] %vm1562, %v1561
    %s1571 = scalar_lea.vmem %s16, 256
    %v1572 = vld [vmem:[%s1571] sm:$0xff]
    %v1573 = vld [vmem:[%s1571 + $0x8] sm:$0xff]
    %v1574 = vld [vmem:[%s1571 + $0x10] sm:$0xff]
    %v1575 = vld [vmem:[%s1571 + $0x18] sm:$0xff]
    %v1576 = vld [vmem:[%s1571 + $0x20] sm:$0xff]
    %v1577 = vld [vmem:[%s1571 + $0x28] sm:$0xff]
    %v1578 = vld [vmem:[%s1571 + $0x30] sm:$0xff]
    %v1579 = vld [vmem:[%s1571 + $0x38] sm:$0xff]
    %v1580 = vld [vmem:[%s1571 + $0x40] sm:$0xff]
    %v1581 = vld [vmem:[%s1571 + $0x48] sm:$0xff]
    %v1582 = vld [vmem:[%s1571 + $0x50] sm:$0xff]
    %v1583 = vld [vmem:[%s1571 + $0x58] sm:$0xff]
    %v1584 = vld [vmem:[%s1571 + $0x60] sm:$0xff]
    %v1585 = vld [vmem:[%s1571 + $0x68] sm:$0xff]
    %v1586 = vld [vmem:[%s1571 + $0x70] sm:$0xff]
    %v1587 = vld [vmem:[%s1571 + $0x78] sm:$0xff]
    %v1588 = vld [vmem:[%s1571 + $0x80] sm:$0xff]
    %v1589 = vld [vmem:[%s1571 + $0x88] sm:$0xff]
    %v1590 = vld [vmem:[%s1571 + $0x90] sm:$0xff]
    %v1591 = vld [vmem:[%s1571 + $0x98] sm:$0xff]
    %v1592 = vld [vmem:[%s1571 + $0xa0] sm:$0xff]
    %v1593 = vld [vmem:[%s1571 + $0xa8] sm:$0xff]
    %v1594 = vld [vmem:[%s1571 + $0xb0] sm:$0xff]
    %v1595 = vld [vmem:[%s1571 + $0xb8] sm:$0xff]
    %v1596 = vld [vmem:[%s1571 + $0xc0] sm:$0xff]
    %v1597 = vld [vmem:[%s1571 + $0xc8] sm:$0xff]
    %v1598 = vld [vmem:[%s1571 + $0xd0] sm:$0xff]
    %v1599 = vld [vmem:[%s1571 + $0xd8] sm:$0xff]
    %v1600 = vld [vmem:[%s1571 + $0xe0] sm:$0xff]
    %v1601 = vld [vmem:[%s1571 + $0xe8] sm:$0xff]
    %v1602 = vld [vmem:[%s1571 + $0xf0] sm:$0xff]
    %v1603 = vld [vmem:[%s1571 + $0xf8] sm:$0xff]
    %v1604 = vld [vmem:[#allocation7] sm:$0xff]
    %v1605 = vld [vmem:[#allocation7 + $0x8] sm:$0xff]
    %v1606 = vld [vmem:[#allocation7 + $0x10] sm:$0xff]
    %v1607 = vld [vmem:[#allocation7 + $0x18] sm:$0xff]
    %v1608 = vld [vmem:[#allocation7 + $0x20] sm:$0xff]
    %v1609 = vld [vmem:[#allocation7 + $0x28] sm:$0xff]
    %v1610 = vld [vmem:[#allocation7 + $0x30] sm:$0xff]
    %v1611 = vld [vmem:[#allocation7 + $0x38] sm:$0xff]
    %v1612 = vld [vmem:[#allocation7 + $0x40] sm:$0xff]
    %v1613 = vld [vmem:[#allocation7 + $0x48] sm:$0xff]
    %v1614 = vld [vmem:[#allocation7 + $0x50] sm:$0xff]
    %v1615 = vld [vmem:[#allocation7 + $0x58] sm:$0xff]
    %v1616 = vld [vmem:[#allocation7 + $0x60] sm:$0xff]
    %v1617 = vld [vmem:[#allocation7 + $0x68] sm:$0xff]
    %v1618 = vld [vmem:[#allocation7 + $0x70] sm:$0xff]
    %v1619 = vld [vmem:[#allocation7 + $0x78] sm:$0xff]
    %1620 = vmatpush.msra.mxu0 %v1587
    %1621 = vmatpush.msra.mxu0 %v1586
    %1622 = vmatpush.msra.mxu0 %v1585
    %1623 = vmatpush.msra.mxu0 %v1584
    %1624 = vmatpush.msra.mxu0 %v1583
    %1625 = vmatpush.msra.mxu0 %v1582
    %1626 = vmatpush.msra.mxu0 %v1581
    %1627 = vmatpush.msra.mxu0 %v1580
    %1628 = vmatpush.msra.mxu0 %v1579
    %1629 = vmatpush.msra.mxu0 %v1578
    %1630 = vmatpush.msra.mxu0 %v1577
    %1631 = vmatpush.msra.mxu0 %v1576
    %1632 = vmatpush.msra.mxu0 %v1575
    %1633 = vmatpush.msra.mxu0 %v1574
    %1634 = vmatpush.msra.mxu0 %v1573
    %1635 = vmatpush.msra.mxu0 %v1572
    %1636 = vmatmul.f32.gmra.mxu0 %v1604
    %v1637 = vpop.f32.mrf.mxu0
    %v1638 = vadd.f32 0.0, %v1637
    %1639 = vmatmul.f32.gmra.mxu0 %v1606
    %v1640 = vpop.f32.mrf.mxu0
    %v1641 = vadd.f32 0.0, %v1640
    %1642 = vmatmul.f32.gmra.mxu0 %v1608
    %v1643 = vpop.f32.mrf.mxu0
    %v1644 = vadd.f32 0.0, %v1643
    %1645 = vmatmul.f32.gmra.mxu0 %v1610
    %v1646 = vpop.f32.mrf.mxu0
    %v1647 = vadd.f32 0.0, %v1646
    %1648 = vmatmul.f32.gmra.mxu0 %v1612
    %v1649 = vpop.f32.mrf.mxu0
    %v1650 = vadd.f32 0.0, %v1649
    %1651 = vmatmul.f32.gmra.mxu0 %v1614
    %v1652 = vpop.f32.mrf.mxu0
    %v1653 = vadd.f32 0.0, %v1652
    %1654 = vmatmul.f32.gmra.mxu0 %v1616
    %v1655 = vpop.f32.mrf.mxu0
    %v1656 = vadd.f32 0.0, %v1655
    %1657 = vmatmul.f32.gmra.mxu0 %v1618
    %v1658 = vpop.f32.mrf.mxu0
    %v1659 = vadd.f32 0.0, %v1658
    %1660 = vdwg.mxu0
    %1661 = vmatpush.msra.mxu0 %v1603
    %1662 = vmatpush.msra.mxu0 %v1602
    %1663 = vmatpush.msra.mxu0 %v1601
    %1664 = vmatpush.msra.mxu0 %v1600
    %1665 = vmatpush.msra.mxu0 %v1599
    %1666 = vmatpush.msra.mxu0 %v1598
    %1667 = vmatpush.msra.mxu0 %v1597
    %1668 = vmatpush.msra.mxu0 %v1596
    %1669 = vmatpush.msra.mxu0 %v1595
    %1670 = vmatpush.msra.mxu0 %v1594
    %1671 = vmatpush.msra.mxu0 %v1593
    %1672 = vmatpush.msra.mxu0 %v1592
    %1673 = vmatpush.msra.mxu0 %v1591
    %1674 = vmatpush.msra.mxu0 %v1590
    %1675 = vmatpush.msra.mxu0 %v1589
    %1676 = vmatpush.msra.mxu0 %v1588
    %1677 = vmatmul.f32.gmra.mxu0 %v1605
    %v1678 = vpop.f32.mrf.mxu0
    %v1679 = vadd.f32 %v1638, %v1678
    %1680 = vmatmul.f32.gmra.mxu0 %v1607
    %v1681 = vpop.f32.mrf.mxu0
    %v1682 = vadd.f32 %v1641, %v1681
    %1683 = vmatmul.f32.gmra.mxu0 %v1609
    %v1684 = vpop.f32.mrf.mxu0
    %v1685 = vadd.f32 %v1644, %v1684
    %1686 = vmatmul.f32.gmra.mxu0 %v1611
    %v1687 = vpop.f32.mrf.mxu0
    %v1688 = vadd.f32 %v1647, %v1687
    %1689 = vmatmul.f32.gmra.mxu0 %v1613
    %v1690 = vpop.f32.mrf.mxu0
    %v1691 = vadd.f32 %v1650, %v1690
    %1692 = vmatmul.f32.gmra.mxu0 %v1615
    %v1693 = vpop.f32.mrf.mxu0
    %v1694 = vadd.f32 %v1653, %v1693
    %1695 = vmatmul.f32.gmra.mxu0 %v1617
    %v1696 = vpop.f32.mrf.mxu0
    %v1697 = vadd.f32 %v1656, %v1696
    %1698 = vmatmul.f32.gmra.mxu0 %v1619
    %v1699 = vpop.f32.mrf.mxu0
    %v1700 = vadd.f32 %v1659, %v1699
    %1701 = vdwg.mxu0
    %v1702 = vld [vmem:[%s4] sm:$0x1]
    %1704 = vset.pattern.permute.xlu0 0
    %1705 = vperm.xlu0 %1704, %v1679
    %v1706 = vpop.permute.xlu0 %1705
    %1709 = vset.pattern.permute.xlu0 0
    %1710 = vperm.xlu0 %1709, %v1682
    %v1711 = vpop.permute.xlu0 %1710
    %1714 = vset.pattern.permute.xlu0 0
    %1715 = vperm.xlu0 %1714, %v1685
    %v1716 = vpop.permute.xlu0 %1715
    %1719 = vset.pattern.permute.xlu0 0
    %1720 = vperm.xlu0 %1719, %v1688
    %v1721 = vpop.permute.xlu0 %1720
    %1724 = vset.pattern.permute.xlu0 0
    %1725 = vperm.xlu0 %1724, %v1691
    %v1726 = vpop.permute.xlu0 %1725
    %1729 = vset.pattern.permute.xlu0 0
    %1730 = vperm.xlu0 %1729, %v1694
    %v1731 = vpop.permute.xlu0 %1730
    %1734 = vset.pattern.permute.xlu0 0
    %1735 = vperm.xlu0 %1734, %v1697
    %v1736 = vpop.permute.xlu0 %1735
    %1739 = vset.pattern.permute.xlu0 0
    %1740 = vperm.xlu0 %1739, %v1700
    %v1741 = vpop.permute.xlu0 %1740
    %v1744 = vperm.slane %v1702, 0
    %v1746 = vmul.f32 %v1706, %v1744
    %v1747 = vmul.f32 %v1711, %v1744
    %v1748 = vmul.f32 %v1716, %v1744
    %v1749 = vmul.f32 %v1721, %v1744
    %v1750 = vmul.f32 %v1726, %v1744
    %v1751 = vmul.f32 %v1731, %v1744
    %v1752 = vmul.f32 %v1736, %v1744
    %v1753 = vmul.f32 %v1741, %v1744
    %v1754 = vadd.f32 %v1746, 0.0
    %v1755 = vadd.f32 %v1747, 0.0
    %v1756 = vadd.f32 %v1748, 0.0
    %v1757 = vadd.f32 %v1749, 0.0
    %v1758 = vadd.f32 %v1750, 0.0
    %v1759 = vadd.f32 %v1751, 0.0
    %v1760 = vadd.f32 %v1752, 0.0
    %v1761 = vadd.f32 %v1753, 0.0
    %v1762 = vld [vmem:[%s282] sm:$0xff]
    %v1763 = vld [vmem:[%s282 + $0x8] sm:$0xff]
    %v1764 = vld [vmem:[%s282 + $0x10] sm:$0xff]
    %v1765 = vld [vmem:[%s282 + $0x18] sm:$0xff]
    %v1766 = vld [vmem:[%s282 + $0x20] sm:$0xff]
    %v1767 = vld [vmem:[%s282 + $0x28] sm:$0xff]
    %v1768 = vld [vmem:[%s282 + $0x30] sm:$0xff]
    %v1769 = vld [vmem:[%s282 + $0x38] sm:$0xff]
    %v1770 = vld [vmem:[%s282 + $0x40] sm:$0xff]
    %v1771 = vld [vmem:[%s282 + $0x48] sm:$0xff]
    %v1772 = vld [vmem:[%s282 + $0x50] sm:$0xff]
    %v1773 = vld [vmem:[%s282 + $0x58] sm:$0xff]
    %v1774 = vld [vmem:[%s282 + $0x60] sm:$0xff]
    %v1775 = vld [vmem:[%s282 + $0x68] sm:$0xff]
    %v1776 = vld [vmem:[%s282 + $0x70] sm:$0xff]
    %v1777 = vld [vmem:[%s282 + $0x78] sm:$0xff]
    %1778 = vmatpush.msra.mxu0 %v1587
    %1779 = vmatpush.msra.mxu0 %v1586
    %1780 = vmatpush.msra.mxu0 %v1585
    %1781 = vmatpush.msra.mxu0 %v1584
    %1782 = vmatpush.msra.mxu0 %v1583
    %1783 = vmatpush.msra.mxu0 %v1582
    %1784 = vmatpush.msra.mxu0 %v1581
    %1785 = vmatpush.msra.mxu0 %v1580
    %1786 = vmatpush.msra.mxu0 %v1579
    %1787 = vmatpush.msra.mxu0 %v1578
    %1788 = vmatpush.msra.mxu0 %v1577
    %1789 = vmatpush.msra.mxu0 %v1576
    %1790 = vmatpush.msra.mxu0 %v1575
    %1791 = vmatpush.msra.mxu0 %v1574
    %1792 = vmatpush.msra.mxu0 %v1573
    %1793 = vmatpush.msra.mxu0 %v1572
    %1794 = vmatmul.f32.gmra.mxu0 %v1762
    %v1795 = vpop.f32.mrf.mxu0
    %v1796 = vadd.f32 0.0, %v1795
    %1797 = vmatmul.f32.gmra.mxu0 %v1764
    %v1798 = vpop.f32.mrf.mxu0
    %v1799 = vadd.f32 0.0, %v1798
    %1800 = vmatmul.f32.gmra.mxu0 %v1766
    %v1801 = vpop.f32.mrf.mxu0
    %v1802 = vadd.f32 0.0, %v1801
    %1803 = vmatmul.f32.gmra.mxu0 %v1768
    %v1804 = vpop.f32.mrf.mxu0
    %v1805 = vadd.f32 0.0, %v1804
    %1806 = vmatmul.f32.gmra.mxu0 %v1770
    %v1807 = vpop.f32.mrf.mxu0
    %v1808 = vadd.f32 0.0, %v1807
    %1809 = vmatmul.f32.gmra.mxu0 %v1772
    %v1810 = vpop.f32.mrf.mxu0
    %v1811 = vadd.f32 0.0, %v1810
    %1812 = vmatmul.f32.gmra.mxu0 %v1774
    %v1813 = vpop.f32.mrf.mxu0
    %v1814 = vadd.f32 0.0, %v1813
    %1815 = vmatmul.f32.gmra.mxu0 %v1776
    %v1816 = vpop.f32.mrf.mxu0
    %v1817 = vadd.f32 0.0, %v1816
    %1818 = vdwg.mxu0
    %1819 = vmatpush.msra.mxu0 %v1603
    %1820 = vmatpush.msra.mxu0 %v1602
    %1821 = vmatpush.msra.mxu0 %v1601
    %1822 = vmatpush.msra.mxu0 %v1600
    %1823 = vmatpush.msra.mxu0 %v1599
    %1824 = vmatpush.msra.mxu0 %v1598
    %1825 = vmatpush.msra.mxu0 %v1597
    %1826 = vmatpush.msra.mxu0 %v1596
    %1827 = vmatpush.msra.mxu0 %v1595
    %1828 = vmatpush.msra.mxu0 %v1594
    %1829 = vmatpush.msra.mxu0 %v1593
    %1830 = vmatpush.msra.mxu0 %v1592
    %1831 = vmatpush.msra.mxu0 %v1591
    %1832 = vmatpush.msra.mxu0 %v1590
    %1833 = vmatpush.msra.mxu0 %v1589
    %1834 = vmatpush.msra.mxu0 %v1588
    %1835 = vmatmul.f32.gmra.mxu0 %v1763
    %v1836 = vpop.f32.mrf.mxu0
    %v1837 = vadd.f32 %v1796, %v1836
    %1838 = vmatmul.f32.gmra.mxu0 %v1765
    %v1839 = vpop.f32.mrf.mxu0
    %v1840 = vadd.f32 %v1799, %v1839
    %1841 = vmatmul.f32.gmra.mxu0 %v1767
    %v1842 = vpop.f32.mrf.mxu0
    %v1843 = vadd.f32 %v1802, %v1842
    %1844 = vmatmul.f32.gmra.mxu0 %v1769
    %v1845 = vpop.f32.mrf.mxu0
    %v1846 = vadd.f32 %v1805, %v1845
    %1847 = vmatmul.f32.gmra.mxu0 %v1771
    %v1848 = vpop.f32.mrf.mxu0
    %v1849 = vadd.f32 %v1808, %v1848
    %1850 = vmatmul.f32.gmra.mxu0 %v1773
    %v1851 = vpop.f32.mrf.mxu0
    %v1852 = vadd.f32 %v1811, %v1851
    %1853 = vmatmul.f32.gmra.mxu0 %v1775
    %v1854 = vpop.f32.mrf.mxu0
    %v1855 = vadd.f32 %v1814, %v1854
    %1856 = vmatmul.f32.gmra.mxu0 %v1777
    %v1857 = vpop.f32.mrf.mxu0
    %v1858 = vadd.f32 %v1817, %v1857
    %1859 = vdwg.mxu0
    %v1860 = vld [vmem:[%s381] sm:$0x1]
    %1862 = vset.pattern.permute.xlu0 0
    %1863 = vperm.xlu0 %1862, %v1837
    %v1864 = vpop.permute.xlu0 %1863
    %1867 = vset.pattern.permute.xlu0 0
    %1868 = vperm.xlu0 %1867, %v1840
    %v1869 = vpop.permute.xlu0 %1868
    %1872 = vset.pattern.permute.xlu0 0
    %1873 = vperm.xlu0 %1872, %v1843
    %v1874 = vpop.permute.xlu0 %1873
    %1877 = vset.pattern.permute.xlu0 0
    %1878 = vperm.xlu0 %1877, %v1846
    %v1879 = vpop.permute.xlu0 %1878
    %1882 = vset.pattern.permute.xlu0 0
    %1883 = vperm.xlu0 %1882, %v1849
    %v1884 = vpop.permute.xlu0 %1883
    %1887 = vset.pattern.permute.xlu0 0
    %1888 = vperm.xlu0 %1887, %v1852
    %v1889 = vpop.permute.xlu0 %1888
    %1892 = vset.pattern.permute.xlu0 0
    %1893 = vperm.xlu0 %1892, %v1855
    %v1894 = vpop.permute.xlu0 %1893
    %1897 = vset.pattern.permute.xlu0 0
    %1898 = vperm.xlu0 %1897, %v1858
    %v1899 = vpop.permute.xlu0 %1898
    %v1902 = vperm.slane %v1860, 0
    %v1904 = vmul.f32 %v1864, %v1902
    %v1905 = vmul.f32 %v1869, %v1902
    %v1906 = vmul.f32 %v1874, %v1902
    %v1907 = vmul.f32 %v1879, %v1902
    %v1908 = vmul.f32 %v1884, %v1902
    %v1909 = vmul.f32 %v1889, %v1902
    %v1910 = vmul.f32 %v1894, %v1902
    %v1911 = vmul.f32 %v1899, %v1902
    %v1912 = vadd.f32 %v1754, %v1904
    %v1913 = vadd.f32 %v1755, %v1905
    %v1914 = vadd.f32 %v1756, %v1906
    %v1915 = vadd.f32 %v1757, %v1907
    %v1916 = vadd.f32 %v1758, %v1908
    %v1917 = vadd.f32 %v1759, %v1909
    %v1918 = vadd.f32 %v1760, %v1910
    %v1919 = vadd.f32 %v1761, %v1911
    %v1920 = vld [vmem:[%s442] sm:$0xff]
    %v1921 = vld [vmem:[%s442 + $0x8] sm:$0xff]
    %v1922 = vld [vmem:[%s442 + $0x10] sm:$0xff]
    %v1923 = vld [vmem:[%s442 + $0x18] sm:$0xff]
    %v1924 = vld [vmem:[%s442 + $0x20] sm:$0xff]
    %v1925 = vld [vmem:[%s442 + $0x28] sm:$0xff]
    %v1926 = vld [vmem:[%s442 + $0x30] sm:$0xff]
    %v1927 = vld [vmem:[%s442 + $0x38] sm:$0xff]
    %v1928 = vld [vmem:[%s442 + $0x40] sm:$0xff]
    %v1929 = vld [vmem:[%s442 + $0x48] sm:$0xff]
    %v1930 = vld [vmem:[%s442 + $0x50] sm:$0xff]
    %v1931 = vld [vmem:[%s442 + $0x58] sm:$0xff]
    %v1932 = vld [vmem:[%s442 + $0x60] sm:$0xff]
    %v1933 = vld [vmem:[%s442 + $0x68] sm:$0xff]
    %v1934 = vld [vmem:[%s442 + $0x70] sm:$0xff]
    %v1935 = vld [vmem:[%s442 + $0x78] sm:$0xff]
    %1936 = vmatpush.msra.mxu0 %v1587
    %1937 = vmatpush.msra.mxu0 %v1586
    %1938 = vmatpush.msra.mxu0 %v1585
    %1939 = vmatpush.msra.mxu0 %v1584
    %1940 = vmatpush.msra.mxu0 %v1583
    %1941 = vmatpush.msra.mxu0 %v1582
    %1942 = vmatpush.msra.mxu0 %v1581
    %1943 = vmatpush.msra.mxu0 %v1580
    %1944 = vmatpush.msra.mxu0 %v1579
    %1945 = vmatpush.msra.mxu0 %v1578
    %1946 = vmatpush.msra.mxu0 %v1577
    %1947 = vmatpush.msra.mxu0 %v1576
    %1948 = vmatpush.msra.mxu0 %v1575
    %1949 = vmatpush.msra.mxu0 %v1574
    %1950 = vmatpush.msra.mxu0 %v1573
    %1951 = vmatpush.msra.mxu0 %v1572
    %1952 = vmatmul.f32.gmra.mxu0 %v1920
    %v1953 = vpop.f32.mrf.mxu0
    %v1954 = vadd.f32 0.0, %v1953
    %1955 = vmatmul.f32.gmra.mxu0 %v1922
    %v1956 = vpop.f32.mrf.mxu0
    %v1957 = vadd.f32 0.0, %v1956
    %1958 = vmatmul.f32.gmra.mxu0 %v1924
    %v1959 = vpop.f32.mrf.mxu0
    %v1960 = vadd.f32 0.0, %v1959
    %1961 = vmatmul.f32.gmra.mxu0 %v1926
    %v1962 = vpop.f32.mrf.mxu0
    %v1963 = vadd.f32 0.0, %v1962
    %1964 = vmatmul.f32.gmra.mxu0 %v1928
    %v1965 = vpop.f32.mrf.mxu0
    %v1966 = vadd.f32 0.0, %v1965
    %1967 = vmatmul.f32.gmra.mxu0 %v1930
    %v1968 = vpop.f32.mrf.mxu0
    %v1969 = vadd.f32 0.0, %v1968
    %1970 = vmatmul.f32.gmra.mxu0 %v1932
    %v1971 = vpop.f32.mrf.mxu0
    %v1972 = vadd.f32 0.0, %v1971
    %1973 = vmatmul.f32.gmra.mxu0 %v1934
    %v1974 = vpop.f32.mrf.mxu0
    %v1975 = vadd.f32 0.0, %v1974
    %1976 = vdwg.mxu0
    %1977 = vmatpush.msra.mxu0 %v1603
    %1978 = vmatpush.msra.mxu0 %v1602
    %1979 = vmatpush.msra.mxu0 %v1601
    %1980 = vmatpush.msra.mxu0 %v1600
    %1981 = vmatpush.msra.mxu0 %v1599
    %1982 = vmatpush.msra.mxu0 %v1598
    %1983 = vmatpush.msra.mxu0 %v1597
    %1984 = vmatpush.msra.mxu0 %v1596
    %1985 = vmatpush.msra.mxu0 %v1595
    %1986 = vmatpush.msra.mxu0 %v1594
    %1987 = vmatpush.msra.mxu0 %v1593
    %1988 = vmatpush.msra.mxu0 %v1592
    %1989 = vmatpush.msra.mxu0 %v1591
    %1990 = vmatpush.msra.mxu0 %v1590
    %1991 = vmatpush.msra.mxu0 %v1589
    %1992 = vmatpush.msra.mxu0 %v1588
    %1993 = vmatmul.f32.gmra.mxu0 %v1921
    %v1994 = vpop.f32.mrf.mxu0
    %v1995 = vadd.f32 %v1954, %v1994
    %1996 = vmatmul.f32.gmra.mxu0 %v1923
    %v1997 = vpop.f32.mrf.mxu0
    %v1998 = vadd.f32 %v1957, %v1997
    %1999 = vmatmul.f32.gmra.mxu0 %v1925
    %v2000 = vpop.f32.mrf.mxu0
    %v2001 = vadd.f32 %v1960, %v2000
    %2002 = vmatmul.f32.gmra.mxu0 %v1927
    %v2003 = vpop.f32.mrf.mxu0
    %v2004 = vadd.f32 %v1963, %v2003
    %2005 = vmatmul.f32.gmra.mxu0 %v1929
    %v2006 = vpop.f32.mrf.mxu0
    %v2007 = vadd.f32 %v1966, %v2006
    %2008 = vmatmul.f32.gmra.mxu0 %v1931
    %v2009 = vpop.f32.mrf.mxu0
    %v2010 = vadd.f32 %v1969, %v2009
    %2011 = vmatmul.f32.gmra.mxu0 %v1933
    %v2012 = vpop.f32.mrf.mxu0
    %v2013 = vadd.f32 %v1972, %v2012
    %2014 = vmatmul.f32.gmra.mxu0 %v1935
    %v2015 = vpop.f32.mrf.mxu0
    %v2016 = vadd.f32 %v1975, %v2015
    %2017 = vdwg.mxu0
    %v2018 = vld [vmem:[%s541] sm:$0x1]
    %2020 = vset.pattern.permute.xlu0 0
    %2021 = vperm.xlu0 %2020, %v1995
    %v2022 = vpop.permute.xlu0 %2021
    %2025 = vset.pattern.permute.xlu0 0
    %2026 = vperm.xlu0 %2025, %v1998
    %v2027 = vpop.permute.xlu0 %2026
    %2030 = vset.pattern.permute.xlu0 0
    %2031 = vperm.xlu0 %2030, %v2001
    %v2032 = vpop.permute.xlu0 %2031
    %2035 = vset.pattern.permute.xlu0 0
    %2036 = vperm.xlu0 %2035, %v2004
    %v2037 = vpop.permute.xlu0 %2036
    %2040 = vset.pattern.permute.xlu0 0
    %2041 = vperm.xlu0 %2040, %v2007
    %v2042 = vpop.permute.xlu0 %2041
    %2045 = vset.pattern.permute.xlu0 0
    %2046 = vperm.xlu0 %2045, %v2010
    %v2047 = vpop.permute.xlu0 %2046
    %2050 = vset.pattern.permute.xlu0 0
    %2051 = vperm.xlu0 %2050, %v2013
    %v2052 = vpop.permute.xlu0 %2051
    %2055 = vset.pattern.permute.xlu0 0
    %2056 = vperm.xlu0 %2055, %v2016
    %v2057 = vpop.permute.xlu0 %2056
    %v2060 = vperm.slane %v2018, 0
    %v2062 = vmul.f32 %v2022, %v2060
    %v2063 = vmul.f32 %v2027, %v2060
    %v2064 = vmul.f32 %v2032, %v2060
    %v2065 = vmul.f32 %v2037, %v2060
    %v2066 = vmul.f32 %v2042, %v2060
    %v2067 = vmul.f32 %v2047, %v2060
    %v2068 = vmul.f32 %v2052, %v2060
    %v2069 = vmul.f32 %v2057, %v2060
    %v2070 = vadd.f32 %v1912, %v2062
    %v2071 = vadd.f32 %v1913, %v2063
    %v2072 = vadd.f32 %v1914, %v2064
    %v2073 = vadd.f32 %v1915, %v2065
    %v2074 = vadd.f32 %v1916, %v2066
    %v2075 = vadd.f32 %v1917, %v2067
    %v2076 = vadd.f32 %v1918, %v2068
    %v2077 = vadd.f32 %v1919, %v2069
    %v2078 = vld [vmem:[%s602] sm:$0xff]
    %v2079 = vld [vmem:[%s602 + $0x8] sm:$0xff]
    %v2080 = vld [vmem:[%s602 + $0x10] sm:$0xff]
    %v2081 = vld [vmem:[%s602 + $0x18] sm:$0xff]
    %v2082 = vld [vmem:[%s602 + $0x20] sm:$0xff]
    %v2083 = vld [vmem:[%s602 + $0x28] sm:$0xff]
    %v2084 = vld [vmem:[%s602 + $0x30] sm:$0xff]
    %v2085 = vld [vmem:[%s602 + $0x38] sm:$0xff]
    %v2086 = vld [vmem:[%s602 + $0x40] sm:$0xff]
    %v2087 = vld [vmem:[%s602 + $0x48] sm:$0xff]
    %v2088 = vld [vmem:[%s602 + $0x50] sm:$0xff]
    %v2089 = vld [vmem:[%s602 + $0x58] sm:$0xff]
    %v2090 = vld [vmem:[%s602 + $0x60] sm:$0xff]
    %v2091 = vld [vmem:[%s602 + $0x68] sm:$0xff]
    %v2092 = vld [vmem:[%s602 + $0x70] sm:$0xff]
    %v2093 = vld [vmem:[%s602 + $0x78] sm:$0xff]
    %2094 = vmatpush.msra.mxu0 %v1587
    %2095 = vmatpush.msra.mxu0 %v1586
    %2096 = vmatpush.msra.mxu0 %v1585
    %2097 = vmatpush.msra.mxu0 %v1584
    %2098 = vmatpush.msra.mxu0 %v1583
    %2099 = vmatpush.msra.mxu0 %v1582
    %2100 = vmatpush.msra.mxu0 %v1581
    %2101 = vmatpush.msra.mxu0 %v1580
    %2102 = vmatpush.msra.mxu0 %v1579
    %2103 = vmatpush.msra.mxu0 %v1578
    %2104 = vmatpush.msra.mxu0 %v1577
    %2105 = vmatpush.msra.mxu0 %v1576
    %2106 = vmatpush.msra.mxu0 %v1575
    %2107 = vmatpush.msra.mxu0 %v1574
    %2108 = vmatpush.msra.mxu0 %v1573
    %2109 = vmatpush.msra.mxu0 %v1572
    %2110 = vmatmul.f32.gmra.mxu0 %v2078
    %v2111 = vpop.f32.mrf.mxu0
    %v2112 = vadd.f32 0.0, %v2111
    %2113 = vmatmul.f32.gmra.mxu0 %v2080
    %v2114 = vpop.f32.mrf.mxu0
    %v2115 = vadd.f32 0.0, %v2114
    %2116 = vmatmul.f32.gmra.mxu0 %v2082
    %v2117 = vpop.f32.mrf.mxu0
    %v2118 = vadd.f32 0.0, %v2117
    %2119 = vmatmul.f32.gmra.mxu0 %v2084
    %v2120 = vpop.f32.mrf.mxu0
    %v2121 = vadd.f32 0.0, %v2120
    %2122 = vmatmul.f32.gmra.mxu0 %v2086
    %v2123 = vpop.f32.mrf.mxu0
    %v2124 = vadd.f32 0.0, %v2123
    %2125 = vmatmul.f32.gmra.mxu0 %v2088
    %v2126 = vpop.f32.mrf.mxu0
    %v2127 = vadd.f32 0.0, %v2126
    %2128 = vmatmul.f32.gmra.mxu0 %v2090
    %v2129 = vpop.f32.mrf.mxu0
    %v2130 = vadd.f32 0.0, %v2129
    %2131 = vmatmul.f32.gmra.mxu0 %v2092
    %v2132 = vpop.f32.mrf.mxu0
    %v2133 = vadd.f32 0.0, %v2132
    %2134 = vdwg.mxu0
    %2135 = vmatpush.msra.mxu0 %v1603
    %2136 = vmatpush.msra.mxu0 %v1602
    %2137 = vmatpush.msra.mxu0 %v1601
    %2138 = vmatpush.msra.mxu0 %v1600
    %2139 = vmatpush.msra.mxu0 %v1599
    %2140 = vmatpush.msra.mxu0 %v1598
    %2141 = vmatpush.msra.mxu0 %v1597
    %2142 = vmatpush.msra.mxu0 %v1596
    %2143 = vmatpush.msra.mxu0 %v1595
    %2144 = vmatpush.msra.mxu0 %v1594
    %2145 = vmatpush.msra.mxu0 %v1593
    %2146 = vmatpush.msra.mxu0 %v1592
    %2147 = vmatpush.msra.mxu0 %v1591
    %2148 = vmatpush.msra.mxu0 %v1590
    %2149 = vmatpush.msra.mxu0 %v1589
    %2150 = vmatpush.msra.mxu0 %v1588
    %2151 = vmatmul.f32.gmra.mxu0 %v2079
    %v2152 = vpop.f32.mrf.mxu0
    %v2153 = vadd.f32 %v2112, %v2152
    %2154 = vmatmul.f32.gmra.mxu0 %v2081
    %v2155 = vpop.f32.mrf.mxu0
    %v2156 = vadd.f32 %v2115, %v2155
    %2157 = vmatmul.f32.gmra.mxu0 %v2083
    %v2158 = vpop.f32.mrf.mxu0
    %v2159 = vadd.f32 %v2118, %v2158
    %2160 = vmatmul.f32.gmra.mxu0 %v2085
    %v2161 = vpop.f32.mrf.mxu0
    %v2162 = vadd.f32 %v2121, %v2161
    %2163 = vmatmul.f32.gmra.mxu0 %v2087
    %v2164 = vpop.f32.mrf.mxu0
    %v2165 = vadd.f32 %v2124, %v2164
    %2166 = vmatmul.f32.gmra.mxu0 %v2089
    %v2167 = vpop.f32.mrf.mxu0
    %v2168 = vadd.f32 %v2127, %v2167
    %2169 = vmatmul.f32.gmra.mxu0 %v2091
    %v2170 = vpop.f32.mrf.mxu0
    %v2171 = vadd.f32 %v2130, %v2170
    %2172 = vmatmul.f32.gmra.mxu0 %v2093
    %v2173 = vpop.f32.mrf.mxu0
    %v2174 = vadd.f32 %v2133, %v2173
    %2175 = vdwg.mxu0
    %v2176 = vld [vmem:[%s701] sm:$0x1]
    %2178 = vset.pattern.permute.xlu0 0
    %2179 = vperm.xlu0 %2178, %v2153
    %v2180 = vpop.permute.xlu0 %2179
    %2183 = vset.pattern.permute.xlu0 0
    %2184 = vperm.xlu0 %2183, %v2156
    %v2185 = vpop.permute.xlu0 %2184
    %2188 = vset.pattern.permute.xlu0 0
    %2189 = vperm.xlu0 %2188, %v2159
    %v2190 = vpop.permute.xlu0 %2189
    %2193 = vset.pattern.permute.xlu0 0
    %2194 = vperm.xlu0 %2193, %v2162
    %v2195 = vpop.permute.xlu0 %2194
    %2198 = vset.pattern.permute.xlu0 0
    %2199 = vperm.xlu0 %2198, %v2165
    %v2200 = vpop.permute.xlu0 %2199
    %2203 = vset.pattern.permute.xlu0 0
    %2204 = vperm.xlu0 %2203, %v2168
    %v2205 = vpop.permute.xlu0 %2204
    %2208 = vset.pattern.permute.xlu0 0
    %2209 = vperm.xlu0 %2208, %v2171
    %v2210 = vpop.permute.xlu0 %2209
    %2213 = vset.pattern.permute.xlu0 0
    %2214 = vperm.xlu0 %2213, %v2174
    %v2215 = vpop.permute.xlu0 %2214
    %v2218 = vperm.slane %v2176, 0
    %v2220 = vmul.f32 %v2180, %v2218
    %v2221 = vmul.f32 %v2185, %v2218
    %v2222 = vmul.f32 %v2190, %v2218
    %v2223 = vmul.f32 %v2195, %v2218
    %v2224 = vmul.f32 %v2200, %v2218
    %v2225 = vmul.f32 %v2205, %v2218
    %v2226 = vmul.f32 %v2210, %v2218
    %v2227 = vmul.f32 %v2215, %v2218
    %v2228 = vadd.f32 %v2070, %v2220
    %v2229 = vadd.f32 %v2071, %v2221
    %v2230 = vadd.f32 %v2072, %v2222
    %v2231 = vadd.f32 %v2073, %v2223
    %v2232 = vadd.f32 %v2074, %v2224
    %v2233 = vadd.f32 %v2075, %v2225
    %v2234 = vadd.f32 %v2076, %v2226
    %v2235 = vadd.f32 %v2077, %v2227
    %v2236 = vld [vmem:[%s762] sm:$0xff]
    %v2237 = vld [vmem:[%s762 + $0x8] sm:$0xff]
    %v2238 = vld [vmem:[%s762 + $0x10] sm:$0xff]
    %v2239 = vld [vmem:[%s762 + $0x18] sm:$0xff]
    %v2240 = vld [vmem:[%s762 + $0x20] sm:$0xff]
    %v2241 = vld [vmem:[%s762 + $0x28] sm:$0xff]
    %v2242 = vld [vmem:[%s762 + $0x30] sm:$0xff]
    %v2243 = vld [vmem:[%s762 + $0x38] sm:$0xff]
    %v2244 = vld [vmem:[%s762 + $0x40] sm:$0xff]
    %v2245 = vld [vmem:[%s762 + $0x48] sm:$0xff]
    %v2246 = vld [vmem:[%s762 + $0x50] sm:$0xff]
    %v2247 = vld [vmem:[%s762 + $0x58] sm:$0xff]
    %v2248 = vld [vmem:[%s762 + $0x60] sm:$0xff]
    %v2249 = vld [vmem:[%s762 + $0x68] sm:$0xff]
    %v2250 = vld [vmem:[%s762 + $0x70] sm:$0xff]
    %v2251 = vld [vmem:[%s762 + $0x78] sm:$0xff]
    %2252 = vmatpush.msra.mxu0 %v1587
    %2253 = vmatpush.msra.mxu0 %v1586
    %2254 = vmatpush.msra.mxu0 %v1585
    %2255 = vmatpush.msra.mxu0 %v1584
    %2256 = vmatpush.msra.mxu0 %v1583
    %2257 = vmatpush.msra.mxu0 %v1582
    %2258 = vmatpush.msra.mxu0 %v1581
    %2259 = vmatpush.msra.mxu0 %v1580
    %2260 = vmatpush.msra.mxu0 %v1579
    %2261 = vmatpush.msra.mxu0 %v1578
    %2262 = vmatpush.msra.mxu0 %v1577
    %2263 = vmatpush.msra.mxu0 %v1576
    %2264 = vmatpush.msra.mxu0 %v1575
    %2265 = vmatpush.msra.mxu0 %v1574
    %2266 = vmatpush.msra.mxu0 %v1573
    %2267 = vmatpush.msra.mxu0 %v1572
    %2268 = vmatmul.f32.gmra.mxu0 %v2236
    %v2269 = vpop.f32.mrf.mxu0
    %v2270 = vadd.f32 0.0, %v2269
    %2271 = vmatmul.f32.gmra.mxu0 %v2238
    %v2272 = vpop.f32.mrf.mxu0
    %v2273 = vadd.f32 0.0, %v2272
    %2274 = vmatmul.f32.gmra.mxu0 %v2240
    %v2275 = vpop.f32.mrf.mxu0
    %v2276 = vadd.f32 0.0, %v2275
    %2277 = vmatmul.f32.gmra.mxu0 %v2242
    %v2278 = vpop.f32.mrf.mxu0
    %v2279 = vadd.f32 0.0, %v2278
    %2280 = vmatmul.f32.gmra.mxu0 %v2244
    %v2281 = vpop.f32.mrf.mxu0
    %v2282 = vadd.f32 0.0, %v2281
    %2283 = vmatmul.f32.gmra.mxu0 %v2246
    %v2284 = vpop.f32.mrf.mxu0
    %v2285 = vadd.f32 0.0, %v2284
    %2286 = vmatmul.f32.gmra.mxu0 %v2248
    %v2287 = vpop.f32.mrf.mxu0
    %v2288 = vadd.f32 0.0, %v2287
    %2289 = vmatmul.f32.gmra.mxu0 %v2250
    %v2290 = vpop.f32.mrf.mxu0
    %v2291 = vadd.f32 0.0, %v2290
    %2292 = vdwg.mxu0
    %2293 = vmatpush.msra.mxu0 %v1603
    %2294 = vmatpush.msra.mxu0 %v1602
    %2295 = vmatpush.msra.mxu0 %v1601
    %2296 = vmatpush.msra.mxu0 %v1600
    %2297 = vmatpush.msra.mxu0 %v1599
    %2298 = vmatpush.msra.mxu0 %v1598
    %2299 = vmatpush.msra.mxu0 %v1597
    %2300 = vmatpush.msra.mxu0 %v1596
    %2301 = vmatpush.msra.mxu0 %v1595
    %2302 = vmatpush.msra.mxu0 %v1594
    %2303 = vmatpush.msra.mxu0 %v1593
    %2304 = vmatpush.msra.mxu0 %v1592
    %2305 = vmatpush.msra.mxu0 %v1591
    %2306 = vmatpush.msra.mxu0 %v1590
    %2307 = vmatpush.msra.mxu0 %v1589
    %2308 = vmatpush.msra.mxu0 %v1588
    %2309 = vmatmul.f32.gmra.mxu0 %v2237
    %v2310 = vpop.f32.mrf.mxu0
    %v2311 = vadd.f32 %v2270, %v2310
    %2312 = vmatmul.f32.gmra.mxu0 %v2239
    %v2313 = vpop.f32.mrf.mxu0
    %v2314 = vadd.f32 %v2273, %v2313
    %2315 = vmatmul.f32.gmra.mxu0 %v2241
    %v2316 = vpop.f32.mrf.mxu0
    %v2317 = vadd.f32 %v2276, %v2316
    %2318 = vmatmul.f32.gmra.mxu0 %v2243
    %v2319 = vpop.f32.mrf.mxu0
    %v2320 = vadd.f32 %v2279, %v2319
    %2321 = vmatmul.f32.gmra.mxu0 %v2245
    %v2322 = vpop.f32.mrf.mxu0
    %v2323 = vadd.f32 %v2282, %v2322
    %2324 = vmatmul.f32.gmra.mxu0 %v2247
    %v2325 = vpop.f32.mrf.mxu0
    %v2326 = vadd.f32 %v2285, %v2325
    %2327 = vmatmul.f32.gmra.mxu0 %v2249
    %v2328 = vpop.f32.mrf.mxu0
    %v2329 = vadd.f32 %v2288, %v2328
    %2330 = vmatmul.f32.gmra.mxu0 %v2251
    %v2331 = vpop.f32.mrf.mxu0
    %v2332 = vadd.f32 %v2291, %v2331
    %2333 = vdwg.mxu0
    %v2334 = vld [vmem:[%s861] sm:$0x1]
    %2336 = vset.pattern.permute.xlu0 0
    %2337 = vperm.xlu0 %2336, %v2311
    %v2338 = vpop.permute.xlu0 %2337
    %2341 = vset.pattern.permute.xlu0 0
    %2342 = vperm.xlu0 %2341, %v2314
    %v2343 = vpop.permute.xlu0 %2342
    %2346 = vset.pattern.permute.xlu0 0
    %2347 = vperm.xlu0 %2346, %v2317
    %v2348 = vpop.permute.xlu0 %2347
    %2351 = vset.pattern.permute.xlu0 0
    %2352 = vperm.xlu0 %2351, %v2320
    %v2353 = vpop.permute.xlu0 %2352
    %2356 = vset.pattern.permute.xlu0 0
    %2357 = vperm.xlu0 %2356, %v2323
    %v2358 = vpop.permute.xlu0 %2357
    %2361 = vset.pattern.permute.xlu0 0
    %2362 = vperm.xlu0 %2361, %v2326
    %v2363 = vpop.permute.xlu0 %2362
    %2366 = vset.pattern.permute.xlu0 0
    %2367 = vperm.xlu0 %2366, %v2329
    %v2368 = vpop.permute.xlu0 %2367
    %2371 = vset.pattern.permute.xlu0 0
    %2372 = vperm.xlu0 %2371, %v2332
    %v2373 = vpop.permute.xlu0 %2372
    %v2376 = vperm.slane %v2334, 0
    %v2378 = vmul.f32 %v2338, %v2376
    %v2379 = vmul.f32 %v2343, %v2376
    %v2380 = vmul.f32 %v2348, %v2376
    %v2381 = vmul.f32 %v2353, %v2376
    %v2382 = vmul.f32 %v2358, %v2376
    %v2383 = vmul.f32 %v2363, %v2376
    %v2384 = vmul.f32 %v2368, %v2376
    %v2385 = vmul.f32 %v2373, %v2376
    %v2386 = vadd.f32 %v2228, %v2378
    %v2387 = vadd.f32 %v2229, %v2379
    %v2388 = vadd.f32 %v2230, %v2380
    %v2389 = vadd.f32 %v2231, %v2381
    %v2390 = vadd.f32 %v2232, %v2382
    %v2391 = vadd.f32 %v2233, %v2383
    %v2392 = vadd.f32 %v2234, %v2384
    %v2393 = vadd.f32 %v2235, %v2385
    %v2394 = vld [vmem:[%s922] sm:$0xff]
    %v2395 = vld [vmem:[%s922 + $0x8] sm:$0xff]
    %v2396 = vld [vmem:[%s922 + $0x10] sm:$0xff]
    %v2397 = vld [vmem:[%s922 + $0x18] sm:$0xff]
    %v2398 = vld [vmem:[%s922 + $0x20] sm:$0xff]
    %v2399 = vld [vmem:[%s922 + $0x28] sm:$0xff]
    %v2400 = vld [vmem:[%s922 + $0x30] sm:$0xff]
    %v2401 = vld [vmem:[%s922 + $0x38] sm:$0xff]
    %v2402 = vld [vmem:[%s922 + $0x40] sm:$0xff]
    %v2403 = vld [vmem:[%s922 + $0x48] sm:$0xff]
    %v2404 = vld [vmem:[%s922 + $0x50] sm:$0xff]
    %v2405 = vld [vmem:[%s922 + $0x58] sm:$0xff]
    %v2406 = vld [vmem:[%s922 + $0x60] sm:$0xff]
    %v2407 = vld [vmem:[%s922 + $0x68] sm:$0xff]
    %v2408 = vld [vmem:[%s922 + $0x70] sm:$0xff]
    %v2409 = vld [vmem:[%s922 + $0x78] sm:$0xff]
    %2410 = vmatpush.msra.mxu0 %v1587
    %2411 = vmatpush.msra.mxu0 %v1586
    %2412 = vmatpush.msra.mxu0 %v1585
    %2413 = vmatpush.msra.mxu0 %v1584
    %2414 = vmatpush.msra.mxu0 %v1583
    %2415 = vmatpush.msra.mxu0 %v1582
    %2416 = vmatpush.msra.mxu0 %v1581
    %2417 = vmatpush.msra.mxu0 %v1580
    %2418 = vmatpush.msra.mxu0 %v1579
    %2419 = vmatpush.msra.mxu0 %v1578
    %2420 = vmatpush.msra.mxu0 %v1577
    %2421 = vmatpush.msra.mxu0 %v1576
    %2422 = vmatpush.msra.mxu0 %v1575
    %2423 = vmatpush.msra.mxu0 %v1574
    %2424 = vmatpush.msra.mxu0 %v1573
    %2425 = vmatpush.msra.mxu0 %v1572
    %2426 = vmatmul.f32.gmra.mxu0 %v2394
    %v2427 = vpop.f32.mrf.mxu0
    %v2428 = vadd.f32 0.0, %v2427
    %2429 = vmatmul.f32.gmra.mxu0 %v2396
    %v2430 = vpop.f32.mrf.mxu0
    %v2431 = vadd.f32 0.0, %v2430
    %2432 = vmatmul.f32.gmra.mxu0 %v2398
    %v2433 = vpop.f32.mrf.mxu0
    %v2434 = vadd.f32 0.0, %v2433
    %2435 = vmatmul.f32.gmra.mxu0 %v2400
    %v2436 = vpop.f32.mrf.mxu0
    %v2437 = vadd.f32 0.0, %v2436
    %2438 = vmatmul.f32.gmra.mxu0 %v2402
    %v2439 = vpop.f32.mrf.mxu0
    %v2440 = vadd.f32 0.0, %v2439
    %2441 = vmatmul.f32.gmra.mxu0 %v2404
    %v2442 = vpop.f32.mrf.mxu0
    %v2443 = vadd.f32 0.0, %v2442
    %2444 = vmatmul.f32.gmra.mxu0 %v2406
    %v2445 = vpop.f32.mrf.mxu0
    %v2446 = vadd.f32 0.0, %v2445
    %2447 = vmatmul.f32.gmra.mxu0 %v2408
    %v2448 = vpop.f32.mrf.mxu0
    %v2449 = vadd.f32 0.0, %v2448
    %2450 = vdwg.mxu0
    %2451 = vmatpush.msra.mxu0 %v1603
    %2452 = vmatpush.msra.mxu0 %v1602
    %2453 = vmatpush.msra.mxu0 %v1601
    %2454 = vmatpush.msra.mxu0 %v1600
    %2455 = vmatpush.msra.mxu0 %v1599
    %2456 = vmatpush.msra.mxu0 %v1598
    %2457 = vmatpush.msra.mxu0 %v1597
    %2458 = vmatpush.msra.mxu0 %v1596
    %2459 = vmatpush.msra.mxu0 %v1595
    %2460 = vmatpush.msra.mxu0 %v1594
    %2461 = vmatpush.msra.mxu0 %v1593
    %2462 = vmatpush.msra.mxu0 %v1592
    %2463 = vmatpush.msra.mxu0 %v1591
    %2464 = vmatpush.msra.mxu0 %v1590
    %2465 = vmatpush.msra.mxu0 %v1589
    %2466 = vmatpush.msra.mxu0 %v1588
    %2467 = vmatmul.f32.gmra.mxu0 %v2395
    %v2468 = vpop.f32.mrf.mxu0
    %v2469 = vadd.f32 %v2428, %v2468
    %2470 = vmatmul.f32.gmra.mxu0 %v2397
    %v2471 = vpop.f32.mrf.mxu0
    %v2472 = vadd.f32 %v2431, %v2471
    %2473 = vmatmul.f32.gmra.mxu0 %v2399
    %v2474 = vpop.f32.mrf.mxu0
    %v2475 = vadd.f32 %v2434, %v2474
    %2476 = vmatmul.f32.gmra.mxu0 %v2401
    %v2477 = vpop.f32.mrf.mxu0
    %v2478 = vadd.f32 %v2437, %v2477
    %2479 = vmatmul.f32.gmra.mxu0 %v2403
    %v2480 = vpop.f32.mrf.mxu0
    %v2481 = vadd.f32 %v2440, %v2480
    %2482 = vmatmul.f32.gmra.mxu0 %v2405
    %v2483 = vpop.f32.mrf.mxu0
    %v2484 = vadd.f32 %v2443, %v2483
    %2485 = vmatmul.f32.gmra.mxu0 %v2407
    %v2486 = vpop.f32.mrf.mxu0
    %v2487 = vadd.f32 %v2446, %v2486
    %2488 = vmatmul.f32.gmra.mxu0 %v2409
    %v2489 = vpop.f32.mrf.mxu0
    %v2490 = vadd.f32 %v2449, %v2489
    %2491 = vdwg.mxu0
    %v2492 = vld [vmem:[%s1021] sm:$0x1]
    %2494 = vset.pattern.permute.xlu0 0
    %2495 = vperm.xlu0 %2494, %v2469
    %v2496 = vpop.permute.xlu0 %2495
    %2499 = vset.pattern.permute.xlu0 0
    %2500 = vperm.xlu0 %2499, %v2472
    %v2501 = vpop.permute.xlu0 %2500
    %2504 = vset.pattern.permute.xlu0 0
    %2505 = vperm.xlu0 %2504, %v2475
    %v2506 = vpop.permute.xlu0 %2505
    %2509 = vset.pattern.permute.xlu0 0
    %2510 = vperm.xlu0 %2509, %v2478
    %v2511 = vpop.permute.xlu0 %2510
    %2514 = vset.pattern.permute.xlu0 0
    %2515 = vperm.xlu0 %2514, %v2481
    %v2516 = vpop.permute.xlu0 %2515
    %2519 = vset.pattern.permute.xlu0 0
    %2520 = vperm.xlu0 %2519, %v2484
    %v2521 = vpop.permute.xlu0 %2520
    %2524 = vset.pattern.permute.xlu0 0
    %2525 = vperm.xlu0 %2524, %v2487
    %v2526 = vpop.permute.xlu0 %2525
    %2529 = vset.pattern.permute.xlu0 0
    %2530 = vperm.xlu0 %2529, %v2490
    %v2531 = vpop.permute.xlu0 %2530
    %v2534 = vperm.slane %v2492, 0
    %v2536 = vmul.f32 %v2496, %v2534
    %v2537 = vmul.f32 %v2501, %v2534
    %v2538 = vmul.f32 %v2506, %v2534
    %v2539 = vmul.f32 %v2511, %v2534
    %v2540 = vmul.f32 %v2516, %v2534
    %v2541 = vmul.f32 %v2521, %v2534
    %v2542 = vmul.f32 %v2526, %v2534
    %v2543 = vmul.f32 %v2531, %v2534
    %v2544 = vadd.f32 %v2386, %v2536
    %v2545 = vadd.f32 %v2387, %v2537
    %v2546 = vadd.f32 %v2388, %v2538
    %v2547 = vadd.f32 %v2389, %v2539
    %v2548 = vadd.f32 %v2390, %v2540
    %v2549 = vadd.f32 %v2391, %v2541
    %v2550 = vadd.f32 %v2392, %v2542
    %v2551 = vadd.f32 %v2393, %v2543
    %v2552 = vld [vmem:[%s1082] sm:$0xff]
    %v2553 = vld [vmem:[%s1082 + $0x8] sm:$0xff]
    %v2554 = vld [vmem:[%s1082 + $0x10] sm:$0xff]
    %v2555 = vld [vmem:[%s1082 + $0x18] sm:$0xff]
    %v2556 = vld [vmem:[%s1082 + $0x20] sm:$0xff]
    %v2557 = vld [vmem:[%s1082 + $0x28] sm:$0xff]
    %v2558 = vld [vmem:[%s1082 + $0x30] sm:$0xff]
    %v2559 = vld [vmem:[%s1082 + $0x38] sm:$0xff]
    %v2560 = vld [vmem:[%s1082 + $0x40] sm:$0xff]
    %v2561 = vld [vmem:[%s1082 + $0x48] sm:$0xff]
    %v2562 = vld [vmem:[%s1082 + $0x50] sm:$0xff]
    %v2563 = vld [vmem:[%s1082 + $0x58] sm:$0xff]
    %v2564 = vld [vmem:[%s1082 + $0x60] sm:$0xff]
    %v2565 = vld [vmem:[%s1082 + $0x68] sm:$0xff]
    %v2566 = vld [vmem:[%s1082 + $0x70] sm:$0xff]
    %v2567 = vld [vmem:[%s1082 + $0x78] sm:$0xff]
    %2568 = vmatpush.msra.mxu0 %v1587
    %2569 = vmatpush.msra.mxu0 %v1586
    %2570 = vmatpush.msra.mxu0 %v1585
    %2571 = vmatpush.msra.mxu0 %v1584
    %2572 = vmatpush.msra.mxu0 %v1583
    %2573 = vmatpush.msra.mxu0 %v1582
    %2574 = vmatpush.msra.mxu0 %v1581
    %2575 = vmatpush.msra.mxu0 %v1580
    %2576 = vmatpush.msra.mxu0 %v1579
    %2577 = vmatpush.msra.mxu0 %v1578
    %2578 = vmatpush.msra.mxu0 %v1577
    %2579 = vmatpush.msra.mxu0 %v1576
    %2580 = vmatpush.msra.mxu0 %v1575
    %2581 = vmatpush.msra.mxu0 %v1574
    %2582 = vmatpush.msra.mxu0 %v1573
    %2583 = vmatpush.msra.mxu0 %v1572
    %2584 = vmatmul.f32.gmra.mxu0 %v2552
    %v2585 = vpop.f32.mrf.mxu0
    %v2586 = vadd.f32 0.0, %v2585
    %2587 = vmatmul.f32.gmra.mxu0 %v2554
    %v2588 = vpop.f32.mrf.mxu0
    %v2589 = vadd.f32 0.0, %v2588
    %2590 = vmatmul.f32.gmra.mxu0 %v2556
    %v2591 = vpop.f32.mrf.mxu0
    %v2592 = vadd.f32 0.0, %v2591
    %2593 = vmatmul.f32.gmra.mxu0 %v2558
    %v2594 = vpop.f32.mrf.mxu0
    %v2595 = vadd.f32 0.0, %v2594
    %2596 = vmatmul.f32.gmra.mxu0 %v2560
    %v2597 = vpop.f32.mrf.mxu0
    %v2598 = vadd.f32 0.0, %v2597
    %2599 = vmatmul.f32.gmra.mxu0 %v2562
    %v2600 = vpop.f32.mrf.mxu0
    %v2601 = vadd.f32 0.0, %v2600
    %2602 = vmatmul.f32.gmra.mxu0 %v2564
    %v2603 = vpop.f32.mrf.mxu0
    %v2604 = vadd.f32 0.0, %v2603
    %2605 = vmatmul.f32.gmra.mxu0 %v2566
    %v2606 = vpop.f32.mrf.mxu0
    %v2607 = vadd.f32 0.0, %v2606
    %2608 = vdwg.mxu0
    %2609 = vmatpush.msra.mxu0 %v1603
    %2610 = vmatpush.msra.mxu0 %v1602
    %2611 = vmatpush.msra.mxu0 %v1601
    %2612 = vmatpush.msra.mxu0 %v1600
    %2613 = vmatpush.msra.mxu0 %v1599
    %2614 = vmatpush.msra.mxu0 %v1598
    %2615 = vmatpush.msra.mxu0 %v1597
    %2616 = vmatpush.msra.mxu0 %v1596
    %2617 = vmatpush.msra.mxu0 %v1595
    %2618 = vmatpush.msra.mxu0 %v1594
    %2619 = vmatpush.msra.mxu0 %v1593
    %2620 = vmatpush.msra.mxu0 %v1592
    %2621 = vmatpush.msra.mxu0 %v1591
    %2622 = vmatpush.msra.mxu0 %v1590
    %2623 = vmatpush.msra.mxu0 %v1589
    %2624 = vmatpush.msra.mxu0 %v1588
    %2625 = vmatmul.f32.gmra.mxu0 %v2553
    %v2626 = vpop.f32.mrf.mxu0
    %v2627 = vadd.f32 %v2586, %v2626
    %2628 = vmatmul.f32.gmra.mxu0 %v2555
    %v2629 = vpop.f32.mrf.mxu0
    %v2630 = vadd.f32 %v2589, %v2629
    %2631 = vmatmul.f32.gmra.mxu0 %v2557
    %v2632 = vpop.f32.mrf.mxu0
    %v2633 = vadd.f32 %v2592, %v2632
    %2634 = vmatmul.f32.gmra.mxu0 %v2559
    %v2635 = vpop.f32.mrf.mxu0
    %v2636 = vadd.f32 %v2595, %v2635
    %2637 = vmatmul.f32.gmra.mxu0 %v2561
    %v2638 = vpop.f32.mrf.mxu0
    %v2639 = vadd.f32 %v2598, %v2638
    %2640 = vmatmul.f32.gmra.mxu0 %v2563
    %v2641 = vpop.f32.mrf.mxu0
    %v2642 = vadd.f32 %v2601, %v2641
    %2643 = vmatmul.f32.gmra.mxu0 %v2565
    %v2644 = vpop.f32.mrf.mxu0
    %v2645 = vadd.f32 %v2604, %v2644
    %2646 = vmatmul.f32.gmra.mxu0 %v2567
    %v2647 = vpop.f32.mrf.mxu0
    %v2648 = vadd.f32 %v2607, %v2647
    %2649 = vdwg.mxu0
    %v2650 = vld [vmem:[%s1181] sm:$0x1]
    %2652 = vset.pattern.permute.xlu0 0
    %2653 = vperm.xlu0 %2652, %v2627
    %v2654 = vpop.permute.xlu0 %2653
    %2657 = vset.pattern.permute.xlu0 0
    %2658 = vperm.xlu0 %2657, %v2630
    %v2659 = vpop.permute.xlu0 %2658
    %2662 = vset.pattern.permute.xlu0 0
    %2663 = vperm.xlu0 %2662, %v2633
    %v2664 = vpop.permute.xlu0 %2663
    %2667 = vset.pattern.permute.xlu0 0
    %2668 = vperm.xlu0 %2667, %v2636
    %v2669 = vpop.permute.xlu0 %2668
    %2672 = vset.pattern.permute.xlu0 0
    %2673 = vperm.xlu0 %2672, %v2639
    %v2674 = vpop.permute.xlu0 %2673
    %2677 = vset.pattern.permute.xlu0 0
    %2678 = vperm.xlu0 %2677, %v2642
    %v2679 = vpop.permute.xlu0 %2678
    %2682 = vset.pattern.permute.xlu0 0
    %2683 = vperm.xlu0 %2682, %v2645
    %v2684 = vpop.permute.xlu0 %2683
    %2687 = vset.pattern.permute.xlu0 0
    %2688 = vperm.xlu0 %2687, %v2648
    %v2689 = vpop.permute.xlu0 %2688
    %v2692 = vperm.slane %v2650, 0
    %v2694 = vmul.f32 %v2654, %v2692
    %v2695 = vmul.f32 %v2659, %v2692
    %v2696 = vmul.f32 %v2664, %v2692
    %v2697 = vmul.f32 %v2669, %v2692
    %v2698 = vmul.f32 %v2674, %v2692
    %v2699 = vmul.f32 %v2679, %v2692
    %v2700 = vmul.f32 %v2684, %v2692
    %v2701 = vmul.f32 %v2689, %v2692
    %v2702 = vadd.f32 %v2544, %v2694
    %v2703 = vadd.f32 %v2545, %v2695
    %v2704 = vadd.f32 %v2546, %v2696
    %v2705 = vadd.f32 %v2547, %v2697
    %v2706 = vadd.f32 %v2548, %v2698
    %v2707 = vadd.f32 %v2549, %v2699
    %v2708 = vadd.f32 %v2550, %v2700
    %v2709 = vadd.f32 %v2551, %v2701
    %v2710 = vld [vmem:[%s1242] sm:$0xff]
    %v2711 = vld [vmem:[%s1242 + $0x8] sm:$0xff]
    %v2712 = vld [vmem:[%s1242 + $0x10] sm:$0xff]
    %v2713 = vld [vmem:[%s1242 + $0x18] sm:$0xff]
    %v2714 = vld [vmem:[%s1242 + $0x20] sm:$0xff]
    %v2715 = vld [vmem:[%s1242 + $0x28] sm:$0xff]
    %v2716 = vld [vmem:[%s1242 + $0x30] sm:$0xff]
    %v2717 = vld [vmem:[%s1242 + $0x38] sm:$0xff]
    %v2718 = vld [vmem:[%s1242 + $0x40] sm:$0xff]
    %v2719 = vld [vmem:[%s1242 + $0x48] sm:$0xff]
    %v2720 = vld [vmem:[%s1242 + $0x50] sm:$0xff]
    %v2721 = vld [vmem:[%s1242 + $0x58] sm:$0xff]
    %v2722 = vld [vmem:[%s1242 + $0x60] sm:$0xff]
    %v2723 = vld [vmem:[%s1242 + $0x68] sm:$0xff]
    %v2724 = vld [vmem:[%s1242 + $0x70] sm:$0xff]
    %v2725 = vld [vmem:[%s1242 + $0x78] sm:$0xff]
    %2726 = vmatpush.msra.mxu0 %v1587
    %2727 = vmatpush.msra.mxu0 %v1586
    %2728 = vmatpush.msra.mxu0 %v1585
    %2729 = vmatpush.msra.mxu0 %v1584
    %2730 = vmatpush.msra.mxu0 %v1583
    %2731 = vmatpush.msra.mxu0 %v1582
    %2732 = vmatpush.msra.mxu0 %v1581
    %2733 = vmatpush.msra.mxu0 %v1580
    %2734 = vmatpush.msra.mxu0 %v1579
    %2735 = vmatpush.msra.mxu0 %v1578
    %2736 = vmatpush.msra.mxu0 %v1577
    %2737 = vmatpush.msra.mxu0 %v1576
    %2738 = vmatpush.msra.mxu0 %v1575
    %2739 = vmatpush.msra.mxu0 %v1574
    %2740 = vmatpush.msra.mxu0 %v1573
    %2741 = vmatpush.msra.mxu0 %v1572
    %2742 = vmatmul.f32.gmra.mxu0 %v2710
    %v2743 = vpop.f32.mrf.mxu0
    %v2744 = vadd.f32 0.0, %v2743
    %2745 = vmatmul.f32.gmra.mxu0 %v2712
    %v2746 = vpop.f32.mrf.mxu0
    %v2747 = vadd.f32 0.0, %v2746
    %2748 = vmatmul.f32.gmra.mxu0 %v2714
    %v2749 = vpop.f32.mrf.mxu0
    %v2750 = vadd.f32 0.0, %v2749
    %2751 = vmatmul.f32.gmra.mxu0 %v2716
    %v2752 = vpop.f32.mrf.mxu0
    %v2753 = vadd.f32 0.0, %v2752
    %2754 = vmatmul.f32.gmra.mxu0 %v2718
    %v2755 = vpop.f32.mrf.mxu0
    %v2756 = vadd.f32 0.0, %v2755
    %2757 = vmatmul.f32.gmra.mxu0 %v2720
    %v2758 = vpop.f32.mrf.mxu0
    %v2759 = vadd.f32 0.0, %v2758
    %2760 = vmatmul.f32.gmra.mxu0 %v2722
    %v2761 = vpop.f32.mrf.mxu0
    %v2762 = vadd.f32 0.0, %v2761
    %2763 = vmatmul.f32.gmra.mxu0 %v2724
    %v2764 = vpop.f32.mrf.mxu0
    %v2765 = vadd.f32 0.0, %v2764
    %2766 = vdwg.mxu0
    %2767 = vmatpush.msra.mxu0 %v1603
    %2768 = vmatpush.msra.mxu0 %v1602
    %2769 = vmatpush.msra.mxu0 %v1601
    %2770 = vmatpush.msra.mxu0 %v1600
    %2771 = vmatpush.msra.mxu0 %v1599
    %2772 = vmatpush.msra.mxu0 %v1598
    %2773 = vmatpush.msra.mxu0 %v1597
    %2774 = vmatpush.msra.mxu0 %v1596
    %2775 = vmatpush.msra.mxu0 %v1595
    %2776 = vmatpush.msra.mxu0 %v1594
    %2777 = vmatpush.msra.mxu0 %v1593
    %2778 = vmatpush.msra.mxu0 %v1592
    %2779 = vmatpush.msra.mxu0 %v1591
    %2780 = vmatpush.msra.mxu0 %v1590
    %2781 = vmatpush.msra.mxu0 %v1589
    %2782 = vmatpush.msra.mxu0 %v1588
    %2783 = vmatmul.f32.gmra.mxu0 %v2711
    %v2784 = vpop.f32.mrf.mxu0
    %v2785 = vadd.f32 %v2744, %v2784
    %2786 = vmatmul.f32.gmra.mxu0 %v2713
    %v2787 = vpop.f32.mrf.mxu0
    %v2788 = vadd.f32 %v2747, %v2787
    %2789 = vmatmul.f32.gmra.mxu0 %v2715
    %v2790 = vpop.f32.mrf.mxu0
    %v2791 = vadd.f32 %v2750, %v2790
    %2792 = vmatmul.f32.gmra.mxu0 %v2717
    %v2793 = vpop.f32.mrf.mxu0
    %v2794 = vadd.f32 %v2753, %v2793
    %2795 = vmatmul.f32.gmra.mxu0 %v2719
    %v2796 = vpop.f32.mrf.mxu0
    %v2797 = vadd.f32 %v2756, %v2796
    %2798 = vmatmul.f32.gmra.mxu0 %v2721
    %v2799 = vpop.f32.mrf.mxu0
    %v2800 = vadd.f32 %v2759, %v2799
    %2801 = vmatmul.f32.gmra.mxu0 %v2723
    %v2802 = vpop.f32.mrf.mxu0
    %v2803 = vadd.f32 %v2762, %v2802
    %2804 = vmatmul.f32.gmra.mxu0 %v2725
    %v2805 = vpop.f32.mrf.mxu0
    %v2806 = vadd.f32 %v2765, %v2805
    %2807 = vdwg.mxu0
    %v2808 = vld [vmem:[%s1341] sm:$0x1]
    %2810 = vset.pattern.permute.xlu0 0
    %2811 = vperm.xlu0 %2810, %v2785
    %v2812 = vpop.permute.xlu0 %2811
    %2815 = vset.pattern.permute.xlu0 0
    %2816 = vperm.xlu0 %2815, %v2788
    %v2817 = vpop.permute.xlu0 %2816
    %2820 = vset.pattern.permute.xlu0 0
    %2821 = vperm.xlu0 %2820, %v2791
    %v2822 = vpop.permute.xlu0 %2821
    %2825 = vset.pattern.permute.xlu0 0
    %2826 = vperm.xlu0 %2825, %v2794
    %v2827 = vpop.permute.xlu0 %2826
    %2830 = vset.pattern.permute.xlu0 0
    %2831 = vperm.xlu0 %2830, %v2797
    %v2832 = vpop.permute.xlu0 %2831
    %2835 = vset.pattern.permute.xlu0 0
    %2836 = vperm.xlu0 %2835, %v2800
    %v2837 = vpop.permute.xlu0 %2836
    %2840 = vset.pattern.permute.xlu0 0
    %2841 = vperm.xlu0 %2840, %v2803
    %v2842 = vpop.permute.xlu0 %2841
    %2845 = vset.pattern.permute.xlu0 0
    %2846 = vperm.xlu0 %2845, %v2806
    %v2847 = vpop.permute.xlu0 %2846
    %v2850 = vperm.slane %v2808, 0
    %v2852 = vmul.f32 %v2812, %v2850
    %v2853 = vmul.f32 %v2817, %v2850
    %v2854 = vmul.f32 %v2822, %v2850
    %v2855 = vmul.f32 %v2827, %v2850
    %v2856 = vmul.f32 %v2832, %v2850
    %v2857 = vmul.f32 %v2837, %v2850
    %v2858 = vmul.f32 %v2842, %v2850
    %v2859 = vmul.f32 %v2847, %v2850
    %v2860 = vadd.f32 %v2702, %v2852
    %v2861 = vadd.f32 %v2703, %v2853
    %v2862 = vadd.f32 %v2704, %v2854
    %v2863 = vadd.f32 %v2705, %v2855
    %v2864 = vadd.f32 %v2706, %v2856
    %v2865 = vadd.f32 %v2707, %v2857
    %v2866 = vadd.f32 %v2708, %v2858
    %v2867 = vadd.f32 %v2709, %v2859
    %v2868 = vld [vmem:[%s1402] sm:$0xff]
    %v2869 = vld [vmem:[%s1402 + $0x8] sm:$0xff]
    %v2870 = vld [vmem:[%s1402 + $0x10] sm:$0xff]
    %v2871 = vld [vmem:[%s1402 + $0x18] sm:$0xff]
    %v2872 = vld [vmem:[%s1402 + $0x20] sm:$0xff]
    %v2873 = vld [vmem:[%s1402 + $0x28] sm:$0xff]
    %v2874 = vld [vmem:[%s1402 + $0x30] sm:$0xff]
    %v2875 = vld [vmem:[%s1402 + $0x38] sm:$0xff]
    %v2876 = vld [vmem:[%s1402 + $0x40] sm:$0xff]
    %v2877 = vld [vmem:[%s1402 + $0x48] sm:$0xff]
    %v2878 = vld [vmem:[%s1402 + $0x50] sm:$0xff]
    %v2879 = vld [vmem:[%s1402 + $0x58] sm:$0xff]
    %v2880 = vld [vmem:[%s1402 + $0x60] sm:$0xff]
    %v2881 = vld [vmem:[%s1402 + $0x68] sm:$0xff]
    %v2882 = vld [vmem:[%s1402 + $0x70] sm:$0xff]
    %v2883 = vld [vmem:[%s1402 + $0x78] sm:$0xff]
    %2884 = vmatpush.msra.mxu0 %v1587
    %2885 = vmatpush.msra.mxu0 %v1586
    %2886 = vmatpush.msra.mxu0 %v1585
    %2887 = vmatpush.msra.mxu0 %v1584
    %2888 = vmatpush.msra.mxu0 %v1583
    %2889 = vmatpush.msra.mxu0 %v1582
    %2890 = vmatpush.msra.mxu0 %v1581
    %2891 = vmatpush.msra.mxu0 %v1580
    %2892 = vmatpush.msra.mxu0 %v1579
    %2893 = vmatpush.msra.mxu0 %v1578
    %2894 = vmatpush.msra.mxu0 %v1577
    %2895 = vmatpush.msra.mxu0 %v1576
    %2896 = vmatpush.msra.mxu0 %v1575
    %2897 = vmatpush.msra.mxu0 %v1574
    %2898 = vmatpush.msra.mxu0 %v1573
    %2899 = vmatpush.msra.mxu0 %v1572
    %2900 = vmatmul.f32.gmra.mxu0 %v2868
    %v2901 = vpop.f32.mrf.mxu0
    %v2902 = vadd.f32 0.0, %v2901
    %2903 = vmatmul.f32.gmra.mxu0 %v2870
    %v2904 = vpop.f32.mrf.mxu0
    %v2905 = vadd.f32 0.0, %v2904
    %2906 = vmatmul.f32.gmra.mxu0 %v2872
    %v2907 = vpop.f32.mrf.mxu0
    %v2908 = vadd.f32 0.0, %v2907
    %2909 = vmatmul.f32.gmra.mxu0 %v2874
    %v2910 = vpop.f32.mrf.mxu0
    %v2911 = vadd.f32 0.0, %v2910
    %2912 = vmatmul.f32.gmra.mxu0 %v2876
    %v2913 = vpop.f32.mrf.mxu0
    %v2914 = vadd.f32 0.0, %v2913
    %2915 = vmatmul.f32.gmra.mxu0 %v2878
    %v2916 = vpop.f32.mrf.mxu0
    %v2917 = vadd.f32 0.0, %v2916
    %2918 = vmatmul.f32.gmra.mxu0 %v2880
    %v2919 = vpop.f32.mrf.mxu0
    %v2920 = vadd.f32 0.0, %v2919
    %2921 = vmatmul.f32.gmra.mxu0 %v2882
    %v2922 = vpop.f32.mrf.mxu0
    %v2923 = vadd.f32 0.0, %v2922
    %2924 = vdwg.mxu0
    %2925 = vmatpush.msra.mxu0 %v1603
    %2926 = vmatpush.msra.mxu0 %v1602
    %2927 = vmatpush.msra.mxu0 %v1601
    %2928 = vmatpush.msra.mxu0 %v1600
    %2929 = vmatpush.msra.mxu0 %v1599
    %2930 = vmatpush.msra.mxu0 %v1598
    %2931 = vmatpush.msra.mxu0 %v1597
    %2932 = vmatpush.msra.mxu0 %v1596
    %2933 = vmatpush.msra.mxu0 %v1595
    %2934 = vmatpush.msra.mxu0 %v1594
    %2935 = vmatpush.msra.mxu0 %v1593
    %2936 = vmatpush.msra.mxu0 %v1592
    %2937 = vmatpush.msra.mxu0 %v1591
    %2938 = vmatpush.msra.mxu0 %v1590
    %2939 = vmatpush.msra.mxu0 %v1589
    %2940 = vmatpush.msra.mxu0 %v1588
    %2941 = vmatmul.f32.gmra.mxu0 %v2869
    %v2942 = vpop.f32.mrf.mxu0
    %v2943 = vadd.f32 %v2902, %v2942
    %2944 = vmatmul.f32.gmra.mxu0 %v2871
    %v2945 = vpop.f32.mrf.mxu0
    %v2946 = vadd.f32 %v2905, %v2945
    %2947 = vmatmul.f32.gmra.mxu0 %v2873
    %v2948 = vpop.f32.mrf.mxu0
    %v2949 = vadd.f32 %v2908, %v2948
    %2950 = vmatmul.f32.gmra.mxu0 %v2875
    %v2951 = vpop.f32.mrf.mxu0
    %v2952 = vadd.f32 %v2911, %v2951
    %2953 = vmatmul.f32.gmra.mxu0 %v2877
    %v2954 = vpop.f32.mrf.mxu0
    %v2955 = vadd.f32 %v2914, %v2954
    %2956 = vmatmul.f32.gmra.mxu0 %v2879
    %v2957 = vpop.f32.mrf.mxu0
    %v2958 = vadd.f32 %v2917, %v2957
    %2959 = vmatmul.f32.gmra.mxu0 %v2881
    %v2960 = vpop.f32.mrf.mxu0
    %v2961 = vadd.f32 %v2920, %v2960
    %2962 = vmatmul.f32.gmra.mxu0 %v2883
    %v2963 = vpop.f32.mrf.mxu0
    %v2964 = vadd.f32 %v2923, %v2963
    %2965 = vdwg.mxu0
    %v2966 = vld [vmem:[%s1501] sm:$0x1]
    %2968 = vset.pattern.permute.xlu0 0
    %2969 = vperm.xlu0 %2968, %v2943
    %v2970 = vpop.permute.xlu0 %2969
    %2973 = vset.pattern.permute.xlu0 0
    %2974 = vperm.xlu0 %2973, %v2946
    %v2975 = vpop.permute.xlu0 %2974
    %2978 = vset.pattern.permute.xlu0 0
    %2979 = vperm.xlu0 %2978, %v2949
    %v2980 = vpop.permute.xlu0 %2979
    %2983 = vset.pattern.permute.xlu0 0
    %2984 = vperm.xlu0 %2983, %v2952
    %v2985 = vpop.permute.xlu0 %2984
    %2988 = vset.pattern.permute.xlu0 0
    %2989 = vperm.xlu0 %2988, %v2955
    %v2990 = vpop.permute.xlu0 %2989
    %2993 = vset.pattern.permute.xlu0 0
    %2994 = vperm.xlu0 %2993, %v2958
    %v2995 = vpop.permute.xlu0 %2994
    %2998 = vset.pattern.permute.xlu0 0
    %2999 = vperm.xlu0 %2998, %v2961
    %v3000 = vpop.permute.xlu0 %2999
    %3003 = vset.pattern.permute.xlu0 0
    %3004 = vperm.xlu0 %3003, %v2964
    %v3005 = vpop.permute.xlu0 %3004
    %v3008 = vperm.slane %v2966, 0
    %v3010 = vmul.f32 %v2970, %v3008
    %v3011 = vmul.f32 %v2975, %v3008
    %v3012 = vmul.f32 %v2980, %v3008
    %v3013 = vmul.f32 %v2985, %v3008
    %v3014 = vmul.f32 %v2990, %v3008
    %v3015 = vmul.f32 %v2995, %v3008
    %v3016 = vmul.f32 %v3000, %v3008
    %v3017 = vmul.f32 %v3005, %v3008
    %v3018 = vadd.f32 %v2860, %v3010
    %v3019 = vadd.f32 %v2861, %v3011
    %v3020 = vadd.f32 %v2862, %v3012
    %v3021 = vadd.f32 %v2863, %v3013
    %v3022 = vadd.f32 %v2864, %v3014
    %v3023 = vadd.f32 %v2865, %v3015
    %v3024 = vadd.f32 %v2866, %v3016
    %v3025 = vadd.f32 %v2867, %v3017
    %s3026 = scalar_lea.vmem [#allocation2], 64
    %3027 = vst.msk [vmem:[%s3026] sm:$0xff] %vm1562, %v3018
    %3028 = vst.msk [vmem:[%s3026 + $0x8] sm:$0xff] %vm1562, %v3019
    %3029 = vst.msk [vmem:[%s3026 + $0x10] sm:$0xff] %vm1562, %v3020
    %3030 = vst.msk [vmem:[%s3026 + $0x18] sm:$0xff] %vm1562, %v3021
    %3031 = vst.msk [vmem:[%s3026 + $0x20] sm:$0xff] %vm1562, %v3022
    %3032 = vst.msk [vmem:[%s3026 + $0x28] sm:$0xff] %vm1562, %v3023
    %3033 = vst.msk [vmem:[%s3026 + $0x30] sm:$0xff] %vm1562, %v3024
    %3034 = vst.msk [vmem:[%s3026 + $0x38] sm:$0xff] %vm1562, %v3025
    %v3035 = vld [vmem:[#allocation2] sm:$0xff]
    %v3036 = vld [vmem:[#allocation2 + $0x8] sm:$0xff]
    %v3037 = vld [vmem:[#allocation2 + $0x10] sm:$0xff]
    %v3038 = vld [vmem:[#allocation2 + $0x18] sm:$0xff]
    %v3039 = vld [vmem:[#allocation2 + $0x20] sm:$0xff]
    %v3040 = vld [vmem:[#allocation2 + $0x28] sm:$0xff]
    %v3041 = vld [vmem:[#allocation2 + $0x30] sm:$0xff]
    %v3042 = vld [vmem:[#allocation2 + $0x38] sm:$0xff]
    %v3043 = vsel %vm1562, %v3035, 0.0
    %v3044 = vsel %vm1562, %v3036, 0.0
    %v3045 = vadd.f32 %v3043, %v3044
    %v3046 = vsel %vm1562, %v3037, 0.0
    %v3047 = vadd.f32 %v3045, %v3046
    %v3048 = vsel %vm1562, %v3038, 0.0
    %v3049 = vadd.f32 %v3047, %v3048
    %v3050 = vsel %vm1562, %v3039, 0.0
    %v3051 = vadd.f32 %v3049, %v3050
    %v3052 = vsel %vm1562, %v3040, 0.0
    %v3053 = vadd.f32 %v3051, %v3052
    %v3054 = vsel %vm1562, %v3041, 0.0
    %v3055 = vadd.f32 %v3053, %v3054
    %v3056 = vsel %vm1562, %v3042, 0.0
    %v3057 = vadd.f32 %v3055, %v3056
    %v3058 = vrot.slane %v3057, 4
    %v3059 = vadd.f32 %v3057, %v3058
    %v3060 = vrot.slane %v3059, 2
    %v3061 = vadd.f32 %v3059, %v3060
    %v3062 = vrot.slane %v3061, 1
    %v3063 = vadd.f32 %v3061, %v3062
    %v3064 = vadd.f32 %v3063, 0.0
    %v3065 = vld [vmem:[%s3026] sm:$0xff]
    %v3066 = vld [vmem:[%s3026 + $0x8] sm:$0xff]
    %v3067 = vld [vmem:[%s3026 + $0x10] sm:$0xff]
    %v3068 = vld [vmem:[%s3026 + $0x18] sm:$0xff]
    %v3069 = vld [vmem:[%s3026 + $0x20] sm:$0xff]
    %v3070 = vld [vmem:[%s3026 + $0x28] sm:$0xff]
    %v3071 = vld [vmem:[%s3026 + $0x30] sm:$0xff]
    %v3072 = vld [vmem:[%s3026 + $0x38] sm:$0xff]
    %v3073 = vsel %vm1562, %v3065, 0.0
    %v3074 = vsel %vm1562, %v3066, 0.0
    %v3075 = vadd.f32 %v3073, %v3074
    %v3076 = vsel %vm1562, %v3067, 0.0
    %v3077 = vadd.f32 %v3075, %v3076
    %v3078 = vsel %vm1562, %v3068, 0.0
    %v3079 = vadd.f32 %v3077, %v3078
    %v3080 = vsel %vm1562, %v3069, 0.0
    %v3081 = vadd.f32 %v3079, %v3080
    %v3082 = vsel %vm1562, %v3070, 0.0
    %v3083 = vadd.f32 %v3081, %v3082
    %v3084 = vsel %vm1562, %v3071, 0.0
    %v3085 = vadd.f32 %v3083, %v3084
    %v3086 = vsel %vm1562, %v3072, 0.0
    %v3087 = vadd.f32 %v3085, %v3086
    %v3088 = vrot.slane %v3087, 4
    %v3089 = vadd.f32 %v3087, %v3088
    %v3090 = vrot.slane %v3089, 2
    %v3091 = vadd.f32 %v3089, %v3090
    %v3092 = vrot.slane %v3091, 1
    %v3093 = vadd.f32 %v3091, %v3092
    %v3094 = vadd.f32 %v3064, %v3093
    %v3095 = vmul.f32 %v3094, 0.0078125
    %v3096 = vsub.f32 %v3035, %v3095
    %v3097 = vsub.f32 %v3036, %v3095
    %v3098 = vsub.f32 %v3037, %v3095
    %v3099 = vsub.f32 %v3038, %v3095
    %v3100 = vsub.f32 %v3039, %v3095
    %v3101 = vsub.f32 %v3040, %v3095
    %v3102 = vsub.f32 %v3041, %v3095
    %v3103 = vsub.f32 %v3042, %v3095
    %v3104 = vmul.f32 %v3096, %v3096
    %v3105 = vmul.f32 %v3097, %v3097
    %v3106 = vmul.f32 %v3098, %v3098
    %v3107 = vmul.f32 %v3099, %v3099
    %v3108 = vmul.f32 %v3100, %v3100
    %v3109 = vmul.f32 %v3101, %v3101
    %v3110 = vmul.f32 %v3102, %v3102
    %v3111 = vmul.f32 %v3103, %v3103
    %v3112 = vsel %vm1562, %v3104, 0.0
    %v3113 = vsel %vm1562, %v3105, 0.0
    %v3114 = vadd.f32 %v3112, %v3113
    %v3115 = vsel %vm1562, %v3106, 0.0
    %v3116 = vadd.f32 %v3114, %v3115
    %v3117 = vsel %vm1562, %v3107, 0.0
    %v3118 = vadd.f32 %v3116, %v3117
    %v3119 = vsel %vm1562, %v3108, 0.0
    %v3120 = vadd.f32 %v3118, %v3119
    %v3121 = vsel %vm1562, %v3109, 0.0
    %v3122 = vadd.f32 %v3120, %v3121
    %v3123 = vsel %vm1562, %v3110, 0.0
    %v3124 = vadd.f32 %v3122, %v3123
    %v3125 = vsel %vm1562, %v3111, 0.0
    %v3126 = vadd.f32 %v3124, %v3125
    %v3127 = vrot.slane %v3126, 4
    %v3128 = vadd.f32 %v3126, %v3127
    %v3129 = vrot.slane %v3128, 2
    %v3130 = vadd.f32 %v3128, %v3129
    %v3131 = vrot.slane %v3130, 1
    %v3132 = vadd.f32 %v3130, %v3131
    %v3133 = vadd.f32 %v3132, 0.0
    %v3134 = vsub.f32 %v3065, %v3095
    %v3135 = vsub.f32 %v3066, %v3095
    %v3136 = vsub.f32 %v3067, %v3095
    %v3137 = vsub.f32 %v3068, %v3095
    %v3138 = vsub.f32 %v3069, %v3095
    %v3139 = vsub.f32 %v3070, %v3095
    %v3140 = vsub.f32 %v3071, %v3095
    %v3141 = vsub.f32 %v3072, %v3095
    %v3142 = vmul.f32 %v3134, %v3134
    %v3143 = vmul.f32 %v3135, %v3135
    %v3144 = vmul.f32 %v3136, %v3136
    %v3145 = vmul.f32 %v3137, %v3137
    %v3146 = vmul.f32 %v3138, %v3138
    %v3147 = vmul.f32 %v3139, %v3139
    %v3148 = vmul.f32 %v3140, %v3140
    %v3149 = vmul.f32 %v3141, %v3141
    %v3150 = vsel %vm1562, %v3142, 0.0
    %v3151 = vsel %vm1562, %v3143, 0.0
    %v3152 = vadd.f32 %v3150, %v3151
    %v3153 = vsel %vm1562, %v3144, 0.0
    %v3154 = vadd.f32 %v3152, %v3153
    %v3155 = vsel %vm1562, %v3145, 0.0
    %v3156 = vadd.f32 %v3154, %v3155
    %v3157 = vsel %vm1562, %v3146, 0.0
    %v3158 = vadd.f32 %v3156, %v3157
    %v3159 = vsel %vm1562, %v3147, 0.0
    %v3160 = vadd.f32 %v3158, %v3159
    %v3161 = vsel %vm1562, %v3148, 0.0
    %v3162 = vadd.f32 %v3160, %v3161
    %v3163 = vsel %vm1562, %v3149, 0.0
    %v3164 = vadd.f32 %v3162, %v3163
    %v3165 = vrot.slane %v3164, 4
    %v3166 = vadd.f32 %v3164, %v3165
    %v3167 = vrot.slane %v3166, 2
    %v3168 = vadd.f32 %v3166, %v3167
    %v3169 = vrot.slane %v3168, 1
    %v3170 = vadd.f32 %v3168, %v3169
    %v3171 = vadd.f32 %v3133, %v3170
    %v3172 = vmul.f32 %v3171, 0.0078125
    %v3173 = vadd.f32 %v3172, 1e-05
    %v3174 = vrsqrt.pop %v3173
    %v3175 = vmul.f32 %v3174, %v3173
    %v3176 = vmul.f32 %v3175, %v3174
    %v3177 = vmul.f32 0.5, %v3176
    %v3178 = vsub.f32 1.5, %v3177
    %v3179 = vmul.f32 %v3174, %v3178
    %vm3180 = vweird.f32 %v3173
    %vm3181 = vweird.f32 %v3174
    %vm3182 = vmor %vm3180, %vm3181
    %v3183 = vsel %vm3182, %v3174, %v3179
    %v3184 = vld [vmem:[%s8] sm:$0x1]
    %v3185 = vmul.f32 %v3184, %v3183
    %v3186 = vld [vmem:[%s9] sm:$0x1]
    %v3187 = vmul.f32 %v3095, %v3185
    %v3188 = vsub.f32 %v3186, %v3187
    %v3190 = vperm.slane %v3185, 0
    %v3192 = vmul.f32 %v3035, %v3190
    %v3193 = vmul.f32 %v3036, %v3190
    %v3194 = vmul.f32 %v3037, %v3190
    %v3195 = vmul.f32 %v3038, %v3190
    %v3196 = vmul.f32 %v3039, %v3190
    %v3197 = vmul.f32 %v3040, %v3190
    %v3198 = vmul.f32 %v3041, %v3190
    %v3199 = vmul.f32 %v3042, %v3190
    %v3201 = vperm.slane %v3188, 0
    %v3203 = vadd.f32 %v3192, %v3201
    %v3204 = vadd.f32 %v3193, %v3201
    %v3205 = vadd.f32 %v3194, %v3201
    %v3206 = vadd.f32 %v3195, %v3201
    %v3207 = vadd.f32 %v3196, %v3201
    %v3208 = vadd.f32 %v3197, %v3201
    %v3209 = vadd.f32 %v3198, %v3201
    %v3210 = vadd.f32 %v3199, %v3201
    %v3211 = vmax.f32 %v3203, 0.0
    %v3212 = vmax.f32 %v3204, 0.0
    %v3213 = vmax.f32 %v3205, 0.0
    %v3214 = vmax.f32 %v3206, 0.0
    %v3215 = vmax.f32 %v3207, 0.0
    %v3216 = vmax.f32 %v3208, 0.0
    %v3217 = vmax.f32 %v3209, 0.0
    %v3218 = vmax.f32 %v3210, 0.0
    %3219 = vst.msk [vmem:[#allocation2] sm:$0xff] %vm1562, %v3211
    %3220 = vst.msk [vmem:[#allocation2 + $0x8] sm:$0xff] %vm1562, %v3212
    %3221 = vst.msk [vmem:[#allocation2 + $0x10] sm:$0xff] %vm1562, %v3213
    %3222 = vst.msk [vmem:[#allocation2 + $0x18] sm:$0xff] %vm1562, %v3214
    %3223 = vst.msk [vmem:[#allocation2 + $0x20] sm:$0xff] %vm1562, %v3215
    %3224 = vst.msk [vmem:[#allocation2 + $0x28] sm:$0xff] %vm1562, %v3216
    %3225 = vst.msk [vmem:[#allocation2 + $0x30] sm:$0xff] %vm1562, %v3217
    %3226 = vst.msk [vmem:[#allocation2 + $0x38] sm:$0xff] %vm1562, %v3218
    %v3227 = vld [vmem:[%s3026] sm:$0xff]
    %v3228 = vld [vmem:[%s3026 + $0x8] sm:$0xff]
    %v3229 = vld [vmem:[%s3026 + $0x10] sm:$0xff]
    %v3230 = vld [vmem:[%s3026 + $0x18] sm:$0xff]
    %v3231 = vld [vmem:[%s3026 + $0x20] sm:$0xff]
    %v3232 = vld [vmem:[%s3026 + $0x28] sm:$0xff]
    %v3233 = vld [vmem:[%s3026 + $0x30] sm:$0xff]
    %v3234 = vld [vmem:[%s3026 + $0x38] sm:$0xff]
    %v3235 = vmul.f32 %v3227, %v3190
    %v3236 = vmul.f32 %v3228, %v3190
    %v3237 = vmul.f32 %v3229, %v3190
    %v3238 = vmul.f32 %v3230, %v3190
    %v3239 = vmul.f32 %v3231, %v3190
    %v3240 = vmul.f32 %v3232, %v3190
    %v3241 = vmul.f32 %v3233, %v3190
    %v3242 = vmul.f32 %v3234, %v3190
    %v3243 = vadd.f32 %v3235, %v3201
    %v3244 = vadd.f32 %v3236, %v3201
    %v3245 = vadd.f32 %v3237, %v3201
    %v3246 = vadd.f32 %v3238, %v3201
    %v3247 = vadd.f32 %v3239, %v3201
    %v3248 = vadd.f32 %v3240, %v3201
    %v3249 = vadd.f32 %v3241, %v3201
    %v3250 = vadd.f32 %v3242, %v3201
    %v3251 = vmax.f32 %v3243, 0.0
    %v3252 = vmax.f32 %v3244, 0.0
    %v3253 = vmax.f32 %v3245, 0.0
    %v3254 = vmax.f32 %v3246, 0.0
    %v3255 = vmax.f32 %v3247, 0.0
    %v3256 = vmax.f32 %v3248, 0.0
    %v3257 = vmax.f32 %v3249, 0.0
    %v3258 = vmax.f32 %v3250, 0.0
    %3259 = vst.msk [vmem:[%s3026] sm:$0xff] %vm1562, %v3251
    %3260 = vst.msk [vmem:[%s3026 + $0x8] sm:$0xff] %vm1562, %v3252
    %3261 = vst.msk [vmem:[%s3026 + $0x10] sm:$0xff] %vm1562, %v3253
    %3262 = vst.msk [vmem:[%s3026 + $0x18] sm:$0xff] %vm1562, %v3254
    %3263 = vst.msk [vmem:[%s3026 + $0x20] sm:$0xff] %vm1562, %v3255
    %3264 = vst.msk [vmem:[%s3026 + $0x28] sm:$0xff] %vm1562, %v3256
    %3265 = vst.msk [vmem:[%s3026 + $0x30] sm:$0xff] %vm1562, %v3257
    %3266 = vst.msk [vmem:[%s3026 + $0x38] sm:$0xff] %vm1562, %v3258
    %v3267 = vld [vmem:[#allocation2] sm:$0xff]
    %v3268 = vld [vmem:[#allocation2 + $0x8] sm:$0xff]
    %v3269 = vld [vmem:[#allocation2 + $0x10] sm:$0xff]
    %v3270 = vld [vmem:[#allocation2 + $0x18] sm:$0xff]
    %v3271 = vld [vmem:[#allocation2 + $0x20] sm:$0xff]
    %v3272 = vld [vmem:[#allocation2 + $0x28] sm:$0xff]
    %v3273 = vld [vmem:[#allocation2 + $0x30] sm:$0xff]
    %v3274 = vld [vmem:[#allocation2 + $0x38] sm:$0xff]
    %v3275 = vld [vmem:[#allocation9] sm:$0xff]
    %v3276 = vld [vmem:[#allocation9 + $0x8] sm:$0xff]
    %vm3277 = vcmask 523264
    %v3279 = vsel %vm3277, %v3275, 0
    %v3282 = vsel %vm3277, %v3276, 0
    %3284 = vmatpush.msra.mxu0 0.0
    %3285 = vmatpush.msra.mxu0 0.0
    %3286 = vmatpush.msra.mxu0 0.0
    %3287 = vmatpush.msra.mxu0 0.0
    %3288 = vmatpush.msra.mxu0 0.0
    %3289 = vmatpush.msra.mxu0 0.0
    %3290 = vmatpush.msra.mxu0 0.0
    %3291 = vmatpush.msra.mxu0 0.0
    %3292 = vmatpush.msra.mxu0 %v3274
    %3293 = vmatpush.msra.mxu0 %v3273
    %3294 = vmatpush.msra.mxu0 %v3272
    %3295 = vmatpush.msra.mxu0 %v3271
    %3296 = vmatpush.msra.mxu0 %v3270
    %3297 = vmatpush.msra.mxu0 %v3269
    %3298 = vmatpush.msra.mxu0 %v3268
    %3299 = vmatpush.msra.mxu0 %v3267
    %3300 = vmatmul.f32.gmra.mxu0 %v3279
    %v3301 = vpop.f32.mrf.mxu0
    %v3302 = vadd.f32 0.0, %v3301
    %3303 = vmatmul.f32.gmra.mxu0 %v3282
    %v3304 = vpop.f32.mrf.mxu0
    %v3305 = vadd.f32 0.0, %v3304
    %3306 = vdwg.mxu0
    %v3307 = vld [vmem:[%s5] sm:$0xff]
    %v3308 = vld [vmem:[%s5 + $0x8] sm:$0xff]
    %s3309 = scalar_lea.vmem [#allocation9], 16
    %v3310 = vld [vmem:[%s3309] sm:$0xff]
    %v3311 = vld [vmem:[%s3309 + $0x8] sm:$0xff]
    %v3313 = vsel %vm3277, %v3310, 0
    %v3316 = vsel %vm3277, %v3311, 0
    %3318 = vmatpush.msra.mxu0 0.0
    %3319 = vmatpush.msra.mxu0 0.0
    %3320 = vmatpush.msra.mxu0 0.0
    %3321 = vmatpush.msra.mxu0 0.0
    %3322 = vmatpush.msra.mxu0 0.0
    %3323 = vmatpush.msra.mxu0 0.0
    %3324 = vmatpush.msra.mxu0 0.0
    %3325 = vmatpush.msra.mxu0 0.0
    %3326 = vmatpush.msra.mxu0 %v3274
    %3327 = vmatpush.msra.mxu0 %v3273
    %3328 = vmatpush.msra.mxu0 %v3272
    %3329 = vmatpush.msra.mxu0 %v3271
    %3330 = vmatpush.msra.mxu0 %v3270
    %3331 = vmatpush.msra.mxu0 %v3269
    %3332 = vmatpush.msra.mxu0 %v3268
    %3333 = vmatpush.msra.mxu0 %v3267
    %3334 = vmatmul.f32.gmra.mxu0 %v3313
    %v3335 = vpop.f32.mrf.mxu0
    %v3336 = vadd.f32 0.0, %v3335
    %3337 = vmatmul.f32.gmra.mxu0 %v3316
    %v3338 = vpop.f32.mrf.mxu0
    %v3339 = vadd.f32 0.0, %v3338
    %3340 = vdwg.mxu0
    %s3341 = scalar_lea.vmem %s5, 16
    %v3342 = vld [vmem:[%s3341] sm:$0xff]
    %v3343 = vld [vmem:[%s3341 + $0x8] sm:$0xff]
    %v3345 = vsel %vm1562, %v3336, 0
    %v3348 = vsel %vm1562, %v3339, 0
    %3350 = vmatpush.msra.mxu0 0.0
    %3351 = vmatpush.msra.mxu0 0.0
    %3352 = vmatpush.msra.mxu0 0.0
    %3353 = vmatpush.msra.mxu0 0.0
    %3354 = vmatpush.msra.mxu0 0.0
    %3355 = vmatpush.msra.mxu0 0.0
    %3356 = vmatpush.msra.mxu0 0.0
    %3357 = vmatpush.msra.mxu0 0.0
    %3358 = vmatpush.msra.mxu0 0.0
    %3359 = vmatpush.msra.mxu0 0.0
    %3360 = vmatpush.msra.mxu0 0.0
    %3361 = vmatpush.msra.mxu0 0.0
    %3362 = vmatpush.msra.mxu0 0.0
    %3363 = vmatpush.msra.mxu0 0.0
    %3364 = vmatpush.msra.mxu0 %v3343
    %3365 = vmatpush.msra.mxu0 %v3342
    %3366 = vmatmul.f32.gmra.mxu0 %v3345
    %v3367 = vpop.f32.mrf.mxu0
    %v3368 = vadd.f32 0.0, %v3367
    %3369 = vmatmul.f32.gmra.mxu0 %v3348
    %v3370 = vpop.f32.mrf.mxu0
    %v3371 = vadd.f32 0.0, %v3370
    %3372 = vdwg.mxu0
    %v3374 = vsel %vm1562, %v3302, 0
    %v3377 = vsel %vm1562, %v3305, 0
    %3379 = vmatpush.msra.mxu0 0.0
    %3380 = vmatpush.msra.mxu0 0.0
    %3381 = vmatpush.msra.mxu0 0.0
    %3382 = vmatpush.msra.mxu0 0.0
    %3383 = vmatpush.msra.mxu0 0.0
    %3384 = vmatpush.msra.mxu0 0.0
    %3385 = vmatpush.msra.mxu0 0.0
    %3386 = vmatpush.msra.mxu0 0.0
    %3387 = vmatpush.msra.mxu0 0.0
    %3388 = vmatpush.msra.mxu0 0.0
    %3389 = vmatpush.msra.mxu0 0.0
    %3390 = vmatpush.msra.mxu0 0.0
    %3391 = vmatpush.msra.mxu0 0.0
    %3392 = vmatpush.msra.mxu0 0.0
    %3393 = vmatpush.msra.mxu0 %v3308
    %3394 = vmatpush.msra.mxu0 %v3307
    %3395 = vmatmul.f32.gmra.mxu0 %v3374
    %v3396 = vpop.f32.mrf.mxu0
    %v3397 = vadd.f32 %v3368, %v3396
    %3398 = vmatmul.f32.gmra.mxu0 %v3377
    %v3399 = vpop.f32.mrf.mxu0
    %v3400 = vadd.f32 %v3371, %v3399
    %3401 = vdwg.mxu0
    %s3402 = scalar_lea.vmem [#allocation9], 32
    %v3403 = vld [vmem:[%s3402] sm:$0xff]
    %v3404 = vld [vmem:[%s3402 + $0x8] sm:$0xff]
    %v3406 = vsel %vm3277, %v3403, 0
    %v3409 = vsel %vm3277, %v3404, 0
    %3411 = vmatpush.msra.mxu0 0.0
    %3412 = vmatpush.msra.mxu0 0.0
    %3413 = vmatpush.msra.mxu0 0.0
    %3414 = vmatpush.msra.mxu0 0.0
    %3415 = vmatpush.msra.mxu0 0.0
    %3416 = vmatpush.msra.mxu0 0.0
    %3417 = vmatpush.msra.mxu0 0.0
    %3418 = vmatpush.msra.mxu0 0.0
    %3419 = vmatpush.msra.mxu0 %v3274
    %3420 = vmatpush.msra.mxu0 %v3273
    %3421 = vmatpush.msra.mxu0 %v3272
    %3422 = vmatpush.msra.mxu0 %v3271
    %3423 = vmatpush.msra.mxu0 %v3270
    %3424 = vmatpush.msra.mxu0 %v3269
    %3425 = vmatpush.msra.mxu0 %v3268
    %3426 = vmatpush.msra.mxu0 %v3267
    %3427 = vmatmul.f32.gmra.mxu0 %v3406
    %v3428 = vpop.f32.mrf.mxu0
    %v3429 = vadd.f32 0.0, %v3428
    %3430 = vmatmul.f32.gmra.mxu0 %v3409
    %v3431 = vpop.f32.mrf.mxu0
    %v3432 = vadd.f32 0.0, %v3431
    %3433 = vdwg.mxu0
    %s3434 = scalar_lea.vmem %s5, 32
    %v3435 = vld [vmem:[%s3434] sm:$0xff]
    %v3436 = vld [vmem:[%s3434 + $0x8] sm:$0xff]
    %v3438 = vsel %vm1562, %v3429, 0
    %v3441 = vsel %vm1562, %v3432, 0
    %3443 = vmatpush.msra.mxu0 0.0
    %3444 = vmatpush.msra.mxu0 0.0
    %3445 = vmatpush.msra.mxu0 0.0
    %3446 = vmatpush.msra.mxu0 0.0
    %3447 = vmatpush.msra.mxu0 0.0
    %3448 = vmatpush.msra.mxu0 0.0
    %3449 = vmatpush.msra.mxu0 0.0
    %3450 = vmatpush.msra.mxu0 0.0
    %3451 = vmatpush.msra.mxu0 0.0
    %3452 = vmatpush.msra.mxu0 0.0
    %3453 = vmatpush.msra.mxu0 0.0
    %3454 = vmatpush.msra.mxu0 0.0
    %3455 = vmatpush.msra.mxu0 0.0
    %3456 = vmatpush.msra.mxu0 0.0
    %3457 = vmatpush.msra.mxu0 %v3436
    %3458 = vmatpush.msra.mxu0 %v3435
    %3459 = vmatmul.f32.gmra.mxu0 %v3438
    %v3460 = vpop.f32.mrf.mxu0
    %v3461 = vadd.f32 0.0, %v3460
    %3462 = vmatmul.f32.gmra.mxu0 %v3441
    %v3463 = vpop.f32.mrf.mxu0
    %v3464 = vadd.f32 0.0, %v3463
    %3465 = vdwg.mxu0
    %v3466 = vadd.f32 %v3397, %v3461
    %v3467 = vadd.f32 %v3400, %v3464
    %s3468 = scalar_lea.vmem [#allocation9], 48
    %v3469 = vld [vmem:[%s3468] sm:$0xff]
    %v3470 = vld [vmem:[%s3468 + $0x8] sm:$0xff]
    %v3472 = vsel %vm3277, %v3469, 0
    %v3475 = vsel %vm3277, %v3470, 0
    %3477 = vmatpush.msra.mxu0 0.0
    %3478 = vmatpush.msra.mxu0 0.0
    %3479 = vmatpush.msra.mxu0 0.0
    %3480 = vmatpush.msra.mxu0 0.0
    %3481 = vmatpush.msra.mxu0 0.0
    %3482 = vmatpush.msra.mxu0 0.0
    %3483 = vmatpush.msra.mxu0 0.0
    %3484 = vmatpush.msra.mxu0 0.0
    %3485 = vmatpush.msra.mxu0 %v3274
    %3486 = vmatpush.msra.mxu0 %v3273
    %3487 = vmatpush.msra.mxu0 %v3272
    %3488 = vmatpush.msra.mxu0 %v3271
    %3489 = vmatpush.msra.mxu0 %v3270
    %3490 = vmatpush.msra.mxu0 %v3269
    %3491 = vmatpush.msra.mxu0 %v3268
    %3492 = vmatpush.msra.mxu0 %v3267
    %3493 = vmatmul.f32.gmra.mxu0 %v3472
    %v3494 = vpop.f32.mrf.mxu0
    %v3495 = vadd.f32 0.0, %v3494
    %3496 = vmatmul.f32.gmra.mxu0 %v3475
    %v3497 = vpop.f32.mrf.mxu0
    %v3498 = vadd.f32 0.0, %v3497
    %3499 = vdwg.mxu0
    %s3500 = scalar_lea.vmem %s5, 48
    %v3501 = vld [vmem:[%s3500] sm:$0xff]
    %v3502 = vld [vmem:[%s3500 + $0x8] sm:$0xff]
    %v3504 = vsel %vm1562, %v3495, 0
    %v3507 = vsel %vm1562, %v3498, 0
    %3509 = vmatpush.msra.mxu0 0.0
    %3510 = vmatpush.msra.mxu0 0.0
    %3511 = vmatpush.msra.mxu0 0.0
    %3512 = vmatpush.msra.mxu0 0.0
    %3513 = vmatpush.msra.mxu0 0.0
    %3514 = vmatpush.msra.mxu0 0.0
    %3515 = vmatpush.msra.mxu0 0.0
    %3516 = vmatpush.msra.mxu0 0.0
    %3517 = vmatpush.msra.mxu0 0.0
    %3518 = vmatpush.msra.mxu0 0.0
    %3519 = vmatpush.msra.mxu0 0.0
    %3520 = vmatpush.msra.mxu0 0.0
    %3521 = vmatpush.msra.mxu0 0.0
    %3522 = vmatpush.msra.mxu0 0.0
    %3523 = vmatpush.msra.mxu0 %v3502
    %3524 = vmatpush.msra.mxu0 %v3501
    %3525 = vmatmul.f32.gmra.mxu0 %v3504
    %v3526 = vpop.f32.mrf.mxu0
    %v3527 = vadd.f32 0.0, %v3526
    %3528 = vmatmul.f32.gmra.mxu0 %v3507
    %v3529 = vpop.f32.mrf.mxu0
    %v3530 = vadd.f32 0.0, %v3529
    %3531 = vdwg.mxu0
    %v3532 = vadd.f32 %v3466, %v3527
    %v3533 = vadd.f32 %v3467, %v3530
    %s3534 = scalar_lea.vmem [#allocation9], 64
    %v3535 = vld [vmem:[%s3534] sm:$0xff]
    %v3536 = vld [vmem:[%s3534 + $0x8] sm:$0xff]
    %v3538 = vsel %vm3277, %v3535, 0
    %v3541 = vsel %vm3277, %v3536, 0
    %3543 = vmatpush.msra.mxu0 0.0
    %3544 = vmatpush.msra.mxu0 0.0
    %3545 = vmatpush.msra.mxu0 0.0
    %3546 = vmatpush.msra.mxu0 0.0
    %3547 = vmatpush.msra.mxu0 0.0
    %3548 = vmatpush.msra.mxu0 0.0
    %3549 = vmatpush.msra.mxu0 0.0
    %3550 = vmatpush.msra.mxu0 0.0
    %3551 = vmatpush.msra.mxu0 %v3274
    %3552 = vmatpush.msra.mxu0 %v3273
    %3553 = vmatpush.msra.mxu0 %v3272
    %3554 = vmatpush.msra.mxu0 %v3271
    %3555 = vmatpush.msra.mxu0 %v3270
    %3556 = vmatpush.msra.mxu0 %v3269
    %3557 = vmatpush.msra.mxu0 %v3268
    %3558 = vmatpush.msra.mxu0 %v3267
    %3559 = vmatmul.f32.gmra.mxu0 %v3538
    %v3560 = vpop.f32.mrf.mxu0
    %v3561 = vadd.f32 0.0, %v3560
    %3562 = vmatmul.f32.gmra.mxu0 %v3541
    %v3563 = vpop.f32.mrf.mxu0
    %v3564 = vadd.f32 0.0, %v3563
    %3565 = vdwg.mxu0
    %s3566 = scalar_lea.vmem %s5, 64
    %v3567 = vld [vmem:[%s3566] sm:$0xff]
    %v3568 = vld [vmem:[%s3566 + $0x8] sm:$0xff]
    %v3570 = vsel %vm1562, %v3561, 0
    %v3573 = vsel %vm1562, %v3564, 0
    %3575 = vmatpush.msra.mxu0 0.0
    %3576 = vmatpush.msra.mxu0 0.0
    %3577 = vmatpush.msra.mxu0 0.0
    %3578 = vmatpush.msra.mxu0 0.0
    %3579 = vmatpush.msra.mxu0 0.0
    %3580 = vmatpush.msra.mxu0 0.0
    %3581 = vmatpush.msra.mxu0 0.0
    %3582 = vmatpush.msra.mxu0 0.0
    %3583 = vmatpush.msra.mxu0 0.0
    %3584 = vmatpush.msra.mxu0 0.0
    %3585 = vmatpush.msra.mxu0 0.0
    %3586 = vmatpush.msra.mxu0 0.0
    %3587 = vmatpush.msra.mxu0 0.0
    %3588 = vmatpush.msra.mxu0 0.0
    %3589 = vmatpush.msra.mxu0 %v3568
    %3590 = vmatpush.msra.mxu0 %v3567
    %3591 = vmatmul.f32.gmra.mxu0 %v3570
    %v3592 = vpop.f32.mrf.mxu0
    %v3593 = vadd.f32 0.0, %v3592
    %3594 = vmatmul.f32.gmra.mxu0 %v3573
    %v3595 = vpop.f32.mrf.mxu0
    %v3596 = vadd.f32 0.0, %v3595
    %3597 = vdwg.mxu0
    %v3598 = vadd.f32 %v3532, %v3593
    %v3599 = vadd.f32 %v3533, %v3596
    %s3600 = scalar_lea.vmem [#allocation9], 80
    %v3601 = vld [vmem:[%s3600] sm:$0xff]
    %v3602 = vld [vmem:[%s3600 + $0x8] sm:$0xff]
    %v3604 = vsel %vm3277, %v3601, 0
    %v3607 = vsel %vm3277, %v3602, 0
    %3609 = vmatpush.msra.mxu0 0.0
    %3610 = vmatpush.msra.mxu0 0.0
    %3611 = vmatpush.msra.mxu0 0.0
    %3612 = vmatpush.msra.mxu0 0.0
    %3613 = vmatpush.msra.mxu0 0.0
    %3614 = vmatpush.msra.mxu0 0.0
    %3615 = vmatpush.msra.mxu0 0.0
    %3616 = vmatpush.msra.mxu0 0.0
    %3617 = vmatpush.msra.mxu0 %v3274
    %3618 = vmatpush.msra.mxu0 %v3273
    %3619 = vmatpush.msra.mxu0 %v3272
    %3620 = vmatpush.msra.mxu0 %v3271
    %3621 = vmatpush.msra.mxu0 %v3270
    %3622 = vmatpush.msra.mxu0 %v3269
    %3623 = vmatpush.msra.mxu0 %v3268
    %3624 = vmatpush.msra.mxu0 %v3267
    %3625 = vmatmul.f32.gmra.mxu0 %v3604
    %v3626 = vpop.f32.mrf.mxu0
    %v3627 = vadd.f32 0.0, %v3626
    %3628 = vmatmul.f32.gmra.mxu0 %v3607
    %v3629 = vpop.f32.mrf.mxu0
    %v3630 = vadd.f32 0.0, %v3629
    %3631 = vdwg.mxu0
    %s3632 = scalar_lea.vmem %s5, 80
    %v3633 = vld [vmem:[%s3632] sm:$0xff]
    %v3634 = vld [vmem:[%s3632 + $0x8] sm:$0xff]
    %v3636 = vsel %vm1562, %v3627, 0
    %v3639 = vsel %vm1562, %v3630, 0
    %3641 = vmatpush.msra.mxu0 0.0
    %3642 = vmatpush.msra.mxu0 0.0
    %3643 = vmatpush.msra.mxu0 0.0
    %3644 = vmatpush.msra.mxu0 0.0
    %3645 = vmatpush.msra.mxu0 0.0
    %3646 = vmatpush.msra.mxu0 0.0
    %3647 = vmatpush.msra.mxu0 0.0
    %3648 = vmatpush.msra.mxu0 0.0
    %3649 = vmatpush.msra.mxu0 0.0
    %3650 = vmatpush.msra.mxu0 0.0
    %3651 = vmatpush.msra.mxu0 0.0
    %3652 = vmatpush.msra.mxu0 0.0
    %3653 = vmatpush.msra.mxu0 0.0
    %3654 = vmatpush.msra.mxu0 0.0
    %3655 = vmatpush.msra.mxu0 %v3634
    %3656 = vmatpush.msra.mxu0 %v3633
    %3657 = vmatmul.f32.gmra.mxu0 %v3636
    %v3658 = vpop.f32.mrf.mxu0
    %v3659 = vadd.f32 0.0, %v3658
    %3660 = vmatmul.f32.gmra.mxu0 %v3639
    %v3661 = vpop.f32.mrf.mxu0
    %v3662 = vadd.f32 0.0, %v3661
    %3663 = vdwg.mxu0
    %v3664 = vadd.f32 %v3598, %v3659
    %v3665 = vadd.f32 %v3599, %v3662
    %s3666 = scalar_lea.vmem [#allocation9], 96
    %v3667 = vld [vmem:[%s3666] sm:$0xff]
    %v3668 = vld [vmem:[%s3666 + $0x8] sm:$0xff]
    %v3670 = vsel %vm3277, %v3667, 0
    %v3673 = vsel %vm3277, %v3668, 0
    %3675 = vmatpush.msra.mxu0 0.0
    %3676 = vmatpush.msra.mxu0 0.0
    %3677 = vmatpush.msra.mxu0 0.0
    %3678 = vmatpush.msra.mxu0 0.0
    %3679 = vmatpush.msra.mxu0 0.0
    %3680 = vmatpush.msra.mxu0 0.0
    %3681 = vmatpush.msra.mxu0 0.0
    %3682 = vmatpush.msra.mxu0 0.0
    %3683 = vmatpush.msra.mxu0 %v3274
    %3684 = vmatpush.msra.mxu0 %v3273
    %3685 = vmatpush.msra.mxu0 %v3272
    %3686 = vmatpush.msra.mxu0 %v3271
    %3687 = vmatpush.msra.mxu0 %v3270
    %3688 = vmatpush.msra.mxu0 %v3269
    %3689 = vmatpush.msra.mxu0 %v3268
    %3690 = vmatpush.msra.mxu0 %v3267
    %3691 = vmatmul.f32.gmra.mxu0 %v3670
    %v3692 = vpop.f32.mrf.mxu0
    %v3693 = vadd.f32 0.0, %v3692
    %3694 = vmatmul.f32.gmra.mxu0 %v3673
    %v3695 = vpop.f32.mrf.mxu0
    %v3696 = vadd.f32 0.0, %v3695
    %3697 = vdwg.mxu0
    %s3698 = scalar_lea.vmem %s5, 96
    %v3699 = vld [vmem:[%s3698] sm:$0xff]
    %v3700 = vld [vmem:[%s3698 + $0x8] sm:$0xff]
    %v3702 = vsel %vm1562, %v3693, 0
    %v3705 = vsel %vm1562, %v3696, 0
    %3707 = vmatpush.msra.mxu0 0.0
    %3708 = vmatpush.msra.mxu0 0.0
    %3709 = vmatpush.msra.mxu0 0.0
    %3710 = vmatpush.msra.mxu0 0.0
    %3711 = vmatpush.msra.mxu0 0.0
    %3712 = vmatpush.msra.mxu0 0.0
    %3713 = vmatpush.msra.mxu0 0.0
    %3714 = vmatpush.msra.mxu0 0.0
    %3715 = vmatpush.msra.mxu0 0.0
    %3716 = vmatpush.msra.mxu0 0.0
    %3717 = vmatpush.msra.mxu0 0.0
    %3718 = vmatpush.msra.mxu0 0.0
    %3719 = vmatpush.msra.mxu0 0.0
    %3720 = vmatpush.msra.mxu0 0.0
    %3721 = vmatpush.msra.mxu0 %v3700
    %3722 = vmatpush.msra.mxu0 %v3699
    %3723 = vmatmul.f32.gmra.mxu0 %v3702
    %v3724 = vpop.f32.mrf.mxu0
    %v3725 = vadd.f32 0.0, %v3724
    %3726 = vmatmul.f32.gmra.mxu0 %v3705
    %v3727 = vpop.f32.mrf.mxu0
    %v3728 = vadd.f32 0.0, %v3727
    %3729 = vdwg.mxu0
    %v3730 = vadd.f32 %v3664, %v3725
    %v3731 = vadd.f32 %v3665, %v3728
    %s3732 = scalar_lea.vmem [#allocation9], 112
    %v3733 = vld [vmem:[%s3732] sm:$0xff]
    %v3734 = vld [vmem:[%s3732 + $0x8] sm:$0xff]
    %v3736 = vsel %vm3277, %v3733, 0
    %v3739 = vsel %vm3277, %v3734, 0
    %3741 = vmatpush.msra.mxu0 0.0
    %3742 = vmatpush.msra.mxu0 0.0
    %3743 = vmatpush.msra.mxu0 0.0
    %3744 = vmatpush.msra.mxu0 0.0
    %3745 = vmatpush.msra.mxu0 0.0
    %3746 = vmatpush.msra.mxu0 0.0
    %3747 = vmatpush.msra.mxu0 0.0
    %3748 = vmatpush.msra.mxu0 0.0
    %3749 = vmatpush.msra.mxu0 %v3274
    %3750 = vmatpush.msra.mxu0 %v3273
    %3751 = vmatpush.msra.mxu0 %v3272
    %3752 = vmatpush.msra.mxu0 %v3271
    %3753 = vmatpush.msra.mxu0 %v3270
    %3754 = vmatpush.msra.mxu0 %v3269
    %3755 = vmatpush.msra.mxu0 %v3268
    %3756 = vmatpush.msra.mxu0 %v3267
    %3757 = vmatmul.f32.gmra.mxu0 %v3736
    %v3758 = vpop.f32.mrf.mxu0
    %v3759 = vadd.f32 0.0, %v3758
    %3760 = vmatmul.f32.gmra.mxu0 %v3739
    %v3761 = vpop.f32.mrf.mxu0
    %v3762 = vadd.f32 0.0, %v3761
    %3763 = vdwg.mxu0
    %s3764 = scalar_lea.vmem %s5, 112
    %v3765 = vld [vmem:[%s3764] sm:$0xff]
    %v3766 = vld [vmem:[%s3764 + $0x8] sm:$0xff]
    %v3768 = vsel %vm1562, %v3759, 0
    %v3771 = vsel %vm1562, %v3762, 0
    %3773 = vmatpush.msra.mxu0 0.0
    %3774 = vmatpush.msra.mxu0 0.0
    %3775 = vmatpush.msra.mxu0 0.0
    %3776 = vmatpush.msra.mxu0 0.0
    %3777 = vmatpush.msra.mxu0 0.0
    %3778 = vmatpush.msra.mxu0 0.0
    %3779 = vmatpush.msra.mxu0 0.0
    %3780 = vmatpush.msra.mxu0 0.0
    %3781 = vmatpush.msra.mxu0 0.0
    %3782 = vmatpush.msra.mxu0 0.0
    %3783 = vmatpush.msra.mxu0 0.0
    %3784 = vmatpush.msra.mxu0 0.0
    %3785 = vmatpush.msra.mxu0 0.0
    %3786 = vmatpush.msra.mxu0 0.0
    %3787 = vmatpush.msra.mxu0 %v3766
    %3788 = vmatpush.msra.mxu0 %v3765
    %3789 = vmatmul.f32.gmra.mxu0 %v3768
    %v3790 = vpop.f32.mrf.mxu0
    %v3791 = vadd.f32 0.0, %v3790
    %3792 = vmatmul.f32.gmra.mxu0 %v3771
    %v3793 = vpop.f32.mrf.mxu0
    %v3794 = vadd.f32 0.0, %v3793
    %3795 = vdwg.mxu0
    %v3796 = vadd.f32 %v3730, %v3791
    %v3797 = vadd.f32 %v3731, %v3794
    %s3798 = scalar_lea.vmem [#allocation9], 128
    %v3799 = vld [vmem:[%s3798] sm:$0xff]
    %v3800 = vld [vmem:[%s3798 + $0x8] sm:$0xff]
    %v3802 = vsel %vm3277, %v3799, 0
    %v3805 = vsel %vm3277, %v3800, 0
    %3807 = vmatpush.msra.mxu0 0.0
    %3808 = vmatpush.msra.mxu0 0.0
    %3809 = vmatpush.msra.mxu0 0.0
    %3810 = vmatpush.msra.mxu0 0.0
    %3811 = vmatpush.msra.mxu0 0.0
    %3812 = vmatpush.msra.mxu0 0.0
    %3813 = vmatpush.msra.mxu0 0.0
    %3814 = vmatpush.msra.mxu0 0.0
    %3815 = vmatpush.msra.mxu0 %v3274
    %3816 = vmatpush.msra.mxu0 %v3273
    %3817 = vmatpush.msra.mxu0 %v3272
    %3818 = vmatpush.msra.mxu0 %v3271
    %3819 = vmatpush.msra.mxu0 %v3270
    %3820 = vmatpush.msra.mxu0 %v3269
    %3821 = vmatpush.msra.mxu0 %v3268
    %3822 = vmatpush.msra.mxu0 %v3267
    %3823 = vmatmul.f32.gmra.mxu0 %v3802
    %v3824 = vpop.f32.mrf.mxu0
    %v3825 = vadd.f32 0.0, %v3824
    %3826 = vmatmul.f32.gmra.mxu0 %v3805
    %v3827 = vpop.f32.mrf.mxu0
    %v3828 = vadd.f32 0.0, %v3827
    %3829 = vdwg.mxu0
    %s3830 = scalar_lea.vmem %s5, 128
    %v3831 = vld [vmem:[%s3830] sm:$0xff]
    %v3832 = vld [vmem:[%s3830 + $0x8] sm:$0xff]
    %v3834 = vsel %vm1562, %v3825, 0
    %v3837 = vsel %vm1562, %v3828, 0
    %3839 = vmatpush.msra.mxu0 0.0
    %3840 = vmatpush.msra.mxu0 0.0
    %3841 = vmatpush.msra.mxu0 0.0
    %3842 = vmatpush.msra.mxu0 0.0
    %3843 = vmatpush.msra.mxu0 0.0
    %3844 = vmatpush.msra.mxu0 0.0
    %3845 = vmatpush.msra.mxu0 0.0
    %3846 = vmatpush.msra.mxu0 0.0
    %3847 = vmatpush.msra.mxu0 0.0
    %3848 = vmatpush.msra.mxu0 0.0
    %3849 = vmatpush.msra.mxu0 0.0
    %3850 = vmatpush.msra.mxu0 0.0
    %3851 = vmatpush.msra.mxu0 0.0
    %3852 = vmatpush.msra.mxu0 0.0
    %3853 = vmatpush.msra.mxu0 %v3832
    %3854 = vmatpush.msra.mxu0 %v3831
    %3855 = vmatmul.f32.gmra.mxu0 %v3834
    %v3856 = vpop.f32.mrf.mxu0
    %v3857 = vadd.f32 0.0, %v3856
    %3858 = vmatmul.f32.gmra.mxu0 %v3837
    %v3859 = vpop.f32.mrf.mxu0
    %v3860 = vadd.f32 0.0, %v3859
    %3861 = vdwg.mxu0
    %v3862 = vadd.f32 %v3796, %v3857
    %v3863 = vadd.f32 %v3797, %v3860
    %vm3864 = vcmask 261120
    %3865 = vst.msk [vmem:[#allocation3] sm:$0xff] %vm3864, %v3862
    %3866 = vst.msk [vmem:[#allocation3 + $0x8] sm:$0xff] %vm3864, %v3863
    %v3867 = vld [vmem:[%s3026] sm:$0xff]
    %v3868 = vld [vmem:[%s3026 + $0x8] sm:$0xff]
    %v3869 = vld [vmem:[%s3026 + $0x10] sm:$0xff]
    %v3870 = vld [vmem:[%s3026 + $0x18] sm:$0xff]
    %v3871 = vld [vmem:[%s3026 + $0x20] sm:$0xff]
    %v3872 = vld [vmem:[%s3026 + $0x28] sm:$0xff]
    %v3873 = vld [vmem:[%s3026 + $0x30] sm:$0xff]
    %v3874 = vld [vmem:[%s3026 + $0x38] sm:$0xff]
    %v3875 = vld [vmem:[#allocation9] sm:$0xff]
    %v3876 = vld [vmem:[#allocation9 + $0x8] sm:$0xff]
    %v3878 = vsel %vm3277, %v3875, 0
    %v3881 = vsel %vm3277, %v3876, 0
    %3883 = vmatpush.msra.mxu0 0.0
    %3884 = vmatpush.msra.mxu0 0.0
    %3885 = vmatpush.msra.mxu0 0.0
    %3886 = vmatpush.msra.mxu0 0.0
    %3887 = vmatpush.msra.mxu0 0.0
    %3888 = vmatpush.msra.mxu0 0.0
    %3889 = vmatpush.msra.mxu0 0.0
    %3890 = vmatpush.msra.mxu0 0.0
    %3891 = vmatpush.msra.mxu0 %v3874
    %3892 = vmatpush.msra.mxu0 %v3873
    %3893 = vmatpush.msra.mxu0 %v3872
    %3894 = vmatpush.msra.mxu0 %v3871
    %3895 = vmatpush.msra.mxu0 %v3870
    %3896 = vmatpush.msra.mxu0 %v3869
    %3897 = vmatpush.msra.mxu0 %v3868
    %3898 = vmatpush.msra.mxu0 %v3867
    %3899 = vmatmul.f32.gmra.mxu0 %v3878
    %v3900 = vpop.f32.mrf.mxu0
    %v3901 = vadd.f32 0.0, %v3900
    %3902 = vmatmul.f32.gmra.mxu0 %v3881
    %v3903 = vpop.f32.mrf.mxu0
    %v3904 = vadd.f32 0.0, %v3903
    %3905 = vdwg.mxu0
    %v3906 = vld [vmem:[%s5] sm:$0xff]
    %v3907 = vld [vmem:[%s5 + $0x8] sm:$0xff]
    %v3908 = vld [vmem:[%s3309] sm:$0xff]
    %v3909 = vld [vmem:[%s3309 + $0x8] sm:$0xff]
    %v3911 = vsel %vm3277, %v3908, 0
    %v3914 = vsel %vm3277, %v3909, 0
    %3916 = vmatpush.msra.mxu0 0.0
    %3917 = vmatpush.msra.mxu0 0.0
    %3918 = vmatpush.msra.mxu0 0.0
    %3919 = vmatpush.msra.mxu0 0.0
    %3920 = vmatpush.msra.mxu0 0.0
    %3921 = vmatpush.msra.mxu0 0.0
    %3922 = vmatpush.msra.mxu0 0.0
    %3923 = vmatpush.msra.mxu0 0.0
    %3924 = vmatpush.msra.mxu0 %v3874
    %3925 = vmatpush.msra.mxu0 %v3873
    %3926 = vmatpush.msra.mxu0 %v3872
    %3927 = vmatpush.msra.mxu0 %v3871
    %3928 = vmatpush.msra.mxu0 %v3870
    %3929 = vmatpush.msra.mxu0 %v3869
    %3930 = vmatpush.msra.mxu0 %v3868
    %3931 = vmatpush.msra.mxu0 %v3867
    %3932 = vmatmul.f32.gmra.mxu0 %v3911
    %v3933 = vpop.f32.mrf.mxu0
    %v3934 = vadd.f32 0.0, %v3933
    %3935 = vmatmul.f32.gmra.mxu0 %v3914
    %v3936 = vpop.f32.mrf.mxu0
    %v3937 = vadd.f32 0.0, %v3936
    %3938 = vdwg.mxu0
    %v3939 = vld [vmem:[%s3341] sm:$0xff]
    %v3940 = vld [vmem:[%s3341 + $0x8] sm:$0xff]
    %v3942 = vsel %vm1562, %v3934, 0
    %v3945 = vsel %vm1562, %v3937, 0
    %3947 = vmatpush.msra.mxu0 0.0
    %3948 = vmatpush.msra.mxu0 0.0
    %3949 = vmatpush.msra.mxu0 0.0
    %3950 = vmatpush.msra.mxu0 0.0
    %3951 = vmatpush.msra.mxu0 0.0
    %3952 = vmatpush.msra.mxu0 0.0
    %3953 = vmatpush.msra.mxu0 0.0
    %3954 = vmatpush.msra.mxu0 0.0
    %3955 = vmatpush.msra.mxu0 0.0
    %3956 = vmatpush.msra.mxu0 0.0
    %3957 = vmatpush.msra.mxu0 0.0
    %3958 = vmatpush.msra.mxu0 0.0
    %3959 = vmatpush.msra.mxu0 0.0
    %3960 = vmatpush.msra.mxu0 0.0
    %3961 = vmatpush.msra.mxu0 %v3940
    %3962 = vmatpush.msra.mxu0 %v3939
    %3963 = vmatmul.f32.gmra.mxu0 %v3942
    %v3964 = vpop.f32.mrf.mxu0
    %v3965 = vadd.f32 0.0, %v3964
    %3966 = vmatmul.f32.gmra.mxu0 %v3945
    %v3967 = vpop.f32.mrf.mxu0
    %v3968 = vadd.f32 0.0, %v3967
    %3969 = vdwg.mxu0
    %v3971 = vsel %vm1562, %v3901, 0
    %v3974 = vsel %vm1562, %v3904, 0
    %3976 = vmatpush.msra.mxu0 0.0
    %3977 = vmatpush.msra.mxu0 0.0
    %3978 = vmatpush.msra.mxu0 0.0
    %3979 = vmatpush.msra.mxu0 0.0
    %3980 = vmatpush.msra.mxu0 0.0
    %3981 = vmatpush.msra.mxu0 0.0
    %3982 = vmatpush.msra.mxu0 0.0
    %3983 = vmatpush.msra.mxu0 0.0
    %3984 = vmatpush.msra.mxu0 0.0
    %3985 = vmatpush.msra.mxu0 0.0
    %3986 = vmatpush.msra.mxu0 0.0
    %3987 = vmatpush.msra.mxu0 0.0
    %3988 = vmatpush.msra.mxu0 0.0
    %3989 = vmatpush.msra.mxu0 0.0
    %3990 = vmatpush.msra.mxu0 %v3907
    %3991 = vmatpush.msra.mxu0 %v3906
    %3992 = vmatmul.f32.gmra.mxu0 %v3971
    %v3993 = vpop.f32.mrf.mxu0
    %v3994 = vadd.f32 %v3965, %v3993
    %3995 = vmatmul.f32.gmra.mxu0 %v3974
    %v3996 = vpop.f32.mrf.mxu0
    %v3997 = vadd.f32 %v3968, %v3996
    %3998 = vdwg.mxu0
    %v3999 = vld [vmem:[%s3402] sm:$0xff]
    %v4000 = vld [vmem:[%s3402 + $0x8] sm:$0xff]
    %v4002 = vsel %vm3277, %v3999, 0
    %v4005 = vsel %vm3277, %v4000, 0
    %4007 = vmatpush.msra.mxu0 0.0
    %4008 = vmatpush.msra.mxu0 0.0
    %4009 = vmatpush.msra.mxu0 0.0
    %4010 = vmatpush.msra.mxu0 0.0
    %4011 = vmatpush.msra.mxu0 0.0
    %4012 = vmatpush.msra.mxu0 0.0
    %4013 = vmatpush.msra.mxu0 0.0
    %4014 = vmatpush.msra.mxu0 0.0
    %4015 = vmatpush.msra.mxu0 %v3874
    %4016 = vmatpush.msra.mxu0 %v3873
    %4017 = vmatpush.msra.mxu0 %v3872
    %4018 = vmatpush.msra.mxu0 %v3871
    %4019 = vmatpush.msra.mxu0 %v3870
    %4020 = vmatpush.msra.mxu0 %v3869
    %4021 = vmatpush.msra.mxu0 %v3868
    %4022 = vmatpush.msra.mxu0 %v3867
    %4023 = vmatmul.f32.gmra.mxu0 %v4002
    %v4024 = vpop.f32.mrf.mxu0
    %v4025 = vadd.f32 0.0, %v4024
    %4026 = vmatmul.f32.gmra.mxu0 %v4005
    %v4027 = vpop.f32.mrf.mxu0
    %v4028 = vadd.f32 0.0, %v4027
    %4029 = vdwg.mxu0
    %v4030 = vld [vmem:[%s3434] sm:$0xff]
    %v4031 = vld [vmem:[%s3434 + $0x8] sm:$0xff]
    %v4033 = vsel %vm1562, %v4025, 0
    %v4036 = vsel %vm1562, %v4028, 0
    %4038 = vmatpush.msra.mxu0 0.0
    %4039 = vmatpush.msra.mxu0 0.0
    %4040 = vmatpush.msra.mxu0 0.0
    %4041 = vmatpush.msra.mxu0 0.0
    %4042 = vmatpush.msra.mxu0 0.0
    %4043 = vmatpush.msra.mxu0 0.0
    %4044 = vmatpush.msra.mxu0 0.0
    %4045 = vmatpush.msra.mxu0 0.0
    %4046 = vmatpush.msra.mxu0 0.0
    %4047 = vmatpush.msra.mxu0 0.0
    %4048 = vmatpush.msra.mxu0 0.0
    %4049 = vmatpush.msra.mxu0 0.0
    %4050 = vmatpush.msra.mxu0 0.0
    %4051 = vmatpush.msra.mxu0 0.0
    %4052 = vmatpush.msra.mxu0 %v4031
    %4053 = vmatpush.msra.mxu0 %v4030
    %4054 = vmatmul.f32.gmra.mxu0 %v4033
    %v4055 = vpop.f32.mrf.mxu0
    %v4056 = vadd.f32 0.0, %v4055
    %4057 = vmatmul.f32.gmra.mxu0 %v4036
    %v4058 = vpop.f32.mrf.mxu0
    %v4059 = vadd.f32 0.0, %v4058
    %4060 = vdwg.mxu0
    %v4061 = vadd.f32 %v3994, %v4056
    %v4062 = vadd.f32 %v3997, %v4059
    %v4063 = vld [vmem:[%s3468] sm:$0xff]
    %v4064 = vld [vmem:[%s3468 + $0x8] sm:$0xff]
    %v4066 = vsel %vm3277, %v4063, 0
    %v4069 = vsel %vm3277, %v4064, 0
    %4071 = vmatpush.msra.mxu0 0.0
    %4072 = vmatpush.msra.mxu0 0.0
    %4073 = vmatpush.msra.mxu0 0.0
    %4074 = vmatpush.msra.mxu0 0.0
    %4075 = vmatpush.msra.mxu0 0.0
    %4076 = vmatpush.msra.mxu0 0.0
    %4077 = vmatpush.msra.mxu0 0.0
    %4078 = vmatpush.msra.mxu0 0.0
    %4079 = vmatpush.msra.mxu0 %v3874
    %4080 = vmatpush.msra.mxu0 %v3873
    %4081 = vmatpush.msra.mxu0 %v3872
    %4082 = vmatpush.msra.mxu0 %v3871
    %4083 = vmatpush.msra.mxu0 %v3870
    %4084 = vmatpush.msra.mxu0 %v3869
    %4085 = vmatpush.msra.mxu0 %v3868
    %4086 = vmatpush.msra.mxu0 %v3867
    %4087 = vmatmul.f32.gmra.mxu0 %v4066
    %v4088 = vpop.f32.mrf.mxu0
    %v4089 = vadd.f32 0.0, %v4088
    %4090 = vmatmul.f32.gmra.mxu0 %v4069
    %v4091 = vpop.f32.mrf.mxu0
    %v4092 = vadd.f32 0.0, %v4091
    %4093 = vdwg.mxu0
    %v4094 = vld [vmem:[%s3500] sm:$0xff]
    %v4095 = vld [vmem:[%s3500 + $0x8] sm:$0xff]
    %v4097 = vsel %vm1562, %v4089, 0
    %v4100 = vsel %vm1562, %v4092, 0
    %4102 = vmatpush.msra.mxu0 0.0
    %4103 = vmatpush.msra.mxu0 0.0
    %4104 = vmatpush.msra.mxu0 0.0
    %4105 = vmatpush.msra.mxu0 0.0
    %4106 = vmatpush.msra.mxu0 0.0
    %4107 = vmatpush.msra.mxu0 0.0
    %4108 = vmatpush.msra.mxu0 0.0
    %4109 = vmatpush.msra.mxu0 0.0
    %4110 = vmatpush.msra.mxu0 0.0
    %4111 = vmatpush.msra.mxu0 0.0
    %4112 = vmatpush.msra.mxu0 0.0
    %4113 = vmatpush.msra.mxu0 0.0
    %4114 = vmatpush.msra.mxu0 0.0
    %4115 = vmatpush.msra.mxu0 0.0
    %4116 = vmatpush.msra.mxu0 %v4095
    %4117 = vmatpush.msra.mxu0 %v4094
    %4118 = vmatmul.f32.gmra.mxu0 %v4097
    %v4119 = vpop.f32.mrf.mxu0
    %v4120 = vadd.f32 0.0, %v4119
    %4121 = vmatmul.f32.gmra.mxu0 %v4100
    %v4122 = vpop.f32.mrf.mxu0
    %v4123 = vadd.f32 0.0, %v4122
    %4124 = vdwg.mxu0
    %v4125 = vadd.f32 %v4061, %v4120
    %v4126 = vadd.f32 %v4062, %v4123
    %v4127 = vld [vmem:[%s3534] sm:$0xff]
    %v4128 = vld [vmem:[%s3534 + $0x8] sm:$0xff]
    %v4130 = vsel %vm3277, %v4127, 0
    %v4133 = vsel %vm3277, %v4128, 0
    %4135 = vmatpush.msra.mxu0 0.0
    %4136 = vmatpush.msra.mxu0 0.0
    %4137 = vmatpush.msra.mxu0 0.0
    %4138 = vmatpush.msra.mxu0 0.0
    %4139 = vmatpush.msra.mxu0 0.0
    %4140 = vmatpush.msra.mxu0 0.0
    %4141 = vmatpush.msra.mxu0 0.0
    %4142 = vmatpush.msra.mxu0 0.0
    %4143 = vmatpush.msra.mxu0 %v3874
    %4144 = vmatpush.msra.mxu0 %v3873
    %4145 = vmatpush.msra.mxu0 %v3872
    %4146 = vmatpush.msra.mxu0 %v3871
    %4147 = vmatpush.msra.mxu0 %v3870
    %4148 = vmatpush.msra.mxu0 %v3869
    %4149 = vmatpush.msra.mxu0 %v3868
    %4150 = vmatpush.msra.mxu0 %v3867
    %4151 = vmatmul.f32.gmra.mxu0 %v4130
    %v4152 = vpop.f32.mrf.mxu0
    %v4153 = vadd.f32 0.0, %v4152
    %4154 = vmatmul.f32.gmra.mxu0 %v4133
    %v4155 = vpop.f32.mrf.mxu0
    %v4156 = vadd.f32 0.0, %v4155
    %4157 = vdwg.mxu0
    %v4158 = vld [vmem:[%s3566] sm:$0xff]
    %v4159 = vld [vmem:[%s3566 + $0x8] sm:$0xff]
    %v4161 = vsel %vm1562, %v4153, 0
    %v4164 = vsel %vm1562, %v4156, 0
    %4166 = vmatpush.msra.mxu0 0.0
    %4167 = vmatpush.msra.mxu0 0.0
    %4168 = vmatpush.msra.mxu0 0.0
    %4169 = vmatpush.msra.mxu0 0.0
    %4170 = vmatpush.msra.mxu0 0.0
    %4171 = vmatpush.msra.mxu0 0.0
    %4172 = vmatpush.msra.mxu0 0.0
    %4173 = vmatpush.msra.mxu0 0.0
    %4174 = vmatpush.msra.mxu0 0.0
    %4175 = vmatpush.msra.mxu0 0.0
    %4176 = vmatpush.msra.mxu0 0.0
    %4177 = vmatpush.msra.mxu0 0.0
    %4178 = vmatpush.msra.mxu0 0.0
    %4179 = vmatpush.msra.mxu0 0.0
    %4180 = vmatpush.msra.mxu0 %v4159
    %4181 = vmatpush.msra.mxu0 %v4158
    %4182 = vmatmul.f32.gmra.mxu0 %v4161
    %v4183 = vpop.f32.mrf.mxu0
    %v4184 = vadd.f32 0.0, %v4183
    %4185 = vmatmul.f32.gmra.mxu0 %v4164
    %v4186 = vpop.f32.mrf.mxu0
    %v4187 = vadd.f32 0.0, %v4186
    %4188 = vdwg.mxu0
    %v4189 = vadd.f32 %v4125, %v4184
    %v4190 = vadd.f32 %v4126, %v4187
    %v4191 = vld [vmem:[%s3600] sm:$0xff]
    %v4192 = vld [vmem:[%s3600 + $0x8] sm:$0xff]
    %v4194 = vsel %vm3277, %v4191, 0
    %v4197 = vsel %vm3277, %v4192, 0
    %4199 = vmatpush.msra.mxu0 0.0
    %4200 = vmatpush.msra.mxu0 0.0
    %4201 = vmatpush.msra.mxu0 0.0
    %4202 = vmatpush.msra.mxu0 0.0
    %4203 = vmatpush.msra.mxu0 0.0
    %4204 = vmatpush.msra.mxu0 0.0
    %4205 = vmatpush.msra.mxu0 0.0
    %4206 = vmatpush.msra.mxu0 0.0
    %4207 = vmatpush.msra.mxu0 %v3874
    %4208 = vmatpush.msra.mxu0 %v3873
    %4209 = vmatpush.msra.mxu0 %v3872
    %4210 = vmatpush.msra.mxu0 %v3871
    %4211 = vmatpush.msra.mxu0 %v3870
    %4212 = vmatpush.msra.mxu0 %v3869
    %4213 = vmatpush.msra.mxu0 %v3868
    %4214 = vmatpush.msra.mxu0 %v3867
    %4215 = vmatmul.f32.gmra.mxu0 %v4194
    %v4216 = vpop.f32.mrf.mxu0
    %v4217 = vadd.f32 0.0, %v4216
    %4218 = vmatmul.f32.gmra.mxu0 %v4197
    %v4219 = vpop.f32.mrf.mxu0
    %v4220 = vadd.f32 0.0, %v4219
    %4221 = vdwg.mxu0
    %v4222 = vld [vmem:[%s3632] sm:$0xff]
    %v4223 = vld [vmem:[%s3632 + $0x8] sm:$0xff]
    %v4225 = vsel %vm1562, %v4217, 0
    %v4228 = vsel %vm1562, %v4220, 0
    %4230 = vmatpush.msra.mxu0 0.0
    %4231 = vmatpush.msra.mxu0 0.0
    %4232 = vmatpush.msra.mxu0 0.0
    %4233 = vmatpush.msra.mxu0 0.0
    %4234 = vmatpush.msra.mxu0 0.0
    %4235 = vmatpush.msra.mxu0 0.0
    %4236 = vmatpush.msra.mxu0 0.0
    %4237 = vmatpush.msra.mxu0 0.0
    %4238 = vmatpush.msra.mxu0 0.0
    %4239 = vmatpush.msra.mxu0 0.0
    %4240 = vmatpush.msra.mxu0 0.0
    %4241 = vmatpush.msra.mxu0 0.0
    %4242 = vmatpush.msra.mxu0 0.0
    %4243 = vmatpush.msra.mxu0 0.0
    %4244 = vmatpush.msra.mxu0 %v4223
    %4245 = vmatpush.msra.mxu0 %v4222
    %4246 = vmatmul.f32.gmra.mxu0 %v4225
    %v4247 = vpop.f32.mrf.mxu0
    %v4248 = vadd.f32 0.0, %v4247
    %4249 = vmatmul.f32.gmra.mxu0 %v4228
    %v4250 = vpop.f32.mrf.mxu0
    %v4251 = vadd.f32 0.0, %v4250
    %4252 = vdwg.mxu0
    %v4253 = vadd.f32 %v4189, %v4248
    %v4254 = vadd.f32 %v4190, %v4251
    %v4255 = vld [vmem:[%s3666] sm:$0xff]
    %v4256 = vld [vmem:[%s3666 + $0x8] sm:$0xff]
    %v4258 = vsel %vm3277, %v4255, 0
    %v4261 = vsel %vm3277, %v4256, 0
    %4263 = vmatpush.msra.mxu0 0.0
    %4264 = vmatpush.msra.mxu0 0.0
    %4265 = vmatpush.msra.mxu0 0.0
    %4266 = vmatpush.msra.mxu0 0.0
    %4267 = vmatpush.msra.mxu0 0.0
    %4268 = vmatpush.msra.mxu0 0.0
    %4269 = vmatpush.msra.mxu0 0.0
    %4270 = vmatpush.msra.mxu0 0.0
    %4271 = vmatpush.msra.mxu0 %v3874
    %4272 = vmatpush.msra.mxu0 %v3873
    %4273 = vmatpush.msra.mxu0 %v3872
    %4274 = vmatpush.msra.mxu0 %v3871
    %4275 = vmatpush.msra.mxu0 %v3870
    %4276 = vmatpush.msra.mxu0 %v3869
    %4277 = vmatpush.msra.mxu0 %v3868
    %4278 = vmatpush.msra.mxu0 %v3867
    %4279 = vmatmul.f32.gmra.mxu0 %v4258
    %v4280 = vpop.f32.mrf.mxu0
    %v4281 = vadd.f32 0.0, %v4280
    %4282 = vmatmul.f32.gmra.mxu0 %v4261
    %v4283 = vpop.f32.mrf.mxu0
    %v4284 = vadd.f32 0.0, %v4283
    %4285 = vdwg.mxu0
    %v4286 = vld [vmem:[%s3698] sm:$0xff]
    %v4287 = vld [vmem:[%s3698 + $0x8] sm:$0xff]
    %v4289 = vsel %vm1562, %v4281, 0
    %v4292 = vsel %vm1562, %v4284, 0
    %4294 = vmatpush.msra.mxu0 0.0
    %4295 = vmatpush.msra.mxu0 0.0
    %4296 = vmatpush.msra.mxu0 0.0
    %4297 = vmatpush.msra.mxu0 0.0
    %4298 = vmatpush.msra.mxu0 0.0
    %4299 = vmatpush.msra.mxu0 0.0
    %4300 = vmatpush.msra.mxu0 0.0
    %4301 = vmatpush.msra.mxu0 0.0
    %4302 = vmatpush.msra.mxu0 0.0
    %4303 = vmatpush.msra.mxu0 0.0
    %4304 = vmatpush.msra.mxu0 0.0
    %4305 = vmatpush.msra.mxu0 0.0
    %4306 = vmatpush.msra.mxu0 0.0
    %4307 = vmatpush.msra.mxu0 0.0
    %4308 = vmatpush.msra.mxu0 %v4287
    %4309 = vmatpush.msra.mxu0 %v4286
    %4310 = vmatmul.f32.gmra.mxu0 %v4289
    %v4311 = vpop.f32.mrf.mxu0
    %v4312 = vadd.f32 0.0, %v4311
    %4313 = vmatmul.f32.gmra.mxu0 %v4292
    %v4314 = vpop.f32.mrf.mxu0
    %v4315 = vadd.f32 0.0, %v4314
    %4316 = vdwg.mxu0
    %v4317 = vadd.f32 %v4253, %v4312
    %v4318 = vadd.f32 %v4254, %v4315
    %v4319 = vld [vmem:[%s3732] sm:$0xff]
    %v4320 = vld [vmem:[%s3732 + $0x8] sm:$0xff]
    %v4322 = vsel %vm3277, %v4319, 0
    %v4325 = vsel %vm3277, %v4320, 0
    %4327 = vmatpush.msra.mxu0 0.0
    %4328 = vmatpush.msra.mxu0 0.0
    %4329 = vmatpush.msra.mxu0 0.0
    %4330 = vmatpush.msra.mxu0 0.0
    %4331 = vmatpush.msra.mxu0 0.0
    %4332 = vmatpush.msra.mxu0 0.0
    %4333 = vmatpush.msra.mxu0 0.0
    %4334 = vmatpush.msra.mxu0 0.0
    %4335 = vmatpush.msra.mxu0 %v3874
    %4336 = vmatpush.msra.mxu0 %v3873
    %4337 = vmatpush.msra.mxu0 %v3872
    %4338 = vmatpush.msra.mxu0 %v3871
    %4339 = vmatpush.msra.mxu0 %v3870
    %4340 = vmatpush.msra.mxu0 %v3869
    %4341 = vmatpush.msra.mxu0 %v3868
    %4342 = vmatpush.msra.mxu0 %v3867
    %4343 = vmatmul.f32.gmra.mxu0 %v4322
    %v4344 = vpop.f32.mrf.mxu0
    %v4345 = vadd.f32 0.0, %v4344
    %4346 = vmatmul.f32.gmra.mxu0 %v4325
    %v4347 = vpop.f32.mrf.mxu0
    %v4348 = vadd.f32 0.0, %v4347
    %4349 = vdwg.mxu0
    %v4350 = vld [vmem:[%s3764] sm:$0xff]
    %v4351 = vld [vmem:[%s3764 + $0x8] sm:$0xff]
    %v4353 = vsel %vm1562, %v4345, 0
    %v4356 = vsel %vm1562, %v4348, 0
    %4358 = vmatpush.msra.mxu0 0.0
    %4359 = vmatpush.msra.mxu0 0.0
    %4360 = vmatpush.msra.mxu0 0.0
    %4361 = vmatpush.msra.mxu0 0.0
    %4362 = vmatpush.msra.mxu0 0.0
    %4363 = vmatpush.msra.mxu0 0.0
    %4364 = vmatpush.msra.mxu0 0.0
    %4365 = vmatpush.msra.mxu0 0.0
    %4366 = vmatpush.msra.mxu0 0.0
    %4367 = vmatpush.msra.mxu0 0.0
    %4368 = vmatpush.msra.mxu0 0.0
    %4369 = vmatpush.msra.mxu0 0.0
    %4370 = vmatpush.msra.mxu0 0.0
    %4371 = vmatpush.msra.mxu0 0.0
    %4372 = vmatpush.msra.mxu0 %v4351
    %4373 = vmatpush.msra.mxu0 %v4350
    %4374 = vmatmul.f32.gmra.mxu0 %v4353
    %v4375 = vpop.f32.mrf.mxu0
    %v4376 = vadd.f32 0.0, %v4375
    %4377 = vmatmul.f32.gmra.mxu0 %v4356
    %v4378 = vpop.f32.mrf.mxu0
    %v4379 = vadd.f32 0.0, %v4378
    %4380 = vdwg.mxu0
    %v4381 = vadd.f32 %v4317, %v4376
    %v4382 = vadd.f32 %v4318, %v4379
    %v4383 = vld [vmem:[%s3798] sm:$0xff]
    %v4384 = vld [vmem:[%s3798 + $0x8] sm:$0xff]
    %v4386 = vsel %vm3277, %v4383, 0
    %v4389 = vsel %vm3277, %v4384, 0
    %4391 = vmatpush.msra.mxu0 0.0
    %4392 = vmatpush.msra.mxu0 0.0
    %4393 = vmatpush.msra.mxu0 0.0
    %4394 = vmatpush.msra.mxu0 0.0
    %4395 = vmatpush.msra.mxu0 0.0
    %4396 = vmatpush.msra.mxu0 0.0
    %4397 = vmatpush.msra.mxu0 0.0
    %4398 = vmatpush.msra.mxu0 0.0
    %4399 = vmatpush.msra.mxu0 %v3874
    %4400 = vmatpush.msra.mxu0 %v3873
    %4401 = vmatpush.msra.mxu0 %v3872
    %4402 = vmatpush.msra.mxu0 %v3871
    %4403 = vmatpush.msra.mxu0 %v3870
    %4404 = vmatpush.msra.mxu0 %v3869
    %4405 = vmatpush.msra.mxu0 %v3868
    %4406 = vmatpush.msra.mxu0 %v3867
    %4407 = vmatmul.f32.gmra.mxu0 %v4386
    %v4408 = vpop.f32.mrf.mxu0
    %v4409 = vadd.f32 0.0, %v4408
    %4410 = vmatmul.f32.gmra.mxu0 %v4389
    %v4411 = vpop.f32.mrf.mxu0
    %v4412 = vadd.f32 0.0, %v4411
    %4413 = vdwg.mxu0
    %v4414 = vld [vmem:[%s3830] sm:$0xff]
    %v4415 = vld [vmem:[%s3830 + $0x8] sm:$0xff]
    %v4417 = vsel %vm1562, %v4409, 0
    %v4420 = vsel %vm1562, %v4412, 0
    %4422 = vmatpush.msra.mxu0 0.0
    %4423 = vmatpush.msra.mxu0 0.0
    %4424 = vmatpush.msra.mxu0 0.0
    %4425 = vmatpush.msra.mxu0 0.0
    %4426 = vmatpush.msra.mxu0 0.0
    %4427 = vmatpush.msra.mxu0 0.0
    %4428 = vmatpush.msra.mxu0 0.0
    %4429 = vmatpush.msra.mxu0 0.0
    %4430 = vmatpush.msra.mxu0 0.0
    %4431 = vmatpush.msra.mxu0 0.0
    %4432 = vmatpush.msra.mxu0 0.0
    %4433 = vmatpush.msra.mxu0 0.0
    %4434 = vmatpush.msra.mxu0 0.0
    %4435 = vmatpush.msra.mxu0 0.0
    %4436 = vmatpush.msra.mxu0 %v4415
    %4437 = vmatpush.msra.mxu0 %v4414
    %4438 = vmatmul.f32.gmra.mxu0 %v4417
    %v4439 = vpop.f32.mrf.mxu0
    %v4440 = vadd.f32 0.0, %v4439
    %4441 = vmatmul.f32.gmra.mxu0 %v4420
    %v4442 = vpop.f32.mrf.mxu0
    %v4443 = vadd.f32 0.0, %v4442
    %4444 = vdwg.mxu0
    %v4445 = vadd.f32 %v4381, %v4440
    %v4446 = vadd.f32 %v4382, %v4443
    %s4447 = scalar_lea.vmem [#allocation3], 16
    %4448 = vst.msk [vmem:[%s4447] sm:$0xff] %vm3864, %v4445
    %4449 = vst.msk [vmem:[%s4447 + $0x8] sm:$0xff] %vm3864, %v4446
    %v4450 = vld [vmem:[#allocation3] sm:$0xff]
    %v4451 = vld [vmem:[#allocation3 + $0x8] sm:$0xff]
    %v4452 = vsel %vm3864, %v4450, 0.0
    %v4453 = vsel %vm3864, %v4451, 0.0
    %v4454 = vadd.f32 %v4452, %v4453
    %v4455 = vrot.slane %v4454, 4
    %v4456 = vadd.f32 %v4454, %v4455
    %v4457 = vrot.slane %v4456, 2
    %v4458 = vadd.f32 %v4456, %v4457
    %v4459 = vrot.slane %v4458, 1
    %v4460 = vadd.f32 %v4458, %v4459
    %v4461 = vadd.f32 %v4460, 0.0
    %v4462 = vld [vmem:[%s4447] sm:$0xff]
    %v4463 = vld [vmem:[%s4447 + $0x8] sm:$0xff]
    %v4464 = vsel %vm3864, %v4462, 0.0
    %v4465 = vsel %vm3864, %v4463, 0.0
    %v4466 = vadd.f32 %v4464, %v4465
    %v4467 = vrot.slane %v4466, 4
    %v4468 = vadd.f32 %v4466, %v4467
    %v4469 = vrot.slane %v4468, 2
    %v4470 = vadd.f32 %v4468, %v4469
    %v4471 = vrot.slane %v4470, 1
    %v4472 = vadd.f32 %v4470, %v4471
    %v4473 = vadd.f32 %v4461, %v4472
    %v4474 = vmul.f32 %v4473, 0.03125
    %v4475 = vsub.f32 %v4450, %v4474
    %v4476 = vsub.f32 %v4451, %v4474
    %v4477 = vmul.f32 %v4475, %v4475
    %v4478 = vmul.f32 %v4476, %v4476
    %v4479 = vsel %vm3864, %v4477, 0.0
    %v4480 = vsel %vm3864, %v4478, 0.0
    %v4481 = vadd.f32 %v4479, %v4480
    %v4482 = vrot.slane %v4481, 4
    %v4483 = vadd.f32 %v4481, %v4482
    %v4484 = vrot.slane %v4483, 2
    %v4485 = vadd.f32 %v4483, %v4484
    %v4486 = vrot.slane %v4485, 1
    %v4487 = vadd.f32 %v4485, %v4486
    %v4488 = vadd.f32 %v4487, 0.0
    %v4489 = vsub.f32 %v4462, %v4474
    %v4490 = vsub.f32 %v4463, %v4474
    %v4491 = vmul.f32 %v4489, %v4489
    %v4492 = vmul.f32 %v4490, %v4490
    %v4493 = vsel %vm3864, %v4491, 0.0
    %v4494 = vsel %vm3864, %v4492, 0.0
    %v4495 = vadd.f32 %v4493, %v4494
    %v4496 = vrot.slane %v4495, 4
    %v4497 = vadd.f32 %v4495, %v4496
    %v4498 = vrot.slane %v4497, 2
    %v4499 = vadd.f32 %v4497, %v4498
    %v4500 = vrot.slane %v4499, 1
    %v4501 = vadd.f32 %v4499, %v4500
    %v4502 = vadd.f32 %v4488, %v4501
    %v4503 = vmul.f32 %v4502, 0.03125
    %v4504 = vadd.f32 %v4503, 1e-05
    %v4505 = vrsqrt.pop %v4504
    %v4506 = vmul.f32 %v4505, %v4504
    %v4507 = vmul.f32 %v4506, %v4505
    %v4508 = vmul.f32 0.5, %v4507
    %v4509 = vsub.f32 1.5, %v4508
    %v4510 = vmul.f32 %v4505, %v4509
    %vm4511 = vweird.f32 %v4504
    %vm4512 = vweird.f32 %v4505
    %vm4513 = vmor %vm4511, %vm4512
    %v4514 = vsel %vm4513, %v4505, %v4510
    %v4515 = vld [vmem:[%s10] sm:$0x1]
    %v4516 = vmul.f32 %v4515, %v4514
    %v4517 = vld [vmem:[%s11] sm:$0x1]
    %v4518 = vmul.f32 %v4474, %v4516
    %v4519 = vsub.f32 %v4517, %v4518
    %v4521 = vperm.slane %v4516, 0
    %v4523 = vmul.f32 %v4450, %v4521
    %v4524 = vmul.f32 %v4451, %v4521
    %v4526 = vperm.slane %v4519, 0
    %v4528 = vadd.f32 %v4523, %v4526
    %v4529 = vadd.f32 %v4524, %v4526
    %v4530 = vmax.f32 %v4528, 0.0
    %v4531 = vmax.f32 %v4529, 0.0
    %4532 = vst.msk [vmem:[#allocation3] sm:$0xff] %vm3864, %v4530
    %4533 = vst.msk [vmem:[#allocation3 + $0x8] sm:$0xff] %vm3864, %v4531
    %v4534 = vld [vmem:[%s4447] sm:$0xff]
    %v4535 = vld [vmem:[%s4447 + $0x8] sm:$0xff]
    %v4536 = vmul.f32 %v4534, %v4521
    %v4537 = vmul.f32 %v4535, %v4521
    %v4538 = vadd.f32 %v4536, %v4526
    %v4539 = vadd.f32 %v4537, %v4526
    %v4540 = vmax.f32 %v4538, 0.0
    %v4541 = vmax.f32 %v4539, 0.0
    %4542 = vst.msk [vmem:[%s4447] sm:$0xff] %vm3864, %v4540
    %4543 = vst.msk [vmem:[%s4447 + $0x8] sm:$0xff] %vm3864, %v4541
    %v4544 = vld [vmem:[#allocation3] sm:$0xff]
    %v4545 = vld [vmem:[#allocation3 + $0x8] sm:$0xff]
    %v4546 = vld [vmem:[%s2] sm:$0xf]
    %v4548 = vsel %vm1562, %v4546, 0
    %4550 = vmatpush.msra.mxu0 0.0
    %4551 = vmatpush.msra.mxu0 0.0
    %4552 = vmatpush.msra.mxu0 0.0
    %4553 = vmatpush.msra.mxu0 0.0
    %4554 = vmatpush.msra.mxu0 0.0
    %4555 = vmatpush.msra.mxu0 0.0
    %4556 = vmatpush.msra.mxu0 0.0
    %4557 = vmatpush.msra.mxu0 0.0
    %4558 = vmatpush.msra.mxu0 0.0
    %4559 = vmatpush.msra.mxu0 0.0
    %4560 = vmatpush.msra.mxu0 0.0
    %4561 = vmatpush.msra.mxu0 0.0
    %4562 = vmatpush.msra.mxu0 0.0
    %4563 = vmatpush.msra.mxu0 0.0
    %4564 = vmatpush.msra.mxu0 %v4545
    %4565 = vmatpush.msra.mxu0 %v4544
    %4566 = vmatmul.f32.gmra.mxu0 %v4548
    %v4567 = vpop.f32.mrf.mxu0
    %v4568 = vadd.f32 0.0, %v4567
    %4569 = vdwg.mxu0
    %v4570 = vld [vmem:[%s6] sm:$0xff]
    %v4571 = vld [vmem:[%s6 + $0x8] sm:$0xff]
    %v4572 = vld [vmem:[%s6 + $0x10] sm:$0xff]
    %v4573 = vld [vmem:[%s6 + $0x18] sm:$0xff]
    %s4574 = scalar_lea.vmem %s2, 4
    %v4575 = vld [vmem:[%s4574] sm:$0xf]
    %v4577 = vsel %vm1562, %v4575, 0
    %4579 = vmatpush.msra.mxu0 0.0
    %4580 = vmatpush.msra.mxu0 0.0
    %4581 = vmatpush.msra.mxu0 0.0
    %4582 = vmatpush.msra.mxu0 0.0
    %4583 = vmatpush.msra.mxu0 0.0
    %4584 = vmatpush.msra.mxu0 0.0
    %4585 = vmatpush.msra.mxu0 0.0
    %4586 = vmatpush.msra.mxu0 0.0
    %4587 = vmatpush.msra.mxu0 0.0
    %4588 = vmatpush.msra.mxu0 0.0
    %4589 = vmatpush.msra.mxu0 0.0
    %4590 = vmatpush.msra.mxu0 0.0
    %4591 = vmatpush.msra.mxu0 0.0
    %4592 = vmatpush.msra.mxu0 0.0
    %4593 = vmatpush.msra.mxu0 %v4545
    %4594 = vmatpush.msra.mxu0 %v4544
    %4595 = vmatmul.f32.gmra.mxu0 %v4577
    %v4596 = vpop.f32.mrf.mxu0
    %v4597 = vadd.f32 0.0, %v4596
    %4598 = vdwg.mxu0
    %s4599 = scalar_lea.vmem %s6, 32
    %v4600 = vld [vmem:[%s4599] sm:$0xff]
    %v4601 = vld [vmem:[%s4599 + $0x8] sm:$0xff]
    %v4602 = vld [vmem:[%s4599 + $0x10] sm:$0xff]
    %v4603 = vld [vmem:[%s4599 + $0x18] sm:$0xff]
    %v4605 = vsel %vm3864, %v4597, 0
    %4607 = vmatpush.msra.mxu0 0.0
    %4608 = vmatpush.msra.mxu0 0.0
    %4609 = vmatpush.msra.mxu0 0.0
    %4610 = vmatpush.msra.mxu0 0.0
    %4611 = vmatpush.msra.mxu0 0.0
    %4612 = vmatpush.msra.mxu0 0.0
    %4613 = vmatpush.msra.mxu0 0.0
    %4614 = vmatpush.msra.mxu0 0.0
    %4615 = vmatpush.msra.mxu0 0.0
    %4616 = vmatpush.msra.mxu0 0.0
    %4617 = vmatpush.msra.mxu0 0.0
    %4618 = vmatpush.msra.mxu0 0.0
    %4619 = vmatpush.msra.mxu0 %v4603
    %4620 = vmatpush.msra.mxu0 %v4602
    %4621 = vmatpush.msra.mxu0 %v4601
    %4622 = vmatpush.msra.mxu0 %v4600
    %4623 = vmatmul.f32.gmra.mxu0 %v4605
    %v4624 = vpop.f32.mrf.mxu0
    %v4625 = vadd.f32 0.0, %v4624
    %4626 = vdwg.mxu0
    %v4628 = vsel %vm3864, %v4568, 0
    %4630 = vmatpush.msra.mxu0 0.0
    %4631 = vmatpush.msra.mxu0 0.0
    %4632 = vmatpush.msra.mxu0 0.0
    %4633 = vmatpush.msra.mxu0 0.0
    %4634 = vmatpush.msra.mxu0 0.0
    %4635 = vmatpush.msra.mxu0 0.0
    %4636 = vmatpush.msra.mxu0 0.0
    %4637 = vmatpush.msra.mxu0 0.0
    %4638 = vmatpush.msra.mxu0 0.0
    %4639 = vmatpush.msra.mxu0 0.0
    %4640 = vmatpush.msra.mxu0 0.0
    %4641 = vmatpush.msra.mxu0 0.0
    %4642 = vmatpush.msra.mxu0 %v4573
    %4643 = vmatpush.msra.mxu0 %v4572
    %4644 = vmatpush.msra.mxu0 %v4571
    %4645 = vmatpush.msra.mxu0 %v4570
    %4646 = vmatmul.f32.gmra.mxu0 %v4628
    %v4647 = vpop.f32.mrf.mxu0
    %v4648 = vadd.f32 %v4625, %v4647
    %4649 = vdwg.mxu0
    %s4650 = scalar_lea.vmem %s2, 8
    %v4651 = vld [vmem:[%s4650] sm:$0xf]
    %v4653 = vsel %vm1562, %v4651, 0
    %4655 = vmatpush.msra.mxu0 0.0
    %4656 = vmatpush.msra.mxu0 0.0
    %4657 = vmatpush.msra.mxu0 0.0
    %4658 = vmatpush.msra.mxu0 0.0
    %4659 = vmatpush.msra.mxu0 0.0
    %4660 = vmatpush.msra.mxu0 0.0
    %4661 = vmatpush.msra.mxu0 0.0
    %4662 = vmatpush.msra.mxu0 0.0
    %4663 = vmatpush.msra.mxu0 0.0
    %4664 = vmatpush.msra.mxu0 0.0
    %4665 = vmatpush.msra.mxu0 0.0
    %4666 = vmatpush.msra.mxu0 0.0
    %4667 = vmatpush.msra.mxu0 0.0
    %4668 = vmatpush.msra.mxu0 0.0
    %4669 = vmatpush.msra.mxu0 %v4545
    %4670 = vmatpush.msra.mxu0 %v4544
    %4671 = vmatmul.f32.gmra.mxu0 %v4653
    %v4672 = vpop.f32.mrf.mxu0
    %v4673 = vadd.f32 0.0, %v4672
    %4674 = vdwg.mxu0
    %s4675 = scalar_lea.vmem %s6, 64
    %v4676 = vld [vmem:[%s4675] sm:$0xff]
    %v4677 = vld [vmem:[%s4675 + $0x8] sm:$0xff]
    %v4678 = vld [vmem:[%s4675 + $0x10] sm:$0xff]
    %v4679 = vld [vmem:[%s4675 + $0x18] sm:$0xff]
    %v4681 = vsel %vm3864, %v4673, 0
    %4683 = vmatpush.msra.mxu0 0.0
    %4684 = vmatpush.msra.mxu0 0.0
    %4685 = vmatpush.msra.mxu0 0.0
    %4686 = vmatpush.msra.mxu0 0.0
    %4687 = vmatpush.msra.mxu0 0.0
    %4688 = vmatpush.msra.mxu0 0.0
    %4689 = vmatpush.msra.mxu0 0.0
    %4690 = vmatpush.msra.mxu0 0.0
    %4691 = vmatpush.msra.mxu0 0.0
    %4692 = vmatpush.msra.mxu0 0.0
    %4693 = vmatpush.msra.mxu0 0.0
    %4694 = vmatpush.msra.mxu0 0.0
    %4695 = vmatpush.msra.mxu0 %v4679
    %4696 = vmatpush.msra.mxu0 %v4678
    %4697 = vmatpush.msra.mxu0 %v4677
    %4698 = vmatpush.msra.mxu0 %v4676
    %4699 = vmatmul.f32.gmra.mxu0 %v4681
    %v4700 = vpop.f32.mrf.mxu0
    %v4701 = vadd.f32 0.0, %v4700
    %4702 = vdwg.mxu0
    %v4703 = vadd.f32 %v4648, %v4701
    %s4704 = scalar_lea.vmem %s2, 12
    %v4705 = vld [vmem:[%s4704] sm:$0xf]
    %v4707 = vsel %vm1562, %v4705, 0
    %4709 = vmatpush.msra.mxu0 0.0
    %4710 = vmatpush.msra.mxu0 0.0
    %4711 = vmatpush.msra.mxu0 0.0
    %4712 = vmatpush.msra.mxu0 0.0
    %4713 = vmatpush.msra.mxu0 0.0
    %4714 = vmatpush.msra.mxu0 0.0
    %4715 = vmatpush.msra.mxu0 0.0
    %4716 = vmatpush.msra.mxu0 0.0
    %4717 = vmatpush.msra.mxu0 0.0
    %4718 = vmatpush.msra.mxu0 0.0
    %4719 = vmatpush.msra.mxu0 0.0
    %4720 = vmatpush.msra.mxu0 0.0
    %4721 = vmatpush.msra.mxu0 0.0
    %4722 = vmatpush.msra.mxu0 0.0
    %4723 = vmatpush.msra.mxu0 %v4545
    %4724 = vmatpush.msra.mxu0 %v4544
    %4725 = vmatmul.f32.gmra.mxu0 %v4707
    %v4726 = vpop.f32.mrf.mxu0
    %v4727 = vadd.f32 0.0, %v4726
    %4728 = vdwg.mxu0
    %s4729 = scalar_lea.vmem %s6, 96
    %v4730 = vld [vmem:[%s4729] sm:$0xff]
    %v4731 = vld [vmem:[%s4729 + $0x8] sm:$0xff]
    %v4732 = vld [vmem:[%s4729 + $0x10] sm:$0xff]
    %v4733 = vld [vmem:[%s4729 + $0x18] sm:$0xff]
    %v4735 = vsel %vm3864, %v4727, 0
    %4737 = vmatpush.msra.mxu0 0.0
    %4738 = vmatpush.msra.mxu0 0.0
    %4739 = vmatpush.msra.mxu0 0.0
    %4740 = vmatpush.msra.mxu0 0.0
    %4741 = vmatpush.msra.mxu0 0.0
    %4742 = vmatpush.msra.mxu0 0.0
    %4743 = vmatpush.msra.mxu0 0.0
    %4744 = vmatpush.msra.mxu0 0.0
    %4745 = vmatpush.msra.mxu0 0.0
    %4746 = vmatpush.msra.mxu0 0.0
    %4747 = vmatpush.msra.mxu0 0.0
    %4748 = vmatpush.msra.mxu0 0.0
    %4749 = vmatpush.msra.mxu0 %v4733
    %4750 = vmatpush.msra.mxu0 %v4732
    %4751 = vmatpush.msra.mxu0 %v4731
    %4752 = vmatpush.msra.mxu0 %v4730
    %4753 = vmatmul.f32.gmra.mxu0 %v4735
    %v4754 = vpop.f32.mrf.mxu0
    %v4755 = vadd.f32 0.0, %v4754
    %4756 = vdwg.mxu0
    %v4757 = vadd.f32 %v4703, %v4755
    %s4758 = scalar_lea.vmem %s2, 16
    %v4759 = vld [vmem:[%s4758] sm:$0xf]
    %v4761 = vsel %vm1562, %v4759, 0
    %4763 = vmatpush.msra.mxu0 0.0
    %4764 = vmatpush.msra.mxu0 0.0
    %4765 = vmatpush.msra.mxu0 0.0
    %4766 = vmatpush.msra.mxu0 0.0
    %4767 = vmatpush.msra.mxu0 0.0
    %4768 = vmatpush.msra.mxu0 0.0
    %4769 = vmatpush.msra.mxu0 0.0
    %4770 = vmatpush.msra.mxu0 0.0
    %4771 = vmatpush.msra.mxu0 0.0
    %4772 = vmatpush.msra.mxu0 0.0
    %4773 = vmatpush.msra.mxu0 0.0
    %4774 = vmatpush.msra.mxu0 0.0
    %4775 = vmatpush.msra.mxu0 0.0
    %4776 = vmatpush.msra.mxu0 0.0
    %4777 = vmatpush.msra.mxu0 %v4545
    %4778 = vmatpush.msra.mxu0 %v4544
    %4779 = vmatmul.f32.gmra.mxu0 %v4761
    %v4780 = vpop.f32.mrf.mxu0
    %v4781 = vadd.f32 0.0, %v4780
    %4782 = vdwg.mxu0
    %s4783 = scalar_lea.vmem %s6, 128
    %v4784 = vld [vmem:[%s4783] sm:$0xff]
    %v4785 = vld [vmem:[%s4783 + $0x8] sm:$0xff]
    %v4786 = vld [vmem:[%s4783 + $0x10] sm:$0xff]
    %v4787 = vld [vmem:[%s4783 + $0x18] sm:$0xff]
    %v4789 = vsel %vm3864, %v4781, 0
    %4791 = vmatpush.msra.mxu0 0.0
    %4792 = vmatpush.msra.mxu0 0.0
    %4793 = vmatpush.msra.mxu0 0.0
    %4794 = vmatpush.msra.mxu0 0.0
    %4795 = vmatpush.msra.mxu0 0.0
    %4796 = vmatpush.msra.mxu0 0.0
    %4797 = vmatpush.msra.mxu0 0.0
    %4798 = vmatpush.msra.mxu0 0.0
    %4799 = vmatpush.msra.mxu0 0.0
    %4800 = vmatpush.msra.mxu0 0.0
    %4801 = vmatpush.msra.mxu0 0.0
    %4802 = vmatpush.msra.mxu0 0.0
    %4803 = vmatpush.msra.mxu0 %v4787
    %4804 = vmatpush.msra.mxu0 %v4786
    %4805 = vmatpush.msra.mxu0 %v4785
    %4806 = vmatpush.msra.mxu0 %v4784
    %4807 = vmatmul.f32.gmra.mxu0 %v4789
    %v4808 = vpop.f32.mrf.mxu0
    %v4809 = vadd.f32 0.0, %v4808
    %4810 = vdwg.mxu0
    %v4811 = vadd.f32 %v4757, %v4809
    %s4812 = scalar_lea.vmem %s2, 20
    %v4813 = vld [vmem:[%s4812] sm:$0xf]
    %v4815 = vsel %vm1562, %v4813, 0
    %4817 = vmatpush.msra.mxu0 0.0
    %4818 = vmatpush.msra.mxu0 0.0
    %4819 = vmatpush.msra.mxu0 0.0
    %4820 = vmatpush.msra.mxu0 0.0
    %4821 = vmatpush.msra.mxu0 0.0
    %4822 = vmatpush.msra.mxu0 0.0
    %4823 = vmatpush.msra.mxu0 0.0
    %4824 = vmatpush.msra.mxu0 0.0
    %4825 = vmatpush.msra.mxu0 0.0
    %4826 = vmatpush.msra.mxu0 0.0
    %4827 = vmatpush.msra.mxu0 0.0
    %4828 = vmatpush.msra.mxu0 0.0
    %4829 = vmatpush.msra.mxu0 0.0
    %4830 = vmatpush.msra.mxu0 0.0
    %4831 = vmatpush.msra.mxu0 %v4545
    %4832 = vmatpush.msra.mxu0 %v4544
    %4833 = vmatmul.f32.gmra.mxu0 %v4815
    %v4834 = vpop.f32.mrf.mxu0
    %v4835 = vadd.f32 0.0, %v4834
    %4836 = vdwg.mxu0
    %s4837 = scalar_lea.vmem %s6, 160
    %v4838 = vld [vmem:[%s4837] sm:$0xff]
    %v4839 = vld [vmem:[%s4837 + $0x8] sm:$0xff]
    %v4840 = vld [vmem:[%s4837 + $0x10] sm:$0xff]
    %v4841 = vld [vmem:[%s4837 + $0x18] sm:$0xff]
    %v4843 = vsel %vm3864, %v4835, 0
    %4845 = vmatpush.msra.mxu0 0.0
    %4846 = vmatpush.msra.mxu0 0.0
    %4847 = vmatpush.msra.mxu0 0.0
    %4848 = vmatpush.msra.mxu0 0.0
    %4849 = vmatpush.msra.mxu0 0.0
    %4850 = vmatpush.msra.mxu0 0.0
    %4851 = vmatpush.msra.mxu0 0.0
    %4852 = vmatpush.msra.mxu0 0.0
    %4853 = vmatpush.msra.mxu0 0.0
    %4854 = vmatpush.msra.mxu0 0.0
    %4855 = vmatpush.msra.mxu0 0.0
    %4856 = vmatpush.msra.mxu0 0.0
    %4857 = vmatpush.msra.mxu0 %v4841
    %4858 = vmatpush.msra.mxu0 %v4840
    %4859 = vmatpush.msra.mxu0 %v4839
    %4860 = vmatpush.msra.mxu0 %v4838
    %4861 = vmatmul.f32.gmra.mxu0 %v4843
    %v4862 = vpop.f32.mrf.mxu0
    %v4863 = vadd.f32 0.0, %v4862
    %4864 = vdwg.mxu0
    %v4865 = vadd.f32 %v4811, %v4863
    %s4866 = scalar_lea.vmem %s2, 24
    %v4867 = vld [vmem:[%s4866] sm:$0xf]
    %v4869 = vsel %vm1562, %v4867, 0
    %4871 = vmatpush.msra.mxu0 0.0
    %4872 = vmatpush.msra.mxu0 0.0
    %4873 = vmatpush.msra.mxu0 0.0
    %4874 = vmatpush.msra.mxu0 0.0
    %4875 = vmatpush.msra.mxu0 0.0
    %4876 = vmatpush.msra.mxu0 0.0
    %4877 = vmatpush.msra.mxu0 0.0
    %4878 = vmatpush.msra.mxu0 0.0
    %4879 = vmatpush.msra.mxu0 0.0
    %4880 = vmatpush.msra.mxu0 0.0
    %4881 = vmatpush.msra.mxu0 0.0
    %4882 = vmatpush.msra.mxu0 0.0
    %4883 = vmatpush.msra.mxu0 0.0
    %4884 = vmatpush.msra.mxu0 0.0
    %4885 = vmatpush.msra.mxu0 %v4545
    %4886 = vmatpush.msra.mxu0 %v4544
    %4887 = vmatmul.f32.gmra.mxu0 %v4869
    %v4888 = vpop.f32.mrf.mxu0
    %v4889 = vadd.f32 0.0, %v4888
    %4890 = vdwg.mxu0
    %s4891 = scalar_lea.vmem %s6, 192
    %v4892 = vld [vmem:[%s4891] sm:$0xff]
    %v4893 = vld [vmem:[%s4891 + $0x8] sm:$0xff]
    %v4894 = vld [vmem:[%s4891 + $0x10] sm:$0xff]
    %v4895 = vld [vmem:[%s4891 + $0x18] sm:$0xff]
    %v4897 = vsel %vm3864, %v4889, 0
    %4899 = vmatpush.msra.mxu0 0.0
    %4900 = vmatpush.msra.mxu0 0.0
    %4901 = vmatpush.msra.mxu0 0.0
    %4902 = vmatpush.msra.mxu0 0.0
    %4903 = vmatpush.msra.mxu0 0.0
    %4904 = vmatpush.msra.mxu0 0.0
    %4905 = vmatpush.msra.mxu0 0.0
    %4906 = vmatpush.msra.mxu0 0.0
    %4907 = vmatpush.msra.mxu0 0.0
    %4908 = vmatpush.msra.mxu0 0.0
    %4909 = vmatpush.msra.mxu0 0.0
    %4910 = vmatpush.msra.mxu0 0.0
    %4911 = vmatpush.msra.mxu0 %v4895
    %4912 = vmatpush.msra.mxu0 %v4894
    %4913 = vmatpush.msra.mxu0 %v4893
    %4914 = vmatpush.msra.mxu0 %v4892
    %4915 = vmatmul.f32.gmra.mxu0 %v4897
    %v4916 = vpop.f32.mrf.mxu0
    %v4917 = vadd.f32 0.0, %v4916
    %4918 = vdwg.mxu0
    %v4919 = vadd.f32 %v4865, %v4917
    %s4920 = scalar_lea.vmem %s2, 28
    %v4921 = vld [vmem:[%s4920] sm:$0xf]
    %v4923 = vsel %vm1562, %v4921, 0
    %4925 = vmatpush.msra.mxu0 0.0
    %4926 = vmatpush.msra.mxu0 0.0
    %4927 = vmatpush.msra.mxu0 0.0
    %4928 = vmatpush.msra.mxu0 0.0
    %4929 = vmatpush.msra.mxu0 0.0
    %4930 = vmatpush.msra.mxu0 0.0
    %4931 = vmatpush.msra.mxu0 0.0
    %4932 = vmatpush.msra.mxu0 0.0
    %4933 = vmatpush.msra.mxu0 0.0
    %4934 = vmatpush.msra.mxu0 0.0
    %4935 = vmatpush.msra.mxu0 0.0
    %4936 = vmatpush.msra.mxu0 0.0
    %4937 = vmatpush.msra.mxu0 0.0
    %4938 = vmatpush.msra.mxu0 0.0
    %4939 = vmatpush.msra.mxu0 %v4545
    %4940 = vmatpush.msra.mxu0 %v4544
    %4941 = vmatmul.f32.gmra.mxu0 %v4923
    %v4942 = vpop.f32.mrf.mxu0
    %v4943 = vadd.f32 0.0, %v4942
    %4944 = vdwg.mxu0
    %s4945 = scalar_lea.vmem %s6, 224
    %v4946 = vld [vmem:[%s4945] sm:$0xff]
    %v4947 = vld [vmem:[%s4945 + $0x8] sm:$0xff]
    %v4948 = vld [vmem:[%s4945 + $0x10] sm:$0xff]
    %v4949 = vld [vmem:[%s4945 + $0x18] sm:$0xff]
    %v4951 = vsel %vm3864, %v4943, 0
    %4953 = vmatpush.msra.mxu0 0.0
    %4954 = vmatpush.msra.mxu0 0.0
    %4955 = vmatpush.msra.mxu0 0.0
    %4956 = vmatpush.msra.mxu0 0.0
    %4957 = vmatpush.msra.mxu0 0.0
    %4958 = vmatpush.msra.mxu0 0.0
    %4959 = vmatpush.msra.mxu0 0.0
    %4960 = vmatpush.msra.mxu0 0.0
    %4961 = vmatpush.msra.mxu0 0.0
    %4962 = vmatpush.msra.mxu0 0.0
    %4963 = vmatpush.msra.mxu0 0.0
    %4964 = vmatpush.msra.mxu0 0.0
    %4965 = vmatpush.msra.mxu0 %v4949
    %4966 = vmatpush.msra.mxu0 %v4948
    %4967 = vmatpush.msra.mxu0 %v4947
    %4968 = vmatpush.msra.mxu0 %v4946
    %4969 = vmatmul.f32.gmra.mxu0 %v4951
    %v4970 = vpop.f32.mrf.mxu0
    %v4971 = vadd.f32 0.0, %v4970
    %4972 = vdwg.mxu0
    %v4973 = vadd.f32 %v4919, %v4971
    %s4974 = scalar_lea.vmem %s2, 32
    %v4975 = vld [vmem:[%s4974] sm:$0xf]
    %v4977 = vsel %vm1562, %v4975, 0
    %4979 = vmatpush.msra.mxu0 0.0
    %4980 = vmatpush.msra.mxu0 0.0
    %4981 = vmatpush.msra.mxu0 0.0
    %4982 = vmatpush.msra.mxu0 0.0
    %4983 = vmatpush.msra.mxu0 0.0
    %4984 = vmatpush.msra.mxu0 0.0
    %4985 = vmatpush.msra.mxu0 0.0
    %4986 = vmatpush.msra.mxu0 0.0
    %4987 = vmatpush.msra.mxu0 0.0
    %4988 = vmatpush.msra.mxu0 0.0
    %4989 = vmatpush.msra.mxu0 0.0
    %4990 = vmatpush.msra.mxu0 0.0
    %4991 = vmatpush.msra.mxu0 0.0
    %4992 = vmatpush.msra.mxu0 0.0
    %4993 = vmatpush.msra.mxu0 %v4545
    %4994 = vmatpush.msra.mxu0 %v4544
    %4995 = vmatmul.f32.gmra.mxu0 %v4977
    %v4996 = vpop.f32.mrf.mxu0
    %v4997 = vadd.f32 0.0, %v4996
    %4998 = vdwg.mxu0
    %s4999 = scalar_lea.vmem %s6, 256
    %v5000 = vld [vmem:[%s4999] sm:$0xff]
    %v5001 = vld [vmem:[%s4999 + $0x8] sm:$0xff]
    %v5002 = vld [vmem:[%s4999 + $0x10] sm:$0xff]
    %v5003 = vld [vmem:[%s4999 + $0x18] sm:$0xff]
    %v5005 = vsel %vm3864, %v4997, 0
    %5007 = vmatpush.msra.mxu0 0.0
    %5008 = vmatpush.msra.mxu0 0.0
    %5009 = vmatpush.msra.mxu0 0.0
    %5010 = vmatpush.msra.mxu0 0.0
    %5011 = vmatpush.msra.mxu0 0.0
    %5012 = vmatpush.msra.mxu0 0.0
    %5013 = vmatpush.msra.mxu0 0.0
    %5014 = vmatpush.msra.mxu0 0.0
    %5015 = vmatpush.msra.mxu0 0.0
    %5016 = vmatpush.msra.mxu0 0.0
    %5017 = vmatpush.msra.mxu0 0.0
    %5018 = vmatpush.msra.mxu0 0.0
    %5019 = vmatpush.msra.mxu0 %v5003
    %5020 = vmatpush.msra.mxu0 %v5002
    %5021 = vmatpush.msra.mxu0 %v5001
    %5022 = vmatpush.msra.mxu0 %v5000
    %5023 = vmatmul.f32.gmra.mxu0 %v5005
    %v5024 = vpop.f32.mrf.mxu0
    %v5025 = vadd.f32 0.0, %v5024
    %5026 = vdwg.mxu0
    %v5027 = vadd.f32 %v4973, %v5025
    %vm5028 = vcmask 519168
    %5029 = vst.msk [vmem:[#allocation4] sm:$0xf] %vm5028, %v5027
    %v5030 = vld [vmem:[%s4447] sm:$0xff]
    %v5031 = vld [vmem:[%s4447 + $0x8] sm:$0xff]
    %v5032 = vld [vmem:[%s2] sm:$0xf]
    %v5034 = vsel %vm1562, %v5032, 0
    %5036 = vmatpush.msra.mxu0 0.0
    %5037 = vmatpush.msra.mxu0 0.0
    %5038 = vmatpush.msra.mxu0 0.0
    %5039 = vmatpush.msra.mxu0 0.0
    %5040 = vmatpush.msra.mxu0 0.0
    %5041 = vmatpush.msra.mxu0 0.0
    %5042 = vmatpush.msra.mxu0 0.0
    %5043 = vmatpush.msra.mxu0 0.0
    %5044 = vmatpush.msra.mxu0 0.0
    %5045 = vmatpush.msra.mxu0 0.0
    %5046 = vmatpush.msra.mxu0 0.0
    %5047 = vmatpush.msra.mxu0 0.0
    %5048 = vmatpush.msra.mxu0 0.0
    %5049 = vmatpush.msra.mxu0 0.0
    %5050 = vmatpush.msra.mxu0 %v5031
    %5051 = vmatpush.msra.mxu0 %v5030
    %5052 = vmatmul.f32.gmra.mxu0 %v5034
    %v5053 = vpop.f32.mrf.mxu0
    %v5054 = vadd.f32 0.0, %v5053
    %5055 = vdwg.mxu0
    %v5056 = vld [vmem:[%s6] sm:$0xff]
    %v5057 = vld [vmem:[%s6 + $0x8] sm:$0xff]
    %v5058 = vld [vmem:[%s6 + $0x10] sm:$0xff]
    %v5059 = vld [vmem:[%s6 + $0x18] sm:$0xff]
    %v5060 = vld [vmem:[%s4574] sm:$0xf]
    %v5062 = vsel %vm1562, %v5060, 0
    %5064 = vmatpush.msra.mxu0 0.0
    %5065 = vmatpush.msra.mxu0 0.0
    %5066 = vmatpush.msra.mxu0 0.0
    %5067 = vmatpush.msra.mxu0 0.0
    %5068 = vmatpush.msra.mxu0 0.0
    %5069 = vmatpush.msra.mxu0 0.0
    %5070 = vmatpush.msra.mxu0 0.0
    %5071 = vmatpush.msra.mxu0 0.0
    %5072 = vmatpush.msra.mxu0 0.0
    %5073 = vmatpush.msra.mxu0 0.0
    %5074 = vmatpush.msra.mxu0 0.0
    %5075 = vmatpush.msra.mxu0 0.0
    %5076 = vmatpush.msra.mxu0 0.0
    %5077 = vmatpush.msra.mxu0 0.0
    %5078 = vmatpush.msra.mxu0 %v5031
    %5079 = vmatpush.msra.mxu0 %v5030
    %5080 = vmatmul.f32.gmra.mxu0 %v5062
    %v5081 = vpop.f32.mrf.mxu0
    %v5082 = vadd.f32 0.0, %v5081
    %5083 = vdwg.mxu0
    %v5084 = vld [vmem:[%s4599] sm:$0xff]
    %v5085 = vld [vmem:[%s4599 + $0x8] sm:$0xff]
    %v5086 = vld [vmem:[%s4599 + $0x10] sm:$0xff]
    %v5087 = vld [vmem:[%s4599 + $0x18] sm:$0xff]
    %v5089 = vsel %vm3864, %v5082, 0
    %5091 = vmatpush.msra.mxu0 0.0
    %5092 = vmatpush.msra.mxu0 0.0
    %5093 = vmatpush.msra.mxu0 0.0
    %5094 = vmatpush.msra.mxu0 0.0
    %5095 = vmatpush.msra.mxu0 0.0
    %5096 = vmatpush.msra.mxu0 0.0
    %5097 = vmatpush.msra.mxu0 0.0
    %5098 = vmatpush.msra.mxu0 0.0
    %5099 = vmatpush.msra.mxu0 0.0
    %5100 = vmatpush.msra.mxu0 0.0
    %5101 = vmatpush.msra.mxu0 0.0
    %5102 = vmatpush.msra.mxu0 0.0
    %5103 = vmatpush.msra.mxu0 %v5087
    %5104 = vmatpush.msra.mxu0 %v5086
    %5105 = vmatpush.msra.mxu0 %v5085
    %5106 = vmatpush.msra.mxu0 %v5084
    %5107 = vmatmul.f32.gmra.mxu0 %v5089
    %v5108 = vpop.f32.mrf.mxu0
    %v5109 = vadd.f32 0.0, %v5108
    %5110 = vdwg.mxu0
    %v5112 = vsel %vm3864, %v5054, 0
    %5114 = vmatpush.msra.mxu0 0.0
    %5115 = vmatpush.msra.mxu0 0.0
    %5116 = vmatpush.msra.mxu0 0.0
    %5117 = vmatpush.msra.mxu0 0.0
    %5118 = vmatpush.msra.mxu0 0.0
    %5119 = vmatpush.msra.mxu0 0.0
    %5120 = vmatpush.msra.mxu0 0.0
    %5121 = vmatpush.msra.mxu0 0.0
    %5122 = vmatpush.msra.mxu0 0.0
    %5123 = vmatpush.msra.mxu0 0.0
    %5124 = vmatpush.msra.mxu0 0.0
    %5125 = vmatpush.msra.mxu0 0.0
    %5126 = vmatpush.msra.mxu0 %v5059
    %5127 = vmatpush.msra.mxu0 %v5058
    %5128 = vmatpush.msra.mxu0 %v5057
    %5129 = vmatpush.msra.mxu0 %v5056
    %5130 = vmatmul.f32.gmra.mxu0 %v5112
    %v5131 = vpop.f32.mrf.mxu0
    %v5132 = vadd.f32 %v5109, %v5131
    %5133 = vdwg.mxu0
    %v5134 = vld [vmem:[%s4650] sm:$0xf]
    %v5136 = vsel %vm1562, %v5134, 0
    %5138 = vmatpush.msra.mxu0 0.0
    %5139 = vmatpush.msra.mxu0 0.0
    %5140 = vmatpush.msra.mxu0 0.0
    %5141 = vmatpush.msra.mxu0 0.0
    %5142 = vmatpush.msra.mxu0 0.0
    %5143 = vmatpush.msra.mxu0 0.0
    %5144 = vmatpush.msra.mxu0 0.0
    %5145 = vmatpush.msra.mxu0 0.0
    %5146 = vmatpush.msra.mxu0 0.0
    %5147 = vmatpush.msra.mxu0 0.0
    %5148 = vmatpush.msra.mxu0 0.0
    %5149 = vmatpush.msra.mxu0 0.0
    %5150 = vmatpush.msra.mxu0 0.0
    %5151 = vmatpush.msra.mxu0 0.0
    %5152 = vmatpush.msra.mxu0 %v5031
    %5153 = vmatpush.msra.mxu0 %v5030
    %5154 = vmatmul.f32.gmra.mxu0 %v5136
    %v5155 = vpop.f32.mrf.mxu0
    %v5156 = vadd.f32 0.0, %v5155
    %5157 = vdwg.mxu0
    %v5158 = vld [vmem:[%s4675] sm:$0xff]
    %v5159 = vld [vmem:[%s4675 + $0x8] sm:$0xff]
    %v5160 = vld [vmem:[%s4675 + $0x10] sm:$0xff]
    %v5161 = vld [vmem:[%s4675 + $0x18] sm:$0xff]
    %v5163 = vsel %vm3864, %v5156, 0
    %5165 = vmatpush.msra.mxu0 0.0
    %5166 = vmatpush.msra.mxu0 0.0
    %5167 = vmatpush.msra.mxu0 0.0
    %5168 = vmatpush.msra.mxu0 0.0
    %5169 = vmatpush.msra.mxu0 0.0
    %5170 = vmatpush.msra.mxu0 0.0
    %5171 = vmatpush.msra.mxu0 0.0
    %5172 = vmatpush.msra.mxu0 0.0
    %5173 = vmatpush.msra.mxu0 0.0
    %5174 = vmatpush.msra.mxu0 0.0
    %5175 = vmatpush.msra.mxu0 0.0
    %5176 = vmatpush.msra.mxu0 0.0
    %5177 = vmatpush.msra.mxu0 %v5161
    %5178 = vmatpush.msra.mxu0 %v5160
    %5179 = vmatpush.msra.mxu0 %v5159
    %5180 = vmatpush.msra.mxu0 %v5158
    %5181 = vmatmul.f32.gmra.mxu0 %v5163
    %v5182 = vpop.f32.mrf.mxu0
    %v5183 = vadd.f32 0.0, %v5182
    %5184 = vdwg.mxu0
    %v5185 = vadd.f32 %v5132, %v5183
    %v5186 = vld [vmem:[%s4704] sm:$0xf]
    %v5188 = vsel %vm1562, %v5186, 0
    %5190 = vmatpush.msra.mxu0 0.0
    %5191 = vmatpush.msra.mxu0 0.0
    %5192 = vmatpush.msra.mxu0 0.0
    %5193 = vmatpush.msra.mxu0 0.0
    %5194 = vmatpush.msra.mxu0 0.0
    %5195 = vmatpush.msra.mxu0 0.0
    %5196 = vmatpush.msra.mxu0 0.0
    %5197 = vmatpush.msra.mxu0 0.0
    %5198 = vmatpush.msra.mxu0 0.0
    %5199 = vmatpush.msra.mxu0 0.0
    %5200 = vmatpush.msra.mxu0 0.0
    %5201 = vmatpush.msra.mxu0 0.0
    %5202 = vmatpush.msra.mxu0 0.0
    %5203 = vmatpush.msra.mxu0 0.0
    %5204 = vmatpush.msra.mxu0 %v5031
    %5205 = vmatpush.msra.mxu0 %v5030
    %5206 = vmatmul.f32.gmra.mxu0 %v5188
    %v5207 = vpop.f32.mrf.mxu0
    %v5208 = vadd.f32 0.0, %v5207
    %5209 = vdwg.mxu0
    %v5210 = vld [vmem:[%s4729] sm:$0xff]
    %v5211 = vld [vmem:[%s4729 + $0x8] sm:$0xff]
    %v5212 = vld [vmem:[%s4729 + $0x10] sm:$0xff]
    %v5213 = vld [vmem:[%s4729 + $0x18] sm:$0xff]
    %v5215 = vsel %vm3864, %v5208, 0
    %5217 = vmatpush.msra.mxu0 0.0
    %5218 = vmatpush.msra.mxu0 0.0
    %5219 = vmatpush.msra.mxu0 0.0
    %5220 = vmatpush.msra.mxu0 0.0
    %5221 = vmatpush.msra.mxu0 0.0
    %5222 = vmatpush.msra.mxu0 0.0
    %5223 = vmatpush.msra.mxu0 0.0
    %5224 = vmatpush.msra.mxu0 0.0
    %5225 = vmatpush.msra.mxu0 0.0
    %5226 = vmatpush.msra.mxu0 0.0
    %5227 = vmatpush.msra.mxu0 0.0
    %5228 = vmatpush.msra.mxu0 0.0
    %5229 = vmatpush.msra.mxu0 %v5213
    %5230 = vmatpush.msra.mxu0 %v5212
    %5231 = vmatpush.msra.mxu0 %v5211
    %5232 = vmatpush.msra.mxu0 %v5210
    %5233 = vmatmul.f32.gmra.mxu0 %v5215
    %v5234 = vpop.f32.mrf.mxu0
    %v5235 = vadd.f32 0.0, %v5234
    %5236 = vdwg.mxu0
    %v5237 = vadd.f32 %v5185, %v5235
    %v5238 = vld [vmem:[%s4758] sm:$0xf]
    %v5240 = vsel %vm1562, %v5238, 0
    %5242 = vmatpush.msra.mxu0 0.0
    %5243 = vmatpush.msra.mxu0 0.0
    %5244 = vmatpush.msra.mxu0 0.0
    %5245 = vmatpush.msra.mxu0 0.0
    %5246 = vmatpush.msra.mxu0 0.0
    %5247 = vmatpush.msra.mxu0 0.0
    %5248 = vmatpush.msra.mxu0 0.0
    %5249 = vmatpush.msra.mxu0 0.0
    %5250 = vmatpush.msra.mxu0 0.0
    %5251 = vmatpush.msra.mxu0 0.0
    %5252 = vmatpush.msra.mxu0 0.0
    %5253 = vmatpush.msra.mxu0 0.0
    %5254 = vmatpush.msra.mxu0 0.0
    %5255 = vmatpush.msra.mxu0 0.0
    %5256 = vmatpush.msra.mxu0 %v5031
    %5257 = vmatpush.msra.mxu0 %v5030
    %5258 = vmatmul.f32.gmra.mxu0 %v5240
    %v5259 = vpop.f32.mrf.mxu0
    %v5260 = vadd.f32 0.0, %v5259
    %5261 = vdwg.mxu0
    %v5262 = vld [vmem:[%s4783] sm:$0xff]
    %v5263 = vld [vmem:[%s4783 + $0x8] sm:$0xff]
    %v5264 = vld [vmem:[%s4783 + $0x10] sm:$0xff]
    %v5265 = vld [vmem:[%s4783 + $0x18] sm:$0xff]
    %v5267 = vsel %vm3864, %v5260, 0
    %5269 = vmatpush.msra.mxu0 0.0
    %5270 = vmatpush.msra.mxu0 0.0
    %5271 = vmatpush.msra.mxu0 0.0
    %5272 = vmatpush.msra.mxu0 0.0
    %5273 = vmatpush.msra.mxu0 0.0
    %5274 = vmatpush.msra.mxu0 0.0
    %5275 = vmatpush.msra.mxu0 0.0
    %5276 = vmatpush.msra.mxu0 0.0
    %5277 = vmatpush.msra.mxu0 0.0
    %5278 = vmatpush.msra.mxu0 0.0
    %5279 = vmatpush.msra.mxu0 0.0
    %5280 = vmatpush.msra.mxu0 0.0
    %5281 = vmatpush.msra.mxu0 %v5265
    %5282 = vmatpush.msra.mxu0 %v5264
    %5283 = vmatpush.msra.mxu0 %v5263
    %5284 = vmatpush.msra.mxu0 %v5262
    %5285 = vmatmul.f32.gmra.mxu0 %v5267
    %v5286 = vpop.f32.mrf.mxu0
    %v5287 = vadd.f32 0.0, %v5286
    %5288 = vdwg.mxu0
    %v5289 = vadd.f32 %v5237, %v5287
    %v5290 = vld [vmem:[%s4812] sm:$0xf]
    %v5292 = vsel %vm1562, %v5290, 0
    %5294 = vmatpush.msra.mxu0 0.0
    %5295 = vmatpush.msra.mxu0 0.0
    %5296 = vmatpush.msra.mxu0 0.0
    %5297 = vmatpush.msra.mxu0 0.0
    %5298 = vmatpush.msra.mxu0 0.0
    %5299 = vmatpush.msra.mxu0 0.0
    %5300 = vmatpush.msra.mxu0 0.0
    %5301 = vmatpush.msra.mxu0 0.0
    %5302 = vmatpush.msra.mxu0 0.0
    %5303 = vmatpush.msra.mxu0 0.0
    %5304 = vmatpush.msra.mxu0 0.0
    %5305 = vmatpush.msra.mxu0 0.0
    %5306 = vmatpush.msra.mxu0 0.0
    %5307 = vmatpush.msra.mxu0 0.0
    %5308 = vmatpush.msra.mxu0 %v5031
    %5309 = vmatpush.msra.mxu0 %v5030
    %5310 = vmatmul.f32.gmra.mxu0 %v5292
    %v5311 = vpop.f32.mrf.mxu0
    %v5312 = vadd.f32 0.0, %v5311
    %5313 = vdwg.mxu0
    %v5314 = vld [vmem:[%s4837] sm:$0xff]
    %v5315 = vld [vmem:[%s4837 + $0x8] sm:$0xff]
    %v5316 = vld [vmem:[%s4837 + $0x10] sm:$0xff]
    %v5317 = vld [vmem:[%s4837 + $0x18] sm:$0xff]
    %v5319 = vsel %vm3864, %v5312, 0
    %5321 = vmatpush.msra.mxu0 0.0
    %5322 = vmatpush.msra.mxu0 0.0
    %5323 = vmatpush.msra.mxu0 0.0
    %5324 = vmatpush.msra.mxu0 0.0
    %5325 = vmatpush.msra.mxu0 0.0
    %5326 = vmatpush.msra.mxu0 0.0
    %5327 = vmatpush.msra.mxu0 0.0
    %5328 = vmatpush.msra.mxu0 0.0
    %5329 = vmatpush.msra.mxu0 0.0
    %5330 = vmatpush.msra.mxu0 0.0
    %5331 = vmatpush.msra.mxu0 0.0
    %5332 = vmatpush.msra.mxu0 0.0
    %5333 = vmatpush.msra.mxu0 %v5317
    %5334 = vmatpush.msra.mxu0 %v5316
    %5335 = vmatpush.msra.mxu0 %v5315
    %5336 = vmatpush.msra.mxu0 %v5314
    %5337 = vmatmul.f32.gmra.mxu0 %v5319
    %v5338 = vpop.f32.mrf.mxu0
    %v5339 = vadd.f32 0.0, %v5338
    %5340 = vdwg.mxu0
    %v5341 = vadd.f32 %v5289, %v5339
    %v5342 = vld [vmem:[%s4866] sm:$0xf]
    %v5344 = vsel %vm1562, %v5342, 0
    %5346 = vmatpush.msra.mxu0 0.0
    %5347 = vmatpush.msra.mxu0 0.0
    %5348 = vmatpush.msra.mxu0 0.0
    %5349 = vmatpush.msra.mxu0 0.0
    %5350 = vmatpush.msra.mxu0 0.0
    %5351 = vmatpush.msra.mxu0 0.0
    %5352 = vmatpush.msra.mxu0 0.0
    %5353 = vmatpush.msra.mxu0 0.0
    %5354 = vmatpush.msra.mxu0 0.0
    %5355 = vmatpush.msra.mxu0 0.0
    %5356 = vmatpush.msra.mxu0 0.0
    %5357 = vmatpush.msra.mxu0 0.0
    %5358 = vmatpush.msra.mxu0 0.0
    %5359 = vmatpush.msra.mxu0 0.0
    %5360 = vmatpush.msra.mxu0 %v5031
    %5361 = vmatpush.msra.mxu0 %v5030
    %5362 = vmatmul.f32.gmra.mxu0 %v5344
    %v5363 = vpop.f32.mrf.mxu0
    %v5364 = vadd.f32 0.0, %v5363
    %5365 = vdwg.mxu0
    %v5366 = vld [vmem:[%s4891] sm:$0xff]
    %v5367 = vld [vmem:[%s4891 + $0x8] sm:$0xff]
    %v5368 = vld [vmem:[%s4891 + $0x10] sm:$0xff]
    %v5369 = vld [vmem:[%s4891 + $0x18] sm:$0xff]
    %v5371 = vsel %vm3864, %v5364, 0
    %5373 = vmatpush.msra.mxu0 0.0
    %5374 = vmatpush.msra.mxu0 0.0
    %5375 = vmatpush.msra.mxu0 0.0
    %5376 = vmatpush.msra.mxu0 0.0
    %5377 = vmatpush.msra.mxu0 0.0
    %5378 = vmatpush.msra.mxu0 0.0
    %5379 = vmatpush.msra.mxu0 0.0
    %5380 = vmatpush.msra.mxu0 0.0
    %5381 = vmatpush.msra.mxu0 0.0
    %5382 = vmatpush.msra.mxu0 0.0
    %5383 = vmatpush.msra.mxu0 0.0
    %5384 = vmatpush.msra.mxu0 0.0
    %5385 = vmatpush.msra.mxu0 %v5369
    %5386 = vmatpush.msra.mxu0 %v5368
    %5387 = vmatpush.msra.mxu0 %v5367
    %5388 = vmatpush.msra.mxu0 %v5366
    %5389 = vmatmul.f32.gmra.mxu0 %v5371
    %v5390 = vpop.f32.mrf.mxu0
    %v5391 = vadd.f32 0.0, %v5390
    %5392 = vdwg.mxu0
    %v5393 = vadd.f32 %v5341, %v5391
    %v5394 = vld [vmem:[%s4920] sm:$0xf]
    %v5396 = vsel %vm1562, %v5394, 0
    %5398 = vmatpush.msra.mxu0 0.0
    %5399 = vmatpush.msra.mxu0 0.0
    %5400 = vmatpush.msra.mxu0 0.0
    %5401 = vmatpush.msra.mxu0 0.0
    %5402 = vmatpush.msra.mxu0 0.0
    %5403 = vmatpush.msra.mxu0 0.0
    %5404 = vmatpush.msra.mxu0 0.0
    %5405 = vmatpush.msra.mxu0 0.0
    %5406 = vmatpush.msra.mxu0 0.0
    %5407 = vmatpush.msra.mxu0 0.0
    %5408 = vmatpush.msra.mxu0 0.0
    %5409 = vmatpush.msra.mxu0 0.0
    %5410 = vmatpush.msra.mxu0 0.0
    %5411 = vmatpush.msra.mxu0 0.0
    %5412 = vmatpush.msra.mxu0 %v5031
    %5413 = vmatpush.msra.mxu0 %v5030
    %5414 = vmatmul.f32.gmra.mxu0 %v5396
    %v5415 = vpop.f32.mrf.mxu0
    %v5416 = vadd.f32 0.0, %v5415
    %5417 = vdwg.mxu0
    %v5418 = vld [vmem:[%s4945] sm:$0xff]
    %v5419 = vld [vmem:[%s4945 + $0x8] sm:$0xff]
    %v5420 = vld [vmem:[%s4945 + $0x10] sm:$0xff]
    %v5421 = vld [vmem:[%s4945 + $0x18] sm:$0xff]
    %v5423 = vsel %vm3864, %v5416, 0
    %5425 = vmatpush.msra.mxu0 0.0
    %5426 = vmatpush.msra.mxu0 0.0
    %5427 = vmatpush.msra.mxu0 0.0
    %5428 = vmatpush.msra.mxu0 0.0
    %5429 = vmatpush.msra.mxu0 0.0
    %5430 = vmatpush.msra.mxu0 0.0
    %5431 = vmatpush.msra.mxu0 0.0
    %5432 = vmatpush.msra.mxu0 0.0
    %5433 = vmatpush.msra.mxu0 0.0
    %5434 = vmatpush.msra.mxu0 0.0
    %5435 = vmatpush.msra.mxu0 0.0
    %5436 = vmatpush.msra.mxu0 0.0
    %5437 = vmatpush.msra.mxu0 %v5421
    %5438 = vmatpush.msra.mxu0 %v5420
    %5439 = vmatpush.msra.mxu0 %v5419
    %5440 = vmatpush.msra.mxu0 %v5418
    %5441 = vmatmul.f32.gmra.mxu0 %v5423
    %v5442 = vpop.f32.mrf.mxu0
    %v5443 = vadd.f32 0.0, %v5442
    %5444 = vdwg.mxu0
    %v5445 = vadd.f32 %v5393, %v5443
    %v5446 = vld [vmem:[%s4974] sm:$0xf]
    %v5448 = vsel %vm1562, %v5446, 0
    %5450 = vmatpush.msra.mxu0 0.0
    %5451 = vmatpush.msra.mxu0 0.0
    %5452 = vmatpush.msra.mxu0 0.0
    %5453 = vmatpush.msra.mxu0 0.0
    %5454 = vmatpush.msra.mxu0 0.0
    %5455 = vmatpush.msra.mxu0 0.0
    %5456 = vmatpush.msra.mxu0 0.0
    %5457 = vmatpush.msra.mxu0 0.0
    %5458 = vmatpush.msra.mxu0 0.0
    %5459 = vmatpush.msra.mxu0 0.0
    %5460 = vmatpush.msra.mxu0 0.0
    %5461 = vmatpush.msra.mxu0 0.0
    %5462 = vmatpush.msra.mxu0 0.0
    %5463 = vmatpush.msra.mxu0 0.0
    %5464 = vmatpush.msra.mxu0 %v5031
    %5465 = vmatpush.msra.mxu0 %v5030
    %5466 = vmatmul.f32.gmra.mxu0 %v5448
    %v5467 = vpop.f32.mrf.mxu0
    %v5468 = vadd.f32 0.0, %v5467
    %5469 = vdwg.mxu0
    %v5470 = vld [vmem:[%s4999] sm:$0xff]
    %v5471 = vld [vmem:[%s4999 + $0x8] sm:$0xff]
    %v5472 = vld [vmem:[%s4999 + $0x10] sm:$0xff]
    %v5473 = vld [vmem:[%s4999 + $0x18] sm:$0xff]
    %v5475 = vsel %vm3864, %v5468, 0
    %5477 = vmatpush.msra.mxu0 0.0
    %5478 = vmatpush.msra.mxu0 0.0
    %5479 = vmatpush.msra.mxu0 0.0
    %5480 = vmatpush.msra.mxu0 0.0
    %5481 = vmatpush.msra.mxu0 0.0
    %5482 = vmatpush.msra.mxu0 0.0
    %5483 = vmatpush.msra.mxu0 0.0
    %5484 = vmatpush.msra.mxu0 0.0
    %5485 = vmatpush.msra.mxu0 0.0
    %5486 = vmatpush.msra.mxu0 0.0
    %5487 = vmatpush.msra.mxu0 0.0
    %5488 = vmatpush.msra.mxu0 0.0
    %5489 = vmatpush.msra.mxu0 %v5473
    %5490 = vmatpush.msra.mxu0 %v5472
    %5491 = vmatpush.msra.mxu0 %v5471
    %5492 = vmatpush.msra.mxu0 %v5470
    %5493 = vmatmul.f32.gmra.mxu0 %v5475
    %v5494 = vpop.f32.mrf.mxu0
    %v5495 = vadd.f32 0.0, %v5494
    %5496 = vdwg.mxu0
    %v5497 = vadd.f32 %v5445, %v5495
    %s5498 = scalar_lea.vmem [#allocation4], 4
    %5499 = vst.msk [vmem:[%s5498] sm:$0xf] %vm5028, %v5497
    %v5500 = vld [vmem:[#allocation4] sm:$0xf]
    %v5501 = vsel %vm5028, %v5500, 0.0
    %v5502 = vrot.slane %v5501, 4
    %v5503 = vadd.f32 %v5501, %v5502
    %v5504 = vrot.slane %v5503, 2
    %v5505 = vadd.f32 %v5503, %v5504
    %v5506 = vrot.slane %v5505, 1
    %v5507 = vadd.f32 %v5505, %v5506
    %v5508 = vadd.f32 %v5507, 0.0
    %v5509 = vld [vmem:[%s5498] sm:$0xf]
    %v5510 = vsel %vm5028, %v5509, 0.0
    %v5511 = vrot.slane %v5510, 4
    %v5512 = vadd.f32 %v5510, %v5511
    %v5513 = vrot.slane %v5512, 2
    %v5514 = vadd.f32 %v5512, %v5513
    %v5515 = vrot.slane %v5514, 1
    %v5516 = vadd.f32 %v5514, %v5515
    %v5517 = vadd.f32 %v5508, %v5516
    %v5518 = vmul.f32 %v5517, 0.125
    %v5519 = vsub.f32 %v5500, %v5518
    %v5520 = vmul.f32 %v5519, %v5519
    %v5521 = vsel %vm5028, %v5520, 0.0
    %v5522 = vrot.slane %v5521, 4
    %v5523 = vadd.f32 %v5521, %v5522
    %v5524 = vrot.slane %v5523, 2
    %v5525 = vadd.f32 %v5523, %v5524
    %v5526 = vrot.slane %v5525, 1
    %v5527 = vadd.f32 %v5525, %v5526
    %v5528 = vadd.f32 %v5527, 0.0
    %v5529 = vsub.f32 %v5509, %v5518
    %v5530 = vmul.f32 %v5529, %v5529
    %v5531 = vsel %vm5028, %v5530, 0.0
    %v5532 = vrot.slane %v5531, 4
    %v5533 = vadd.f32 %v5531, %v5532
    %v5534 = vrot.slane %v5533, 2
    %v5535 = vadd.f32 %v5533, %v5534
    %v5536 = vrot.slane %v5535, 1
    %v5537 = vadd.f32 %v5535, %v5536
    %v5538 = vadd.f32 %v5528, %v5537
    %v5539 = vmul.f32 %v5538, 0.125
    %v5540 = vadd.f32 %v5539, 1e-05
    %v5541 = vrsqrt.pop %v5540
    %v5542 = vmul.f32 %v5541, %v5540
    %v5543 = vmul.f32 %v5542, %v5541
    %v5544 = vmul.f32 0.5, %v5543
    %v5545 = vsub.f32 1.5, %v5544
    %v5546 = vmul.f32 %v5541, %v5545
    %vm5547 = vweird.f32 %v5540
    %vm5548 = vweird.f32 %v5541
    %vm5549 = vmor %vm5547, %vm5548
    %v5550 = vsel %vm5549, %v5541, %v5546
    %v5551 = vld [vmem:[%s12] sm:$0x1]
    %v5552 = vmul.f32 %v5551, %v5550
    %v5553 = vld [vmem:[%s13] sm:$0x1]
    %v5554 = vmul.f32 %v5518, %v5552
    %v5555 = vsub.f32 %v5553, %v5554
    %v5557 = vperm.slane %v5552, 0
    %v5559 = vmul.f32 %v5500, %v5557
    %v5561 = vperm.slane %v5555, 0
    %v5563 = vadd.f32 %v5559, %v5561
    %v5564 = vmax.f32 %v5563, 0.0
    %5565 = vst.msk [vmem:[#allocation4] sm:$0xf] %vm5028, %v5564
    %v5566 = vld [vmem:[%s5498] sm:$0xf]
    %v5567 = vmul.f32 %v5566, %v5557
    %v5568 = vadd.f32 %v5567, %v5561
    %v5569 = vmax.f32 %v5568, 0.0
    %5570 = vst.msk [vmem:[%s5498] sm:$0xf] %vm5028, %v5569
    %v5571 = vld [vmem:[%s7] sm:$0x1]
    %v5572 = vld [vmem:[#allocation4] sm:$0xf]
    %v5574 = vsel %vm3277, %v5571, 0
    %v5577 = vsel %vm3277, %v5572, 0
    %5579 = vmatpush.xpose.msra.mxu0 0.0
    %5580 = vmatpush.xpose.msra.mxu0 0.0
    %5581 = vmatpush.xpose.msra.mxu0 0.0
    %5582 = vmatpush.xpose.msra.mxu0 0.0
    %5583 = vmatpush.xpose.msra.mxu0 0.0
    %5584 = vmatpush.xpose.msra.mxu0 0.0
    %5585 = vmatpush.xpose.msra.mxu0 0.0
    %5586 = vmatpush.xpose.msra.mxu0 0.0
    %5587 = vmatpush.xpose.msra.mxu0 0.0
    %5588 = vmatpush.xpose.msra.mxu0 0.0
    %5589 = vmatpush.xpose.msra.mxu0 0.0
    %5590 = vmatpush.xpose.msra.mxu0 0.0
    %5591 = vmatpush.xpose.msra.mxu0 0.0
    %5592 = vmatpush.xpose.msra.mxu0 0.0
    %5593 = vmatpush.xpose.msra.mxu0 0.0
    %5594 = vmatpush.xpose.msra.mxu0 %v5577
    %5595 = vmatmul.f32.gmra.mxu0 %v5574
    %v5596 = vpop.f32.mrf.mxu0
    %v5597 = vadd.f32 0.0, %v5596
    %5598 = vdwg.mxu0
    %v5599 = vld [vmem:[%s3] sm:$0xff]
    %5601 = vst [vmem:[#allocation1] ss:$2 sm:$0xff] %v5599
    %v5602 = vld.sshfl [vmem:[#allocation1] sm:$0xff pattern:$0x75316420]
    %v5603 = vld.sshfl [vmem:[#allocation1 + $0x8] sm:$0xff pattern:$0x75316420]
    %vm5604 = vcmask 31744
    %v5606 = vsel %vm5604, %v5597, 0
    %vm5608 = vcmask 1043456
    %v5609 = vsel %vm5608, %v5602, 0
    %v5611 = vsel %vm5608, %v5603, 0
    %5613 = vmatpush.msra.mxu0 0.0
    %5614 = vmatpush.msra.mxu0 0.0
    %5615 = vmatpush.msra.mxu0 0.0
    %5616 = vmatpush.msra.mxu0 0.0
    %5617 = vmatpush.msra.mxu0 0.0
    %5618 = vmatpush.msra.mxu0 0.0
    %5619 = vmatpush.msra.mxu0 0.0
    %5620 = vmatpush.msra.mxu0 0.0
    %5621 = vmatpush.msra.mxu0 0.0
    %5622 = vmatpush.msra.mxu0 0.0
    %5623 = vmatpush.msra.mxu0 0.0
    %5624 = vmatpush.msra.mxu0 0.0
    %5625 = vmatpush.msra.mxu0 0.0
    %5626 = vmatpush.msra.mxu0 0.0
    %5627 = vmatpush.msra.mxu0 0.0
    %5628 = vmatpush.msra.mxu0 %v5609
    %5629 = vmatmul.f32.gmra.mxu0 %v5606
    %v5630 = vpop.f32.mrf.mxu0
    %v5631 = vadd.f32 0.0, %v5630
    %5632 = vdwg.mxu0
    %5633 = vmatpush.msra.mxu0 0.0
    %5634 = vmatpush.msra.mxu0 0.0
    %5635 = vmatpush.msra.mxu0 0.0
    %5636 = vmatpush.msra.mxu0 0.0
    %5637 = vmatpush.msra.mxu0 0.0
    %5638 = vmatpush.msra.mxu0 0.0
    %5639 = vmatpush.msra.mxu0 0.0
    %5640 = vmatpush.msra.mxu0 0.0
    %5641 = vmatpush.msra.mxu0 0.0
    %5642 = vmatpush.msra.mxu0 0.0
    %5643 = vmatpush.msra.mxu0 0.0
    %5644 = vmatpush.msra.mxu0 0.0
    %5645 = vmatpush.msra.mxu0 0.0
    %5646 = vmatpush.msra.mxu0 0.0
    %5647 = vmatpush.msra.mxu0 0.0
    %5648 = vmatpush.msra.mxu0 %v5611
    %5649 = vmatmul.f32.gmra.mxu0 %v5606
    %v5650 = vpop.f32.mrf.mxu0
    %v5651 = vadd.f32 0.0, %v5650
    %5652 = vdwg.mxu0
    %v5655 = vrot.slane %v5651, 7
    %vm5656 = vcmask 1040384
    %v5657 = vsel %vm5656, %v5631, %v5655
    %v5659 = vlaneseq
    %vm5660 = vcmp.ge.s32.totalorder %v5659, 0
    %vm5661 = vcmp.lt.s32.totalorder %v5659, 256
    %vm5662 = vmand %vm5660, %vm5661
    %5663 = vst.msk [vmem:[%s17] sm:$0x3] %vm5662, %v5657
    %v5664 = vld [vmem:[%s7] sm:$0x1]
    %v5665 = vld [vmem:[%s5498] sm:$0xf]
    %v5667 = vsel %vm3277, %v5664, 0
    %v5670 = vsel %vm3277, %v5665, 0
    %5672 = vmatpush.xpose.msra.mxu0 0.0
    %5673 = vmatpush.xpose.msra.mxu0 0.0
    %5674 = vmatpush.xpose.msra.mxu0 0.0
    %5675 = vmatpush.xpose.msra.mxu0 0.0
    %5676 = vmatpush.xpose.msra.mxu0 0.0
    %5677 = vmatpush.xpose.msra.mxu0 0.0
    %5678 = vmatpush.xpose.msra.mxu0 0.0
    %5679 = vmatpush.xpose.msra.mxu0 0.0
    %5680 = vmatpush.xpose.msra.mxu0 0.0
    %5681 = vmatpush.xpose.msra.mxu0 0.0
    %5682 = vmatpush.xpose.msra.mxu0 0.0
    %5683 = vmatpush.xpose.msra.mxu0 0.0
    %5684 = vmatpush.xpose.msra.mxu0 0.0
    %5685 = vmatpush.xpose.msra.mxu0 0.0
    %5686 = vmatpush.xpose.msra.mxu0 0.0
    %5687 = vmatpush.xpose.msra.mxu0 %v5670
    %5688 = vmatmul.f32.gmra.mxu0 %v5667
    %v5689 = vpop.f32.mrf.mxu0
    %v5690 = vadd.f32 0.0, %v5689
    %5691 = vdwg.mxu0
    %v5692 = vld [vmem:[%s3] sm:$0xff]
    %5694 = vst [vmem:[#allocation1] ss:$2 sm:$0xff] %v5692
    %v5695 = vld.sshfl [vmem:[#allocation1] sm:$0xff pattern:$0x75316420]
    %v5696 = vld.sshfl [vmem:[#allocation1 + $0x8] sm:$0xff pattern:$0x75316420]
    %v5698 = vsel %vm5604, %v5690, 0
    %v5700 = vsel %vm5608, %v5695, 0
    %v5702 = vsel %vm5608, %v5696, 0
    %5704 = vmatpush.msra.mxu0 0.0
    %5705 = vmatpush.msra.mxu0 0.0
    %5706 = vmatpush.msra.mxu0 0.0
    %5707 = vmatpush.msra.mxu0 0.0
    %5708 = vmatpush.msra.mxu0 0.0
    %5709 = vmatpush.msra.mxu0 0.0
    %5710 = vmatpush.msra.mxu0 0.0
    %5711 = vmatpush.msra.mxu0 0.0
    %5712 = vmatpush.msra.mxu0 0.0
    %5713 = vmatpush.msra.mxu0 0.0
    %5714 = vmatpush.msra.mxu0 0.0
    %5715 = vmatpush.msra.mxu0 0.0
    %5716 = vmatpush.msra.mxu0 0.0
    %5717 = vmatpush.msra.mxu0 0.0
    %5718 = vmatpush.msra.mxu0 0.0
    %5719 = vmatpush.msra.mxu0 %v5700
    %5720 = vmatmul.f32.gmra.mxu0 %v5698
    %v5721 = vpop.f32.mrf.mxu0
    %v5722 = vadd.f32 0.0, %v5721
    %5723 = vdwg.mxu0
    %5724 = vmatpush.msra.mxu0 0.0
    %5725 = vmatpush.msra.mxu0 0.0
    %5726 = vmatpush.msra.mxu0 0.0
    %5727 = vmatpush.msra.mxu0 0.0
    %5728 = vmatpush.msra.mxu0 0.0
    %5729 = vmatpush.msra.mxu0 0.0
    %5730 = vmatpush.msra.mxu0 0.0
    %5731 = vmatpush.msra.mxu0 0.0
    %5732 = vmatpush.msra.mxu0 0.0
    %5733 = vmatpush.msra.mxu0 0.0
    %5734 = vmatpush.msra.mxu0 0.0
    %5735 = vmatpush.msra.mxu0 0.0
    %5736 = vmatpush.msra.mxu0 0.0
    %5737 = vmatpush.msra.mxu0 0.0
    %5738 = vmatpush.msra.mxu0 0.0
    %5739 = vmatpush.msra.mxu0 %v5702
    %5740 = vmatmul.f32.gmra.mxu0 %v5698
    %v5741 = vpop.f32.mrf.mxu0
    %v5742 = vadd.f32 0.0, %v5741
    %5743 = vdwg.mxu0
    %v5746 = vrot.slane %v5742, 7
    %v5747 = vsel %vm5656, %v5722, %v5746
    %s5749 = scalar_lea.vmem %s17, 2
    %5750 = vst.msk [vmem:[%s5749] sm:$0x3] %vm5662, %v5747
    %v5751 = vld [vmem:[%s17] sm:$0x3]
    %v5753 = vperm.slane %v5751, 0
    %v5754 = vperm.slane %v5751, 1
    %v5757 = vsel %vm5656, %v5753, 0.0
    %v5758 = vsel %vm5656, %v5754, 0.0
    %v5759 = vadd.f32 %v5757, %v5758
    %5760 = vadd.xlane.f32.xlu0 %v5759
    %v5761 = vpop.xlane.xlu0 %5760
    %v5762 = vadd.f32 %v5761, 0.0
    %v5763 = vld [vmem:[%s5749] sm:$0x3]
    %v5765 = vperm.slane %v5763, 0
    %v5766 = vperm.slane %v5763, 1
    %v5769 = vsel %vm5656, %v5765, 0.0
    %v5770 = vsel %vm5656, %v5766, 0.0
    %v5771 = vadd.f32 %v5769, %v5770
    %5772 = vadd.xlane.f32.xlu0 %v5771
    %v5773 = vpop.xlane.xlu0 %5772
    %v5774 = vadd.f32 %v5762, %v5773
    %v5775 = vmul.f32 %v5774, 0.001953125
    %v5777 = vperm.slane %v5775, 0
    %v5779 = vsub.f32 %v5751, %v5777
    %v5780 = vmul.f32 %v5779, %v5779
    %v5782 = vperm.slane %v5780, 0
    %v5783 = vperm.slane %v5780, 1
    %v5786 = vsel %vm5656, %v5782, 0.0
    %v5787 = vsel %vm5656, %v5783, 0.0
    %v5788 = vadd.f32 %v5786, %v5787
    %5789 = vadd.xlane.f32.xlu0 %v5788
    %v5790 = vpop.xlane.xlu0 %5789
    %v5791 = vadd.f32 %v5790, 0.0
    %v5792 = vsub.f32 %v5763, %v5777
    %v5793 = vmul.f32 %v5792, %v5792
    %v5795 = vperm.slane %v5793, 0
    %v5796 = vperm.slane %v5793, 1
    %v5799 = vsel %vm5656, %v5795, 0.0
    %v5800 = vsel %vm5656, %v5796, 0.0
    %v5801 = vadd.f32 %v5799, %v5800
    %5802 = vadd.xlane.f32.xlu0 %v5801
    %v5803 = vpop.xlane.xlu0 %5802
    %v5804 = vadd.f32 %v5791, %v5803
    %v5805 = vmul.f32 %v5804, 0.001953125
    %v5806 = vadd.f32 %v5805, 1e-05
    %v5807 = vrsqrt.pop %v5806
    %v5808 = vmul.f32 %v5807, %v5806
    %v5809 = vmul.f32 %v5808, %v5807
    %v5810 = vmul.f32 0.5, %v5809
    %v5811 = vsub.f32 1.5, %v5810
    %v5812 = vmul.f32 %v5807, %v5811
    %vm5813 = vweird.f32 %v5806
    %vm5814 = vweird.f32 %v5807
    %vm5815 = vmor %vm5813, %vm5814
    %v5816 = vsel %vm5815, %v5807, %v5812
    %v5817 = vld [vmem:[#allocation5] sm:$0x1]
    %v5818 = vmul.f32 %v5817, %v5816
    %v5819 = vld [vmem:[#allocation6] sm:$0x1]
    %v5820 = vmul.f32 %v5775, %v5818
    %v5821 = vsub.f32 %v5819, %v5820
    %5823 = vset.pattern.permute.xlu0 0
    %5824 = vperm.xlu0 %5823, %v5818
    %v5825 = vpop.permute.xlu0 %5824
    %v5827 = vperm.slane %v5825, 0
    %v5828 = vmul.f32 %v5751, %v5827
    %5830 = vset.pattern.permute.xlu0 0
    %5831 = vperm.xlu0 %5830, %v5821
    %v5832 = vpop.permute.xlu0 %5831
    %v5834 = vperm.slane %v5832, 0
    %v5835 = vadd.f32 %v5828, %v5834
    %v5836 = vmax.f32 %v5835, 0.0
    %5837 = vst.msk [vmem:[%s17] sm:$0x3] %vm5662, %v5836
    %v5838 = vld [vmem:[%s5749] sm:$0x3]
    %v5839 = vmul.f32 %v5838, %v5827
    %v5840 = vadd.f32 %v5839, %v5834
    %v5841 = vmax.f32 %v5840, 0.0
    %5842 = vst.msk [vmem:[%s5749] sm:$0x3] %vm5662, %v5841
    // Predicated region
    $region78: #{encdec_forward.1} parent=1 // pred_check
      _
    $region79: #{encdec_forward.1} parent=1 // pred_check_branch
      %5844 = sbr.rel (0) target = $region81
    $region80: #{encdec_forward.1} parent=1 // pred_region
      _
    $region81: #{encdec_forward.1} parent=1 // pred_fallthru
      _
    // Predicated region
    $region82: #{encdec_forward.1} parent=1 // pred_check
      _
    $region83: #{encdec_forward.1} parent=1 // pred_check_branch
      %5846 = sbr.rel (0) target = $region85
    $region84: #{encdec_forward.1} parent=1 // pred_region
      _
    $region85: #{encdec_forward.1} parent=1 // pred_fallthru
      _
    %5847 = vsyncpa [#allocation8], 1
    %5848 = vsyncpa [#allocation10], 1

</llo_original>
